<compile_context>
chip_gen: v7x
topology: tpu7x:2x2x1
jax: 0.10.0
libtpu: 0.0.40
codegen_flags: <defaults>
</compile_context>

<pallas_src>
import functools

import jax
import jax.numpy as jnp
from jax import lax
from jax.experimental import pallas as pl
from jax.experimental.pallas import tpu as pltpu


def _fused_conv_kernel(w_ref, b_ref, x_ref, o_ref, *, KH, KW, Wp, OL):
    # w_ref: (KH*KW, Cout, Cin)  per-tap weight matrices (resident across grid)
    # b_ref: (Cout, 1)           bias column (resident)
    # x_ref: (1, Cin, Lp)        flattened zero-padded image (+1 guard row)
    # o_ref: (1, Cout, OL)       OL = OH1 * Wp (stride-1 output rows, padded width)
    acc = None
    for t in range(KH * KW):            # static unroll over the taps
        i, j = divmod(t, KW)
        # Contiguous shifted slice = the im2col row for tap (i, j), built on-chip.
        x_tap = x_ref[0, :, pl.ds(i * Wp + j, OL)]          # (Cin, OL)
        w_t = w_ref[t]                                       # (Cout, Cin)
        c = jnp.dot(w_t, x_tap,
                    precision=lax.Precision.HIGHEST,
                    preferred_element_type=jnp.float32)      # (Cout, OL)
        acc = c if acc is None else acc + c
    acc = acc + b_ref[...]                                   # bias over lanes
    # LeakyReLU (PyTorch default negative_slope = 0.01): max(a, 0.01*a).
    o_ref[0] = jnp.maximum(acc, 0.01 * acc).astype(o_ref.dtype)


def conv_layer_2d(x, weight, bias, *, stride=(1, 1), padding=(1, 1)):
    """Conv2d(NCHW) + bias + LeakyReLU with im2col fused into a Pallas TPU kernel.

    x:      [N, Cin, H, W]      float32
    weight: [Cout, Cin, KH, KW]
    bias:   [Cout]
    """
    if isinstance(stride, int):
        stride = (stride, stride)
    if isinstance(padding, int):
        padding = (padding, padding)

    N, Cin, H, W = x.shape
    Cout, Cin_w, KH, KW = weight.shape
    assert Cin_w == Cin
    sh, sw = stride
    ph, pw = padding

    Hp, Wp = H + 2 * ph, W + 2 * pw
    OH1, OW1 = Hp - KH + 1, Wp - KW + 1          # stride-1 output extents
    assert OH1 >= 1 and OW1 >= 1, "kernel larger than padded input"
    OH, OW = (OH1 - 1) // sh + 1, (OW1 - 1) // sw + 1
    OL = OH1 * Wp                                # output lanes per image

    # Zero-pad spatially; one extra bottom guard row so the deepest tap's
    # contiguous slice (start (KH-1)*Wp + KW-1, length OL) never reads OOB.
    xp = jnp.pad(x.astype(jnp.float32),
                 ((0, 0), (0, 0), (ph, ph + 1), (pw, pw)))
    Lp = (Hp + 1) * Wp
    xflat = xp.reshape(N, Cin, Lp)

    # Per-tap weight matrices: (KH*KW, Cout, Cin); bias as a lane-broadcast column.
    w9 = jnp.transpose(weight.astype(jnp.float32), (2, 3, 0, 1)).reshape(KH * KW, Cout, Cin)
    bcol = bias.astype(jnp.float32).reshape(Cout, 1)

    # VMEM budget: double-buffered input + output blocks plus small headroom.
    vmem_needed = 2 * 4 * (Cin * Lp + Cout * OL) + (2 << 20)
    vmem_limit = int(min(max(32 << 20, vmem_needed), 96 << 20))

    kernel = functools.partial(_fused_conv_kernel, KH=KH, KW=KW, Wp=Wp, OL=OL)
    out = pl.pallas_call(
        kernel,
        out_shape=jax.ShapeDtypeStruct((N, Cout, OL), jnp.float32),
        grid_spec=pltpu.PrefetchScalarGridSpec(
            num_scalar_prefetch=0,
            grid=(N,),
            in_specs=[
                pl.BlockSpec((KH * KW, Cout, Cin), lambda n: (0, 0, 0)),  # weights
                pl.BlockSpec((Cout, 1), lambda n: (0, 0)),                # bias
                pl.BlockSpec((1, Cin, Lp), lambda n: (n, 0, 0)),          # padded image
            ],
            out_specs=pl.BlockSpec((1, Cout, OL), lambda n: (n, 0, 0)),
        ),
        compiler_params=pltpu.CompilerParams(
            dimension_semantics=("parallel",),
            vmem_limit_bytes=vmem_limit,
        ),
    )(w9, bcol, xflat)

    # (N, Cout, OH1*Wp) -> drop wrap-around columns -> apply stride.
    # This is already N-major / NCHW; no transpose pass over the output.
    y1 = out.reshape(N, Cout, OH1, Wp)[:, :, :, :OW1]
    y = y1[:, :, ::sh, ::sw]
    assert y.shape == (N, Cout, OH, OW)
    return y


def _reference(x, weight, bias, stride, padding):
    y = lax.conv_general_dilated(
        x, weight, window_strides=stride,
        padding=[(padding[0], padding[0]), (padding[1], padding[1])],
        dimension_numbers=("NCHW", "OIHW", "NCHW"),
        precision=lax.Precision.HIGHEST)
    y = y + bias.reshape(1, -1, 1, 1)
    return jnp.where(y > 0, y, 0.01 * y)


if __name__ == "__main__":
    # ConvLayer2D(in_channels=4, out_channels=8, kernel_size=3, stride=1,
    #             padding=1, activation='LeakyReLU', norm=None, sn=False)
    N, Cin, H, W = 2, 4, 16, 16
    Cout, KH, KW = 8, 3, 3
    stride, padding = (1, 1), (1, 1)

    key = jax.random.PRNGKey(0)
    kx, kw, kb = jax.random.split(key, 3)
    x = jax.random.normal(kx, (N, Cin, H, W), dtype=jnp.float32)
    # Deterministic, PyTorch-default-like (uniform in +/- 1/sqrt(fan_in)) init.
    fan_in = Cin * KH * KW
    bound = 1.0 / (fan_in ** 0.5)
    weight = jax.random.uniform(kw, (Cout, Cin, KH, KW), jnp.float32, -bound, bound)
    bias = jax.random.uniform(kb, (Cout,), jnp.float32, -bound, bound)

    fn = jax.jit(functools.partial(conv_layer_2d, stride=stride, padding=padding))
    out = fn(x, weight, bias)
    jax.block_until_ready(out)

    ref = _reference(x, weight, bias, stride, padding)
    assert out.shape == (N, Cout, H, W), out.shape
    err = float(jnp.max(jnp.abs(out - ref)))
    assert jnp.allclose(out, ref, atol=1e-4, rtol=1e-4), err

    print("KERNEL_OK")
</pallas_src>

<mosaic_0001>
module attributes {stable_mosaic.version = 11 : i64} {
  func.func @_fused_conv_kernel(%arg0: i32, %arg1: memref<9x8x4xf32, #tpu.memory_space<vmem>>, %arg2: memref<8x1xf32, #tpu.memory_space<vmem>>, %arg3: memref<1x4x342xf32, #tpu.memory_space<vmem>>, %arg4: memref<1x8x288xf32, #tpu.memory_space<vmem>>) attributes {dimension_semantics = [#tpu.dimension_semantics<parallel>], iteration_bounds = array<i64: 2>, scalar_prefetch = 0 : i64, scratch_operands = 0 : i64, tpu.core_type = #tpu.core_type<tc>, window_params = [{pipeline_mode = #tpu.pipeline_mode<synchronous>, transform_indices = @transform_0, window_bounds = array<i64: 9, 8, 4>}, {pipeline_mode = #tpu.pipeline_mode<synchronous>, transform_indices = @transform_1, window_bounds = array<i64: 8, 1>}, {transform_indices = @transform_2, window_bounds = array<i64: 1, 4, 342>}, {transform_indices = @transform_3, window_bounds = array<i64: 1, 8, 288>}]} {
    %c0 = arith.constant 0 : index
    %c0_0 = arith.constant 0 : index
    %c0_1 = arith.constant 0 : index
    %0 = vector.load %arg3[%c0, %c0_0, %c0_1] : memref<1x4x342xf32, #tpu.memory_space<vmem>>, vector<1x4x288xf32>
    %1 = vector.shape_cast %0 : vector<1x4x288xf32> to vector<4x288xf32>
    %c0_2 = arith.constant 0 : index
    %c0_3 = arith.constant 0 : index
    %c0_4 = arith.constant 0 : index
    %2 = vector.load %arg1[%c0_2, %c0_3, %c0_4] : memref<9x8x4xf32, #tpu.memory_space<vmem>>, vector<1x8x4xf32>
    %3 = vector.shape_cast %2 : vector<1x8x4xf32> to vector<8x4xf32>
    %cst = arith.constant dense<0.000000e+00> : vector<8x288xf32>
    %4 = tpu.matmul %3, %1, %cst {dimension_numbers = #tpu.dot_dimension_numbers<[1], [0], [0], [1], [0, 0, 1, 1], [], []>, precision = #tpu.contract_precision<fp32>} : vector<8x4xf32>, vector<4x288xf32>, vector<8x288xf32> -> vector<8x288xf32>
    %c0_5 = arith.constant 0 : index
    %c0_6 = arith.constant 0 : index
    %c1 = arith.constant 1 : index
    %5 = vector.load %arg3[%c0_5, %c0_6, %c1] : memref<1x4x342xf32, #tpu.memory_space<vmem>>, vector<1x4x288xf32>
    %6 = vector.shape_cast %5 : vector<1x4x288xf32> to vector<4x288xf32>
    %c1_7 = arith.constant 1 : index
    %c0_8 = arith.constant 0 : index
    %c0_9 = arith.constant 0 : index
    %7 = vector.load %arg1[%c1_7, %c0_8, %c0_9] : memref<9x8x4xf32, #tpu.memory_space<vmem>>, vector<1x8x4xf32>
    %8 = vector.shape_cast %7 : vector<1x8x4xf32> to vector<8x4xf32>
    %cst_10 = arith.constant dense<0.000000e+00> : vector<8x288xf32>
    %9 = tpu.matmul %8, %6, %cst_10 {dimension_numbers = #tpu.dot_dimension_numbers<[1], [0], [0], [1], [0, 0, 1, 1], [], []>, precision = #tpu.contract_precision<fp32>} : vector<8x4xf32>, vector<4x288xf32>, vector<8x288xf32> -> vector<8x288xf32>
    %10 = arith.addf %4, %9 : vector<8x288xf32>
    %c0_11 = arith.constant 0 : index
    %c0_12 = arith.constant 0 : index
    %c2 = arith.constant 2 : index
    %11 = vector.load %arg3[%c0_11, %c0_12, %c2] : memref<1x4x342xf32, #tpu.memory_space<vmem>>, vector<1x4x288xf32>
    %12 = vector.shape_cast %11 : vector<1x4x288xf32> to vector<4x288xf32>
    %c2_13 = arith.constant 2 : index
    %c0_14 = arith.constant 0 : index
    %c0_15 = arith.constant 0 : index
    %13 = vector.load %arg1[%c2_13, %c0_14, %c0_15] : memref<9x8x4xf32, #tpu.memory_space<vmem>>, vector<1x8x4xf32>
    %14 = vector.shape_cast %13 : vector<1x8x4xf32> to vector<8x4xf32>
    %cst_16 = arith.constant dense<0.000000e+00> : vector<8x288xf32>
    %15 = tpu.matmul %14, %12, %cst_16 {dimension_numbers = #tpu.dot_dimension_numbers<[1], [0], [0], [1], [0, 0, 1, 1], [], []>, precision = #tpu.contract_precision<fp32>} : vector<8x4xf32>, vector<4x288xf32>, vector<8x288xf32> -> vector<8x288xf32>
    %16 = arith.addf %10, %15 : vector<8x288xf32>
    %c0_17 = arith.constant 0 : index
    %c0_18 = arith.constant 0 : index
    %c18 = arith.constant 18 : index
    %17 = vector.load %arg3[%c0_17, %c0_18, %c18] : memref<1x4x342xf32, #tpu.memory_space<vmem>>, vector<1x4x288xf32>
    %18 = vector.shape_cast %17 : vector<1x4x288xf32> to vector<4x288xf32>
    %c3 = arith.constant 3 : index
    %c0_19 = arith.constant 0 : index
    %c0_20 = arith.constant 0 : index
    %19 = vector.load %arg1[%c3, %c0_19, %c0_20] : memref<9x8x4xf32, #tpu.memory_space<vmem>>, vector<1x8x4xf32>
    %20 = vector.shape_cast %19 : vector<1x8x4xf32> to vector<8x4xf32>
    %cst_21 = arith.constant dense<0.000000e+00> : vector<8x288xf32>
    %21 = tpu.matmul %20, %18, %cst_21 {dimension_numbers = #tpu.dot_dimension_numbers<[1], [0], [0], [1], [0, 0, 1, 1], [], []>, precision = #tpu.contract_precision<fp32>} : vector<8x4xf32>, vector<4x288xf32>, vector<8x288xf32> -> vector<8x288xf32>
    %22 = arith.addf %16, %21 : vector<8x288xf32>
    %c0_22 = arith.constant 0 : index
    %c0_23 = arith.constant 0 : index
    %c19 = arith.constant 19 : index
    %23 = vector.load %arg3[%c0_22, %c0_23, %c19] : memref<1x4x342xf32, #tpu.memory_space<vmem>>, vector<1x4x288xf32>
    %24 = vector.shape_cast %23 : vector<1x4x288xf32> to vector<4x288xf32>
    %c4 = arith.constant 4 : index
    %c0_24 = arith.constant 0 : index
    %c0_25 = arith.constant 0 : index
    %25 = vector.load %arg1[%c4, %c0_24, %c0_25] : memref<9x8x4xf32, #tpu.memory_space<vmem>>, vector<1x8x4xf32>
    %26 = vector.shape_cast %25 : vector<1x8x4xf32> to vector<8x4xf32>
    %cst_26 = arith.constant dense<0.000000e+00> : vector<8x288xf32>
    %27 = tpu.matmul %26, %24, %cst_26 {dimension_numbers = #tpu.dot_dimension_numbers<[1], [0], [0], [1], [0, 0, 1, 1], [], []>, precision = #tpu.contract_precision<fp32>} : vector<8x4xf32>, vector<4x288xf32>, vector<8x288xf32> -> vector<8x288xf32>
    %28 = arith.addf %22, %27 : vector<8x288xf32>
    %c0_27 = arith.constant 0 : index
    %c0_28 = arith.constant 0 : index
    %c20 = arith.constant 20 : index
    %29 = vector.load %arg3[%c0_27, %c0_28, %c20] : memref<1x4x342xf32, #tpu.memory_space<vmem>>, vector<1x4x288xf32>
    %30 = vector.shape_cast %29 : vector<1x4x288xf32> to vector<4x288xf32>
    %c5 = arith.constant 5 : index
    %c0_29 = arith.constant 0 : index
    %c0_30 = arith.constant 0 : index
    %31 = vector.load %arg1[%c5, %c0_29, %c0_30] : memref<9x8x4xf32, #tpu.memory_space<vmem>>, vector<1x8x4xf32>
    %32 = vector.shape_cast %31 : vector<1x8x4xf32> to vector<8x4xf32>
    %cst_31 = arith.constant dense<0.000000e+00> : vector<8x288xf32>
    %33 = tpu.matmul %32, %30, %cst_31 {dimension_numbers = #tpu.dot_dimension_numbers<[1], [0], [0], [1], [0, 0, 1, 1], [], []>, precision = #tpu.contract_precision<fp32>} : vector<8x4xf32>, vector<4x288xf32>, vector<8x288xf32> -> vector<8x288xf32>
    %34 = arith.addf %28, %33 : vector<8x288xf32>
    %c0_32 = arith.constant 0 : index
    %c0_33 = arith.constant 0 : index
    %c36 = arith.constant 36 : index
    %35 = vector.load %arg3[%c0_32, %c0_33, %c36] : memref<1x4x342xf32, #tpu.memory_space<vmem>>, vector<1x4x288xf32>
    %36 = vector.shape_cast %35 : vector<1x4x288xf32> to vector<4x288xf32>
    %c6 = arith.constant 6 : index
    %c0_34 = arith.constant 0 : index
    %c0_35 = arith.constant 0 : index
    %37 = vector.load %arg1[%c6, %c0_34, %c0_35] : memref<9x8x4xf32, #tpu.memory_space<vmem>>, vector<1x8x4xf32>
    %38 = vector.shape_cast %37 : vector<1x8x4xf32> to vector<8x4xf32>
    %cst_36 = arith.constant dense<0.000000e+00> : vector<8x288xf32>
    %39 = tpu.matmul %38, %36, %cst_36 {dimension_numbers = #tpu.dot_dimension_numbers<[1], [0], [0], [1], [0, 0, 1, 1], [], []>, precision = #tpu.contract_precision<fp32>} : vector<8x4xf32>, vector<4x288xf32>, vector<8x288xf32> -> vector<8x288xf32>
    %40 = arith.addf %34, %39 : vector<8x288xf32>
    %c0_37 = arith.constant 0 : index
    %c0_38 = arith.constant 0 : index
    %c37 = arith.constant 37 : index
    %41 = vector.load %arg3[%c0_37, %c0_38, %c37] : memref<1x4x342xf32, #tpu.memory_space<vmem>>, vector<1x4x288xf32>
    %42 = vector.shape_cast %41 : vector<1x4x288xf32> to vector<4x288xf32>
    %c7 = arith.constant 7 : index
    %c0_39 = arith.constant 0 : index
    %c0_40 = arith.constant 0 : index
    %43 = vector.load %arg1[%c7, %c0_39, %c0_40] : memref<9x8x4xf32, #tpu.memory_space<vmem>>, vector<1x8x4xf32>
    %44 = vector.shape_cast %43 : vector<1x8x4xf32> to vector<8x4xf32>
    %cst_41 = arith.constant dense<0.000000e+00> : vector<8x288xf32>
    %45 = tpu.matmul %44, %42, %cst_41 {dimension_numbers = #tpu.dot_dimension_numbers<[1], [0], [0], [1], [0, 0, 1, 1], [], []>, precision = #tpu.contract_precision<fp32>} : vector<8x4xf32>, vector<4x288xf32>, vector<8x288xf32> -> vector<8x288xf32>
    %46 = arith.addf %40, %45 : vector<8x288xf32>
    %c0_42 = arith.constant 0 : index
    %c0_43 = arith.constant 0 : index
    %c38 = arith.constant 38 : index
    %47 = vector.load %arg3[%c0_42, %c0_43, %c38] : memref<1x4x342xf32, #tpu.memory_space<vmem>>, vector<1x4x288xf32>
    %48 = vector.shape_cast %47 : vector<1x4x288xf32> to vector<4x288xf32>
    %c8 = arith.constant 8 : index
    %c0_44 = arith.constant 0 : index
    %c0_45 = arith.constant 0 : index
    %49 = vector.load %arg1[%c8, %c0_44, %c0_45] : memref<9x8x4xf32, #tpu.memory_space<vmem>>, vector<1x8x4xf32>
    %50 = vector.shape_cast %49 : vector<1x8x4xf32> to vector<8x4xf32>
    %cst_46 = arith.constant dense<0.000000e+00> : vector<8x288xf32>
    %51 = tpu.matmul %50, %48, %cst_46 {dimension_numbers = #tpu.dot_dimension_numbers<[1], [0], [0], [1], [0, 0, 1, 1], [], []>, precision = #tpu.contract_precision<fp32>} : vector<8x4xf32>, vector<4x288xf32>, vector<8x288xf32> -> vector<8x288xf32>
    %52 = arith.addf %46, %51 : vector<8x288xf32>
    %c0_47 = arith.constant 0 : index
    %c0_48 = arith.constant 0 : index
    %53 = vector.load %arg2[%c0_47, %c0_48] : memref<8x1xf32, #tpu.memory_space<vmem>>, vector<8x1xf32>
    %54 = vector.broadcast %53 : vector<8x1xf32> to vector<8x288xf32>
    %55 = arith.addf %52, %54 : vector<8x288xf32>
    %cst_49 = arith.constant 0.00999999977 : f32
    %56 = vector.broadcast %cst_49 : f32 to vector<8x288xf32>
    %57 = arith.mulf %56, %55 : vector<8x288xf32>
    %58 = arith.maximumf %55, %57 : vector<8x288xf32>
    %c0_50 = arith.constant 0 : index
    %c0_51 = arith.constant 0 : index
    %c0_52 = arith.constant 0 : index
    %59 = vector.load %arg4[%c0_50, %c0_51, %c0_52] : memref<1x8x288xf32, #tpu.memory_space<vmem>>, vector<1x8x288xf32>
    %60 = vector.shape_cast %59 : vector<1x8x288xf32> to vector<8x288xf32>
    %61 = vector.shape_cast %58 : vector<8x288xf32> to vector<1x8x288xf32>
    tpu.vector_store %arg4[%c0_50, %c0_51, %c0_52], %61 {strides = array<i32>} : memref<1x8x288xf32, #tpu.memory_space<vmem>>, vector<1x8x288xf32>,
    return
  }
  func.func @transform_0(%arg0: i32) -> (i32, i32, i32) {
    %c0_i32 = arith.constant 0 : i32
    %c0_i32_0 = arith.constant 0 : i32
    %c0_i32_1 = arith.constant 0 : i32
    %c0_i32_2 = arith.constant 0 : i32
    return %c0_i32, %c0_i32_0, %c0_i32_1 : i32, i32, i32
  }
  func.func @transform_1(%arg0: i32) -> (i32, i32) {
    %c0_i32 = arith.constant 0 : i32
    %c0_i32_0 = arith.constant 0 : i32
    %c0_i32_1 = arith.constant 0 : i32
    return %c0_i32, %c0_i32_0 : i32, i32
  }
  func.func @transform_2(%arg0: i32) -> (i32, i32, i32) {
    %c0_i32 = arith.constant 0 : i32
    %c0_i32_0 = arith.constant 0 : i32
    %c0_i32_1 = arith.constant 0 : i32
    return %arg0, %c0_i32, %c0_i32_0 : i32, i32, i32
  }
  func.func @transform_3(%arg0: i32) -> (i32, i32, i32) {
    %c0_i32 = arith.constant 0 : i32
    %c0_i32_0 = arith.constant 0 : i32
    %c0_i32_1 = arith.constant 0 : i32
    return %arg0, %c0_i32, %c0_i32_0 : i32, i32, i32
  }
}

</mosaic_0001>

<llo_original>
// kernel: conv_layer_2d.1
$region0: #{conv_layer_2d.1}
  #allocation0 [shape = 'u32[]', space=smem, size = 0x4, offset = 0x4, fixed_abs, tag = 'smem constant byte address 0x4 - core index']
  #allocation1 [shape = 'u32[144,128]{1,0:T(1,128)}', space=vmem, size = 0x12000, scoped, tag = 'internal scratch']
  %s0 = inlined_call_operand.vmem [shape: f32[9,8,4], index: 0, kind: input, shape index: {}]
  %s1 = inlined_call_operand.vmem [shape: f32[8,1], index: 1, kind: input, shape index: {}]
  %s2 = inlined_call_operand.vmem [shape: f32[2,4,342], index: 2, kind: input, shape index: {}]
  %s3 = inlined_call_operand.vmem [shape: f32[2,8,288], index: 3, kind: output, shape index: {}]
  %s4 = sld [smem:[#allocation0]]
  $region45: #{conv_layer_2d.1} parent=0
    _
  %s6 = ssub.s32 1, %s4
  %s7 = scalar_select 0, %s6, %s4
  loop: start=0, step=1, limit=4
  $region2: #{conv_layer_2d.1} parent=0 // loop_pre_header
    _
  $region3: #{conv_layer_2d.1} parent=0 // loop_header
    %s9 = sphi 0, %s13
    %p10 = scmp.ge.s32.totalorder %s9, 4
    %s17 = sphi 0, %s17
    %s19 = sphi 0, %s17
    %s20 = sphi 0, %s19
    %s34 = sphi 0, %s20
    %s38 = sphi 0, %s38
    %s40 = sphi 0, %s38
    %s41 = sphi 0, %s40
    %s55 = sphi 0, %s41
    %s61 = sphi 0, %s63
    %s64 = sphi 0, %s61
    %s65 = sphi 0, %s64
    %s81 = sphi 0, %s65
    %s87 = sphi 0, %s89
    %s90 = sphi 0, %s87
    %s91 = sphi 0, %s90
    %s107 = sphi 0, %s91
  $region4: #{conv_layer_2d.1} parent=0 // loop_header_branch
    %12 = sbr.rel (%p10) target = $region8
  $region5: #{conv_layer_2d.1} parent=0 // loop_body
    %s14 = ssub.s32 %s9, 1
    %s15 = ssub.s32 %s9, 2
    %s16 = sadd.s32 %s9, 1
    %s18 = sadd.s32 %s17, 1
    %p21 = scmp.eq.s32.totalorder %s9, 1
    %p22 = scmp.ne.s32.totalorder %s17, %s19
    %p23 = scmp.eq.s32.totalorder %s9, 0
    %p24 = por %p22, %p23
    %p25 = scmp.ne.s32.totalorder %s17, %s19
    %p26 = scmp.eq.s32.totalorder %s14, 1
    %p27 = por %p25, %p26
    %p28 = scmp.ne.s32.totalorder %s19, %s20
    %p29 = scmp.eq.s32.totalorder %s14, 0
    %p30 = por %p28, %p29
    %p31 = scmp.ne.s32.totalorder %s19, %s20
    %p32 = scmp.eq.s32.totalorder %s15, 1
    %p33 = por %p31, %p32
    %p35 = scmp.ne.s32.totalorder %s20, %s34
    %p36 = scmp.eq.s32.totalorder %s15, 0
    %p37 = por %p35, %p36
    %s39 = sadd.s32 %s38, 1
    %p42 = scmp.eq.s32.totalorder %s9, 1
    %p43 = scmp.ne.s32.totalorder %s38, %s40
    %p44 = scmp.eq.s32.totalorder %s9, 0
    %p45 = por %p43, %p44
    %p46 = scmp.ne.s32.totalorder %s38, %s40
    %p47 = scmp.eq.s32.totalorder %s14, 1
    %p48 = por %p46, %p47
    %p49 = scmp.ne.s32.totalorder %s40, %s41
    %p50 = scmp.eq.s32.totalorder %s14, 0
    %p51 = por %p49, %p50
    %p52 = scmp.ne.s32.totalorder %s40, %s41
    %p53 = scmp.eq.s32.totalorder %s15, 1
    %p54 = por %p52, %p53
    %p56 = scmp.ne.s32.totalorder %s41, %s55
    %p57 = scmp.eq.s32.totalorder %s15, 0
    %p58 = por %p56, %p57
    %s59 = ssub.s32 %s9, %s16
    %p60 = scmp.eq.s32.totalorder %s59, 0
    %s62 = sadd.s32 %s61, 1
    %s63 = scalar_select %p60, %s61, %s62
    %p66 = pneg %p60
    %p67 = scmp.eq.s32.totalorder %s9, 1
    %p68 = por %p66, %p67
    %p69 = scmp.ne.s32.totalorder %s61, %s64
    %p70 = scmp.eq.s32.totalorder %s9, 0
    %p71 = por %p69, %p70
    %p72 = scmp.ne.s32.totalorder %s61, %s64
    %p73 = scmp.eq.s32.totalorder %s14, 1
    %p74 = por %p72, %p73
    %p75 = scmp.ne.s32.totalorder %s64, %s65
    %p76 = scmp.eq.s32.totalorder %s14, 0
    %p77 = por %p75, %p76
    %p78 = scmp.ne.s32.totalorder %s64, %s65
    %p79 = scmp.eq.s32.totalorder %s15, 1
    %p80 = por %p78, %p79
    %p82 = scmp.ne.s32.totalorder %s65, %s81
    %p83 = scmp.eq.s32.totalorder %s15, 0
    %p84 = por %p82, %p83
    %s85 = ssub.s32 %s9, %s16
    %p86 = scmp.eq.s32.totalorder %s85, 0
    %s88 = sadd.s32 %s87, 1
    %s89 = scalar_select %p86, %s87, %s88
    %p92 = pneg %p86
    %p93 = scmp.eq.s32.totalorder %s9, 1
    %p94 = por %p92, %p93
    %p95 = scmp.ne.s32.totalorder %s87, %s90
    %p96 = scmp.eq.s32.totalorder %s9, 0
    %p97 = por %p95, %p96
    %p98 = scmp.ne.s32.totalorder %s87, %s90
    %p99 = scmp.eq.s32.totalorder %s14, 1
    %p100 = por %p98, %p99
    %p101 = scmp.ne.s32.totalorder %s90, %s91
    %p102 = scmp.eq.s32.totalorder %s14, 0
    %p103 = por %p101, %p102
    %p104 = scmp.ne.s32.totalorder %s90, %s91
    %p105 = scmp.eq.s32.totalorder %s15, 1
    %p106 = por %p104, %p105
    %p108 = scmp.ne.s32.totalorder %s91, %s107
    %p109 = scmp.eq.s32.totalorder %s15, 0
    %p110 = por %p108, %p109
    %p111 = scmp.le.s32.totalorder 1, %s9
    %p112 = scmp.lt.s32.totalorder %s9, 3
    %p113 = pnand %p111, %p112
    %p114 = pneg %p113
    // Predicated region
    $region9: #{conv_layer_2d.1} parent=5 // pred_check
      _
    $region10: #{conv_layer_2d.1} parent=5 // pred_check_branch
      %116 = sbr.rel (%p113) target = $region12
    $region11: #{conv_layer_2d.1} parent=5 // pred_region
      %s117 = ssub.s32 %s9, 1
      // Predicated region
      $region13: #{conv_layer_2d.1} parent=11 // pred_check
        %p118 = pneg %p30
      $region14: #{conv_layer_2d.1} parent=11 // pred_check_branch
        %120 = sbr.rel (%p118) target = $region16
      $region15: #{conv_layer_2d.1} parent=11 // pred_region
        _
      $region16: #{conv_layer_2d.1} parent=11 // pred_fallthru
        _
      // Predicated region
      $region17: #{conv_layer_2d.1} parent=11 // pred_check
        %p121 = pneg %p51
      $region18: #{conv_layer_2d.1} parent=11 // pred_check_branch
        %123 = sbr.rel (%p121) target = $region20
      $region19: #{conv_layer_2d.1} parent=11 // pred_region
        _
      $region20: #{conv_layer_2d.1} parent=11 // pred_fallthru
        _
    $region12: #{conv_layer_2d.1} parent=5 // pred_fallthru
      _
    %p124 = scmp.lt.s32.totalorder %s9, 2
    // Predicated region
    $region21: #{conv_layer_2d.1} parent=5 // pred_check
      %p125 = pneg %p124
    $region22: #{conv_layer_2d.1} parent=5 // pred_check_branch
      %127 = sbr.rel (%p125) target = $region24
    $region23: #{conv_layer_2d.1} parent=5 // pred_region
      // Predicated region
      $region25: #{conv_layer_2d.1} parent=23 // pred_check
        %p128 = pneg %p71
      $region26: #{conv_layer_2d.1} parent=23 // pred_check_branch
        %130 = sbr.rel (%p128) target = $region28
      $region27: #{conv_layer_2d.1} parent=23 // pred_region
        %p131 = scmp.lt.s32.totalorder %s9, 1
        %s132 = scalar_select %p131, %s9, 1
        %s133 = smul.addr %s132, 3
        %s134 = smul.addr %s133, 4
        %s135 = scalar_lea.vmem %s2, %s134
      $region28: #{conv_layer_2d.1} parent=23 // pred_fallthru
        _
    $region24: #{conv_layer_2d.1} parent=5 // pred_fallthru
      _
    %p136 = scmp.le.s32.totalorder 1, %s9
    %p137 = scmp.lt.s32.totalorder %s9, 3
    %p138 = pnand %p136, %p137
    %p139 = pneg %p138
    // Predicated region
    $region29: #{conv_layer_2d.1} parent=5 // pred_check
      _
    $region30: #{conv_layer_2d.1} parent=5 // pred_check_branch
      %141 = sbr.rel (%p138) target = $region32
    $region31: #{conv_layer_2d.1} parent=5 // pred_region
      %s142 = ssub.s32 %s9, 1
      %p143 = pneg %p30
      %p144 = pneg %p27
      %p145 = pneg %p51
      %p146 = pneg %p48
      %p147 = scmp.lt.s32.totalorder %s14, 1
      %s148 = scalar_select %p147, %s14, 1
      %s149 = smul.addr %s148, 3
      %s150 = smul.addr %s149, 4
      %s151 = scalar_lea.vmem %s2, %s150
      %p152 = pneg %p77
      %p153 = pneg %p74
      %p154 = pneg %p103
      %p155 = pneg %p100
      %p156 = scmp.lt.s32.totalorder %s14, 1
      %s157 = scalar_select %p156, %s14, 1
      %s158 = smul.addr %s157, 3
      %s159 = smul.addr %s158, 8
      %s160 = scalar_lea.vmem %s3, %s159
      %p161 = scmp.lt.s32.totalorder %s14, 1
      %s162 = scalar_select %p161, %s14, 1
      %s163 = smul.addr %s162, 3
      %s164 = smul.addr %s163, 4
      %s165 = scalar_lea.vmem %s2, %s164
      %p166 = scmp.lt.s32.totalorder %s14, 1
      %s167 = scalar_select %p166, %s14, 1
      %s168 = smul.addr %s167, 3
      %s169 = smul.addr %s168, 8
      %s170 = scalar_lea.vmem %s3, %s169
      %v171 = vld [vmem:[%s165] sm:$0xff]
      %v172 = vld [vmem:[%s165 + $0x8] sm:$0xf]
      %v173 = vld [vmem:[%s0] sm:$0xff]
      %s174 = scalar_lea.vmem %s0, 8
      %v175 = vld [vmem:[%s174] sm:$0xff]
      %v178 = vcombine.high %v171, %v171
      %179 = vrot.lane.b32.xlu0 %v171, 127
      %v180 = vpop.permute.xlu0 %179
      %181 = vrot.lane.b32.xlu0 %v178, 127
      %v182 = vpop.permute.xlu0 %181
      %183 = vrot.lane.b32.xlu0 %v172, 127
      %v184 = vpop.permute.xlu0 %183
      %vm185 = vcmask 1039360
      %v186 = vsel %vm185, %v180, %v182
      %v187 = vsel %vm185, %v182, %v184
      %vm188 = vcmask 31744
      %v190 = vsel %vm188, %v175, 0
      %vm192 = vcmask 1043456
      %v193 = vsel %vm192, %v186, 0
      %v195 = vsel %vm192, %v187, 0
      %v197 = vsel %vm192, %v184, 0
      %v199 = vand.u32 %v195, 4294901760
      %200 = vmatprep.subr.mxu0 %v199
      %v201 = vand.u32 %v193, 4294901760
      %202 = vmatpush1.msra.mxu0 %v201
      %203 = vmatprep.subr.mxu0 0.0
      %204 = vmatpush1.msra.mxu0 0.0
      %205 = vmatprep.subr.mxu0 0.0
      %206 = vmatpush1.msra.mxu0 0.0
      %207 = vmatprep.subr.mxu0 0.0
      %208 = vmatpush1.msra.mxu0 0.0
      %209 = vmatprep.subr.mxu0 0.0
      %210 = vmatpush1.msra.mxu0 0.0
      %211 = vmatprep.subr.mxu0 0.0
      %212 = vmatpush1.msra.mxu0 0.0
      %213 = vmatprep.subr.mxu0 0.0
      %214 = vmatpush1.msra.mxu0 0.0
      %215 = vmatprep.subr.mxu0 0.0
      %216 = vmatpush1.msra.mxu0 0.0
      %217 = vmatprep.subr.mxu0 0.0
      %218 = vmatpush1.msra.mxu0 0.0
      %219 = vmatprep.subr.mxu0 0.0
      %220 = vmatpush1.msra.mxu0 0.0
      %221 = vmatprep.subr.mxu0 0.0
      %222 = vmatpush1.msra.mxu0 0.0
      %223 = vmatprep.subr.mxu0 0.0
      %224 = vmatpush1.msra.mxu0 0.0
      %225 = vmatprep.subr.mxu0 0.0
      %226 = vmatpush1.msra.mxu0 0.0
      %227 = vmatprep.subr.mxu0 0.0
      %228 = vmatpush1.msra.mxu0 0.0
      %229 = vmatprep.subr.mxu0 0.0
      %230 = vmatpush1.msra.mxu0 0.0
      %231 = vmatprep.subr.mxu0 0.0
      %232 = vmatpush1.msra.mxu0 0.0
      %233 = vmatprep.subr.mxu0 0.0
      %234 = vmatpush1.msra.mxu0 0.0
      %235 = vmatprep.subr.mxu0 0.0
      %236 = vmatpush1.msra.mxu0 0.0
      %237 = vmatprep.subr.mxu0 0.0
      %238 = vmatpush1.msra.mxu0 0.0
      %239 = vmatprep.subr.mxu0 0.0
      %240 = vmatpush1.msra.mxu0 0.0
      %241 = vmatprep.subr.mxu0 0.0
      %242 = vmatpush1.msra.mxu0 0.0
      %243 = vmatprep.subr.mxu0 0.0
      %244 = vmatpush1.msra.mxu0 0.0
      %245 = vmatprep.subr.mxu0 0.0
      %246 = vmatpush1.msra.mxu0 0.0
      %247 = vmatprep.subr.mxu0 0.0
      %248 = vmatpush1.msra.mxu0 0.0
      %249 = vmatprep.subr.mxu0 0.0
      %250 = vmatpush1.msra.mxu0 0.0
      %251 = vmatprep.subr.mxu0 0.0
      %252 = vmatpush1.msra.mxu0 0.0
      %253 = vmatprep.subr.mxu0 0.0
      %254 = vmatpush1.msra.mxu0 0.0
      %255 = vmatprep.subr.mxu0 0.0
      %256 = vmatpush1.msra.mxu0 0.0
      %257 = vmatprep.subr.mxu0 0.0
      %258 = vmatpush1.msra.mxu0 0.0
      %259 = vmatprep.subr.mxu0 0.0
      %260 = vmatpush1.msra.mxu0 0.0
      %261 = vmatprep.subr.mxu0 0.0
      %262 = vmatpush1.msra.mxu0 0.0
      %263 = vmatprep.subr.mxu0 0.0
      %264 = vmatpush1.msra.mxu0 0.0
      %265 = vmatprep.mubr.f32.mxu0 0.0
      %v266 = vand.u32 %v190, 4294901760
      %v267 = vsub.f32 %v190, %v266
      %v268 = vand.u32 %v267, 4294901760
      %v269 = vsub.f32 %v267, %v268
      %v270 = vand.u32 %v269, 4294901760
      %271 = vmatmul.mubr.f32.gmra.mrb[0].mxu0 %v270
      %v272 = vpop.f32.mrb[0].mxu0
      %v273 = vadd.f32 0.0, %v272
      %v274 = vpop.f32.mrb[0].mxu0
      %v275 = vadd.f32 0.0, %v274
      %276 = vdwg.mxu0
      %v277 = vand.u32 %v195, 4294901760
      %v278 = vsub.f32 %v195, %v277
      %v279 = vand.u32 %v278, 4294901760
      %v280 = vsub.f32 %v278, %v279
      %v281 = vand.u32 %v280, 4294901760
      %282 = vmatprep.subr.mxu0 %v281
      %v283 = vand.u32 %v193, 4294901760
      %v284 = vsub.f32 %v193, %v283
      %v285 = vand.u32 %v284, 4294901760
      %v286 = vsub.f32 %v284, %v285
      %v287 = vand.u32 %v286, 4294901760
      %288 = vmatpush1.msra.mxu0 %v287
      %289 = vmatprep.subr.mxu0 0.0
      %290 = vmatpush1.msra.mxu0 0.0
      %291 = vmatprep.subr.mxu0 0.0
      %292 = vmatpush1.msra.mxu0 0.0
      %293 = vmatprep.subr.mxu0 0.0
      %294 = vmatpush1.msra.mxu0 0.0
      %295 = vmatprep.subr.mxu0 0.0
      %296 = vmatpush1.msra.mxu0 0.0
      %297 = vmatprep.subr.mxu0 0.0
      %298 = vmatpush1.msra.mxu0 0.0
      %299 = vmatprep.subr.mxu0 0.0
      %300 = vmatpush1.msra.mxu0 0.0
      %301 = vmatprep.subr.mxu0 0.0
      %302 = vmatpush1.msra.mxu0 0.0
      %303 = vmatprep.subr.mxu0 0.0
      %304 = vmatpush1.msra.mxu0 0.0
      %305 = vmatprep.subr.mxu0 0.0
      %306 = vmatpush1.msra.mxu0 0.0
      %307 = vmatprep.subr.mxu0 0.0
      %308 = vmatpush1.msra.mxu0 0.0
      %309 = vmatprep.subr.mxu0 0.0
      %310 = vmatpush1.msra.mxu0 0.0
      %311 = vmatprep.subr.mxu0 0.0
      %312 = vmatpush1.msra.mxu0 0.0
      %313 = vmatprep.subr.mxu0 0.0
      %314 = vmatpush1.msra.mxu0 0.0
      %315 = vmatprep.subr.mxu0 0.0
      %316 = vmatpush1.msra.mxu0 0.0
      %317 = vmatprep.subr.mxu0 0.0
      %318 = vmatpush1.msra.mxu0 0.0
      %319 = vmatprep.subr.mxu0 0.0
      %320 = vmatpush1.msra.mxu0 0.0
      %321 = vmatprep.subr.mxu0 0.0
      %322 = vmatpush1.msra.mxu0 0.0
      %323 = vmatprep.subr.mxu0 0.0
      %324 = vmatpush1.msra.mxu0 0.0
      %325 = vmatprep.subr.mxu0 0.0
      %326 = vmatpush1.msra.mxu0 0.0
      %327 = vmatprep.subr.mxu0 0.0
      %328 = vmatpush1.msra.mxu0 0.0
      %329 = vmatprep.subr.mxu0 0.0
      %330 = vmatpush1.msra.mxu0 0.0
      %331 = vmatprep.subr.mxu0 0.0
      %332 = vmatpush1.msra.mxu0 0.0
      %333 = vmatprep.subr.mxu0 0.0
      %334 = vmatpush1.msra.mxu0 0.0
      %335 = vmatprep.subr.mxu0 0.0
      %336 = vmatpush1.msra.mxu0 0.0
      %337 = vmatprep.subr.mxu0 0.0
      %338 = vmatpush1.msra.mxu0 0.0
      %339 = vmatprep.subr.mxu0 0.0
      %340 = vmatpush1.msra.mxu0 0.0
      %341 = vmatprep.subr.mxu0 0.0
      %342 = vmatpush1.msra.mxu0 0.0
      %343 = vmatprep.subr.mxu0 0.0
      %344 = vmatpush1.msra.mxu0 0.0
      %345 = vmatprep.subr.mxu0 0.0
      %346 = vmatpush1.msra.mxu0 0.0
      %347 = vmatprep.subr.mxu0 0.0
      %348 = vmatpush1.msra.mxu0 0.0
      %349 = vmatprep.subr.mxu0 0.0
      %350 = vmatpush1.msra.mxu0 0.0
      %351 = vmatprep.mubr.f32.mxu0 0.0
      %v352 = vand.u32 %v190, 4294901760
      %353 = vmatmul.mubr.f32.gmra.mrb[0].mxu0 %v352
      %v354 = vpop.f32.mrb[0].mxu0
      %v355 = vadd.f32 %v273, %v354
      %v356 = vpop.f32.mrb[0].mxu0
      %v357 = vadd.f32 %v275, %v356
      %358 = vdwg.mxu0
      %v359 = vand.u32 %v195, 4294901760
      %v360 = vsub.f32 %v195, %v359
      %361 = vmatprep.subr.mxu0 %v360
      %v362 = vand.u32 %v193, 4294901760
      %v363 = vsub.f32 %v193, %v362
      %364 = vmatpush1.msra.mxu0 %v363
      %365 = vmatprep.subr.mxu0 0.0
      %366 = vmatpush1.msra.mxu0 0.0
      %367 = vmatprep.subr.mxu0 0.0
      %368 = vmatpush1.msra.mxu0 0.0
      %369 = vmatprep.subr.mxu0 0.0
      %370 = vmatpush1.msra.mxu0 0.0
      %371 = vmatprep.subr.mxu0 0.0
      %372 = vmatpush1.msra.mxu0 0.0
      %373 = vmatprep.subr.mxu0 0.0
      %374 = vmatpush1.msra.mxu0 0.0
      %375 = vmatprep.subr.mxu0 0.0
      %376 = vmatpush1.msra.mxu0 0.0
      %377 = vmatprep.subr.mxu0 0.0
      %378 = vmatpush1.msra.mxu0 0.0
      %379 = vmatprep.subr.mxu0 0.0
      %380 = vmatpush1.msra.mxu0 0.0
      %381 = vmatprep.subr.mxu0 0.0
      %382 = vmatpush1.msra.mxu0 0.0
      %383 = vmatprep.subr.mxu0 0.0
      %384 = vmatpush1.msra.mxu0 0.0
      %385 = vmatprep.subr.mxu0 0.0
      %386 = vmatpush1.msra.mxu0 0.0
      %387 = vmatprep.subr.mxu0 0.0
      %388 = vmatpush1.msra.mxu0 0.0
      %389 = vmatprep.subr.mxu0 0.0
      %390 = vmatpush1.msra.mxu0 0.0
      %391 = vmatprep.subr.mxu0 0.0
      %392 = vmatpush1.msra.mxu0 0.0
      %393 = vmatprep.subr.mxu0 0.0
      %394 = vmatpush1.msra.mxu0 0.0
      %395 = vmatprep.subr.mxu0 0.0
      %396 = vmatpush1.msra.mxu0 0.0
      %397 = vmatprep.subr.mxu0 0.0
      %398 = vmatpush1.msra.mxu0 0.0
      %399 = vmatprep.subr.mxu0 0.0
      %400 = vmatpush1.msra.mxu0 0.0
      %401 = vmatprep.subr.mxu0 0.0
      %402 = vmatpush1.msra.mxu0 0.0
      %403 = vmatprep.subr.mxu0 0.0
      %404 = vmatpush1.msra.mxu0 0.0
      %405 = vmatprep.subr.mxu0 0.0
      %406 = vmatpush1.msra.mxu0 0.0
      %407 = vmatprep.subr.mxu0 0.0
      %408 = vmatpush1.msra.mxu0 0.0
      %409 = vmatprep.subr.mxu0 0.0
      %410 = vmatpush1.msra.mxu0 0.0
      %411 = vmatprep.subr.mxu0 0.0
      %412 = vmatpush1.msra.mxu0 0.0
      %413 = vmatprep.subr.mxu0 0.0
      %414 = vmatpush1.msra.mxu0 0.0
      %415 = vmatprep.subr.mxu0 0.0
      %416 = vmatpush1.msra.mxu0 0.0
      %417 = vmatprep.subr.mxu0 0.0
      %418 = vmatpush1.msra.mxu0 0.0
      %419 = vmatprep.subr.mxu0 0.0
      %420 = vmatpush1.msra.mxu0 0.0
      %421 = vmatprep.subr.mxu0 0.0
      %422 = vmatpush1.msra.mxu0 0.0
      %423 = vmatprep.subr.mxu0 0.0
      %424 = vmatpush1.msra.mxu0 0.0
      %425 = vmatprep.subr.mxu0 0.0
      %426 = vmatpush1.msra.mxu0 0.0
      %427 = vmatprep.mubr.f32.mxu0 0.0
      %v428 = vand.u32 %v190, 4294901760
      %v429 = vsub.f32 %v190, %v428
      %430 = vmatmul.mubr.f32.gmra.mrb[0].mxu0 %v429
      %v431 = vpop.f32.mrb[0].mxu0
      %v432 = vadd.f32 %v355, %v431
      %v433 = vpop.f32.mrb[0].mxu0
      %v434 = vadd.f32 %v357, %v433
      %435 = vdwg.mxu0
      %v436 = vand.u32 %v195, 4294901760
      %437 = vmatprep.subr.mxu0 %v436
      %v438 = vand.u32 %v193, 4294901760
      %439 = vmatpush1.msra.mxu0 %v438
      %440 = vmatprep.subr.mxu0 0.0
      %441 = vmatpush1.msra.mxu0 0.0
      %442 = vmatprep.subr.mxu0 0.0
      %443 = vmatpush1.msra.mxu0 0.0
      %444 = vmatprep.subr.mxu0 0.0
      %445 = vmatpush1.msra.mxu0 0.0
      %446 = vmatprep.subr.mxu0 0.0
      %447 = vmatpush1.msra.mxu0 0.0
      %448 = vmatprep.subr.mxu0 0.0
      %449 = vmatpush1.msra.mxu0 0.0
      %450 = vmatprep.subr.mxu0 0.0
      %451 = vmatpush1.msra.mxu0 0.0
      %452 = vmatprep.subr.mxu0 0.0
      %453 = vmatpush1.msra.mxu0 0.0
      %454 = vmatprep.subr.mxu0 0.0
      %455 = vmatpush1.msra.mxu0 0.0
      %456 = vmatprep.subr.mxu0 0.0
      %457 = vmatpush1.msra.mxu0 0.0
      %458 = vmatprep.subr.mxu0 0.0
      %459 = vmatpush1.msra.mxu0 0.0
      %460 = vmatprep.subr.mxu0 0.0
      %461 = vmatpush1.msra.mxu0 0.0
      %462 = vmatprep.subr.mxu0 0.0
      %463 = vmatpush1.msra.mxu0 0.0
      %464 = vmatprep.subr.mxu0 0.0
      %465 = vmatpush1.msra.mxu0 0.0
      %466 = vmatprep.subr.mxu0 0.0
      %467 = vmatpush1.msra.mxu0 0.0
      %468 = vmatprep.subr.mxu0 0.0
      %469 = vmatpush1.msra.mxu0 0.0
      %470 = vmatprep.subr.mxu0 0.0
      %471 = vmatpush1.msra.mxu0 0.0
      %472 = vmatprep.subr.mxu0 0.0
      %473 = vmatpush1.msra.mxu0 0.0
      %474 = vmatprep.subr.mxu0 0.0
      %475 = vmatpush1.msra.mxu0 0.0
      %476 = vmatprep.subr.mxu0 0.0
      %477 = vmatpush1.msra.mxu0 0.0
      %478 = vmatprep.subr.mxu0 0.0
      %479 = vmatpush1.msra.mxu0 0.0
      %480 = vmatprep.subr.mxu0 0.0
      %481 = vmatpush1.msra.mxu0 0.0
      %482 = vmatprep.subr.mxu0 0.0
      %483 = vmatpush1.msra.mxu0 0.0
      %484 = vmatprep.subr.mxu0 0.0
      %485 = vmatpush1.msra.mxu0 0.0
      %486 = vmatprep.subr.mxu0 0.0
      %487 = vmatpush1.msra.mxu0 0.0
      %488 = vmatprep.subr.mxu0 0.0
      %489 = vmatpush1.msra.mxu0 0.0
      %490 = vmatprep.subr.mxu0 0.0
      %491 = vmatpush1.msra.mxu0 0.0
      %492 = vmatprep.subr.mxu0 0.0
      %493 = vmatpush1.msra.mxu0 0.0
      %494 = vmatprep.subr.mxu0 0.0
      %495 = vmatpush1.msra.mxu0 0.0
      %496 = vmatprep.subr.mxu0 0.0
      %497 = vmatpush1.msra.mxu0 0.0
      %498 = vmatprep.subr.mxu0 0.0
      %499 = vmatpush1.msra.mxu0 0.0
      %500 = vmatprep.subr.mxu0 0.0
      %501 = vmatpush1.msra.mxu0 0.0
      %502 = vmatprep.mubr.f32.mxu0 0.0
      %v503 = vand.u32 %v190, 4294901760
      %v504 = vsub.f32 %v190, %v503
      %v505 = vand.u32 %v504, 4294901760
      %506 = vmatmul.mubr.f32.gmra.mrb[0].mxu0 %v505
      %v507 = vpop.f32.mrb[0].mxu0
      %v508 = vadd.f32 %v432, %v507
      %v509 = vpop.f32.mrb[0].mxu0
      %v510 = vadd.f32 %v434, %v509
      %511 = vdwg.mxu0
      %v512 = vand.u32 %v195, 4294901760
      %v513 = vsub.f32 %v195, %v512
      %v514 = vand.u32 %v513, 4294901760
      %515 = vmatprep.subr.mxu0 %v514
      %v516 = vand.u32 %v193, 4294901760
      %v517 = vsub.f32 %v193, %v516
      %v518 = vand.u32 %v517, 4294901760
      %519 = vmatpush1.msra.mxu0 %v518
      %520 = vmatprep.subr.mxu0 0.0
      %521 = vmatpush1.msra.mxu0 0.0
      %522 = vmatprep.subr.mxu0 0.0
      %523 = vmatpush1.msra.mxu0 0.0
      %524 = vmatprep.subr.mxu0 0.0
      %525 = vmatpush1.msra.mxu0 0.0
      %526 = vmatprep.subr.mxu0 0.0
      %527 = vmatpush1.msra.mxu0 0.0
      %528 = vmatprep.subr.mxu0 0.0
      %529 = vmatpush1.msra.mxu0 0.0
      %530 = vmatprep.subr.mxu0 0.0
      %531 = vmatpush1.msra.mxu0 0.0
      %532 = vmatprep.subr.mxu0 0.0
      %533 = vmatpush1.msra.mxu0 0.0
      %534 = vmatprep.subr.mxu0 0.0
      %535 = vmatpush1.msra.mxu0 0.0
      %536 = vmatprep.subr.mxu0 0.0
      %537 = vmatpush1.msra.mxu0 0.0
      %538 = vmatprep.subr.mxu0 0.0
      %539 = vmatpush1.msra.mxu0 0.0
      %540 = vmatprep.subr.mxu0 0.0
      %541 = vmatpush1.msra.mxu0 0.0
      %542 = vmatprep.subr.mxu0 0.0
      %543 = vmatpush1.msra.mxu0 0.0
      %544 = vmatprep.subr.mxu0 0.0
      %545 = vmatpush1.msra.mxu0 0.0
      %546 = vmatprep.subr.mxu0 0.0
      %547 = vmatpush1.msra.mxu0 0.0
      %548 = vmatprep.subr.mxu0 0.0
      %549 = vmatpush1.msra.mxu0 0.0
      %550 = vmatprep.subr.mxu0 0.0
      %551 = vmatpush1.msra.mxu0 0.0
      %552 = vmatprep.subr.mxu0 0.0
      %553 = vmatpush1.msra.mxu0 0.0
      %554 = vmatprep.subr.mxu0 0.0
      %555 = vmatpush1.msra.mxu0 0.0
      %556 = vmatprep.subr.mxu0 0.0
      %557 = vmatpush1.msra.mxu0 0.0
      %558 = vmatprep.subr.mxu0 0.0
      %559 = vmatpush1.msra.mxu0 0.0
      %560 = vmatprep.subr.mxu0 0.0
      %561 = vmatpush1.msra.mxu0 0.0
      %562 = vmatprep.subr.mxu0 0.0
      %563 = vmatpush1.msra.mxu0 0.0
      %564 = vmatprep.subr.mxu0 0.0
      %565 = vmatpush1.msra.mxu0 0.0
      %566 = vmatprep.subr.mxu0 0.0
      %567 = vmatpush1.msra.mxu0 0.0
      %568 = vmatprep.subr.mxu0 0.0
      %569 = vmatpush1.msra.mxu0 0.0
      %570 = vmatprep.subr.mxu0 0.0
      %571 = vmatpush1.msra.mxu0 0.0
      %572 = vmatprep.subr.mxu0 0.0
      %573 = vmatpush1.msra.mxu0 0.0
      %574 = vmatprep.subr.mxu0 0.0
      %575 = vmatpush1.msra.mxu0 0.0
      %576 = vmatprep.subr.mxu0 0.0
      %577 = vmatpush1.msra.mxu0 0.0
      %578 = vmatprep.subr.mxu0 0.0
      %579 = vmatpush1.msra.mxu0 0.0
      %580 = vmatprep.subr.mxu0 0.0
      %581 = vmatpush1.msra.mxu0 0.0
      %582 = vmatprep.mubr.f32.mxu0 0.0
      %v583 = vand.u32 %v190, 4294901760
      %584 = vmatmul.mubr.f32.gmra.mrb[0].mxu0 %v583
      %v585 = vpop.f32.mrb[0].mxu0
      %v586 = vadd.f32 %v508, %v585
      %v587 = vpop.f32.mrb[0].mxu0
      %v588 = vadd.f32 %v510, %v587
      %589 = vdwg.mxu0
      %v590 = vand.u32 %v195, 4294901760
      %591 = vmatprep.subr.mxu0 %v590
      %v592 = vand.u32 %v193, 4294901760
      %593 = vmatpush1.msra.mxu0 %v592
      %594 = vmatprep.subr.mxu0 0.0
      %595 = vmatpush1.msra.mxu0 0.0
      %596 = vmatprep.subr.mxu0 0.0
      %597 = vmatpush1.msra.mxu0 0.0
      %598 = vmatprep.subr.mxu0 0.0
      %599 = vmatpush1.msra.mxu0 0.0
      %600 = vmatprep.subr.mxu0 0.0
      %601 = vmatpush1.msra.mxu0 0.0
      %602 = vmatprep.subr.mxu0 0.0
      %603 = vmatpush1.msra.mxu0 0.0
      %604 = vmatprep.subr.mxu0 0.0
      %605 = vmatpush1.msra.mxu0 0.0
      %606 = vmatprep.subr.mxu0 0.0
      %607 = vmatpush1.msra.mxu0 0.0
      %608 = vmatprep.subr.mxu0 0.0
      %609 = vmatpush1.msra.mxu0 0.0
      %610 = vmatprep.subr.mxu0 0.0
      %611 = vmatpush1.msra.mxu0 0.0
      %612 = vmatprep.subr.mxu0 0.0
      %613 = vmatpush1.msra.mxu0 0.0
      %614 = vmatprep.subr.mxu0 0.0
      %615 = vmatpush1.msra.mxu0 0.0
      %616 = vmatprep.subr.mxu0 0.0
      %617 = vmatpush1.msra.mxu0 0.0
      %618 = vmatprep.subr.mxu0 0.0
      %619 = vmatpush1.msra.mxu0 0.0
      %620 = vmatprep.subr.mxu0 0.0
      %621 = vmatpush1.msra.mxu0 0.0
      %622 = vmatprep.subr.mxu0 0.0
      %623 = vmatpush1.msra.mxu0 0.0
      %624 = vmatprep.subr.mxu0 0.0
      %625 = vmatpush1.msra.mxu0 0.0
      %626 = vmatprep.subr.mxu0 0.0
      %627 = vmatpush1.msra.mxu0 0.0
      %628 = vmatprep.subr.mxu0 0.0
      %629 = vmatpush1.msra.mxu0 0.0
      %630 = vmatprep.subr.mxu0 0.0
      %631 = vmatpush1.msra.mxu0 0.0
      %632 = vmatprep.subr.mxu0 0.0
      %633 = vmatpush1.msra.mxu0 0.0
      %634 = vmatprep.subr.mxu0 0.0
      %635 = vmatpush1.msra.mxu0 0.0
      %636 = vmatprep.subr.mxu0 0.0
      %637 = vmatpush1.msra.mxu0 0.0
      %638 = vmatprep.subr.mxu0 0.0
      %639 = vmatpush1.msra.mxu0 0.0
      %640 = vmatprep.subr.mxu0 0.0
      %641 = vmatpush1.msra.mxu0 0.0
      %642 = vmatprep.subr.mxu0 0.0
      %643 = vmatpush1.msra.mxu0 0.0
      %644 = vmatprep.subr.mxu0 0.0
      %645 = vmatpush1.msra.mxu0 0.0
      %646 = vmatprep.subr.mxu0 0.0
      %647 = vmatpush1.msra.mxu0 0.0
      %648 = vmatprep.subr.mxu0 0.0
      %649 = vmatpush1.msra.mxu0 0.0
      %650 = vmatprep.subr.mxu0 0.0
      %651 = vmatpush1.msra.mxu0 0.0
      %652 = vmatprep.subr.mxu0 0.0
      %653 = vmatpush1.msra.mxu0 0.0
      %654 = vmatprep.subr.mxu0 0.0
      %655 = vmatpush1.msra.mxu0 0.0
      %656 = vmatprep.mubr.f32.mxu0 0.0
      %v657 = vand.u32 %v190, 4294901760
      %658 = vmatmul.mubr.f32.gmra.mrb[0].mxu0 %v657
      %v659 = vpop.f32.mrb[0].mxu0
      %v660 = vadd.f32 %v586, %v659
      %v661 = vpop.f32.mrb[0].mxu0
      %v662 = vadd.f32 %v588, %v661
      %663 = vdwg.mxu0
      %664 = vmatprep.subr.mxu0 0.0
      %v665 = vand.u32 %v197, 4294901760
      %666 = vmatpush1.msra.mxu0 %v665
      %667 = vmatprep.subr.mxu0 0.0
      %668 = vmatpush1.msra.mxu0 0.0
      %669 = vmatprep.subr.mxu0 0.0
      %670 = vmatpush1.msra.mxu0 0.0
      %671 = vmatprep.subr.mxu0 0.0
      %672 = vmatpush1.msra.mxu0 0.0
      %673 = vmatprep.subr.mxu0 0.0
      %674 = vmatpush1.msra.mxu0 0.0
      %675 = vmatprep.subr.mxu0 0.0
      %676 = vmatpush1.msra.mxu0 0.0
      %677 = vmatprep.subr.mxu0 0.0
      %678 = vmatpush1.msra.mxu0 0.0
      %679 = vmatprep.subr.mxu0 0.0
      %680 = vmatpush1.msra.mxu0 0.0
      %681 = vmatprep.subr.mxu0 0.0
      %682 = vmatpush1.msra.mxu0 0.0
      %683 = vmatprep.subr.mxu0 0.0
      %684 = vmatpush1.msra.mxu0 0.0
      %685 = vmatprep.subr.mxu0 0.0
      %686 = vmatpush1.msra.mxu0 0.0
      %687 = vmatprep.subr.mxu0 0.0
      %688 = vmatpush1.msra.mxu0 0.0
      %689 = vmatprep.subr.mxu0 0.0
      %690 = vmatpush1.msra.mxu0 0.0
      %691 = vmatprep.subr.mxu0 0.0
      %692 = vmatpush1.msra.mxu0 0.0
      %693 = vmatprep.subr.mxu0 0.0
      %694 = vmatpush1.msra.mxu0 0.0
      %695 = vmatprep.subr.mxu0 0.0
      %696 = vmatpush1.msra.mxu0 0.0
      %697 = vmatprep.subr.mxu0 0.0
      %698 = vmatpush1.msra.mxu0 0.0
      %699 = vmatprep.subr.mxu0 0.0
      %700 = vmatpush1.msra.mxu0 0.0
      %701 = vmatprep.subr.mxu0 0.0
      %702 = vmatpush1.msra.mxu0 0.0
      %703 = vmatprep.subr.mxu0 0.0
      %704 = vmatpush1.msra.mxu0 0.0
      %705 = vmatprep.subr.mxu0 0.0
      %706 = vmatpush1.msra.mxu0 0.0
      %707 = vmatprep.subr.mxu0 0.0
      %708 = vmatpush1.msra.mxu0 0.0
      %709 = vmatprep.subr.mxu0 0.0
      %710 = vmatpush1.msra.mxu0 0.0
      %711 = vmatprep.subr.mxu0 0.0
      %712 = vmatpush1.msra.mxu0 0.0
      %713 = vmatprep.subr.mxu0 0.0
      %714 = vmatpush1.msra.mxu0 0.0
      %715 = vmatprep.subr.mxu0 0.0
      %716 = vmatpush1.msra.mxu0 0.0
      %717 = vmatprep.subr.mxu0 0.0
      %718 = vmatpush1.msra.mxu0 0.0
      %719 = vmatprep.subr.mxu0 0.0
      %720 = vmatpush1.msra.mxu0 0.0
      %721 = vmatprep.subr.mxu0 0.0
      %722 = vmatpush1.msra.mxu0 0.0
      %723 = vmatprep.subr.mxu0 0.0
      %724 = vmatpush1.msra.mxu0 0.0
      %725 = vmatprep.subr.mxu0 0.0
      %726 = vmatpush1.msra.mxu0 0.0
      %727 = vmatprep.subr.mxu0 0.0
      %728 = vmatpush1.msra.mxu0 0.0
      %729 = vmatprep.mubr.f32.mxu0 0.0
      %v730 = vand.u32 %v190, 4294901760
      %v731 = vsub.f32 %v190, %v730
      %v732 = vand.u32 %v731, 4294901760
      %v733 = vsub.f32 %v731, %v732
      %v734 = vand.u32 %v733, 4294901760
      %735 = vmatmul.mubr.f32.gmra.mrb[0].mxu0 %v734
      %v736 = vpop.f32.mrb[0].mxu0
      %v737 = vadd.f32 0.0, %v736
      %v738 = vpop.f32.mrb[0].mxu0
      %739 = vdwg.mxu0
      %740 = vmatprep.subr.mxu0 0.0
      %v741 = vand.u32 %v197, 4294901760
      %v742 = vsub.f32 %v197, %v741
      %v743 = vand.u32 %v742, 4294901760
      %v744 = vsub.f32 %v742, %v743
      %v745 = vand.u32 %v744, 4294901760
      %746 = vmatpush1.msra.mxu0 %v745
      %747 = vmatprep.subr.mxu0 0.0
      %748 = vmatpush1.msra.mxu0 0.0
      %749 = vmatprep.subr.mxu0 0.0
      %750 = vmatpush1.msra.mxu0 0.0
      %751 = vmatprep.subr.mxu0 0.0
      %752 = vmatpush1.msra.mxu0 0.0
      %753 = vmatprep.subr.mxu0 0.0
      %754 = vmatpush1.msra.mxu0 0.0
      %755 = vmatprep.subr.mxu0 0.0
      %756 = vmatpush1.msra.mxu0 0.0
      %757 = vmatprep.subr.mxu0 0.0
      %758 = vmatpush1.msra.mxu0 0.0
      %759 = vmatprep.subr.mxu0 0.0
      %760 = vmatpush1.msra.mxu0 0.0
      %761 = vmatprep.subr.mxu0 0.0
      %762 = vmatpush1.msra.mxu0 0.0
      %763 = vmatprep.subr.mxu0 0.0
      %764 = vmatpush1.msra.mxu0 0.0
      %765 = vmatprep.subr.mxu0 0.0
      %766 = vmatpush1.msra.mxu0 0.0
      %767 = vmatprep.subr.mxu0 0.0
      %768 = vmatpush1.msra.mxu0 0.0
      %769 = vmatprep.subr.mxu0 0.0
      %770 = vmatpush1.msra.mxu0 0.0
      %771 = vmatprep.subr.mxu0 0.0
      %772 = vmatpush1.msra.mxu0 0.0
      %773 = vmatprep.subr.mxu0 0.0
      %774 = vmatpush1.msra.mxu0 0.0
      %775 = vmatprep.subr.mxu0 0.0
      %776 = vmatpush1.msra.mxu0 0.0
      %777 = vmatprep.subr.mxu0 0.0
      %778 = vmatpush1.msra.mxu0 0.0
      %779 = vmatprep.subr.mxu0 0.0
      %780 = vmatpush1.msra.mxu0 0.0
      %781 = vmatprep.subr.mxu0 0.0
      %782 = vmatpush1.msra.mxu0 0.0
      %783 = vmatprep.subr.mxu0 0.0
      %784 = vmatpush1.msra.mxu0 0.0
      %785 = vmatprep.subr.mxu0 0.0
      %786 = vmatpush1.msra.mxu0 0.0
      %787 = vmatprep.subr.mxu0 0.0
      %788 = vmatpush1.msra.mxu0 0.0
      %789 = vmatprep.subr.mxu0 0.0
      %790 = vmatpush1.msra.mxu0 0.0
      %791 = vmatprep.subr.mxu0 0.0
      %792 = vmatpush1.msra.mxu0 0.0
      %793 = vmatprep.subr.mxu0 0.0
      %794 = vmatpush1.msra.mxu0 0.0
      %795 = vmatprep.subr.mxu0 0.0
      %796 = vmatpush1.msra.mxu0 0.0
      %797 = vmatprep.subr.mxu0 0.0
      %798 = vmatpush1.msra.mxu0 0.0
      %799 = vmatprep.subr.mxu0 0.0
      %800 = vmatpush1.msra.mxu0 0.0
      %801 = vmatprep.subr.mxu0 0.0
      %802 = vmatpush1.msra.mxu0 0.0
      %803 = vmatprep.subr.mxu0 0.0
      %804 = vmatpush1.msra.mxu0 0.0
      %805 = vmatprep.subr.mxu0 0.0
      %806 = vmatpush1.msra.mxu0 0.0
      %807 = vmatprep.subr.mxu0 0.0
      %808 = vmatpush1.msra.mxu0 0.0
      %809 = vmatprep.mubr.f32.mxu0 0.0
      %v810 = vand.u32 %v190, 4294901760
      %811 = vmatmul.mubr.f32.gmra.mrb[0].mxu0 %v810
      %v812 = vpop.f32.mrb[0].mxu0
      %v813 = vadd.f32 %v737, %v812
      %v814 = vpop.f32.mrb[0].mxu0
      %815 = vdwg.mxu0
      %816 = vmatprep.subr.mxu0 0.0
      %v817 = vand.u32 %v197, 4294901760
      %v818 = vsub.f32 %v197, %v817
      %819 = vmatpush1.msra.mxu0 %v818
      %820 = vmatprep.subr.mxu0 0.0
      %821 = vmatpush1.msra.mxu0 0.0
      %822 = vmatprep.subr.mxu0 0.0
      %823 = vmatpush1.msra.mxu0 0.0
      %824 = vmatprep.subr.mxu0 0.0
      %825 = vmatpush1.msra.mxu0 0.0
      %826 = vmatprep.subr.mxu0 0.0
      %827 = vmatpush1.msra.mxu0 0.0
      %828 = vmatprep.subr.mxu0 0.0
      %829 = vmatpush1.msra.mxu0 0.0
      %830 = vmatprep.subr.mxu0 0.0
      %831 = vmatpush1.msra.mxu0 0.0
      %832 = vmatprep.subr.mxu0 0.0
      %833 = vmatpush1.msra.mxu0 0.0
      %834 = vmatprep.subr.mxu0 0.0
      %835 = vmatpush1.msra.mxu0 0.0
      %836 = vmatprep.subr.mxu0 0.0
      %837 = vmatpush1.msra.mxu0 0.0
      %838 = vmatprep.subr.mxu0 0.0
      %839 = vmatpush1.msra.mxu0 0.0
      %840 = vmatprep.subr.mxu0 0.0
      %841 = vmatpush1.msra.mxu0 0.0
      %842 = vmatprep.subr.mxu0 0.0
      %843 = vmatpush1.msra.mxu0 0.0
      %844 = vmatprep.subr.mxu0 0.0
      %845 = vmatpush1.msra.mxu0 0.0
      %846 = vmatprep.subr.mxu0 0.0
      %847 = vmatpush1.msra.mxu0 0.0
      %848 = vmatprep.subr.mxu0 0.0
      %849 = vmatpush1.msra.mxu0 0.0
      %850 = vmatprep.subr.mxu0 0.0
      %851 = vmatpush1.msra.mxu0 0.0
      %852 = vmatprep.subr.mxu0 0.0
      %853 = vmatpush1.msra.mxu0 0.0
      %854 = vmatprep.subr.mxu0 0.0
      %855 = vmatpush1.msra.mxu0 0.0
      %856 = vmatprep.subr.mxu0 0.0
      %857 = vmatpush1.msra.mxu0 0.0
      %858 = vmatprep.subr.mxu0 0.0
      %859 = vmatpush1.msra.mxu0 0.0
      %860 = vmatprep.subr.mxu0 0.0
      %861 = vmatpush1.msra.mxu0 0.0
      %862 = vmatprep.subr.mxu0 0.0
      %863 = vmatpush1.msra.mxu0 0.0
      %864 = vmatprep.subr.mxu0 0.0
      %865 = vmatpush1.msra.mxu0 0.0
      %866 = vmatprep.subr.mxu0 0.0
      %867 = vmatpush1.msra.mxu0 0.0
      %868 = vmatprep.subr.mxu0 0.0
      %869 = vmatpush1.msra.mxu0 0.0
      %870 = vmatprep.subr.mxu0 0.0
      %871 = vmatpush1.msra.mxu0 0.0
      %872 = vmatprep.subr.mxu0 0.0
      %873 = vmatpush1.msra.mxu0 0.0
      %874 = vmatprep.subr.mxu0 0.0
      %875 = vmatpush1.msra.mxu0 0.0
      %876 = vmatprep.subr.mxu0 0.0
      %877 = vmatpush1.msra.mxu0 0.0
      %878 = vmatprep.subr.mxu0 0.0
      %879 = vmatpush1.msra.mxu0 0.0
      %880 = vmatprep.subr.mxu0 0.0
      %881 = vmatpush1.msra.mxu0 0.0
      %882 = vmatprep.mubr.f32.mxu0 0.0
      %v883 = vand.u32 %v190, 4294901760
      %v884 = vsub.f32 %v190, %v883
      %885 = vmatmul.mubr.f32.gmra.mrb[0].mxu0 %v884
      %v886 = vpop.f32.mrb[0].mxu0
      %v887 = vadd.f32 %v813, %v886
      %v888 = vpop.f32.mrb[0].mxu0
      %889 = vdwg.mxu0
      %890 = vmatprep.subr.mxu0 0.0
      %v891 = vand.u32 %v197, 4294901760
      %892 = vmatpush1.msra.mxu0 %v891
      %893 = vmatprep.subr.mxu0 0.0
      %894 = vmatpush1.msra.mxu0 0.0
      %895 = vmatprep.subr.mxu0 0.0
      %896 = vmatpush1.msra.mxu0 0.0
      %897 = vmatprep.subr.mxu0 0.0
      %898 = vmatpush1.msra.mxu0 0.0
      %899 = vmatprep.subr.mxu0 0.0
      %900 = vmatpush1.msra.mxu0 0.0
      %901 = vmatprep.subr.mxu0 0.0
      %902 = vmatpush1.msra.mxu0 0.0
      %903 = vmatprep.subr.mxu0 0.0
      %904 = vmatpush1.msra.mxu0 0.0
      %905 = vmatprep.subr.mxu0 0.0
      %906 = vmatpush1.msra.mxu0 0.0
      %907 = vmatprep.subr.mxu0 0.0
      %908 = vmatpush1.msra.mxu0 0.0
      %909 = vmatprep.subr.mxu0 0.0
      %910 = vmatpush1.msra.mxu0 0.0
      %911 = vmatprep.subr.mxu0 0.0
      %912 = vmatpush1.msra.mxu0 0.0
      %913 = vmatprep.subr.mxu0 0.0
      %914 = vmatpush1.msra.mxu0 0.0
      %915 = vmatprep.subr.mxu0 0.0
      %916 = vmatpush1.msra.mxu0 0.0
      %917 = vmatprep.subr.mxu0 0.0
      %918 = vmatpush1.msra.mxu0 0.0
      %919 = vmatprep.subr.mxu0 0.0
      %920 = vmatpush1.msra.mxu0 0.0
      %921 = vmatprep.subr.mxu0 0.0
      %922 = vmatpush1.msra.mxu0 0.0
      %923 = vmatprep.subr.mxu0 0.0
      %924 = vmatpush1.msra.mxu0 0.0
      %925 = vmatprep.subr.mxu0 0.0
      %926 = vmatpush1.msra.mxu0 0.0
      %927 = vmatprep.subr.mxu0 0.0
      %928 = vmatpush1.msra.mxu0 0.0
      %929 = vmatprep.subr.mxu0 0.0
      %930 = vmatpush1.msra.mxu0 0.0
      %931 = vmatprep.subr.mxu0 0.0
      %932 = vmatpush1.msra.mxu0 0.0
      %933 = vmatprep.subr.mxu0 0.0
      %934 = vmatpush1.msra.mxu0 0.0
      %935 = vmatprep.subr.mxu0 0.0
      %936 = vmatpush1.msra.mxu0 0.0
      %937 = vmatprep.subr.mxu0 0.0
      %938 = vmatpush1.msra.mxu0 0.0
      %939 = vmatprep.subr.mxu0 0.0
      %940 = vmatpush1.msra.mxu0 0.0
      %941 = vmatprep.subr.mxu0 0.0
      %942 = vmatpush1.msra.mxu0 0.0
      %943 = vmatprep.subr.mxu0 0.0
      %944 = vmatpush1.msra.mxu0 0.0
      %945 = vmatprep.subr.mxu0 0.0
      %946 = vmatpush1.msra.mxu0 0.0
      %947 = vmatprep.subr.mxu0 0.0
      %948 = vmatpush1.msra.mxu0 0.0
      %949 = vmatprep.subr.mxu0 0.0
      %950 = vmatpush1.msra.mxu0 0.0
      %951 = vmatprep.subr.mxu0 0.0
      %952 = vmatpush1.msra.mxu0 0.0
      %953 = vmatprep.subr.mxu0 0.0
      %954 = vmatpush1.msra.mxu0 0.0
      %955 = vmatprep.mubr.f32.mxu0 0.0
      %v956 = vand.u32 %v190, 4294901760
      %v957 = vsub.f32 %v190, %v956
      %v958 = vand.u32 %v957, 4294901760
      %959 = vmatmul.mubr.f32.gmra.mrb[0].mxu0 %v958
      %v960 = vpop.f32.mrb[0].mxu0
      %v961 = vadd.f32 %v887, %v960
      %v962 = vpop.f32.mrb[0].mxu0
      %963 = vdwg.mxu0
      %964 = vmatprep.subr.mxu0 0.0
      %v965 = vand.u32 %v197, 4294901760
      %v966 = vsub.f32 %v197, %v965
      %v967 = vand.u32 %v966, 4294901760
      %968 = vmatpush1.msra.mxu0 %v967
      %969 = vmatprep.subr.mxu0 0.0
      %970 = vmatpush1.msra.mxu0 0.0
      %971 = vmatprep.subr.mxu0 0.0
      %972 = vmatpush1.msra.mxu0 0.0
      %973 = vmatprep.subr.mxu0 0.0
      %974 = vmatpush1.msra.mxu0 0.0
      %975 = vmatprep.subr.mxu0 0.0
      %976 = vmatpush1.msra.mxu0 0.0
      %977 = vmatprep.subr.mxu0 0.0
      %978 = vmatpush1.msra.mxu0 0.0
      %979 = vmatprep.subr.mxu0 0.0
      %980 = vmatpush1.msra.mxu0 0.0
      %981 = vmatprep.subr.mxu0 0.0
      %982 = vmatpush1.msra.mxu0 0.0
      %983 = vmatprep.subr.mxu0 0.0
      %984 = vmatpush1.msra.mxu0 0.0
      %985 = vmatprep.subr.mxu0 0.0
      %986 = vmatpush1.msra.mxu0 0.0
      %987 = vmatprep.subr.mxu0 0.0
      %988 = vmatpush1.msra.mxu0 0.0
      %989 = vmatprep.subr.mxu0 0.0
      %990 = vmatpush1.msra.mxu0 0.0
      %991 = vmatprep.subr.mxu0 0.0
      %992 = vmatpush1.msra.mxu0 0.0
      %993 = vmatprep.subr.mxu0 0.0
      %994 = vmatpush1.msra.mxu0 0.0
      %995 = vmatprep.subr.mxu0 0.0
      %996 = vmatpush1.msra.mxu0 0.0
      %997 = vmatprep.subr.mxu0 0.0
      %998 = vmatpush1.msra.mxu0 0.0
      %999 = vmatprep.subr.mxu0 0.0
      %1000 = vmatpush1.msra.mxu0 0.0
      %1001 = vmatprep.subr.mxu0 0.0
      %1002 = vmatpush1.msra.mxu0 0.0
      %1003 = vmatprep.subr.mxu0 0.0
      %1004 = vmatpush1.msra.mxu0 0.0
      %1005 = vmatprep.subr.mxu0 0.0
      %1006 = vmatpush1.msra.mxu0 0.0
      %1007 = vmatprep.subr.mxu0 0.0
      %1008 = vmatpush1.msra.mxu0 0.0
      %1009 = vmatprep.subr.mxu0 0.0
      %1010 = vmatpush1.msra.mxu0 0.0
      %1011 = vmatprep.subr.mxu0 0.0
      %1012 = vmatpush1.msra.mxu0 0.0
      %1013 = vmatprep.subr.mxu0 0.0
      %1014 = vmatpush1.msra.mxu0 0.0
      %1015 = vmatprep.subr.mxu0 0.0
      %1016 = vmatpush1.msra.mxu0 0.0
      %1017 = vmatprep.subr.mxu0 0.0
      %1018 = vmatpush1.msra.mxu0 0.0
      %1019 = vmatprep.subr.mxu0 0.0
      %1020 = vmatpush1.msra.mxu0 0.0
      %1021 = vmatprep.subr.mxu0 0.0
      %1022 = vmatpush1.msra.mxu0 0.0
      %1023 = vmatprep.subr.mxu0 0.0
      %1024 = vmatpush1.msra.mxu0 0.0
      %1025 = vmatprep.subr.mxu0 0.0
      %1026 = vmatpush1.msra.mxu0 0.0
      %1027 = vmatprep.subr.mxu0 0.0
      %1028 = vmatpush1.msra.mxu0 0.0
      %1029 = vmatprep.subr.mxu0 0.0
      %1030 = vmatpush1.msra.mxu0 0.0
      %1031 = vmatprep.mubr.f32.mxu0 0.0
      %v1032 = vand.u32 %v190, 4294901760
      %1033 = vmatmul.mubr.f32.gmra.mrb[0].mxu0 %v1032
      %v1034 = vpop.f32.mrb[0].mxu0
      %v1035 = vadd.f32 %v961, %v1034
      %v1036 = vpop.f32.mrb[0].mxu0
      %1037 = vdwg.mxu0
      %1038 = vmatprep.subr.mxu0 0.0
      %v1039 = vand.u32 %v197, 4294901760
      %1040 = vmatpush1.msra.mxu0 %v1039
      %1041 = vmatprep.subr.mxu0 0.0
      %1042 = vmatpush1.msra.mxu0 0.0
      %1043 = vmatprep.subr.mxu0 0.0
      %1044 = vmatpush1.msra.mxu0 0.0
      %1045 = vmatprep.subr.mxu0 0.0
      %1046 = vmatpush1.msra.mxu0 0.0
      %1047 = vmatprep.subr.mxu0 0.0
      %1048 = vmatpush1.msra.mxu0 0.0
      %1049 = vmatprep.subr.mxu0 0.0
      %1050 = vmatpush1.msra.mxu0 0.0
      %1051 = vmatprep.subr.mxu0 0.0
      %1052 = vmatpush1.msra.mxu0 0.0
      %1053 = vmatprep.subr.mxu0 0.0
      %1054 = vmatpush1.msra.mxu0 0.0
      %1055 = vmatprep.subr.mxu0 0.0
      %1056 = vmatpush1.msra.mxu0 0.0
      %1057 = vmatprep.subr.mxu0 0.0
      %1058 = vmatpush1.msra.mxu0 0.0
      %1059 = vmatprep.subr.mxu0 0.0
      %1060 = vmatpush1.msra.mxu0 0.0
      %1061 = vmatprep.subr.mxu0 0.0
      %1062 = vmatpush1.msra.mxu0 0.0
      %1063 = vmatprep.subr.mxu0 0.0
      %1064 = vmatpush1.msra.mxu0 0.0
      %1065 = vmatprep.subr.mxu0 0.0
      %1066 = vmatpush1.msra.mxu0 0.0
      %1067 = vmatprep.subr.mxu0 0.0
      %1068 = vmatpush1.msra.mxu0 0.0
      %1069 = vmatprep.subr.mxu0 0.0
      %1070 = vmatpush1.msra.mxu0 0.0
      %1071 = vmatprep.subr.mxu0 0.0
      %1072 = vmatpush1.msra.mxu0 0.0
      %1073 = vmatprep.subr.mxu0 0.0
      %1074 = vmatpush1.msra.mxu0 0.0
      %1075 = vmatprep.subr.mxu0 0.0
      %1076 = vmatpush1.msra.mxu0 0.0
      %1077 = vmatprep.subr.mxu0 0.0
      %1078 = vmatpush1.msra.mxu0 0.0
      %1079 = vmatprep.subr.mxu0 0.0
      %1080 = vmatpush1.msra.mxu0 0.0
      %1081 = vmatprep.subr.mxu0 0.0
      %1082 = vmatpush1.msra.mxu0 0.0
      %1083 = vmatprep.subr.mxu0 0.0
      %1084 = vmatpush1.msra.mxu0 0.0
      %1085 = vmatprep.subr.mxu0 0.0
      %1086 = vmatpush1.msra.mxu0 0.0
      %1087 = vmatprep.subr.mxu0 0.0
      %1088 = vmatpush1.msra.mxu0 0.0
      %1089 = vmatprep.subr.mxu0 0.0
      %1090 = vmatpush1.msra.mxu0 0.0
      %1091 = vmatprep.subr.mxu0 0.0
      %1092 = vmatpush1.msra.mxu0 0.0
      %1093 = vmatprep.subr.mxu0 0.0
      %1094 = vmatpush1.msra.mxu0 0.0
      %1095 = vmatprep.subr.mxu0 0.0
      %1096 = vmatpush1.msra.mxu0 0.0
      %1097 = vmatprep.subr.mxu0 0.0
      %1098 = vmatpush1.msra.mxu0 0.0
      %1099 = vmatprep.subr.mxu0 0.0
      %1100 = vmatpush1.msra.mxu0 0.0
      %1101 = vmatprep.subr.mxu0 0.0
      %1102 = vmatpush1.msra.mxu0 0.0
      %1103 = vmatprep.mubr.f32.mxu0 0.0
      %v1104 = vand.u32 %v190, 4294901760
      %1105 = vmatmul.mubr.f32.gmra.mrb[0].mxu0 %v1104
      %v1106 = vpop.f32.mrb[0].mxu0
      %v1107 = vadd.f32 %v1035, %v1106
      %v1108 = vpop.f32.mrb[0].mxu0
      %1109 = vdwg.mxu0
      %v1111 = vsel %vm188, %v173, 0
      %v1113 = vsel %vm192, %v171, 0
      %v1115 = vsel %vm192, %v178, 0
      %v1117 = vsel %vm192, %v172, 0
      %v1119 = vand.u32 %v1115, 4294901760
      %1120 = vmatprep.subr.mxu0 %v1119
      %v1121 = vand.u32 %v1113, 4294901760
      %1122 = vmatpush1.msra.mxu0 %v1121
      %1123 = vmatprep.subr.mxu0 0.0
      %1124 = vmatpush1.msra.mxu0 0.0
      %1125 = vmatprep.subr.mxu0 0.0
      %1126 = vmatpush1.msra.mxu0 0.0
      %1127 = vmatprep.subr.mxu0 0.0
      %1128 = vmatpush1.msra.mxu0 0.0
      %1129 = vmatprep.subr.mxu0 0.0
      %1130 = vmatpush1.msra.mxu0 0.0
      %1131 = vmatprep.subr.mxu0 0.0
      %1132 = vmatpush1.msra.mxu0 0.0
      %1133 = vmatprep.subr.mxu0 0.0
      %1134 = vmatpush1.msra.mxu0 0.0
      %1135 = vmatprep.subr.mxu0 0.0
      %1136 = vmatpush1.msra.mxu0 0.0
      %1137 = vmatprep.subr.mxu0 0.0
      %1138 = vmatpush1.msra.mxu0 0.0
      %1139 = vmatprep.subr.mxu0 0.0
      %1140 = vmatpush1.msra.mxu0 0.0
      %1141 = vmatprep.subr.mxu0 0.0
      %1142 = vmatpush1.msra.mxu0 0.0
      %1143 = vmatprep.subr.mxu0 0.0
      %1144 = vmatpush1.msra.mxu0 0.0
      %1145 = vmatprep.subr.mxu0 0.0
      %1146 = vmatpush1.msra.mxu0 0.0
      %1147 = vmatprep.subr.mxu0 0.0
      %1148 = vmatpush1.msra.mxu0 0.0
      %1149 = vmatprep.subr.mxu0 0.0
      %1150 = vmatpush1.msra.mxu0 0.0
      %1151 = vmatprep.subr.mxu0 0.0
      %1152 = vmatpush1.msra.mxu0 0.0
      %1153 = vmatprep.subr.mxu0 0.0
      %1154 = vmatpush1.msra.mxu0 0.0
      %1155 = vmatprep.subr.mxu0 0.0
      %1156 = vmatpush1.msra.mxu0 0.0
      %1157 = vmatprep.subr.mxu0 0.0
      %1158 = vmatpush1.msra.mxu0 0.0
      %1159 = vmatprep.subr.mxu0 0.0
      %1160 = vmatpush1.msra.mxu0 0.0
      %1161 = vmatprep.subr.mxu0 0.0
      %1162 = vmatpush1.msra.mxu0 0.0
      %1163 = vmatprep.subr.mxu0 0.0
      %1164 = vmatpush1.msra.mxu0 0.0
      %1165 = vmatprep.subr.mxu0 0.0
      %1166 = vmatpush1.msra.mxu0 0.0
      %1167 = vmatprep.subr.mxu0 0.0
      %1168 = vmatpush1.msra.mxu0 0.0
      %1169 = vmatprep.subr.mxu0 0.0
      %1170 = vmatpush1.msra.mxu0 0.0
      %1171 = vmatprep.subr.mxu0 0.0
      %1172 = vmatpush1.msra.mxu0 0.0
      %1173 = vmatprep.subr.mxu0 0.0
      %1174 = vmatpush1.msra.mxu0 0.0
      %1175 = vmatprep.subr.mxu0 0.0
      %1176 = vmatpush1.msra.mxu0 0.0
      %1177 = vmatprep.subr.mxu0 0.0
      %1178 = vmatpush1.msra.mxu0 0.0
      %1179 = vmatprep.subr.mxu0 0.0
      %1180 = vmatpush1.msra.mxu0 0.0
      %1181 = vmatprep.subr.mxu0 0.0
      %1182 = vmatpush1.msra.mxu0 0.0
      %1183 = vmatprep.subr.mxu0 0.0
      %1184 = vmatpush1.msra.mxu0 0.0
      %1185 = vmatprep.mubr.f32.mxu0 0.0
      %v1186 = vand.u32 %v1111, 4294901760
      %v1187 = vsub.f32 %v1111, %v1186
      %v1188 = vand.u32 %v1187, 4294901760
      %v1189 = vsub.f32 %v1187, %v1188
      %v1190 = vand.u32 %v1189, 4294901760
      %1191 = vmatmul.mubr.f32.gmra.mrb[0].mxu0 %v1190
      %v1192 = vpop.f32.mrb[0].mxu0
      %v1193 = vadd.f32 %v660, %v1192
      %v1194 = vpop.f32.mrb[0].mxu0
      %v1195 = vadd.f32 %v662, %v1194
      %1196 = vdwg.mxu0
      %v1197 = vand.u32 %v1115, 4294901760
      %v1198 = vsub.f32 %v1115, %v1197
      %v1199 = vand.u32 %v1198, 4294901760
      %v1200 = vsub.f32 %v1198, %v1199
      %v1201 = vand.u32 %v1200, 4294901760
      %1202 = vmatprep.subr.mxu0 %v1201
      %v1203 = vand.u32 %v1113, 4294901760
      %v1204 = vsub.f32 %v1113, %v1203
      %v1205 = vand.u32 %v1204, 4294901760
      %v1206 = vsub.f32 %v1204, %v1205
      %v1207 = vand.u32 %v1206, 4294901760
      %1208 = vmatpush1.msra.mxu0 %v1207
      %1209 = vmatprep.subr.mxu0 0.0
      %1210 = vmatpush1.msra.mxu0 0.0
      %1211 = vmatprep.subr.mxu0 0.0
      %1212 = vmatpush1.msra.mxu0 0.0
      %1213 = vmatprep.subr.mxu0 0.0
      %1214 = vmatpush1.msra.mxu0 0.0
      %1215 = vmatprep.subr.mxu0 0.0
      %1216 = vmatpush1.msra.mxu0 0.0
      %1217 = vmatprep.subr.mxu0 0.0
      %1218 = vmatpush1.msra.mxu0 0.0
      %1219 = vmatprep.subr.mxu0 0.0
      %1220 = vmatpush1.msra.mxu0 0.0
      %1221 = vmatprep.subr.mxu0 0.0
      %1222 = vmatpush1.msra.mxu0 0.0
      %1223 = vmatprep.subr.mxu0 0.0
      %1224 = vmatpush1.msra.mxu0 0.0
      %1225 = vmatprep.subr.mxu0 0.0
      %1226 = vmatpush1.msra.mxu0 0.0
      %1227 = vmatprep.subr.mxu0 0.0
      %1228 = vmatpush1.msra.mxu0 0.0
      %1229 = vmatprep.subr.mxu0 0.0
      %1230 = vmatpush1.msra.mxu0 0.0
      %1231 = vmatprep.subr.mxu0 0.0
      %1232 = vmatpush1.msra.mxu0 0.0
      %1233 = vmatprep.subr.mxu0 0.0
      %1234 = vmatpush1.msra.mxu0 0.0
      %1235 = vmatprep.subr.mxu0 0.0
      %1236 = vmatpush1.msra.mxu0 0.0
      %1237 = vmatprep.subr.mxu0 0.0
      %1238 = vmatpush1.msra.mxu0 0.0
      %1239 = vmatprep.subr.mxu0 0.0
      %1240 = vmatpush1.msra.mxu0 0.0
      %1241 = vmatprep.subr.mxu0 0.0
      %1242 = vmatpush1.msra.mxu0 0.0
      %1243 = vmatprep.subr.mxu0 0.0
      %1244 = vmatpush1.msra.mxu0 0.0
      %1245 = vmatprep.subr.mxu0 0.0
      %1246 = vmatpush1.msra.mxu0 0.0
      %1247 = vmatprep.subr.mxu0 0.0
      %1248 = vmatpush1.msra.mxu0 0.0
      %1249 = vmatprep.subr.mxu0 0.0
      %1250 = vmatpush1.msra.mxu0 0.0
      %1251 = vmatprep.subr.mxu0 0.0
      %1252 = vmatpush1.msra.mxu0 0.0
      %1253 = vmatprep.subr.mxu0 0.0
      %1254 = vmatpush1.msra.mxu0 0.0
      %1255 = vmatprep.subr.mxu0 0.0
      %1256 = vmatpush1.msra.mxu0 0.0
      %1257 = vmatprep.subr.mxu0 0.0
      %1258 = vmatpush1.msra.mxu0 0.0
      %1259 = vmatprep.subr.mxu0 0.0
      %1260 = vmatpush1.msra.mxu0 0.0
      %1261 = vmatprep.subr.mxu0 0.0
      %1262 = vmatpush1.msra.mxu0 0.0
      %1263 = vmatprep.subr.mxu0 0.0
      %1264 = vmatpush1.msra.mxu0 0.0
      %1265 = vmatprep.subr.mxu0 0.0
      %1266 = vmatpush1.msra.mxu0 0.0
      %1267 = vmatprep.subr.mxu0 0.0
      %1268 = vmatpush1.msra.mxu0 0.0
      %1269 = vmatprep.subr.mxu0 0.0
      %1270 = vmatpush1.msra.mxu0 0.0
      %1271 = vmatprep.mubr.f32.mxu0 0.0
      %v1272 = vand.u32 %v1111, 4294901760
      %1273 = vmatmul.mubr.f32.gmra.mrb[0].mxu0 %v1272
      %v1274 = vpop.f32.mrb[0].mxu0
      %v1275 = vadd.f32 %v1193, %v1274
      %v1276 = vpop.f32.mrb[0].mxu0
      %v1277 = vadd.f32 %v1195, %v1276
      %1278 = vdwg.mxu0
      %v1279 = vand.u32 %v1115, 4294901760
      %v1280 = vsub.f32 %v1115, %v1279
      %1281 = vmatprep.subr.mxu0 %v1280
      %v1282 = vand.u32 %v1113, 4294901760
      %v1283 = vsub.f32 %v1113, %v1282
      %1284 = vmatpush1.msra.mxu0 %v1283
      %1285 = vmatprep.subr.mxu0 0.0
      %1286 = vmatpush1.msra.mxu0 0.0
      %1287 = vmatprep.subr.mxu0 0.0
      %1288 = vmatpush1.msra.mxu0 0.0
      %1289 = vmatprep.subr.mxu0 0.0
      %1290 = vmatpush1.msra.mxu0 0.0
      %1291 = vmatprep.subr.mxu0 0.0
      %1292 = vmatpush1.msra.mxu0 0.0
      %1293 = vmatprep.subr.mxu0 0.0
      %1294 = vmatpush1.msra.mxu0 0.0
      %1295 = vmatprep.subr.mxu0 0.0
      %1296 = vmatpush1.msra.mxu0 0.0
      %1297 = vmatprep.subr.mxu0 0.0
      %1298 = vmatpush1.msra.mxu0 0.0
      %1299 = vmatprep.subr.mxu0 0.0
      %1300 = vmatpush1.msra.mxu0 0.0
      %1301 = vmatprep.subr.mxu0 0.0
      %1302 = vmatpush1.msra.mxu0 0.0
      %1303 = vmatprep.subr.mxu0 0.0
      %1304 = vmatpush1.msra.mxu0 0.0
      %1305 = vmatprep.subr.mxu0 0.0
      %1306 = vmatpush1.msra.mxu0 0.0
      %1307 = vmatprep.subr.mxu0 0.0
      %1308 = vmatpush1.msra.mxu0 0.0
      %1309 = vmatprep.subr.mxu0 0.0
      %1310 = vmatpush1.msra.mxu0 0.0
      %1311 = vmatprep.subr.mxu0 0.0
      %1312 = vmatpush1.msra.mxu0 0.0
      %1313 = vmatprep.subr.mxu0 0.0
      %1314 = vmatpush1.msra.mxu0 0.0
      %1315 = vmatprep.subr.mxu0 0.0
      %1316 = vmatpush1.msra.mxu0 0.0
      %1317 = vmatprep.subr.mxu0 0.0
      %1318 = vmatpush1.msra.mxu0 0.0
      %1319 = vmatprep.subr.mxu0 0.0
      %1320 = vmatpush1.msra.mxu0 0.0
      %1321 = vmatprep.subr.mxu0 0.0
      %1322 = vmatpush1.msra.mxu0 0.0
      %1323 = vmatprep.subr.mxu0 0.0
      %1324 = vmatpush1.msra.mxu0 0.0
      %1325 = vmatprep.subr.mxu0 0.0
      %1326 = vmatpush1.msra.mxu0 0.0
      %1327 = vmatprep.subr.mxu0 0.0
      %1328 = vmatpush1.msra.mxu0 0.0
      %1329 = vmatprep.subr.mxu0 0.0
      %1330 = vmatpush1.msra.mxu0 0.0
      %1331 = vmatprep.subr.mxu0 0.0
      %1332 = vmatpush1.msra.mxu0 0.0
      %1333 = vmatprep.subr.mxu0 0.0
      %1334 = vmatpush1.msra.mxu0 0.0
      %1335 = vmatprep.subr.mxu0 0.0
      %1336 = vmatpush1.msra.mxu0 0.0
      %1337 = vmatprep.subr.mxu0 0.0
      %1338 = vmatpush1.msra.mxu0 0.0
      %1339 = vmatprep.subr.mxu0 0.0
      %1340 = vmatpush1.msra.mxu0 0.0
      %1341 = vmatprep.subr.mxu0 0.0
      %1342 = vmatpush1.msra.mxu0 0.0
      %1343 = vmatprep.subr.mxu0 0.0
      %1344 = vmatpush1.msra.mxu0 0.0
      %1345 = vmatprep.subr.mxu0 0.0
      %1346 = vmatpush1.msra.mxu0 0.0
      %1347 = vmatprep.mubr.f32.mxu0 0.0
      %v1348 = vand.u32 %v1111, 4294901760
      %v1349 = vsub.f32 %v1111, %v1348
      %1350 = vmatmul.mubr.f32.gmra.mrb[0].mxu0 %v1349
      %v1351 = vpop.f32.mrb[0].mxu0
      %v1352 = vadd.f32 %v1275, %v1351
      %v1353 = vpop.f32.mrb[0].mxu0
      %v1354 = vadd.f32 %v1277, %v1353
      %1355 = vdwg.mxu0
      %v1356 = vand.u32 %v1115, 4294901760
      %1357 = vmatprep.subr.mxu0 %v1356
      %v1358 = vand.u32 %v1113, 4294901760
      %1359 = vmatpush1.msra.mxu0 %v1358
      %1360 = vmatprep.subr.mxu0 0.0
      %1361 = vmatpush1.msra.mxu0 0.0
      %1362 = vmatprep.subr.mxu0 0.0
      %1363 = vmatpush1.msra.mxu0 0.0
      %1364 = vmatprep.subr.mxu0 0.0
      %1365 = vmatpush1.msra.mxu0 0.0
      %1366 = vmatprep.subr.mxu0 0.0
      %1367 = vmatpush1.msra.mxu0 0.0
      %1368 = vmatprep.subr.mxu0 0.0
      %1369 = vmatpush1.msra.mxu0 0.0
      %1370 = vmatprep.subr.mxu0 0.0
      %1371 = vmatpush1.msra.mxu0 0.0
      %1372 = vmatprep.subr.mxu0 0.0
      %1373 = vmatpush1.msra.mxu0 0.0
      %1374 = vmatprep.subr.mxu0 0.0
      %1375 = vmatpush1.msra.mxu0 0.0
      %1376 = vmatprep.subr.mxu0 0.0
      %1377 = vmatpush1.msra.mxu0 0.0
      %1378 = vmatprep.subr.mxu0 0.0
      %1379 = vmatpush1.msra.mxu0 0.0
      %1380 = vmatprep.subr.mxu0 0.0
      %1381 = vmatpush1.msra.mxu0 0.0
      %1382 = vmatprep.subr.mxu0 0.0
      %1383 = vmatpush1.msra.mxu0 0.0
      %1384 = vmatprep.subr.mxu0 0.0
      %1385 = vmatpush1.msra.mxu0 0.0
      %1386 = vmatprep.subr.mxu0 0.0
      %1387 = vmatpush1.msra.mxu0 0.0
      %1388 = vmatprep.subr.mxu0 0.0
      %1389 = vmatpush1.msra.mxu0 0.0
      %1390 = vmatprep.subr.mxu0 0.0
      %1391 = vmatpush1.msra.mxu0 0.0
      %1392 = vmatprep.subr.mxu0 0.0
      %1393 = vmatpush1.msra.mxu0 0.0
      %1394 = vmatprep.subr.mxu0 0.0
      %1395 = vmatpush1.msra.mxu0 0.0
      %1396 = vmatprep.subr.mxu0 0.0
      %1397 = vmatpush1.msra.mxu0 0.0
      %1398 = vmatprep.subr.mxu0 0.0
      %1399 = vmatpush1.msra.mxu0 0.0
      %1400 = vmatprep.subr.mxu0 0.0
      %1401 = vmatpush1.msra.mxu0 0.0
      %1402 = vmatprep.subr.mxu0 0.0
      %1403 = vmatpush1.msra.mxu0 0.0
      %1404 = vmatprep.subr.mxu0 0.0
      %1405 = vmatpush1.msra.mxu0 0.0
      %1406 = vmatprep.subr.mxu0 0.0
      %1407 = vmatpush1.msra.mxu0 0.0
      %1408 = vmatprep.subr.mxu0 0.0
      %1409 = vmatpush1.msra.mxu0 0.0
      %1410 = vmatprep.subr.mxu0 0.0
      %1411 = vmatpush1.msra.mxu0 0.0
      %1412 = vmatprep.subr.mxu0 0.0
      %1413 = vmatpush1.msra.mxu0 0.0
      %1414 = vmatprep.subr.mxu0 0.0
      %1415 = vmatpush1.msra.mxu0 0.0
      %1416 = vmatprep.subr.mxu0 0.0
      %1417 = vmatpush1.msra.mxu0 0.0
      %1418 = vmatprep.subr.mxu0 0.0
      %1419 = vmatpush1.msra.mxu0 0.0
      %1420 = vmatprep.subr.mxu0 0.0
      %1421 = vmatpush1.msra.mxu0 0.0
      %1422 = vmatprep.mubr.f32.mxu0 0.0
      %v1423 = vand.u32 %v1111, 4294901760
      %v1424 = vsub.f32 %v1111, %v1423
      %v1425 = vand.u32 %v1424, 4294901760
      %1426 = vmatmul.mubr.f32.gmra.mrb[0].mxu0 %v1425
      %v1427 = vpop.f32.mrb[0].mxu0
      %v1428 = vadd.f32 %v1352, %v1427
      %v1429 = vpop.f32.mrb[0].mxu0
      %v1430 = vadd.f32 %v1354, %v1429
      %1431 = vdwg.mxu0
      %v1432 = vand.u32 %v1115, 4294901760
      %v1433 = vsub.f32 %v1115, %v1432
      %v1434 = vand.u32 %v1433, 4294901760
      %1435 = vmatprep.subr.mxu0 %v1434
      %v1436 = vand.u32 %v1113, 4294901760
      %v1437 = vsub.f32 %v1113, %v1436
      %v1438 = vand.u32 %v1437, 4294901760
      %1439 = vmatpush1.msra.mxu0 %v1438
      %1440 = vmatprep.subr.mxu0 0.0
      %1441 = vmatpush1.msra.mxu0 0.0
      %1442 = vmatprep.subr.mxu0 0.0
      %1443 = vmatpush1.msra.mxu0 0.0
      %1444 = vmatprep.subr.mxu0 0.0
      %1445 = vmatpush1.msra.mxu0 0.0
      %1446 = vmatprep.subr.mxu0 0.0
      %1447 = vmatpush1.msra.mxu0 0.0
      %1448 = vmatprep.subr.mxu0 0.0
      %1449 = vmatpush1.msra.mxu0 0.0
      %1450 = vmatprep.subr.mxu0 0.0
      %1451 = vmatpush1.msra.mxu0 0.0
      %1452 = vmatprep.subr.mxu0 0.0
      %1453 = vmatpush1.msra.mxu0 0.0
      %1454 = vmatprep.subr.mxu0 0.0
      %1455 = vmatpush1.msra.mxu0 0.0
      %1456 = vmatprep.subr.mxu0 0.0
      %1457 = vmatpush1.msra.mxu0 0.0
      %1458 = vmatprep.subr.mxu0 0.0
      %1459 = vmatpush1.msra.mxu0 0.0
      %1460 = vmatprep.subr.mxu0 0.0
      %1461 = vmatpush1.msra.mxu0 0.0
      %1462 = vmatprep.subr.mxu0 0.0
      %1463 = vmatpush1.msra.mxu0 0.0
      %1464 = vmatprep.subr.mxu0 0.0
      %1465 = vmatpush1.msra.mxu0 0.0
      %1466 = vmatprep.subr.mxu0 0.0
      %1467 = vmatpush1.msra.mxu0 0.0
      %1468 = vmatprep.subr.mxu0 0.0
      %1469 = vmatpush1.msra.mxu0 0.0
      %1470 = vmatprep.subr.mxu0 0.0
      %1471 = vmatpush1.msra.mxu0 0.0
      %1472 = vmatprep.subr.mxu0 0.0
      %1473 = vmatpush1.msra.mxu0 0.0
      %1474 = vmatprep.subr.mxu0 0.0
      %1475 = vmatpush1.msra.mxu0 0.0
      %1476 = vmatprep.subr.mxu0 0.0
      %1477 = vmatpush1.msra.mxu0 0.0
      %1478 = vmatprep.subr.mxu0 0.0
      %1479 = vmatpush1.msra.mxu0 0.0
      %1480 = vmatprep.subr.mxu0 0.0
      %1481 = vmatpush1.msra.mxu0 0.0
      %1482 = vmatprep.subr.mxu0 0.0
      %1483 = vmatpush1.msra.mxu0 0.0
      %1484 = vmatprep.subr.mxu0 0.0
      %1485 = vmatpush1.msra.mxu0 0.0
      %1486 = vmatprep.subr.mxu0 0.0
      %1487 = vmatpush1.msra.mxu0 0.0
      %1488 = vmatprep.subr.mxu0 0.0
      %1489 = vmatpush1.msra.mxu0 0.0
      %1490 = vmatprep.subr.mxu0 0.0
      %1491 = vmatpush1.msra.mxu0 0.0
      %1492 = vmatprep.subr.mxu0 0.0
      %1493 = vmatpush1.msra.mxu0 0.0
      %1494 = vmatprep.subr.mxu0 0.0
      %1495 = vmatpush1.msra.mxu0 0.0
      %1496 = vmatprep.subr.mxu0 0.0
      %1497 = vmatpush1.msra.mxu0 0.0
      %1498 = vmatprep.subr.mxu0 0.0
      %1499 = vmatpush1.msra.mxu0 0.0
      %1500 = vmatprep.subr.mxu0 0.0
      %1501 = vmatpush1.msra.mxu0 0.0
      %1502 = vmatprep.mubr.f32.mxu0 0.0
      %v1503 = vand.u32 %v1111, 4294901760
      %1504 = vmatmul.mubr.f32.gmra.mrb[0].mxu0 %v1503
      %v1505 = vpop.f32.mrb[0].mxu0
      %v1506 = vadd.f32 %v1428, %v1505
      %v1507 = vpop.f32.mrb[0].mxu0
      %v1508 = vadd.f32 %v1430, %v1507
      %1509 = vdwg.mxu0
      %v1510 = vand.u32 %v1115, 4294901760
      %1511 = vmatprep.subr.mxu0 %v1510
      %v1512 = vand.u32 %v1113, 4294901760
      %1513 = vmatpush1.msra.mxu0 %v1512
      %1514 = vmatprep.subr.mxu0 0.0
      %1515 = vmatpush1.msra.mxu0 0.0
      %1516 = vmatprep.subr.mxu0 0.0
      %1517 = vmatpush1.msra.mxu0 0.0
      %1518 = vmatprep.subr.mxu0 0.0
      %1519 = vmatpush1.msra.mxu0 0.0
      %1520 = vmatprep.subr.mxu0 0.0
      %1521 = vmatpush1.msra.mxu0 0.0
      %1522 = vmatprep.subr.mxu0 0.0
      %1523 = vmatpush1.msra.mxu0 0.0
      %1524 = vmatprep.subr.mxu0 0.0
      %1525 = vmatpush1.msra.mxu0 0.0
      %1526 = vmatprep.subr.mxu0 0.0
      %1527 = vmatpush1.msra.mxu0 0.0
      %1528 = vmatprep.subr.mxu0 0.0
      %1529 = vmatpush1.msra.mxu0 0.0
      %1530 = vmatprep.subr.mxu0 0.0
      %1531 = vmatpush1.msra.mxu0 0.0
      %1532 = vmatprep.subr.mxu0 0.0
      %1533 = vmatpush1.msra.mxu0 0.0
      %1534 = vmatprep.subr.mxu0 0.0
      %1535 = vmatpush1.msra.mxu0 0.0
      %1536 = vmatprep.subr.mxu0 0.0
      %1537 = vmatpush1.msra.mxu0 0.0
      %1538 = vmatprep.subr.mxu0 0.0
      %1539 = vmatpush1.msra.mxu0 0.0
      %1540 = vmatprep.subr.mxu0 0.0
      %1541 = vmatpush1.msra.mxu0 0.0
      %1542 = vmatprep.subr.mxu0 0.0
      %1543 = vmatpush1.msra.mxu0 0.0
      %1544 = vmatprep.subr.mxu0 0.0
      %1545 = vmatpush1.msra.mxu0 0.0
      %1546 = vmatprep.subr.mxu0 0.0
      %1547 = vmatpush1.msra.mxu0 0.0
      %1548 = vmatprep.subr.mxu0 0.0
      %1549 = vmatpush1.msra.mxu0 0.0
      %1550 = vmatprep.subr.mxu0 0.0
      %1551 = vmatpush1.msra.mxu0 0.0
      %1552 = vmatprep.subr.mxu0 0.0
      %1553 = vmatpush1.msra.mxu0 0.0
      %1554 = vmatprep.subr.mxu0 0.0
      %1555 = vmatpush1.msra.mxu0 0.0
      %1556 = vmatprep.subr.mxu0 0.0
      %1557 = vmatpush1.msra.mxu0 0.0
      %1558 = vmatprep.subr.mxu0 0.0
      %1559 = vmatpush1.msra.mxu0 0.0
      %1560 = vmatprep.subr.mxu0 0.0
      %1561 = vmatpush1.msra.mxu0 0.0
      %1562 = vmatprep.subr.mxu0 0.0
      %1563 = vmatpush1.msra.mxu0 0.0
      %1564 = vmatprep.subr.mxu0 0.0
      %1565 = vmatpush1.msra.mxu0 0.0
      %1566 = vmatprep.subr.mxu0 0.0
      %1567 = vmatpush1.msra.mxu0 0.0
      %1568 = vmatprep.subr.mxu0 0.0
      %1569 = vmatpush1.msra.mxu0 0.0
      %1570 = vmatprep.subr.mxu0 0.0
      %1571 = vmatpush1.msra.mxu0 0.0
      %1572 = vmatprep.subr.mxu0 0.0
      %1573 = vmatpush1.msra.mxu0 0.0
      %1574 = vmatprep.subr.mxu0 0.0
      %1575 = vmatpush1.msra.mxu0 0.0
      %1576 = vmatprep.mubr.f32.mxu0 0.0
      %v1577 = vand.u32 %v1111, 4294901760
      %1578 = vmatmul.mubr.f32.gmra.mrb[0].mxu0 %v1577
      %v1579 = vpop.f32.mrb[0].mxu0
      %v1580 = vadd.f32 %v1506, %v1579
      %v1581 = vpop.f32.mrb[0].mxu0
      %v1582 = vadd.f32 %v1508, %v1581
      %1583 = vdwg.mxu0
      %1584 = vmatprep.subr.mxu0 0.0
      %v1585 = vand.u32 %v1117, 4294901760
      %1586 = vmatpush1.msra.mxu0 %v1585
      %1587 = vmatprep.subr.mxu0 0.0
      %1588 = vmatpush1.msra.mxu0 0.0
      %1589 = vmatprep.subr.mxu0 0.0
      %1590 = vmatpush1.msra.mxu0 0.0
      %1591 = vmatprep.subr.mxu0 0.0
      %1592 = vmatpush1.msra.mxu0 0.0
      %1593 = vmatprep.subr.mxu0 0.0
      %1594 = vmatpush1.msra.mxu0 0.0
      %1595 = vmatprep.subr.mxu0 0.0
      %1596 = vmatpush1.msra.mxu0 0.0
      %1597 = vmatprep.subr.mxu0 0.0
      %1598 = vmatpush1.msra.mxu0 0.0
      %1599 = vmatprep.subr.mxu0 0.0
      %1600 = vmatpush1.msra.mxu0 0.0
      %1601 = vmatprep.subr.mxu0 0.0
      %1602 = vmatpush1.msra.mxu0 0.0
      %1603 = vmatprep.subr.mxu0 0.0
      %1604 = vmatpush1.msra.mxu0 0.0
      %1605 = vmatprep.subr.mxu0 0.0
      %1606 = vmatpush1.msra.mxu0 0.0
      %1607 = vmatprep.subr.mxu0 0.0
      %1608 = vmatpush1.msra.mxu0 0.0
      %1609 = vmatprep.subr.mxu0 0.0
      %1610 = vmatpush1.msra.mxu0 0.0
      %1611 = vmatprep.subr.mxu0 0.0
      %1612 = vmatpush1.msra.mxu0 0.0
      %1613 = vmatprep.subr.mxu0 0.0
      %1614 = vmatpush1.msra.mxu0 0.0
      %1615 = vmatprep.subr.mxu0 0.0
      %1616 = vmatpush1.msra.mxu0 0.0
      %1617 = vmatprep.subr.mxu0 0.0
      %1618 = vmatpush1.msra.mxu0 0.0
      %1619 = vmatprep.subr.mxu0 0.0
      %1620 = vmatpush1.msra.mxu0 0.0
      %1621 = vmatprep.subr.mxu0 0.0
      %1622 = vmatpush1.msra.mxu0 0.0
      %1623 = vmatprep.subr.mxu0 0.0
      %1624 = vmatpush1.msra.mxu0 0.0
      %1625 = vmatprep.subr.mxu0 0.0
      %1626 = vmatpush1.msra.mxu0 0.0
      %1627 = vmatprep.subr.mxu0 0.0
      %1628 = vmatpush1.msra.mxu0 0.0
      %1629 = vmatprep.subr.mxu0 0.0
      %1630 = vmatpush1.msra.mxu0 0.0
      %1631 = vmatprep.subr.mxu0 0.0
      %1632 = vmatpush1.msra.mxu0 0.0
      %1633 = vmatprep.subr.mxu0 0.0
      %1634 = vmatpush1.msra.mxu0 0.0
      %1635 = vmatprep.subr.mxu0 0.0
      %1636 = vmatpush1.msra.mxu0 0.0
      %1637 = vmatprep.subr.mxu0 0.0
      %1638 = vmatpush1.msra.mxu0 0.0
      %1639 = vmatprep.subr.mxu0 0.0
      %1640 = vmatpush1.msra.mxu0 0.0
      %1641 = vmatprep.subr.mxu0 0.0
      %1642 = vmatpush1.msra.mxu0 0.0
      %1643 = vmatprep.subr.mxu0 0.0
      %1644 = vmatpush1.msra.mxu0 0.0
      %1645 = vmatprep.subr.mxu0 0.0
      %1646 = vmatpush1.msra.mxu0 0.0
      %1647 = vmatprep.subr.mxu0 0.0
      %1648 = vmatpush1.msra.mxu0 0.0
      %1649 = vmatprep.mubr.f32.mxu0 0.0
      %v1650 = vand.u32 %v1111, 4294901760
      %v1651 = vsub.f32 %v1111, %v1650
      %v1652 = vand.u32 %v1651, 4294901760
      %v1653 = vsub.f32 %v1651, %v1652
      %v1654 = vand.u32 %v1653, 4294901760
      %1655 = vmatmul.mubr.f32.gmra.mrb[0].mxu0 %v1654
      %v1656 = vpop.f32.mrb[0].mxu0
      %v1657 = vadd.f32 %v1107, %v1656
      %v1658 = vpop.f32.mrb[0].mxu0
      %1659 = vdwg.mxu0
      %1660 = vmatprep.subr.mxu0 0.0
      %v1661 = vand.u32 %v1117, 4294901760
      %v1662 = vsub.f32 %v1117, %v1661
      %v1663 = vand.u32 %v1662, 4294901760
      %v1664 = vsub.f32 %v1662, %v1663
      %v1665 = vand.u32 %v1664, 4294901760
      %1666 = vmatpush1.msra.mxu0 %v1665
      %1667 = vmatprep.subr.mxu0 0.0
      %1668 = vmatpush1.msra.mxu0 0.0
      %1669 = vmatprep.subr.mxu0 0.0
      %1670 = vmatpush1.msra.mxu0 0.0
      %1671 = vmatprep.subr.mxu0 0.0
      %1672 = vmatpush1.msra.mxu0 0.0
      %1673 = vmatprep.subr.mxu0 0.0
      %1674 = vmatpush1.msra.mxu0 0.0
      %1675 = vmatprep.subr.mxu0 0.0
      %1676 = vmatpush1.msra.mxu0 0.0
      %1677 = vmatprep.subr.mxu0 0.0
      %1678 = vmatpush1.msra.mxu0 0.0
      %1679 = vmatprep.subr.mxu0 0.0
      %1680 = vmatpush1.msra.mxu0 0.0
      %1681 = vmatprep.subr.mxu0 0.0
      %1682 = vmatpush1.msra.mxu0 0.0
      %1683 = vmatprep.subr.mxu0 0.0
      %1684 = vmatpush1.msra.mxu0 0.0
      %1685 = vmatprep.subr.mxu0 0.0
      %1686 = vmatpush1.msra.mxu0 0.0
      %1687 = vmatprep.subr.mxu0 0.0
      %1688 = vmatpush1.msra.mxu0 0.0
      %1689 = vmatprep.subr.mxu0 0.0
      %1690 = vmatpush1.msra.mxu0 0.0
      %1691 = vmatprep.subr.mxu0 0.0
      %1692 = vmatpush1.msra.mxu0 0.0
      %1693 = vmatprep.subr.mxu0 0.0
      %1694 = vmatpush1.msra.mxu0 0.0
      %1695 = vmatprep.subr.mxu0 0.0
      %1696 = vmatpush1.msra.mxu0 0.0
      %1697 = vmatprep.subr.mxu0 0.0
      %1698 = vmatpush1.msra.mxu0 0.0
      %1699 = vmatprep.subr.mxu0 0.0
      %1700 = vmatpush1.msra.mxu0 0.0
      %1701 = vmatprep.subr.mxu0 0.0
      %1702 = vmatpush1.msra.mxu0 0.0
      %1703 = vmatprep.subr.mxu0 0.0
      %1704 = vmatpush1.msra.mxu0 0.0
      %1705 = vmatprep.subr.mxu0 0.0
      %1706 = vmatpush1.msra.mxu0 0.0
      %1707 = vmatprep.subr.mxu0 0.0
      %1708 = vmatpush1.msra.mxu0 0.0
      %1709 = vmatprep.subr.mxu0 0.0
      %1710 = vmatpush1.msra.mxu0 0.0
      %1711 = vmatprep.subr.mxu0 0.0
      %1712 = vmatpush1.msra.mxu0 0.0
      %1713 = vmatprep.subr.mxu0 0.0
      %1714 = vmatpush1.msra.mxu0 0.0
      %1715 = vmatprep.subr.mxu0 0.0
      %1716 = vmatpush1.msra.mxu0 0.0
      %1717 = vmatprep.subr.mxu0 0.0
      %1718 = vmatpush1.msra.mxu0 0.0
      %1719 = vmatprep.subr.mxu0 0.0
      %1720 = vmatpush1.msra.mxu0 0.0
      %1721 = vmatprep.subr.mxu0 0.0
      %1722 = vmatpush1.msra.mxu0 0.0
      %1723 = vmatprep.subr.mxu0 0.0
      %1724 = vmatpush1.msra.mxu0 0.0
      %1725 = vmatprep.subr.mxu0 0.0
      %1726 = vmatpush1.msra.mxu0 0.0
      %1727 = vmatprep.subr.mxu0 0.0
      %1728 = vmatpush1.msra.mxu0 0.0
      %1729 = vmatprep.mubr.f32.mxu0 0.0
      %v1730 = vand.u32 %v1111, 4294901760
      %1731 = vmatmul.mubr.f32.gmra.mrb[0].mxu0 %v1730
      %v1732 = vpop.f32.mrb[0].mxu0
      %v1733 = vadd.f32 %v1657, %v1732
      %v1734 = vpop.f32.mrb[0].mxu0
      %1735 = vdwg.mxu0
      %1736 = vmatprep.subr.mxu0 0.0
      %v1737 = vand.u32 %v1117, 4294901760
      %v1738 = vsub.f32 %v1117, %v1737
      %1739 = vmatpush1.msra.mxu0 %v1738
      %1740 = vmatprep.subr.mxu0 0.0
      %1741 = vmatpush1.msra.mxu0 0.0
      %1742 = vmatprep.subr.mxu0 0.0
      %1743 = vmatpush1.msra.mxu0 0.0
      %1744 = vmatprep.subr.mxu0 0.0
      %1745 = vmatpush1.msra.mxu0 0.0
      %1746 = vmatprep.subr.mxu0 0.0
      %1747 = vmatpush1.msra.mxu0 0.0
      %1748 = vmatprep.subr.mxu0 0.0
      %1749 = vmatpush1.msra.mxu0 0.0
      %1750 = vmatprep.subr.mxu0 0.0
      %1751 = vmatpush1.msra.mxu0 0.0
      %1752 = vmatprep.subr.mxu0 0.0
      %1753 = vmatpush1.msra.mxu0 0.0
      %1754 = vmatprep.subr.mxu0 0.0
      %1755 = vmatpush1.msra.mxu0 0.0
      %1756 = vmatprep.subr.mxu0 0.0
      %1757 = vmatpush1.msra.mxu0 0.0
      %1758 = vmatprep.subr.mxu0 0.0
      %1759 = vmatpush1.msra.mxu0 0.0
      %1760 = vmatprep.subr.mxu0 0.0
      %1761 = vmatpush1.msra.mxu0 0.0
      %1762 = vmatprep.subr.mxu0 0.0
      %1763 = vmatpush1.msra.mxu0 0.0
      %1764 = vmatprep.subr.mxu0 0.0
      %1765 = vmatpush1.msra.mxu0 0.0
      %1766 = vmatprep.subr.mxu0 0.0
      %1767 = vmatpush1.msra.mxu0 0.0
      %1768 = vmatprep.subr.mxu0 0.0
      %1769 = vmatpush1.msra.mxu0 0.0
      %1770 = vmatprep.subr.mxu0 0.0
      %1771 = vmatpush1.msra.mxu0 0.0
      %1772 = vmatprep.subr.mxu0 0.0
      %1773 = vmatpush1.msra.mxu0 0.0
      %1774 = vmatprep.subr.mxu0 0.0
      %1775 = vmatpush1.msra.mxu0 0.0
      %1776 = vmatprep.subr.mxu0 0.0
      %1777 = vmatpush1.msra.mxu0 0.0
      %1778 = vmatprep.subr.mxu0 0.0
      %1779 = vmatpush1.msra.mxu0 0.0
      %1780 = vmatprep.subr.mxu0 0.0
      %1781 = vmatpush1.msra.mxu0 0.0
      %1782 = vmatprep.subr.mxu0 0.0
      %1783 = vmatpush1.msra.mxu0 0.0
      %1784 = vmatprep.subr.mxu0 0.0
      %1785 = vmatpush1.msra.mxu0 0.0
      %1786 = vmatprep.subr.mxu0 0.0
      %1787 = vmatpush1.msra.mxu0 0.0
      %1788 = vmatprep.subr.mxu0 0.0
      %1789 = vmatpush1.msra.mxu0 0.0
      %1790 = vmatprep.subr.mxu0 0.0
      %1791 = vmatpush1.msra.mxu0 0.0
      %1792 = vmatprep.subr.mxu0 0.0
      %1793 = vmatpush1.msra.mxu0 0.0
      %1794 = vmatprep.subr.mxu0 0.0
      %1795 = vmatpush1.msra.mxu0 0.0
      %1796 = vmatprep.subr.mxu0 0.0
      %1797 = vmatpush1.msra.mxu0 0.0
      %1798 = vmatprep.subr.mxu0 0.0
      %1799 = vmatpush1.msra.mxu0 0.0
      %1800 = vmatprep.subr.mxu0 0.0
      %1801 = vmatpush1.msra.mxu0 0.0
      %1802 = vmatprep.mubr.f32.mxu0 0.0
      %v1803 = vand.u32 %v1111, 4294901760
      %v1804 = vsub.f32 %v1111, %v1803
      %1805 = vmatmul.mubr.f32.gmra.mrb[0].mxu0 %v1804
      %v1806 = vpop.f32.mrb[0].mxu0
      %v1807 = vadd.f32 %v1733, %v1806
      %v1808 = vpop.f32.mrb[0].mxu0
      %1809 = vdwg.mxu0
      %1810 = vmatprep.subr.mxu0 0.0
      %v1811 = vand.u32 %v1117, 4294901760
      %1812 = vmatpush1.msra.mxu0 %v1811
      %1813 = vmatprep.subr.mxu0 0.0
      %1814 = vmatpush1.msra.mxu0 0.0
      %1815 = vmatprep.subr.mxu0 0.0
      %1816 = vmatpush1.msra.mxu0 0.0
      %1817 = vmatprep.subr.mxu0 0.0
      %1818 = vmatpush1.msra.mxu0 0.0
      %1819 = vmatprep.subr.mxu0 0.0
      %1820 = vmatpush1.msra.mxu0 0.0
      %1821 = vmatprep.subr.mxu0 0.0
      %1822 = vmatpush1.msra.mxu0 0.0
      %1823 = vmatprep.subr.mxu0 0.0
      %1824 = vmatpush1.msra.mxu0 0.0
      %1825 = vmatprep.subr.mxu0 0.0
      %1826 = vmatpush1.msra.mxu0 0.0
      %1827 = vmatprep.subr.mxu0 0.0
      %1828 = vmatpush1.msra.mxu0 0.0
      %1829 = vmatprep.subr.mxu0 0.0
      %1830 = vmatpush1.msra.mxu0 0.0
      %1831 = vmatprep.subr.mxu0 0.0
      %1832 = vmatpush1.msra.mxu0 0.0
      %1833 = vmatprep.subr.mxu0 0.0
      %1834 = vmatpush1.msra.mxu0 0.0
      %1835 = vmatprep.subr.mxu0 0.0
      %1836 = vmatpush1.msra.mxu0 0.0
      %1837 = vmatprep.subr.mxu0 0.0
      %1838 = vmatpush1.msra.mxu0 0.0
      %1839 = vmatprep.subr.mxu0 0.0
      %1840 = vmatpush1.msra.mxu0 0.0
      %1841 = vmatprep.subr.mxu0 0.0
      %1842 = vmatpush1.msra.mxu0 0.0
      %1843 = vmatprep.subr.mxu0 0.0
      %1844 = vmatpush1.msra.mxu0 0.0
      %1845 = vmatprep.subr.mxu0 0.0
      %1846 = vmatpush1.msra.mxu0 0.0
      %1847 = vmatprep.subr.mxu0 0.0
      %1848 = vmatpush1.msra.mxu0 0.0
      %1849 = vmatprep.subr.mxu0 0.0
      %1850 = vmatpush1.msra.mxu0 0.0
      %1851 = vmatprep.subr.mxu0 0.0
      %1852 = vmatpush1.msra.mxu0 0.0
      %1853 = vmatprep.subr.mxu0 0.0
      %1854 = vmatpush1.msra.mxu0 0.0
      %1855 = vmatprep.subr.mxu0 0.0
      %1856 = vmatpush1.msra.mxu0 0.0
      %1857 = vmatprep.subr.mxu0 0.0
      %1858 = vmatpush1.msra.mxu0 0.0
      %1859 = vmatprep.subr.mxu0 0.0
      %1860 = vmatpush1.msra.mxu0 0.0
      %1861 = vmatprep.subr.mxu0 0.0
      %1862 = vmatpush1.msra.mxu0 0.0
      %1863 = vmatprep.subr.mxu0 0.0
      %1864 = vmatpush1.msra.mxu0 0.0
      %1865 = vmatprep.subr.mxu0 0.0
      %1866 = vmatpush1.msra.mxu0 0.0
      %1867 = vmatprep.subr.mxu0 0.0
      %1868 = vmatpush1.msra.mxu0 0.0
      %1869 = vmatprep.subr.mxu0 0.0
      %1870 = vmatpush1.msra.mxu0 0.0
      %1871 = vmatprep.subr.mxu0 0.0
      %1872 = vmatpush1.msra.mxu0 0.0
      %1873 = vmatprep.subr.mxu0 0.0
      %1874 = vmatpush1.msra.mxu0 0.0
      %1875 = vmatprep.mubr.f32.mxu0 0.0
      %v1876 = vand.u32 %v1111, 4294901760
      %v1877 = vsub.f32 %v1111, %v1876
      %v1878 = vand.u32 %v1877, 4294901760
      %1879 = vmatmul.mubr.f32.gmra.mrb[0].mxu0 %v1878
      %v1880 = vpop.f32.mrb[0].mxu0
      %v1881 = vadd.f32 %v1807, %v1880
      %v1882 = vpop.f32.mrb[0].mxu0
      %1883 = vdwg.mxu0
      %1884 = vmatprep.subr.mxu0 0.0
      %v1885 = vand.u32 %v1117, 4294901760
      %v1886 = vsub.f32 %v1117, %v1885
      %v1887 = vand.u32 %v1886, 4294901760
      %1888 = vmatpush1.msra.mxu0 %v1887
      %1889 = vmatprep.subr.mxu0 0.0
      %1890 = vmatpush1.msra.mxu0 0.0
      %1891 = vmatprep.subr.mxu0 0.0
      %1892 = vmatpush1.msra.mxu0 0.0
      %1893 = vmatprep.subr.mxu0 0.0
      %1894 = vmatpush1.msra.mxu0 0.0
      %1895 = vmatprep.subr.mxu0 0.0
      %1896 = vmatpush1.msra.mxu0 0.0
      %1897 = vmatprep.subr.mxu0 0.0
      %1898 = vmatpush1.msra.mxu0 0.0
      %1899 = vmatprep.subr.mxu0 0.0
      %1900 = vmatpush1.msra.mxu0 0.0
      %1901 = vmatprep.subr.mxu0 0.0
      %1902 = vmatpush1.msra.mxu0 0.0
      %1903 = vmatprep.subr.mxu0 0.0
      %1904 = vmatpush1.msra.mxu0 0.0
      %1905 = vmatprep.subr.mxu0 0.0
      %1906 = vmatpush1.msra.mxu0 0.0
      %1907 = vmatprep.subr.mxu0 0.0
      %1908 = vmatpush1.msra.mxu0 0.0
      %1909 = vmatprep.subr.mxu0 0.0
      %1910 = vmatpush1.msra.mxu0 0.0
      %1911 = vmatprep.subr.mxu0 0.0
      %1912 = vmatpush1.msra.mxu0 0.0
      %1913 = vmatprep.subr.mxu0 0.0
      %1914 = vmatpush1.msra.mxu0 0.0
      %1915 = vmatprep.subr.mxu0 0.0
      %1916 = vmatpush1.msra.mxu0 0.0
      %1917 = vmatprep.subr.mxu0 0.0
      %1918 = vmatpush1.msra.mxu0 0.0
      %1919 = vmatprep.subr.mxu0 0.0
      %1920 = vmatpush1.msra.mxu0 0.0
      %1921 = vmatprep.subr.mxu0 0.0
      %1922 = vmatpush1.msra.mxu0 0.0
      %1923 = vmatprep.subr.mxu0 0.0
      %1924 = vmatpush1.msra.mxu0 0.0
      %1925 = vmatprep.subr.mxu0 0.0
      %1926 = vmatpush1.msra.mxu0 0.0
      %1927 = vmatprep.subr.mxu0 0.0
      %1928 = vmatpush1.msra.mxu0 0.0
      %1929 = vmatprep.subr.mxu0 0.0
      %1930 = vmatpush1.msra.mxu0 0.0
      %1931 = vmatprep.subr.mxu0 0.0
      %1932 = vmatpush1.msra.mxu0 0.0
      %1933 = vmatprep.subr.mxu0 0.0
      %1934 = vmatpush1.msra.mxu0 0.0
      %1935 = vmatprep.subr.mxu0 0.0
      %1936 = vmatpush1.msra.mxu0 0.0
      %1937 = vmatprep.subr.mxu0 0.0
      %1938 = vmatpush1.msra.mxu0 0.0
      %1939 = vmatprep.subr.mxu0 0.0
      %1940 = vmatpush1.msra.mxu0 0.0
      %1941 = vmatprep.subr.mxu0 0.0
      %1942 = vmatpush1.msra.mxu0 0.0
      %1943 = vmatprep.subr.mxu0 0.0
      %1944 = vmatpush1.msra.mxu0 0.0
      %1945 = vmatprep.subr.mxu0 0.0
      %1946 = vmatpush1.msra.mxu0 0.0
      %1947 = vmatprep.subr.mxu0 0.0
      %1948 = vmatpush1.msra.mxu0 0.0
      %1949 = vmatprep.subr.mxu0 0.0
      %1950 = vmatpush1.msra.mxu0 0.0
      %1951 = vmatprep.mubr.f32.mxu0 0.0
      %v1952 = vand.u32 %v1111, 4294901760
      %1953 = vmatmul.mubr.f32.gmra.mrb[0].mxu0 %v1952
      %v1954 = vpop.f32.mrb[0].mxu0
      %v1955 = vadd.f32 %v1881, %v1954
      %v1956 = vpop.f32.mrb[0].mxu0
      %1957 = vdwg.mxu0
      %1958 = vmatprep.subr.mxu0 0.0
      %v1959 = vand.u32 %v1117, 4294901760
      %1960 = vmatpush1.msra.mxu0 %v1959
      %1961 = vmatprep.subr.mxu0 0.0
      %1962 = vmatpush1.msra.mxu0 0.0
      %1963 = vmatprep.subr.mxu0 0.0
      %1964 = vmatpush1.msra.mxu0 0.0
      %1965 = vmatprep.subr.mxu0 0.0
      %1966 = vmatpush1.msra.mxu0 0.0
      %1967 = vmatprep.subr.mxu0 0.0
      %1968 = vmatpush1.msra.mxu0 0.0
      %1969 = vmatprep.subr.mxu0 0.0
      %1970 = vmatpush1.msra.mxu0 0.0
      %1971 = vmatprep.subr.mxu0 0.0
      %1972 = vmatpush1.msra.mxu0 0.0
      %1973 = vmatprep.subr.mxu0 0.0
      %1974 = vmatpush1.msra.mxu0 0.0
      %1975 = vmatprep.subr.mxu0 0.0
      %1976 = vmatpush1.msra.mxu0 0.0
      %1977 = vmatprep.subr.mxu0 0.0
      %1978 = vmatpush1.msra.mxu0 0.0
      %1979 = vmatprep.subr.mxu0 0.0
      %1980 = vmatpush1.msra.mxu0 0.0
      %1981 = vmatprep.subr.mxu0 0.0
      %1982 = vmatpush1.msra.mxu0 0.0
      %1983 = vmatprep.subr.mxu0 0.0
      %1984 = vmatpush1.msra.mxu0 0.0
      %1985 = vmatprep.subr.mxu0 0.0
      %1986 = vmatpush1.msra.mxu0 0.0
      %1987 = vmatprep.subr.mxu0 0.0
      %1988 = vmatpush1.msra.mxu0 0.0
      %1989 = vmatprep.subr.mxu0 0.0
      %1990 = vmatpush1.msra.mxu0 0.0
      %1991 = vmatprep.subr.mxu0 0.0
      %1992 = vmatpush1.msra.mxu0 0.0
      %1993 = vmatprep.subr.mxu0 0.0
      %1994 = vmatpush1.msra.mxu0 0.0
      %1995 = vmatprep.subr.mxu0 0.0
      %1996 = vmatpush1.msra.mxu0 0.0
      %1997 = vmatprep.subr.mxu0 0.0
      %1998 = vmatpush1.msra.mxu0 0.0
      %1999 = vmatprep.subr.mxu0 0.0
      %2000 = vmatpush1.msra.mxu0 0.0
      %2001 = vmatprep.subr.mxu0 0.0
      %2002 = vmatpush1.msra.mxu0 0.0
      %2003 = vmatprep.subr.mxu0 0.0
      %2004 = vmatpush1.msra.mxu0 0.0
      %2005 = vmatprep.subr.mxu0 0.0
      %2006 = vmatpush1.msra.mxu0 0.0
      %2007 = vmatprep.subr.mxu0 0.0
      %2008 = vmatpush1.msra.mxu0 0.0
      %2009 = vmatprep.subr.mxu0 0.0
      %2010 = vmatpush1.msra.mxu0 0.0
      %2011 = vmatprep.subr.mxu0 0.0
      %2012 = vmatpush1.msra.mxu0 0.0
      %2013 = vmatprep.subr.mxu0 0.0
      %2014 = vmatpush1.msra.mxu0 0.0
      %2015 = vmatprep.subr.mxu0 0.0
      %2016 = vmatpush1.msra.mxu0 0.0
      %2017 = vmatprep.subr.mxu0 0.0
      %2018 = vmatpush1.msra.mxu0 0.0
      %2019 = vmatprep.subr.mxu0 0.0
      %2020 = vmatpush1.msra.mxu0 0.0
      %2021 = vmatprep.subr.mxu0 0.0
      %2022 = vmatpush1.msra.mxu0 0.0
      %2023 = vmatprep.mubr.f32.mxu0 0.0
      %v2024 = vand.u32 %v1111, 4294901760
      %2025 = vmatmul.mubr.f32.gmra.mrb[0].mxu0 %v2024
      %v2026 = vpop.f32.mrb[0].mxu0
      %v2027 = vadd.f32 %v1955, %v2026
      %v2028 = vpop.f32.mrb[0].mxu0
      %2029 = vdwg.mxu0
      %v2030 = vld [vmem:[%s165] sm:$0xff]
      %v2031 = vld [vmem:[%s165 + $0x8] sm:$0xf]
      %s2032 = scalar_lea.vmem %s0, 16
      %v2033 = vld [vmem:[%s2032] sm:$0xff]
      %v2036 = vcombine.high %v2030, %v2030
      %2037 = vrot.lane.b32.xlu0 %v2030, 126
      %v2038 = vpop.permute.xlu0 %2037
      %2039 = vrot.lane.b32.xlu0 %v2036, 126
      %v2040 = vpop.permute.xlu0 %2039
      %2041 = vrot.lane.b32.xlu0 %v2031, 126
      %v2042 = vpop.permute.xlu0 %2041
      %vm2043 = vcmask 1031168
      %v2044 = vsel %vm2043, %v2038, %v2040
      %v2045 = vsel %vm2043, %v2040, %v2042
      %v2047 = vsel %vm188, %v2033, 0
      %v2049 = vsel %vm192, %v2044, 0
      %v2051 = vsel %vm192, %v2045, 0
      %v2053 = vsel %vm192, %v2042, 0
      %v2055 = vand.u32 %v2051, 4294901760
      %2056 = vmatprep.subr.mxu0 %v2055
      %v2057 = vand.u32 %v2049, 4294901760
      %2058 = vmatpush1.msra.mxu0 %v2057
      %2059 = vmatprep.subr.mxu0 0.0
      %2060 = vmatpush1.msra.mxu0 0.0
      %2061 = vmatprep.subr.mxu0 0.0
      %2062 = vmatpush1.msra.mxu0 0.0
      %2063 = vmatprep.subr.mxu0 0.0
      %2064 = vmatpush1.msra.mxu0 0.0
      %2065 = vmatprep.subr.mxu0 0.0
      %2066 = vmatpush1.msra.mxu0 0.0
      %2067 = vmatprep.subr.mxu0 0.0
      %2068 = vmatpush1.msra.mxu0 0.0
      %2069 = vmatprep.subr.mxu0 0.0
      %2070 = vmatpush1.msra.mxu0 0.0
      %2071 = vmatprep.subr.mxu0 0.0
      %2072 = vmatpush1.msra.mxu0 0.0
      %2073 = vmatprep.subr.mxu0 0.0
      %2074 = vmatpush1.msra.mxu0 0.0
      %2075 = vmatprep.subr.mxu0 0.0
      %2076 = vmatpush1.msra.mxu0 0.0
      %2077 = vmatprep.subr.mxu0 0.0
      %2078 = vmatpush1.msra.mxu0 0.0
      %2079 = vmatprep.subr.mxu0 0.0
      %2080 = vmatpush1.msra.mxu0 0.0
      %2081 = vmatprep.subr.mxu0 0.0
      %2082 = vmatpush1.msra.mxu0 0.0
      %2083 = vmatprep.subr.mxu0 0.0
      %2084 = vmatpush1.msra.mxu0 0.0
      %2085 = vmatprep.subr.mxu0 0.0
      %2086 = vmatpush1.msra.mxu0 0.0
      %2087 = vmatprep.subr.mxu0 0.0
      %2088 = vmatpush1.msra.mxu0 0.0
      %2089 = vmatprep.subr.mxu0 0.0
      %2090 = vmatpush1.msra.mxu0 0.0
      %2091 = vmatprep.subr.mxu0 0.0
      %2092 = vmatpush1.msra.mxu0 0.0
      %2093 = vmatprep.subr.mxu0 0.0
      %2094 = vmatpush1.msra.mxu0 0.0
      %2095 = vmatprep.subr.mxu0 0.0
      %2096 = vmatpush1.msra.mxu0 0.0
      %2097 = vmatprep.subr.mxu0 0.0
      %2098 = vmatpush1.msra.mxu0 0.0
      %2099 = vmatprep.subr.mxu0 0.0
      %2100 = vmatpush1.msra.mxu0 0.0
      %2101 = vmatprep.subr.mxu0 0.0
      %2102 = vmatpush1.msra.mxu0 0.0
      %2103 = vmatprep.subr.mxu0 0.0
      %2104 = vmatpush1.msra.mxu0 0.0
      %2105 = vmatprep.subr.mxu0 0.0
      %2106 = vmatpush1.msra.mxu0 0.0
      %2107 = vmatprep.subr.mxu0 0.0
      %2108 = vmatpush1.msra.mxu0 0.0
      %2109 = vmatprep.subr.mxu0 0.0
      %2110 = vmatpush1.msra.mxu0 0.0
      %2111 = vmatprep.subr.mxu0 0.0
      %2112 = vmatpush1.msra.mxu0 0.0
      %2113 = vmatprep.subr.mxu0 0.0
      %2114 = vmatpush1.msra.mxu0 0.0
      %2115 = vmatprep.subr.mxu0 0.0
      %2116 = vmatpush1.msra.mxu0 0.0
      %2117 = vmatprep.subr.mxu0 0.0
      %2118 = vmatpush1.msra.mxu0 0.0
      %2119 = vmatprep.subr.mxu0 0.0
      %2120 = vmatpush1.msra.mxu0 0.0
      %2121 = vmatprep.mubr.f32.mxu0 0.0
      %v2122 = vand.u32 %v2047, 4294901760
      %v2123 = vsub.f32 %v2047, %v2122
      %v2124 = vand.u32 %v2123, 4294901760
      %v2125 = vsub.f32 %v2123, %v2124
      %v2126 = vand.u32 %v2125, 4294901760
      %2127 = vmatmul.mubr.f32.gmra.mrb[0].mxu0 %v2126
      %v2128 = vpop.f32.mrb[0].mxu0
      %v2129 = vadd.f32 0.0, %v2128
      %v2130 = vpop.f32.mrb[0].mxu0
      %v2131 = vadd.f32 0.0, %v2130
      %2132 = vdwg.mxu0
      %v2133 = vand.u32 %v2051, 4294901760
      %v2134 = vsub.f32 %v2051, %v2133
      %v2135 = vand.u32 %v2134, 4294901760
      %v2136 = vsub.f32 %v2134, %v2135
      %v2137 = vand.u32 %v2136, 4294901760
      %2138 = vmatprep.subr.mxu0 %v2137
      %v2139 = vand.u32 %v2049, 4294901760
      %v2140 = vsub.f32 %v2049, %v2139
      %v2141 = vand.u32 %v2140, 4294901760
      %v2142 = vsub.f32 %v2140, %v2141
      %v2143 = vand.u32 %v2142, 4294901760
      %2144 = vmatpush1.msra.mxu0 %v2143
      %2145 = vmatprep.subr.mxu0 0.0
      %2146 = vmatpush1.msra.mxu0 0.0
      %2147 = vmatprep.subr.mxu0 0.0
      %2148 = vmatpush1.msra.mxu0 0.0
      %2149 = vmatprep.subr.mxu0 0.0
      %2150 = vmatpush1.msra.mxu0 0.0
      %2151 = vmatprep.subr.mxu0 0.0
      %2152 = vmatpush1.msra.mxu0 0.0
      %2153 = vmatprep.subr.mxu0 0.0
      %2154 = vmatpush1.msra.mxu0 0.0
      %2155 = vmatprep.subr.mxu0 0.0
      %2156 = vmatpush1.msra.mxu0 0.0
      %2157 = vmatprep.subr.mxu0 0.0
      %2158 = vmatpush1.msra.mxu0 0.0
      %2159 = vmatprep.subr.mxu0 0.0
      %2160 = vmatpush1.msra.mxu0 0.0
      %2161 = vmatprep.subr.mxu0 0.0
      %2162 = vmatpush1.msra.mxu0 0.0
      %2163 = vmatprep.subr.mxu0 0.0
      %2164 = vmatpush1.msra.mxu0 0.0
      %2165 = vmatprep.subr.mxu0 0.0
      %2166 = vmatpush1.msra.mxu0 0.0
      %2167 = vmatprep.subr.mxu0 0.0
      %2168 = vmatpush1.msra.mxu0 0.0
      %2169 = vmatprep.subr.mxu0 0.0
      %2170 = vmatpush1.msra.mxu0 0.0
      %2171 = vmatprep.subr.mxu0 0.0
      %2172 = vmatpush1.msra.mxu0 0.0
      %2173 = vmatprep.subr.mxu0 0.0
      %2174 = vmatpush1.msra.mxu0 0.0
      %2175 = vmatprep.subr.mxu0 0.0
      %2176 = vmatpush1.msra.mxu0 0.0
      %2177 = vmatprep.subr.mxu0 0.0
      %2178 = vmatpush1.msra.mxu0 0.0
      %2179 = vmatprep.subr.mxu0 0.0
      %2180 = vmatpush1.msra.mxu0 0.0
      %2181 = vmatprep.subr.mxu0 0.0
      %2182 = vmatpush1.msra.mxu0 0.0
      %2183 = vmatprep.subr.mxu0 0.0
      %2184 = vmatpush1.msra.mxu0 0.0
      %2185 = vmatprep.subr.mxu0 0.0
      %2186 = vmatpush1.msra.mxu0 0.0
      %2187 = vmatprep.subr.mxu0 0.0
      %2188 = vmatpush1.msra.mxu0 0.0
      %2189 = vmatprep.subr.mxu0 0.0
      %2190 = vmatpush1.msra.mxu0 0.0
      %2191 = vmatprep.subr.mxu0 0.0
      %2192 = vmatpush1.msra.mxu0 0.0
      %2193 = vmatprep.subr.mxu0 0.0
      %2194 = vmatpush1.msra.mxu0 0.0
      %2195 = vmatprep.subr.mxu0 0.0
      %2196 = vmatpush1.msra.mxu0 0.0
      %2197 = vmatprep.subr.mxu0 0.0
      %2198 = vmatpush1.msra.mxu0 0.0
      %2199 = vmatprep.subr.mxu0 0.0
      %2200 = vmatpush1.msra.mxu0 0.0
      %2201 = vmatprep.subr.mxu0 0.0
      %2202 = vmatpush1.msra.mxu0 0.0
      %2203 = vmatprep.subr.mxu0 0.0
      %2204 = vmatpush1.msra.mxu0 0.0
      %2205 = vmatprep.subr.mxu0 0.0
      %2206 = vmatpush1.msra.mxu0 0.0
      %2207 = vmatprep.mubr.f32.mxu0 0.0
      %v2208 = vand.u32 %v2047, 4294901760
      %2209 = vmatmul.mubr.f32.gmra.mrb[0].mxu0 %v2208
      %v2210 = vpop.f32.mrb[0].mxu0
      %v2211 = vadd.f32 %v2129, %v2210
      %v2212 = vpop.f32.mrb[0].mxu0
      %v2213 = vadd.f32 %v2131, %v2212
      %2214 = vdwg.mxu0
      %v2215 = vand.u32 %v2051, 4294901760
      %v2216 = vsub.f32 %v2051, %v2215
      %2217 = vmatprep.subr.mxu0 %v2216
      %v2218 = vand.u32 %v2049, 4294901760
      %v2219 = vsub.f32 %v2049, %v2218
      %2220 = vmatpush1.msra.mxu0 %v2219
      %2221 = vmatprep.subr.mxu0 0.0
      %2222 = vmatpush1.msra.mxu0 0.0
      %2223 = vmatprep.subr.mxu0 0.0
      %2224 = vmatpush1.msra.mxu0 0.0
      %2225 = vmatprep.subr.mxu0 0.0
      %2226 = vmatpush1.msra.mxu0 0.0
      %2227 = vmatprep.subr.mxu0 0.0
      %2228 = vmatpush1.msra.mxu0 0.0
      %2229 = vmatprep.subr.mxu0 0.0
      %2230 = vmatpush1.msra.mxu0 0.0
      %2231 = vmatprep.subr.mxu0 0.0
      %2232 = vmatpush1.msra.mxu0 0.0
      %2233 = vmatprep.subr.mxu0 0.0
      %2234 = vmatpush1.msra.mxu0 0.0
      %2235 = vmatprep.subr.mxu0 0.0
      %2236 = vmatpush1.msra.mxu0 0.0
      %2237 = vmatprep.subr.mxu0 0.0
      %2238 = vmatpush1.msra.mxu0 0.0
      %2239 = vmatprep.subr.mxu0 0.0
      %2240 = vmatpush1.msra.mxu0 0.0
      %2241 = vmatprep.subr.mxu0 0.0
      %2242 = vmatpush1.msra.mxu0 0.0
      %2243 = vmatprep.subr.mxu0 0.0
      %2244 = vmatpush1.msra.mxu0 0.0
      %2245 = vmatprep.subr.mxu0 0.0
      %2246 = vmatpush1.msra.mxu0 0.0
      %2247 = vmatprep.subr.mxu0 0.0
      %2248 = vmatpush1.msra.mxu0 0.0
      %2249 = vmatprep.subr.mxu0 0.0
      %2250 = vmatpush1.msra.mxu0 0.0
      %2251 = vmatprep.subr.mxu0 0.0
      %2252 = vmatpush1.msra.mxu0 0.0
      %2253 = vmatprep.subr.mxu0 0.0
      %2254 = vmatpush1.msra.mxu0 0.0
      %2255 = vmatprep.subr.mxu0 0.0
      %2256 = vmatpush1.msra.mxu0 0.0
      %2257 = vmatprep.subr.mxu0 0.0
      %2258 = vmatpush1.msra.mxu0 0.0
      %2259 = vmatprep.subr.mxu0 0.0
      %2260 = vmatpush1.msra.mxu0 0.0
      %2261 = vmatprep.subr.mxu0 0.0
      %2262 = vmatpush1.msra.mxu0 0.0
      %2263 = vmatprep.subr.mxu0 0.0
      %2264 = vmatpush1.msra.mxu0 0.0
      %2265 = vmatprep.subr.mxu0 0.0
      %2266 = vmatpush1.msra.mxu0 0.0
      %2267 = vmatprep.subr.mxu0 0.0
      %2268 = vmatpush1.msra.mxu0 0.0
      %2269 = vmatprep.subr.mxu0 0.0
      %2270 = vmatpush1.msra.mxu0 0.0
      %2271 = vmatprep.subr.mxu0 0.0
      %2272 = vmatpush1.msra.mxu0 0.0
      %2273 = vmatprep.subr.mxu0 0.0
      %2274 = vmatpush1.msra.mxu0 0.0
      %2275 = vmatprep.subr.mxu0 0.0
      %2276 = vmatpush1.msra.mxu0 0.0
      %2277 = vmatprep.subr.mxu0 0.0
      %2278 = vmatpush1.msra.mxu0 0.0
      %2279 = vmatprep.subr.mxu0 0.0
      %2280 = vmatpush1.msra.mxu0 0.0
      %2281 = vmatprep.subr.mxu0 0.0
      %2282 = vmatpush1.msra.mxu0 0.0
      %2283 = vmatprep.mubr.f32.mxu0 0.0
      %v2284 = vand.u32 %v2047, 4294901760
      %v2285 = vsub.f32 %v2047, %v2284
      %2286 = vmatmul.mubr.f32.gmra.mrb[0].mxu0 %v2285
      %v2287 = vpop.f32.mrb[0].mxu0
      %v2288 = vadd.f32 %v2211, %v2287
      %v2289 = vpop.f32.mrb[0].mxu0
      %v2290 = vadd.f32 %v2213, %v2289
      %2291 = vdwg.mxu0
      %v2292 = vand.u32 %v2051, 4294901760
      %2293 = vmatprep.subr.mxu0 %v2292
      %v2294 = vand.u32 %v2049, 4294901760
      %2295 = vmatpush1.msra.mxu0 %v2294
      %2296 = vmatprep.subr.mxu0 0.0
      %2297 = vmatpush1.msra.mxu0 0.0
      %2298 = vmatprep.subr.mxu0 0.0
      %2299 = vmatpush1.msra.mxu0 0.0
      %2300 = vmatprep.subr.mxu0 0.0
      %2301 = vmatpush1.msra.mxu0 0.0
      %2302 = vmatprep.subr.mxu0 0.0
      %2303 = vmatpush1.msra.mxu0 0.0
      %2304 = vmatprep.subr.mxu0 0.0
      %2305 = vmatpush1.msra.mxu0 0.0
      %2306 = vmatprep.subr.mxu0 0.0
      %2307 = vmatpush1.msra.mxu0 0.0
      %2308 = vmatprep.subr.mxu0 0.0
      %2309 = vmatpush1.msra.mxu0 0.0
      %2310 = vmatprep.subr.mxu0 0.0
      %2311 = vmatpush1.msra.mxu0 0.0
      %2312 = vmatprep.subr.mxu0 0.0
      %2313 = vmatpush1.msra.mxu0 0.0
      %2314 = vmatprep.subr.mxu0 0.0
      %2315 = vmatpush1.msra.mxu0 0.0
      %2316 = vmatprep.subr.mxu0 0.0
      %2317 = vmatpush1.msra.mxu0 0.0
      %2318 = vmatprep.subr.mxu0 0.0
      %2319 = vmatpush1.msra.mxu0 0.0
      %2320 = vmatprep.subr.mxu0 0.0
      %2321 = vmatpush1.msra.mxu0 0.0
      %2322 = vmatprep.subr.mxu0 0.0
      %2323 = vmatpush1.msra.mxu0 0.0
      %2324 = vmatprep.subr.mxu0 0.0
      %2325 = vmatpush1.msra.mxu0 0.0
      %2326 = vmatprep.subr.mxu0 0.0
      %2327 = vmatpush1.msra.mxu0 0.0
      %2328 = vmatprep.subr.mxu0 0.0
      %2329 = vmatpush1.msra.mxu0 0.0
      %2330 = vmatprep.subr.mxu0 0.0
      %2331 = vmatpush1.msra.mxu0 0.0
      %2332 = vmatprep.subr.mxu0 0.0
      %2333 = vmatpush1.msra.mxu0 0.0
      %2334 = vmatprep.subr.mxu0 0.0
      %2335 = vmatpush1.msra.mxu0 0.0
      %2336 = vmatprep.subr.mxu0 0.0
      %2337 = vmatpush1.msra.mxu0 0.0
      %2338 = vmatprep.subr.mxu0 0.0
      %2339 = vmatpush1.msra.mxu0 0.0
      %2340 = vmatprep.subr.mxu0 0.0
      %2341 = vmatpush1.msra.mxu0 0.0
      %2342 = vmatprep.subr.mxu0 0.0
      %2343 = vmatpush1.msra.mxu0 0.0
      %2344 = vmatprep.subr.mxu0 0.0
      %2345 = vmatpush1.msra.mxu0 0.0
      %2346 = vmatprep.subr.mxu0 0.0
      %2347 = vmatpush1.msra.mxu0 0.0
      %2348 = vmatprep.subr.mxu0 0.0
      %2349 = vmatpush1.msra.mxu0 0.0
      %2350 = vmatprep.subr.mxu0 0.0
      %2351 = vmatpush1.msra.mxu0 0.0
      %2352 = vmatprep.subr.mxu0 0.0
      %2353 = vmatpush1.msra.mxu0 0.0
      %2354 = vmatprep.subr.mxu0 0.0
      %2355 = vmatpush1.msra.mxu0 0.0
      %2356 = vmatprep.subr.mxu0 0.0
      %2357 = vmatpush1.msra.mxu0 0.0
      %2358 = vmatprep.mubr.f32.mxu0 0.0
      %v2359 = vand.u32 %v2047, 4294901760
      %v2360 = vsub.f32 %v2047, %v2359
      %v2361 = vand.u32 %v2360, 4294901760
      %2362 = vmatmul.mubr.f32.gmra.mrb[0].mxu0 %v2361
      %v2363 = vpop.f32.mrb[0].mxu0
      %v2364 = vadd.f32 %v2288, %v2363
      %v2365 = vpop.f32.mrb[0].mxu0
      %v2366 = vadd.f32 %v2290, %v2365
      %2367 = vdwg.mxu0
      %v2368 = vand.u32 %v2051, 4294901760
      %v2369 = vsub.f32 %v2051, %v2368
      %v2370 = vand.u32 %v2369, 4294901760
      %2371 = vmatprep.subr.mxu0 %v2370
      %v2372 = vand.u32 %v2049, 4294901760
      %v2373 = vsub.f32 %v2049, %v2372
      %v2374 = vand.u32 %v2373, 4294901760
      %2375 = vmatpush1.msra.mxu0 %v2374
      %2376 = vmatprep.subr.mxu0 0.0
      %2377 = vmatpush1.msra.mxu0 0.0
      %2378 = vmatprep.subr.mxu0 0.0
      %2379 = vmatpush1.msra.mxu0 0.0
      %2380 = vmatprep.subr.mxu0 0.0
      %2381 = vmatpush1.msra.mxu0 0.0
      %2382 = vmatprep.subr.mxu0 0.0
      %2383 = vmatpush1.msra.mxu0 0.0
      %2384 = vmatprep.subr.mxu0 0.0
      %2385 = vmatpush1.msra.mxu0 0.0
      %2386 = vmatprep.subr.mxu0 0.0
      %2387 = vmatpush1.msra.mxu0 0.0
      %2388 = vmatprep.subr.mxu0 0.0
      %2389 = vmatpush1.msra.mxu0 0.0
      %2390 = vmatprep.subr.mxu0 0.0
      %2391 = vmatpush1.msra.mxu0 0.0
      %2392 = vmatprep.subr.mxu0 0.0
      %2393 = vmatpush1.msra.mxu0 0.0
      %2394 = vmatprep.subr.mxu0 0.0
      %2395 = vmatpush1.msra.mxu0 0.0
      %2396 = vmatprep.subr.mxu0 0.0
      %2397 = vmatpush1.msra.mxu0 0.0
      %2398 = vmatprep.subr.mxu0 0.0
      %2399 = vmatpush1.msra.mxu0 0.0
      %2400 = vmatprep.subr.mxu0 0.0
      %2401 = vmatpush1.msra.mxu0 0.0
      %2402 = vmatprep.subr.mxu0 0.0
      %2403 = vmatpush1.msra.mxu0 0.0
      %2404 = vmatprep.subr.mxu0 0.0
      %2405 = vmatpush1.msra.mxu0 0.0
      %2406 = vmatprep.subr.mxu0 0.0
      %2407 = vmatpush1.msra.mxu0 0.0
      %2408 = vmatprep.subr.mxu0 0.0
      %2409 = vmatpush1.msra.mxu0 0.0
      %2410 = vmatprep.subr.mxu0 0.0
      %2411 = vmatpush1.msra.mxu0 0.0
      %2412 = vmatprep.subr.mxu0 0.0
      %2413 = vmatpush1.msra.mxu0 0.0
      %2414 = vmatprep.subr.mxu0 0.0
      %2415 = vmatpush1.msra.mxu0 0.0
      %2416 = vmatprep.subr.mxu0 0.0
      %2417 = vmatpush1.msra.mxu0 0.0
      %2418 = vmatprep.subr.mxu0 0.0
      %2419 = vmatpush1.msra.mxu0 0.0
      %2420 = vmatprep.subr.mxu0 0.0
      %2421 = vmatpush1.msra.mxu0 0.0
      %2422 = vmatprep.subr.mxu0 0.0
      %2423 = vmatpush1.msra.mxu0 0.0
      %2424 = vmatprep.subr.mxu0 0.0
      %2425 = vmatpush1.msra.mxu0 0.0
      %2426 = vmatprep.subr.mxu0 0.0
      %2427 = vmatpush1.msra.mxu0 0.0
      %2428 = vmatprep.subr.mxu0 0.0
      %2429 = vmatpush1.msra.mxu0 0.0
      %2430 = vmatprep.subr.mxu0 0.0
      %2431 = vmatpush1.msra.mxu0 0.0
      %2432 = vmatprep.subr.mxu0 0.0
      %2433 = vmatpush1.msra.mxu0 0.0
      %2434 = vmatprep.subr.mxu0 0.0
      %2435 = vmatpush1.msra.mxu0 0.0
      %2436 = vmatprep.subr.mxu0 0.0
      %2437 = vmatpush1.msra.mxu0 0.0
      %2438 = vmatprep.mubr.f32.mxu0 0.0
      %v2439 = vand.u32 %v2047, 4294901760
      %2440 = vmatmul.mubr.f32.gmra.mrb[0].mxu0 %v2439
      %v2441 = vpop.f32.mrb[0].mxu0
      %v2442 = vadd.f32 %v2364, %v2441
      %v2443 = vpop.f32.mrb[0].mxu0
      %v2444 = vadd.f32 %v2366, %v2443
      %2445 = vdwg.mxu0
      %v2446 = vand.u32 %v2051, 4294901760
      %2447 = vmatprep.subr.mxu0 %v2446
      %v2448 = vand.u32 %v2049, 4294901760
      %2449 = vmatpush1.msra.mxu0 %v2448
      %2450 = vmatprep.subr.mxu0 0.0
      %2451 = vmatpush1.msra.mxu0 0.0
      %2452 = vmatprep.subr.mxu0 0.0
      %2453 = vmatpush1.msra.mxu0 0.0
      %2454 = vmatprep.subr.mxu0 0.0
      %2455 = vmatpush1.msra.mxu0 0.0
      %2456 = vmatprep.subr.mxu0 0.0
      %2457 = vmatpush1.msra.mxu0 0.0
      %2458 = vmatprep.subr.mxu0 0.0
      %2459 = vmatpush1.msra.mxu0 0.0
      %2460 = vmatprep.subr.mxu0 0.0
      %2461 = vmatpush1.msra.mxu0 0.0
      %2462 = vmatprep.subr.mxu0 0.0
      %2463 = vmatpush1.msra.mxu0 0.0
      %2464 = vmatprep.subr.mxu0 0.0
      %2465 = vmatpush1.msra.mxu0 0.0
      %2466 = vmatprep.subr.mxu0 0.0
      %2467 = vmatpush1.msra.mxu0 0.0
      %2468 = vmatprep.subr.mxu0 0.0
      %2469 = vmatpush1.msra.mxu0 0.0
      %2470 = vmatprep.subr.mxu0 0.0
      %2471 = vmatpush1.msra.mxu0 0.0
      %2472 = vmatprep.subr.mxu0 0.0
      %2473 = vmatpush1.msra.mxu0 0.0
      %2474 = vmatprep.subr.mxu0 0.0
      %2475 = vmatpush1.msra.mxu0 0.0
      %2476 = vmatprep.subr.mxu0 0.0
      %2477 = vmatpush1.msra.mxu0 0.0
      %2478 = vmatprep.subr.mxu0 0.0
      %2479 = vmatpush1.msra.mxu0 0.0
      %2480 = vmatprep.subr.mxu0 0.0
      %2481 = vmatpush1.msra.mxu0 0.0
      %2482 = vmatprep.subr.mxu0 0.0
      %2483 = vmatpush1.msra.mxu0 0.0
      %2484 = vmatprep.subr.mxu0 0.0
      %2485 = vmatpush1.msra.mxu0 0.0
      %2486 = vmatprep.subr.mxu0 0.0
      %2487 = vmatpush1.msra.mxu0 0.0
      %2488 = vmatprep.subr.mxu0 0.0
      %2489 = vmatpush1.msra.mxu0 0.0
      %2490 = vmatprep.subr.mxu0 0.0
      %2491 = vmatpush1.msra.mxu0 0.0
      %2492 = vmatprep.subr.mxu0 0.0
      %2493 = vmatpush1.msra.mxu0 0.0
      %2494 = vmatprep.subr.mxu0 0.0
      %2495 = vmatpush1.msra.mxu0 0.0
      %2496 = vmatprep.subr.mxu0 0.0
      %2497 = vmatpush1.msra.mxu0 0.0
      %2498 = vmatprep.subr.mxu0 0.0
      %2499 = vmatpush1.msra.mxu0 0.0
      %2500 = vmatprep.subr.mxu0 0.0
      %2501 = vmatpush1.msra.mxu0 0.0
      %2502 = vmatprep.subr.mxu0 0.0
      %2503 = vmatpush1.msra.mxu0 0.0
      %2504 = vmatprep.subr.mxu0 0.0
      %2505 = vmatpush1.msra.mxu0 0.0
      %2506 = vmatprep.subr.mxu0 0.0
      %2507 = vmatpush1.msra.mxu0 0.0
      %2508 = vmatprep.subr.mxu0 0.0
      %2509 = vmatpush1.msra.mxu0 0.0
      %2510 = vmatprep.subr.mxu0 0.0
      %2511 = vmatpush1.msra.mxu0 0.0
      %2512 = vmatprep.mubr.f32.mxu0 0.0
      %v2513 = vand.u32 %v2047, 4294901760
      %2514 = vmatmul.mubr.f32.gmra.mrb[0].mxu0 %v2513
      %v2515 = vpop.f32.mrb[0].mxu0
      %v2516 = vadd.f32 %v2442, %v2515
      %v2517 = vpop.f32.mrb[0].mxu0
      %v2518 = vadd.f32 %v2444, %v2517
      %2519 = vdwg.mxu0
      %2520 = vmatprep.subr.mxu0 0.0
      %v2521 = vand.u32 %v2053, 4294901760
      %2522 = vmatpush1.msra.mxu0 %v2521
      %2523 = vmatprep.subr.mxu0 0.0
      %2524 = vmatpush1.msra.mxu0 0.0
      %2525 = vmatprep.subr.mxu0 0.0
      %2526 = vmatpush1.msra.mxu0 0.0
      %2527 = vmatprep.subr.mxu0 0.0
      %2528 = vmatpush1.msra.mxu0 0.0
      %2529 = vmatprep.subr.mxu0 0.0
      %2530 = vmatpush1.msra.mxu0 0.0
      %2531 = vmatprep.subr.mxu0 0.0
      %2532 = vmatpush1.msra.mxu0 0.0
      %2533 = vmatprep.subr.mxu0 0.0
      %2534 = vmatpush1.msra.mxu0 0.0
      %2535 = vmatprep.subr.mxu0 0.0
      %2536 = vmatpush1.msra.mxu0 0.0
      %2537 = vmatprep.subr.mxu0 0.0
      %2538 = vmatpush1.msra.mxu0 0.0
      %2539 = vmatprep.subr.mxu0 0.0
      %2540 = vmatpush1.msra.mxu0 0.0
      %2541 = vmatprep.subr.mxu0 0.0
      %2542 = vmatpush1.msra.mxu0 0.0
      %2543 = vmatprep.subr.mxu0 0.0
      %2544 = vmatpush1.msra.mxu0 0.0
      %2545 = vmatprep.subr.mxu0 0.0
      %2546 = vmatpush1.msra.mxu0 0.0
      %2547 = vmatprep.subr.mxu0 0.0
      %2548 = vmatpush1.msra.mxu0 0.0
      %2549 = vmatprep.subr.mxu0 0.0
      %2550 = vmatpush1.msra.mxu0 0.0
      %2551 = vmatprep.subr.mxu0 0.0
      %2552 = vmatpush1.msra.mxu0 0.0
      %2553 = vmatprep.subr.mxu0 0.0
      %2554 = vmatpush1.msra.mxu0 0.0
      %2555 = vmatprep.subr.mxu0 0.0
      %2556 = vmatpush1.msra.mxu0 0.0
      %2557 = vmatprep.subr.mxu0 0.0
      %2558 = vmatpush1.msra.mxu0 0.0
      %2559 = vmatprep.subr.mxu0 0.0
      %2560 = vmatpush1.msra.mxu0 0.0
      %2561 = vmatprep.subr.mxu0 0.0
      %2562 = vmatpush1.msra.mxu0 0.0
      %2563 = vmatprep.subr.mxu0 0.0
      %2564 = vmatpush1.msra.mxu0 0.0
      %2565 = vmatprep.subr.mxu0 0.0
      %2566 = vmatpush1.msra.mxu0 0.0
      %2567 = vmatprep.subr.mxu0 0.0
      %2568 = vmatpush1.msra.mxu0 0.0
      %2569 = vmatprep.subr.mxu0 0.0
      %2570 = vmatpush1.msra.mxu0 0.0
      %2571 = vmatprep.subr.mxu0 0.0
      %2572 = vmatpush1.msra.mxu0 0.0
      %2573 = vmatprep.subr.mxu0 0.0
      %2574 = vmatpush1.msra.mxu0 0.0
      %2575 = vmatprep.subr.mxu0 0.0
      %2576 = vmatpush1.msra.mxu0 0.0
      %2577 = vmatprep.subr.mxu0 0.0
      %2578 = vmatpush1.msra.mxu0 0.0
      %2579 = vmatprep.subr.mxu0 0.0
      %2580 = vmatpush1.msra.mxu0 0.0
      %2581 = vmatprep.subr.mxu0 0.0
      %2582 = vmatpush1.msra.mxu0 0.0
      %2583 = vmatprep.subr.mxu0 0.0
      %2584 = vmatpush1.msra.mxu0 0.0
      %2585 = vmatprep.mubr.f32.mxu0 0.0
      %v2586 = vand.u32 %v2047, 4294901760
      %v2587 = vsub.f32 %v2047, %v2586
      %v2588 = vand.u32 %v2587, 4294901760
      %v2589 = vsub.f32 %v2587, %v2588
      %v2590 = vand.u32 %v2589, 4294901760
      %2591 = vmatmul.mubr.f32.gmra.mrb[0].mxu0 %v2590
      %v2592 = vpop.f32.mrb[0].mxu0
      %v2593 = vadd.f32 0.0, %v2592
      %v2594 = vpop.f32.mrb[0].mxu0
      %2595 = vdwg.mxu0
      %2596 = vmatprep.subr.mxu0 0.0
      %v2597 = vand.u32 %v2053, 4294901760
      %v2598 = vsub.f32 %v2053, %v2597
      %v2599 = vand.u32 %v2598, 4294901760
      %v2600 = vsub.f32 %v2598, %v2599
      %v2601 = vand.u32 %v2600, 4294901760
      %2602 = vmatpush1.msra.mxu0 %v2601
      %2603 = vmatprep.subr.mxu0 0.0
      %2604 = vmatpush1.msra.mxu0 0.0
      %2605 = vmatprep.subr.mxu0 0.0
      %2606 = vmatpush1.msra.mxu0 0.0
      %2607 = vmatprep.subr.mxu0 0.0
      %2608 = vmatpush1.msra.mxu0 0.0
      %2609 = vmatprep.subr.mxu0 0.0
      %2610 = vmatpush1.msra.mxu0 0.0
      %2611 = vmatprep.subr.mxu0 0.0
      %2612 = vmatpush1.msra.mxu0 0.0
      %2613 = vmatprep.subr.mxu0 0.0
      %2614 = vmatpush1.msra.mxu0 0.0
      %2615 = vmatprep.subr.mxu0 0.0
      %2616 = vmatpush1.msra.mxu0 0.0
      %2617 = vmatprep.subr.mxu0 0.0
      %2618 = vmatpush1.msra.mxu0 0.0
      %2619 = vmatprep.subr.mxu0 0.0
      %2620 = vmatpush1.msra.mxu0 0.0
      %2621 = vmatprep.subr.mxu0 0.0
      %2622 = vmatpush1.msra.mxu0 0.0
      %2623 = vmatprep.subr.mxu0 0.0
      %2624 = vmatpush1.msra.mxu0 0.0
      %2625 = vmatprep.subr.mxu0 0.0
      %2626 = vmatpush1.msra.mxu0 0.0
      %2627 = vmatprep.subr.mxu0 0.0
      %2628 = vmatpush1.msra.mxu0 0.0
      %2629 = vmatprep.subr.mxu0 0.0
      %2630 = vmatpush1.msra.mxu0 0.0
      %2631 = vmatprep.subr.mxu0 0.0
      %2632 = vmatpush1.msra.mxu0 0.0
      %2633 = vmatprep.subr.mxu0 0.0
      %2634 = vmatpush1.msra.mxu0 0.0
      %2635 = vmatprep.subr.mxu0 0.0
      %2636 = vmatpush1.msra.mxu0 0.0
      %2637 = vmatprep.subr.mxu0 0.0
      %2638 = vmatpush1.msra.mxu0 0.0
      %2639 = vmatprep.subr.mxu0 0.0
      %2640 = vmatpush1.msra.mxu0 0.0
      %2641 = vmatprep.subr.mxu0 0.0
      %2642 = vmatpush1.msra.mxu0 0.0
      %2643 = vmatprep.subr.mxu0 0.0
      %2644 = vmatpush1.msra.mxu0 0.0
      %2645 = vmatprep.subr.mxu0 0.0
      %2646 = vmatpush1.msra.mxu0 0.0
      %2647 = vmatprep.subr.mxu0 0.0
      %2648 = vmatpush1.msra.mxu0 0.0
      %2649 = vmatprep.subr.mxu0 0.0
      %2650 = vmatpush1.msra.mxu0 0.0
      %2651 = vmatprep.subr.mxu0 0.0
      %2652 = vmatpush1.msra.mxu0 0.0
      %2653 = vmatprep.subr.mxu0 0.0
      %2654 = vmatpush1.msra.mxu0 0.0
      %2655 = vmatprep.subr.mxu0 0.0
      %2656 = vmatpush1.msra.mxu0 0.0
      %2657 = vmatprep.subr.mxu0 0.0
      %2658 = vmatpush1.msra.mxu0 0.0
      %2659 = vmatprep.subr.mxu0 0.0
      %2660 = vmatpush1.msra.mxu0 0.0
      %2661 = vmatprep.subr.mxu0 0.0
      %2662 = vmatpush1.msra.mxu0 0.0
      %2663 = vmatprep.subr.mxu0 0.0
      %2664 = vmatpush1.msra.mxu0 0.0
      %2665 = vmatprep.mubr.f32.mxu0 0.0
      %v2666 = vand.u32 %v2047, 4294901760
      %2667 = vmatmul.mubr.f32.gmra.mrb[0].mxu0 %v2666
      %v2668 = vpop.f32.mrb[0].mxu0
      %v2669 = vadd.f32 %v2593, %v2668
      %v2670 = vpop.f32.mrb[0].mxu0
      %2671 = vdwg.mxu0
      %2672 = vmatprep.subr.mxu0 0.0
      %v2673 = vand.u32 %v2053, 4294901760
      %v2674 = vsub.f32 %v2053, %v2673
      %2675 = vmatpush1.msra.mxu0 %v2674
      %2676 = vmatprep.subr.mxu0 0.0
      %2677 = vmatpush1.msra.mxu0 0.0
      %2678 = vmatprep.subr.mxu0 0.0
      %2679 = vmatpush1.msra.mxu0 0.0
      %2680 = vmatprep.subr.mxu0 0.0
      %2681 = vmatpush1.msra.mxu0 0.0
      %2682 = vmatprep.subr.mxu0 0.0
      %2683 = vmatpush1.msra.mxu0 0.0
      %2684 = vmatprep.subr.mxu0 0.0
      %2685 = vmatpush1.msra.mxu0 0.0
      %2686 = vmatprep.subr.mxu0 0.0
      %2687 = vmatpush1.msra.mxu0 0.0
      %2688 = vmatprep.subr.mxu0 0.0
      %2689 = vmatpush1.msra.mxu0 0.0
      %2690 = vmatprep.subr.mxu0 0.0
      %2691 = vmatpush1.msra.mxu0 0.0
      %2692 = vmatprep.subr.mxu0 0.0
      %2693 = vmatpush1.msra.mxu0 0.0
      %2694 = vmatprep.subr.mxu0 0.0
      %2695 = vmatpush1.msra.mxu0 0.0
      %2696 = vmatprep.subr.mxu0 0.0
      %2697 = vmatpush1.msra.mxu0 0.0
      %2698 = vmatprep.subr.mxu0 0.0
      %2699 = vmatpush1.msra.mxu0 0.0
      %2700 = vmatprep.subr.mxu0 0.0
      %2701 = vmatpush1.msra.mxu0 0.0
      %2702 = vmatprep.subr.mxu0 0.0
      %2703 = vmatpush1.msra.mxu0 0.0
      %2704 = vmatprep.subr.mxu0 0.0
      %2705 = vmatpush1.msra.mxu0 0.0
      %2706 = vmatprep.subr.mxu0 0.0
      %2707 = vmatpush1.msra.mxu0 0.0
      %2708 = vmatprep.subr.mxu0 0.0
      %2709 = vmatpush1.msra.mxu0 0.0
      %2710 = vmatprep.subr.mxu0 0.0
      %2711 = vmatpush1.msra.mxu0 0.0
      %2712 = vmatprep.subr.mxu0 0.0
      %2713 = vmatpush1.msra.mxu0 0.0
      %2714 = vmatprep.subr.mxu0 0.0
      %2715 = vmatpush1.msra.mxu0 0.0
      %2716 = vmatprep.subr.mxu0 0.0
      %2717 = vmatpush1.msra.mxu0 0.0
      %2718 = vmatprep.subr.mxu0 0.0
      %2719 = vmatpush1.msra.mxu0 0.0
      %2720 = vmatprep.subr.mxu0 0.0
      %2721 = vmatpush1.msra.mxu0 0.0
      %2722 = vmatprep.subr.mxu0 0.0
      %2723 = vmatpush1.msra.mxu0 0.0
      %2724 = vmatprep.subr.mxu0 0.0
      %2725 = vmatpush1.msra.mxu0 0.0
      %2726 = vmatprep.subr.mxu0 0.0
      %2727 = vmatpush1.msra.mxu0 0.0
      %2728 = vmatprep.subr.mxu0 0.0
      %2729 = vmatpush1.msra.mxu0 0.0
      %2730 = vmatprep.subr.mxu0 0.0
      %2731 = vmatpush1.msra.mxu0 0.0
      %2732 = vmatprep.subr.mxu0 0.0
      %2733 = vmatpush1.msra.mxu0 0.0
      %2734 = vmatprep.subr.mxu0 0.0
      %2735 = vmatpush1.msra.mxu0 0.0
      %2736 = vmatprep.subr.mxu0 0.0
      %2737 = vmatpush1.msra.mxu0 0.0
      %2738 = vmatprep.mubr.f32.mxu0 0.0
      %v2739 = vand.u32 %v2047, 4294901760
      %v2740 = vsub.f32 %v2047, %v2739
      %2741 = vmatmul.mubr.f32.gmra.mrb[0].mxu0 %v2740
      %v2742 = vpop.f32.mrb[0].mxu0
      %v2743 = vadd.f32 %v2669, %v2742
      %v2744 = vpop.f32.mrb[0].mxu0
      %2745 = vdwg.mxu0
      %2746 = vmatprep.subr.mxu0 0.0
      %v2747 = vand.u32 %v2053, 4294901760
      %2748 = vmatpush1.msra.mxu0 %v2747
      %2749 = vmatprep.subr.mxu0 0.0
      %2750 = vmatpush1.msra.mxu0 0.0
      %2751 = vmatprep.subr.mxu0 0.0
      %2752 = vmatpush1.msra.mxu0 0.0
      %2753 = vmatprep.subr.mxu0 0.0
      %2754 = vmatpush1.msra.mxu0 0.0
      %2755 = vmatprep.subr.mxu0 0.0
      %2756 = vmatpush1.msra.mxu0 0.0
      %2757 = vmatprep.subr.mxu0 0.0
      %2758 = vmatpush1.msra.mxu0 0.0
      %2759 = vmatprep.subr.mxu0 0.0
      %2760 = vmatpush1.msra.mxu0 0.0
      %2761 = vmatprep.subr.mxu0 0.0
      %2762 = vmatpush1.msra.mxu0 0.0
      %2763 = vmatprep.subr.mxu0 0.0
      %2764 = vmatpush1.msra.mxu0 0.0
      %2765 = vmatprep.subr.mxu0 0.0
      %2766 = vmatpush1.msra.mxu0 0.0
      %2767 = vmatprep.subr.mxu0 0.0
      %2768 = vmatpush1.msra.mxu0 0.0
      %2769 = vmatprep.subr.mxu0 0.0
      %2770 = vmatpush1.msra.mxu0 0.0
      %2771 = vmatprep.subr.mxu0 0.0
      %2772 = vmatpush1.msra.mxu0 0.0
      %2773 = vmatprep.subr.mxu0 0.0
      %2774 = vmatpush1.msra.mxu0 0.0
      %2775 = vmatprep.subr.mxu0 0.0
      %2776 = vmatpush1.msra.mxu0 0.0
      %2777 = vmatprep.subr.mxu0 0.0
      %2778 = vmatpush1.msra.mxu0 0.0
      %2779 = vmatprep.subr.mxu0 0.0
      %2780 = vmatpush1.msra.mxu0 0.0
      %2781 = vmatprep.subr.mxu0 0.0
      %2782 = vmatpush1.msra.mxu0 0.0
      %2783 = vmatprep.subr.mxu0 0.0
      %2784 = vmatpush1.msra.mxu0 0.0
      %2785 = vmatprep.subr.mxu0 0.0
      %2786 = vmatpush1.msra.mxu0 0.0
      %2787 = vmatprep.subr.mxu0 0.0
      %2788 = vmatpush1.msra.mxu0 0.0
      %2789 = vmatprep.subr.mxu0 0.0
      %2790 = vmatpush1.msra.mxu0 0.0
      %2791 = vmatprep.subr.mxu0 0.0
      %2792 = vmatpush1.msra.mxu0 0.0
      %2793 = vmatprep.subr.mxu0 0.0
      %2794 = vmatpush1.msra.mxu0 0.0
      %2795 = vmatprep.subr.mxu0 0.0
      %2796 = vmatpush1.msra.mxu0 0.0
      %2797 = vmatprep.subr.mxu0 0.0
      %2798 = vmatpush1.msra.mxu0 0.0
      %2799 = vmatprep.subr.mxu0 0.0
      %2800 = vmatpush1.msra.mxu0 0.0
      %2801 = vmatprep.subr.mxu0 0.0
      %2802 = vmatpush1.msra.mxu0 0.0
      %2803 = vmatprep.subr.mxu0 0.0
      %2804 = vmatpush1.msra.mxu0 0.0
      %2805 = vmatprep.subr.mxu0 0.0
      %2806 = vmatpush1.msra.mxu0 0.0
      %2807 = vmatprep.subr.mxu0 0.0
      %2808 = vmatpush1.msra.mxu0 0.0
      %2809 = vmatprep.subr.mxu0 0.0
      %2810 = vmatpush1.msra.mxu0 0.0
      %2811 = vmatprep.mubr.f32.mxu0 0.0
      %v2812 = vand.u32 %v2047, 4294901760
      %v2813 = vsub.f32 %v2047, %v2812
      %v2814 = vand.u32 %v2813, 4294901760
      %2815 = vmatmul.mubr.f32.gmra.mrb[0].mxu0 %v2814
      %v2816 = vpop.f32.mrb[0].mxu0
      %v2817 = vadd.f32 %v2743, %v2816
      %v2818 = vpop.f32.mrb[0].mxu0
      %2819 = vdwg.mxu0
      %2820 = vmatprep.subr.mxu0 0.0
      %v2821 = vand.u32 %v2053, 4294901760
      %v2822 = vsub.f32 %v2053, %v2821
      %v2823 = vand.u32 %v2822, 4294901760
      %2824 = vmatpush1.msra.mxu0 %v2823
      %2825 = vmatprep.subr.mxu0 0.0
      %2826 = vmatpush1.msra.mxu0 0.0
      %2827 = vmatprep.subr.mxu0 0.0
      %2828 = vmatpush1.msra.mxu0 0.0
      %2829 = vmatprep.subr.mxu0 0.0
      %2830 = vmatpush1.msra.mxu0 0.0
      %2831 = vmatprep.subr.mxu0 0.0
      %2832 = vmatpush1.msra.mxu0 0.0
      %2833 = vmatprep.subr.mxu0 0.0
      %2834 = vmatpush1.msra.mxu0 0.0
      %2835 = vmatprep.subr.mxu0 0.0
      %2836 = vmatpush1.msra.mxu0 0.0
      %2837 = vmatprep.subr.mxu0 0.0
      %2838 = vmatpush1.msra.mxu0 0.0
      %2839 = vmatprep.subr.mxu0 0.0
      %2840 = vmatpush1.msra.mxu0 0.0
      %2841 = vmatprep.subr.mxu0 0.0
      %2842 = vmatpush1.msra.mxu0 0.0
      %2843 = vmatprep.subr.mxu0 0.0
      %2844 = vmatpush1.msra.mxu0 0.0
      %2845 = vmatprep.subr.mxu0 0.0
      %2846 = vmatpush1.msra.mxu0 0.0
      %2847 = vmatprep.subr.mxu0 0.0
      %2848 = vmatpush1.msra.mxu0 0.0
      %2849 = vmatprep.subr.mxu0 0.0
      %2850 = vmatpush1.msra.mxu0 0.0
      %2851 = vmatprep.subr.mxu0 0.0
      %2852 = vmatpush1.msra.mxu0 0.0
      %2853 = vmatprep.subr.mxu0 0.0
      %2854 = vmatpush1.msra.mxu0 0.0
      %2855 = vmatprep.subr.mxu0 0.0
      %2856 = vmatpush1.msra.mxu0 0.0
      %2857 = vmatprep.subr.mxu0 0.0
      %2858 = vmatpush1.msra.mxu0 0.0
      %2859 = vmatprep.subr.mxu0 0.0
      %2860 = vmatpush1.msra.mxu0 0.0
      %2861 = vmatprep.subr.mxu0 0.0
      %2862 = vmatpush1.msra.mxu0 0.0
      %2863 = vmatprep.subr.mxu0 0.0
      %2864 = vmatpush1.msra.mxu0 0.0
      %2865 = vmatprep.subr.mxu0 0.0
      %2866 = vmatpush1.msra.mxu0 0.0
      %2867 = vmatprep.subr.mxu0 0.0
      %2868 = vmatpush1.msra.mxu0 0.0
      %2869 = vmatprep.subr.mxu0 0.0
      %2870 = vmatpush1.msra.mxu0 0.0
      %2871 = vmatprep.subr.mxu0 0.0
      %2872 = vmatpush1.msra.mxu0 0.0
      %2873 = vmatprep.subr.mxu0 0.0
      %2874 = vmatpush1.msra.mxu0 0.0
      %2875 = vmatprep.subr.mxu0 0.0
      %2876 = vmatpush1.msra.mxu0 0.0
      %2877 = vmatprep.subr.mxu0 0.0
      %2878 = vmatpush1.msra.mxu0 0.0
      %2879 = vmatprep.subr.mxu0 0.0
      %2880 = vmatpush1.msra.mxu0 0.0
      %2881 = vmatprep.subr.mxu0 0.0
      %2882 = vmatpush1.msra.mxu0 0.0
      %2883 = vmatprep.subr.mxu0 0.0
      %2884 = vmatpush1.msra.mxu0 0.0
      %2885 = vmatprep.subr.mxu0 0.0
      %2886 = vmatpush1.msra.mxu0 0.0
      %2887 = vmatprep.mubr.f32.mxu0 0.0
      %v2888 = vand.u32 %v2047, 4294901760
      %2889 = vmatmul.mubr.f32.gmra.mrb[0].mxu0 %v2888
      %v2890 = vpop.f32.mrb[0].mxu0
      %v2891 = vadd.f32 %v2817, %v2890
      %v2892 = vpop.f32.mrb[0].mxu0
      %2893 = vdwg.mxu0
      %2894 = vmatprep.subr.mxu0 0.0
      %v2895 = vand.u32 %v2053, 4294901760
      %2896 = vmatpush1.msra.mxu0 %v2895
      %2897 = vmatprep.subr.mxu0 0.0
      %2898 = vmatpush1.msra.mxu0 0.0
      %2899 = vmatprep.subr.mxu0 0.0
      %2900 = vmatpush1.msra.mxu0 0.0
      %2901 = vmatprep.subr.mxu0 0.0
      %2902 = vmatpush1.msra.mxu0 0.0
      %2903 = vmatprep.subr.mxu0 0.0
      %2904 = vmatpush1.msra.mxu0 0.0
      %2905 = vmatprep.subr.mxu0 0.0
      %2906 = vmatpush1.msra.mxu0 0.0
      %2907 = vmatprep.subr.mxu0 0.0
      %2908 = vmatpush1.msra.mxu0 0.0
      %2909 = vmatprep.subr.mxu0 0.0
      %2910 = vmatpush1.msra.mxu0 0.0
      %2911 = vmatprep.subr.mxu0 0.0
      %2912 = vmatpush1.msra.mxu0 0.0
      %2913 = vmatprep.subr.mxu0 0.0
      %2914 = vmatpush1.msra.mxu0 0.0
      %2915 = vmatprep.subr.mxu0 0.0
      %2916 = vmatpush1.msra.mxu0 0.0
      %2917 = vmatprep.subr.mxu0 0.0
      %2918 = vmatpush1.msra.mxu0 0.0
      %2919 = vmatprep.subr.mxu0 0.0
      %2920 = vmatpush1.msra.mxu0 0.0
      %2921 = vmatprep.subr.mxu0 0.0
      %2922 = vmatpush1.msra.mxu0 0.0
      %2923 = vmatprep.subr.mxu0 0.0
      %2924 = vmatpush1.msra.mxu0 0.0
      %2925 = vmatprep.subr.mxu0 0.0
      %2926 = vmatpush1.msra.mxu0 0.0
      %2927 = vmatprep.subr.mxu0 0.0
      %2928 = vmatpush1.msra.mxu0 0.0
      %2929 = vmatprep.subr.mxu0 0.0
      %2930 = vmatpush1.msra.mxu0 0.0
      %2931 = vmatprep.subr.mxu0 0.0
      %2932 = vmatpush1.msra.mxu0 0.0
      %2933 = vmatprep.subr.mxu0 0.0
      %2934 = vmatpush1.msra.mxu0 0.0
      %2935 = vmatprep.subr.mxu0 0.0
      %2936 = vmatpush1.msra.mxu0 0.0
      %2937 = vmatprep.subr.mxu0 0.0
      %2938 = vmatpush1.msra.mxu0 0.0
      %2939 = vmatprep.subr.mxu0 0.0
      %2940 = vmatpush1.msra.mxu0 0.0
      %2941 = vmatprep.subr.mxu0 0.0
      %2942 = vmatpush1.msra.mxu0 0.0
      %2943 = vmatprep.subr.mxu0 0.0
      %2944 = vmatpush1.msra.mxu0 0.0
      %2945 = vmatprep.subr.mxu0 0.0
      %2946 = vmatpush1.msra.mxu0 0.0
      %2947 = vmatprep.subr.mxu0 0.0
      %2948 = vmatpush1.msra.mxu0 0.0
      %2949 = vmatprep.subr.mxu0 0.0
      %2950 = vmatpush1.msra.mxu0 0.0
      %2951 = vmatprep.subr.mxu0 0.0
      %2952 = vmatpush1.msra.mxu0 0.0
      %2953 = vmatprep.subr.mxu0 0.0
      %2954 = vmatpush1.msra.mxu0 0.0
      %2955 = vmatprep.subr.mxu0 0.0
      %2956 = vmatpush1.msra.mxu0 0.0
      %2957 = vmatprep.subr.mxu0 0.0
      %2958 = vmatpush1.msra.mxu0 0.0
      %2959 = vmatprep.mubr.f32.mxu0 0.0
      %v2960 = vand.u32 %v2047, 4294901760
      %2961 = vmatmul.mubr.f32.gmra.mrb[0].mxu0 %v2960
      %v2962 = vpop.f32.mrb[0].mxu0
      %v2963 = vadd.f32 %v2891, %v2962
      %v2964 = vpop.f32.mrb[0].mxu0
      %2965 = vdwg.mxu0
      %v2966 = vadd.f32 %v1580, %v2516
      %v2967 = vadd.f32 %v1582, %v2518
      %v2968 = vadd.f32 %v2027, %v2963
      %v2969 = vld [vmem:[%s165] sm:$0xff]
      %v2970 = vld [vmem:[%s165 + $0x8] sm:$0xf]
      %s2971 = scalar_lea.vmem %s0, 24
      %v2972 = vld [vmem:[%s2971] sm:$0xff]
      %v2975 = vcombine.high %v2969, %v2969
      %2976 = vrot.lane.b32.xlu0 %v2969, 110
      %v2977 = vpop.permute.xlu0 %2976
      %2978 = vrot.lane.b32.xlu0 %v2975, 110
      %v2979 = vpop.permute.xlu0 %2978
      %2980 = vrot.lane.b32.xlu0 %v2970, 110
      %v2981 = vpop.permute.xlu0 %2980
      %vm2982 = vcmask 900096
      %v2983 = vsel %vm2982, %v2977, %v2979
      %v2984 = vsel %vm2982, %v2979, %v2981
      %v2986 = vsel %vm188, %v2972, 0
      %v2988 = vsel %vm192, %v2983, 0
      %v2990 = vsel %vm192, %v2984, 0
      %v2992 = vsel %vm192, %v2981, 0
      %v2994 = vand.u32 %v2990, 4294901760
      %2995 = vmatprep.subr.mxu0 %v2994
      %v2996 = vand.u32 %v2988, 4294901760
      %2997 = vmatpush1.msra.mxu0 %v2996
      %2998 = vmatprep.subr.mxu0 0.0
      %2999 = vmatpush1.msra.mxu0 0.0
      %3000 = vmatprep.subr.mxu0 0.0
      %3001 = vmatpush1.msra.mxu0 0.0
      %3002 = vmatprep.subr.mxu0 0.0
      %3003 = vmatpush1.msra.mxu0 0.0
      %3004 = vmatprep.subr.mxu0 0.0
      %3005 = vmatpush1.msra.mxu0 0.0
      %3006 = vmatprep.subr.mxu0 0.0
      %3007 = vmatpush1.msra.mxu0 0.0
      %3008 = vmatprep.subr.mxu0 0.0
      %3009 = vmatpush1.msra.mxu0 0.0
      %3010 = vmatprep.subr.mxu0 0.0
      %3011 = vmatpush1.msra.mxu0 0.0
      %3012 = vmatprep.subr.mxu0 0.0
      %3013 = vmatpush1.msra.mxu0 0.0
      %3014 = vmatprep.subr.mxu0 0.0
      %3015 = vmatpush1.msra.mxu0 0.0
      %3016 = vmatprep.subr.mxu0 0.0
      %3017 = vmatpush1.msra.mxu0 0.0
      %3018 = vmatprep.subr.mxu0 0.0
      %3019 = vmatpush1.msra.mxu0 0.0
      %3020 = vmatprep.subr.mxu0 0.0
      %3021 = vmatpush1.msra.mxu0 0.0
      %3022 = vmatprep.subr.mxu0 0.0
      %3023 = vmatpush1.msra.mxu0 0.0
      %3024 = vmatprep.subr.mxu0 0.0
      %3025 = vmatpush1.msra.mxu0 0.0
      %3026 = vmatprep.subr.mxu0 0.0
      %3027 = vmatpush1.msra.mxu0 0.0
      %3028 = vmatprep.subr.mxu0 0.0
      %3029 = vmatpush1.msra.mxu0 0.0
      %3030 = vmatprep.subr.mxu0 0.0
      %3031 = vmatpush1.msra.mxu0 0.0
      %3032 = vmatprep.subr.mxu0 0.0
      %3033 = vmatpush1.msra.mxu0 0.0
      %3034 = vmatprep.subr.mxu0 0.0
      %3035 = vmatpush1.msra.mxu0 0.0
      %3036 = vmatprep.subr.mxu0 0.0
      %3037 = vmatpush1.msra.mxu0 0.0
      %3038 = vmatprep.subr.mxu0 0.0
      %3039 = vmatpush1.msra.mxu0 0.0
      %3040 = vmatprep.subr.mxu0 0.0
      %3041 = vmatpush1.msra.mxu0 0.0
      %3042 = vmatprep.subr.mxu0 0.0
      %3043 = vmatpush1.msra.mxu0 0.0
      %3044 = vmatprep.subr.mxu0 0.0
      %3045 = vmatpush1.msra.mxu0 0.0
      %3046 = vmatprep.subr.mxu0 0.0
      %3047 = vmatpush1.msra.mxu0 0.0
      %3048 = vmatprep.subr.mxu0 0.0
      %3049 = vmatpush1.msra.mxu0 0.0
      %3050 = vmatprep.subr.mxu0 0.0
      %3051 = vmatpush1.msra.mxu0 0.0
      %3052 = vmatprep.subr.mxu0 0.0
      %3053 = vmatpush1.msra.mxu0 0.0
      %3054 = vmatprep.subr.mxu0 0.0
      %3055 = vmatpush1.msra.mxu0 0.0
      %3056 = vmatprep.subr.mxu0 0.0
      %3057 = vmatpush1.msra.mxu0 0.0
      %3058 = vmatprep.subr.mxu0 0.0
      %3059 = vmatpush1.msra.mxu0 0.0
      %3060 = vmatprep.mubr.f32.mxu0 0.0
      %v3061 = vand.u32 %v2986, 4294901760
      %v3062 = vsub.f32 %v2986, %v3061
      %v3063 = vand.u32 %v3062, 4294901760
      %v3064 = vsub.f32 %v3062, %v3063
      %v3065 = vand.u32 %v3064, 4294901760
      %3066 = vmatmul.mubr.f32.gmra.mrb[0].mxu0 %v3065
      %v3067 = vpop.f32.mrb[0].mxu0
      %v3068 = vadd.f32 0.0, %v3067
      %v3069 = vpop.f32.mrb[0].mxu0
      %v3070 = vadd.f32 0.0, %v3069
      %3071 = vdwg.mxu0
      %v3072 = vand.u32 %v2990, 4294901760
      %v3073 = vsub.f32 %v2990, %v3072
      %v3074 = vand.u32 %v3073, 4294901760
      %v3075 = vsub.f32 %v3073, %v3074
      %v3076 = vand.u32 %v3075, 4294901760
      %3077 = vmatprep.subr.mxu0 %v3076
      %v3078 = vand.u32 %v2988, 4294901760
      %v3079 = vsub.f32 %v2988, %v3078
      %v3080 = vand.u32 %v3079, 4294901760
      %v3081 = vsub.f32 %v3079, %v3080
      %v3082 = vand.u32 %v3081, 4294901760
      %3083 = vmatpush1.msra.mxu0 %v3082
      %3084 = vmatprep.subr.mxu0 0.0
      %3085 = vmatpush1.msra.mxu0 0.0
      %3086 = vmatprep.subr.mxu0 0.0
      %3087 = vmatpush1.msra.mxu0 0.0
      %3088 = vmatprep.subr.mxu0 0.0
      %3089 = vmatpush1.msra.mxu0 0.0
      %3090 = vmatprep.subr.mxu0 0.0
      %3091 = vmatpush1.msra.mxu0 0.0
      %3092 = vmatprep.subr.mxu0 0.0
      %3093 = vmatpush1.msra.mxu0 0.0
      %3094 = vmatprep.subr.mxu0 0.0
      %3095 = vmatpush1.msra.mxu0 0.0
      %3096 = vmatprep.subr.mxu0 0.0
      %3097 = vmatpush1.msra.mxu0 0.0
      %3098 = vmatprep.subr.mxu0 0.0
      %3099 = vmatpush1.msra.mxu0 0.0
      %3100 = vmatprep.subr.mxu0 0.0
      %3101 = vmatpush1.msra.mxu0 0.0
      %3102 = vmatprep.subr.mxu0 0.0
      %3103 = vmatpush1.msra.mxu0 0.0
      %3104 = vmatprep.subr.mxu0 0.0
      %3105 = vmatpush1.msra.mxu0 0.0
      %3106 = vmatprep.subr.mxu0 0.0
      %3107 = vmatpush1.msra.mxu0 0.0
      %3108 = vmatprep.subr.mxu0 0.0
      %3109 = vmatpush1.msra.mxu0 0.0
      %3110 = vmatprep.subr.mxu0 0.0
      %3111 = vmatpush1.msra.mxu0 0.0
      %3112 = vmatprep.subr.mxu0 0.0
      %3113 = vmatpush1.msra.mxu0 0.0
      %3114 = vmatprep.subr.mxu0 0.0
      %3115 = vmatpush1.msra.mxu0 0.0
      %3116 = vmatprep.subr.mxu0 0.0
      %3117 = vmatpush1.msra.mxu0 0.0
      %3118 = vmatprep.subr.mxu0 0.0
      %3119 = vmatpush1.msra.mxu0 0.0
      %3120 = vmatprep.subr.mxu0 0.0
      %3121 = vmatpush1.msra.mxu0 0.0
      %3122 = vmatprep.subr.mxu0 0.0
      %3123 = vmatpush1.msra.mxu0 0.0
      %3124 = vmatprep.subr.mxu0 0.0
      %3125 = vmatpush1.msra.mxu0 0.0
      %3126 = vmatprep.subr.mxu0 0.0
      %3127 = vmatpush1.msra.mxu0 0.0
      %3128 = vmatprep.subr.mxu0 0.0
      %3129 = vmatpush1.msra.mxu0 0.0
      %3130 = vmatprep.subr.mxu0 0.0
      %3131 = vmatpush1.msra.mxu0 0.0
      %3132 = vmatprep.subr.mxu0 0.0
      %3133 = vmatpush1.msra.mxu0 0.0
      %3134 = vmatprep.subr.mxu0 0.0
      %3135 = vmatpush1.msra.mxu0 0.0
      %3136 = vmatprep.subr.mxu0 0.0
      %3137 = vmatpush1.msra.mxu0 0.0
      %3138 = vmatprep.subr.mxu0 0.0
      %3139 = vmatpush1.msra.mxu0 0.0
      %3140 = vmatprep.subr.mxu0 0.0
      %3141 = vmatpush1.msra.mxu0 0.0
      %3142 = vmatprep.subr.mxu0 0.0
      %3143 = vmatpush1.msra.mxu0 0.0
      %3144 = vmatprep.subr.mxu0 0.0
      %3145 = vmatpush1.msra.mxu0 0.0
      %3146 = vmatprep.mubr.f32.mxu0 0.0
      %v3147 = vand.u32 %v2986, 4294901760
      %3148 = vmatmul.mubr.f32.gmra.mrb[0].mxu0 %v3147
      %v3149 = vpop.f32.mrb[0].mxu0
      %v3150 = vadd.f32 %v3068, %v3149
      %v3151 = vpop.f32.mrb[0].mxu0
      %v3152 = vadd.f32 %v3070, %v3151
      %3153 = vdwg.mxu0
      %v3154 = vand.u32 %v2990, 4294901760
      %v3155 = vsub.f32 %v2990, %v3154
      %3156 = vmatprep.subr.mxu0 %v3155
      %v3157 = vand.u32 %v2988, 4294901760
      %v3158 = vsub.f32 %v2988, %v3157
      %3159 = vmatpush1.msra.mxu0 %v3158
      %3160 = vmatprep.subr.mxu0 0.0
      %3161 = vmatpush1.msra.mxu0 0.0
      %3162 = vmatprep.subr.mxu0 0.0
      %3163 = vmatpush1.msra.mxu0 0.0
      %3164 = vmatprep.subr.mxu0 0.0
      %3165 = vmatpush1.msra.mxu0 0.0
      %3166 = vmatprep.subr.mxu0 0.0
      %3167 = vmatpush1.msra.mxu0 0.0
      %3168 = vmatprep.subr.mxu0 0.0
      %3169 = vmatpush1.msra.mxu0 0.0
      %3170 = vmatprep.subr.mxu0 0.0
      %3171 = vmatpush1.msra.mxu0 0.0
      %3172 = vmatprep.subr.mxu0 0.0
      %3173 = vmatpush1.msra.mxu0 0.0
      %3174 = vmatprep.subr.mxu0 0.0
      %3175 = vmatpush1.msra.mxu0 0.0
      %3176 = vmatprep.subr.mxu0 0.0
      %3177 = vmatpush1.msra.mxu0 0.0
      %3178 = vmatprep.subr.mxu0 0.0
      %3179 = vmatpush1.msra.mxu0 0.0
      %3180 = vmatprep.subr.mxu0 0.0
      %3181 = vmatpush1.msra.mxu0 0.0
      %3182 = vmatprep.subr.mxu0 0.0
      %3183 = vmatpush1.msra.mxu0 0.0
      %3184 = vmatprep.subr.mxu0 0.0
      %3185 = vmatpush1.msra.mxu0 0.0
      %3186 = vmatprep.subr.mxu0 0.0
      %3187 = vmatpush1.msra.mxu0 0.0
      %3188 = vmatprep.subr.mxu0 0.0
      %3189 = vmatpush1.msra.mxu0 0.0
      %3190 = vmatprep.subr.mxu0 0.0
      %3191 = vmatpush1.msra.mxu0 0.0
      %3192 = vmatprep.subr.mxu0 0.0
      %3193 = vmatpush1.msra.mxu0 0.0
      %3194 = vmatprep.subr.mxu0 0.0
      %3195 = vmatpush1.msra.mxu0 0.0
      %3196 = vmatprep.subr.mxu0 0.0
      %3197 = vmatpush1.msra.mxu0 0.0
      %3198 = vmatprep.subr.mxu0 0.0
      %3199 = vmatpush1.msra.mxu0 0.0
      %3200 = vmatprep.subr.mxu0 0.0
      %3201 = vmatpush1.msra.mxu0 0.0
      %3202 = vmatprep.subr.mxu0 0.0
      %3203 = vmatpush1.msra.mxu0 0.0
      %3204 = vmatprep.subr.mxu0 0.0
      %3205 = vmatpush1.msra.mxu0 0.0
      %3206 = vmatprep.subr.mxu0 0.0
      %3207 = vmatpush1.msra.mxu0 0.0
      %3208 = vmatprep.subr.mxu0 0.0
      %3209 = vmatpush1.msra.mxu0 0.0
      %3210 = vmatprep.subr.mxu0 0.0
      %3211 = vmatpush1.msra.mxu0 0.0
      %3212 = vmatprep.subr.mxu0 0.0
      %3213 = vmatpush1.msra.mxu0 0.0
      %3214 = vmatprep.subr.mxu0 0.0
      %3215 = vmatpush1.msra.mxu0 0.0
      %3216 = vmatprep.subr.mxu0 0.0
      %3217 = vmatpush1.msra.mxu0 0.0
      %3218 = vmatprep.subr.mxu0 0.0
      %3219 = vmatpush1.msra.mxu0 0.0
      %3220 = vmatprep.subr.mxu0 0.0
      %3221 = vmatpush1.msra.mxu0 0.0
      %3222 = vmatprep.mubr.f32.mxu0 0.0
      %v3223 = vand.u32 %v2986, 4294901760
      %v3224 = vsub.f32 %v2986, %v3223
      %3225 = vmatmul.mubr.f32.gmra.mrb[0].mxu0 %v3224
      %v3226 = vpop.f32.mrb[0].mxu0
      %v3227 = vadd.f32 %v3150, %v3226
      %v3228 = vpop.f32.mrb[0].mxu0
      %v3229 = vadd.f32 %v3152, %v3228
      %3230 = vdwg.mxu0
      %v3231 = vand.u32 %v2990, 4294901760
      %3232 = vmatprep.subr.mxu0 %v3231
      %v3233 = vand.u32 %v2988, 4294901760
      %3234 = vmatpush1.msra.mxu0 %v3233
      %3235 = vmatprep.subr.mxu0 0.0
      %3236 = vmatpush1.msra.mxu0 0.0
      %3237 = vmatprep.subr.mxu0 0.0
      %3238 = vmatpush1.msra.mxu0 0.0
      %3239 = vmatprep.subr.mxu0 0.0
      %3240 = vmatpush1.msra.mxu0 0.0
      %3241 = vmatprep.subr.mxu0 0.0
      %3242 = vmatpush1.msra.mxu0 0.0
      %3243 = vmatprep.subr.mxu0 0.0
      %3244 = vmatpush1.msra.mxu0 0.0
      %3245 = vmatprep.subr.mxu0 0.0
      %3246 = vmatpush1.msra.mxu0 0.0
      %3247 = vmatprep.subr.mxu0 0.0
      %3248 = vmatpush1.msra.mxu0 0.0
      %3249 = vmatprep.subr.mxu0 0.0
      %3250 = vmatpush1.msra.mxu0 0.0
      %3251 = vmatprep.subr.mxu0 0.0
      %3252 = vmatpush1.msra.mxu0 0.0
      %3253 = vmatprep.subr.mxu0 0.0
      %3254 = vmatpush1.msra.mxu0 0.0
      %3255 = vmatprep.subr.mxu0 0.0
      %3256 = vmatpush1.msra.mxu0 0.0
      %3257 = vmatprep.subr.mxu0 0.0
      %3258 = vmatpush1.msra.mxu0 0.0
      %3259 = vmatprep.subr.mxu0 0.0
      %3260 = vmatpush1.msra.mxu0 0.0
      %3261 = vmatprep.subr.mxu0 0.0
      %3262 = vmatpush1.msra.mxu0 0.0
      %3263 = vmatprep.subr.mxu0 0.0
      %3264 = vmatpush1.msra.mxu0 0.0
      %3265 = vmatprep.subr.mxu0 0.0
      %3266 = vmatpush1.msra.mxu0 0.0
      %3267 = vmatprep.subr.mxu0 0.0
      %3268 = vmatpush1.msra.mxu0 0.0
      %3269 = vmatprep.subr.mxu0 0.0
      %3270 = vmatpush1.msra.mxu0 0.0
      %3271 = vmatprep.subr.mxu0 0.0
      %3272 = vmatpush1.msra.mxu0 0.0
      %3273 = vmatprep.subr.mxu0 0.0
      %3274 = vmatpush1.msra.mxu0 0.0
      %3275 = vmatprep.subr.mxu0 0.0
      %3276 = vmatpush1.msra.mxu0 0.0
      %3277 = vmatprep.subr.mxu0 0.0
      %3278 = vmatpush1.msra.mxu0 0.0
      %3279 = vmatprep.subr.mxu0 0.0
      %3280 = vmatpush1.msra.mxu0 0.0
      %3281 = vmatprep.subr.mxu0 0.0
      %3282 = vmatpush1.msra.mxu0 0.0
      %3283 = vmatprep.subr.mxu0 0.0
      %3284 = vmatpush1.msra.mxu0 0.0
      %3285 = vmatprep.subr.mxu0 0.0
      %3286 = vmatpush1.msra.mxu0 0.0
      %3287 = vmatprep.subr.mxu0 0.0
      %3288 = vmatpush1.msra.mxu0 0.0
      %3289 = vmatprep.subr.mxu0 0.0
      %3290 = vmatpush1.msra.mxu0 0.0
      %3291 = vmatprep.subr.mxu0 0.0
      %3292 = vmatpush1.msra.mxu0 0.0
      %3293 = vmatprep.subr.mxu0 0.0
      %3294 = vmatpush1.msra.mxu0 0.0
      %3295 = vmatprep.subr.mxu0 0.0
      %3296 = vmatpush1.msra.mxu0 0.0
      %3297 = vmatprep.mubr.f32.mxu0 0.0
      %v3298 = vand.u32 %v2986, 4294901760
      %v3299 = vsub.f32 %v2986, %v3298
      %v3300 = vand.u32 %v3299, 4294901760
      %3301 = vmatmul.mubr.f32.gmra.mrb[0].mxu0 %v3300
      %v3302 = vpop.f32.mrb[0].mxu0
      %v3303 = vadd.f32 %v3227, %v3302
      %v3304 = vpop.f32.mrb[0].mxu0
      %v3305 = vadd.f32 %v3229, %v3304
      %3306 = vdwg.mxu0
      %v3307 = vand.u32 %v2990, 4294901760
      %v3308 = vsub.f32 %v2990, %v3307
      %v3309 = vand.u32 %v3308, 4294901760
      %3310 = vmatprep.subr.mxu0 %v3309
      %v3311 = vand.u32 %v2988, 4294901760
      %v3312 = vsub.f32 %v2988, %v3311
      %v3313 = vand.u32 %v3312, 4294901760
      %3314 = vmatpush1.msra.mxu0 %v3313
      %3315 = vmatprep.subr.mxu0 0.0
      %3316 = vmatpush1.msra.mxu0 0.0
      %3317 = vmatprep.subr.mxu0 0.0
      %3318 = vmatpush1.msra.mxu0 0.0
      %3319 = vmatprep.subr.mxu0 0.0
      %3320 = vmatpush1.msra.mxu0 0.0
      %3321 = vmatprep.subr.mxu0 0.0
      %3322 = vmatpush1.msra.mxu0 0.0
      %3323 = vmatprep.subr.mxu0 0.0
      %3324 = vmatpush1.msra.mxu0 0.0
      %3325 = vmatprep.subr.mxu0 0.0
      %3326 = vmatpush1.msra.mxu0 0.0
      %3327 = vmatprep.subr.mxu0 0.0
      %3328 = vmatpush1.msra.mxu0 0.0
      %3329 = vmatprep.subr.mxu0 0.0
      %3330 = vmatpush1.msra.mxu0 0.0
      %3331 = vmatprep.subr.mxu0 0.0
      %3332 = vmatpush1.msra.mxu0 0.0
      %3333 = vmatprep.subr.mxu0 0.0
      %3334 = vmatpush1.msra.mxu0 0.0
      %3335 = vmatprep.subr.mxu0 0.0
      %3336 = vmatpush1.msra.mxu0 0.0
      %3337 = vmatprep.subr.mxu0 0.0
      %3338 = vmatpush1.msra.mxu0 0.0
      %3339 = vmatprep.subr.mxu0 0.0
      %3340 = vmatpush1.msra.mxu0 0.0
      %3341 = vmatprep.subr.mxu0 0.0
      %3342 = vmatpush1.msra.mxu0 0.0
      %3343 = vmatprep.subr.mxu0 0.0
      %3344 = vmatpush1.msra.mxu0 0.0
      %3345 = vmatprep.subr.mxu0 0.0
      %3346 = vmatpush1.msra.mxu0 0.0
      %3347 = vmatprep.subr.mxu0 0.0
      %3348 = vmatpush1.msra.mxu0 0.0
      %3349 = vmatprep.subr.mxu0 0.0
      %3350 = vmatpush1.msra.mxu0 0.0
      %3351 = vmatprep.subr.mxu0 0.0
      %3352 = vmatpush1.msra.mxu0 0.0
      %3353 = vmatprep.subr.mxu0 0.0
      %3354 = vmatpush1.msra.mxu0 0.0
      %3355 = vmatprep.subr.mxu0 0.0
      %3356 = vmatpush1.msra.mxu0 0.0
      %3357 = vmatprep.subr.mxu0 0.0
      %3358 = vmatpush1.msra.mxu0 0.0
      %3359 = vmatprep.subr.mxu0 0.0
      %3360 = vmatpush1.msra.mxu0 0.0
      %3361 = vmatprep.subr.mxu0 0.0
      %3362 = vmatpush1.msra.mxu0 0.0
      %3363 = vmatprep.subr.mxu0 0.0
      %3364 = vmatpush1.msra.mxu0 0.0
      %3365 = vmatprep.subr.mxu0 0.0
      %3366 = vmatpush1.msra.mxu0 0.0
      %3367 = vmatprep.subr.mxu0 0.0
      %3368 = vmatpush1.msra.mxu0 0.0
      %3369 = vmatprep.subr.mxu0 0.0
      %3370 = vmatpush1.msra.mxu0 0.0
      %3371 = vmatprep.subr.mxu0 0.0
      %3372 = vmatpush1.msra.mxu0 0.0
      %3373 = vmatprep.subr.mxu0 0.0
      %3374 = vmatpush1.msra.mxu0 0.0
      %3375 = vmatprep.subr.mxu0 0.0
      %3376 = vmatpush1.msra.mxu0 0.0
      %3377 = vmatprep.mubr.f32.mxu0 0.0
      %v3378 = vand.u32 %v2986, 4294901760
      %3379 = vmatmul.mubr.f32.gmra.mrb[0].mxu0 %v3378
      %v3380 = vpop.f32.mrb[0].mxu0
      %v3381 = vadd.f32 %v3303, %v3380
      %v3382 = vpop.f32.mrb[0].mxu0
      %v3383 = vadd.f32 %v3305, %v3382
      %3384 = vdwg.mxu0
      %v3385 = vand.u32 %v2990, 4294901760
      %3386 = vmatprep.subr.mxu0 %v3385
      %v3387 = vand.u32 %v2988, 4294901760
      %3388 = vmatpush1.msra.mxu0 %v3387
      %3389 = vmatprep.subr.mxu0 0.0
      %3390 = vmatpush1.msra.mxu0 0.0
      %3391 = vmatprep.subr.mxu0 0.0
      %3392 = vmatpush1.msra.mxu0 0.0
      %3393 = vmatprep.subr.mxu0 0.0
      %3394 = vmatpush1.msra.mxu0 0.0
      %3395 = vmatprep.subr.mxu0 0.0
      %3396 = vmatpush1.msra.mxu0 0.0
      %3397 = vmatprep.subr.mxu0 0.0
      %3398 = vmatpush1.msra.mxu0 0.0
      %3399 = vmatprep.subr.mxu0 0.0
      %3400 = vmatpush1.msra.mxu0 0.0
      %3401 = vmatprep.subr.mxu0 0.0
      %3402 = vmatpush1.msra.mxu0 0.0
      %3403 = vmatprep.subr.mxu0 0.0
      %3404 = vmatpush1.msra.mxu0 0.0
      %3405 = vmatprep.subr.mxu0 0.0
      %3406 = vmatpush1.msra.mxu0 0.0
      %3407 = vmatprep.subr.mxu0 0.0
      %3408 = vmatpush1.msra.mxu0 0.0
      %3409 = vmatprep.subr.mxu0 0.0
      %3410 = vmatpush1.msra.mxu0 0.0
      %3411 = vmatprep.subr.mxu0 0.0
      %3412 = vmatpush1.msra.mxu0 0.0
      %3413 = vmatprep.subr.mxu0 0.0
      %3414 = vmatpush1.msra.mxu0 0.0
      %3415 = vmatprep.subr.mxu0 0.0
      %3416 = vmatpush1.msra.mxu0 0.0
      %3417 = vmatprep.subr.mxu0 0.0
      %3418 = vmatpush1.msra.mxu0 0.0
      %3419 = vmatprep.subr.mxu0 0.0
      %3420 = vmatpush1.msra.mxu0 0.0
      %3421 = vmatprep.subr.mxu0 0.0
      %3422 = vmatpush1.msra.mxu0 0.0
      %3423 = vmatprep.subr.mxu0 0.0
      %3424 = vmatpush1.msra.mxu0 0.0
      %3425 = vmatprep.subr.mxu0 0.0
      %3426 = vmatpush1.msra.mxu0 0.0
      %3427 = vmatprep.subr.mxu0 0.0
      %3428 = vmatpush1.msra.mxu0 0.0
      %3429 = vmatprep.subr.mxu0 0.0
      %3430 = vmatpush1.msra.mxu0 0.0
      %3431 = vmatprep.subr.mxu0 0.0
      %3432 = vmatpush1.msra.mxu0 0.0
      %3433 = vmatprep.subr.mxu0 0.0
      %3434 = vmatpush1.msra.mxu0 0.0
      %3435 = vmatprep.subr.mxu0 0.0
      %3436 = vmatpush1.msra.mxu0 0.0
      %3437 = vmatprep.subr.mxu0 0.0
      %3438 = vmatpush1.msra.mxu0 0.0
      %3439 = vmatprep.subr.mxu0 0.0
      %3440 = vmatpush1.msra.mxu0 0.0
      %3441 = vmatprep.subr.mxu0 0.0
      %3442 = vmatpush1.msra.mxu0 0.0
      %3443 = vmatprep.subr.mxu0 0.0
      %3444 = vmatpush1.msra.mxu0 0.0
      %3445 = vmatprep.subr.mxu0 0.0
      %3446 = vmatpush1.msra.mxu0 0.0
      %3447 = vmatprep.subr.mxu0 0.0
      %3448 = vmatpush1.msra.mxu0 0.0
      %3449 = vmatprep.subr.mxu0 0.0
      %3450 = vmatpush1.msra.mxu0 0.0
      %3451 = vmatprep.mubr.f32.mxu0 0.0
      %v3452 = vand.u32 %v2986, 4294901760
      %3453 = vmatmul.mubr.f32.gmra.mrb[0].mxu0 %v3452
      %v3454 = vpop.f32.mrb[0].mxu0
      %v3455 = vadd.f32 %v3381, %v3454
      %v3456 = vpop.f32.mrb[0].mxu0
      %v3457 = vadd.f32 %v3383, %v3456
      %3458 = vdwg.mxu0
      %3459 = vmatprep.subr.mxu0 0.0
      %v3460 = vand.u32 %v2992, 4294901760
      %3461 = vmatpush1.msra.mxu0 %v3460
      %3462 = vmatprep.subr.mxu0 0.0
      %3463 = vmatpush1.msra.mxu0 0.0
      %3464 = vmatprep.subr.mxu0 0.0
      %3465 = vmatpush1.msra.mxu0 0.0
      %3466 = vmatprep.subr.mxu0 0.0
      %3467 = vmatpush1.msra.mxu0 0.0
      %3468 = vmatprep.subr.mxu0 0.0
      %3469 = vmatpush1.msra.mxu0 0.0
      %3470 = vmatprep.subr.mxu0 0.0
      %3471 = vmatpush1.msra.mxu0 0.0
      %3472 = vmatprep.subr.mxu0 0.0
      %3473 = vmatpush1.msra.mxu0 0.0
      %3474 = vmatprep.subr.mxu0 0.0
      %3475 = vmatpush1.msra.mxu0 0.0
      %3476 = vmatprep.subr.mxu0 0.0
      %3477 = vmatpush1.msra.mxu0 0.0
      %3478 = vmatprep.subr.mxu0 0.0
      %3479 = vmatpush1.msra.mxu0 0.0
      %3480 = vmatprep.subr.mxu0 0.0
      %3481 = vmatpush1.msra.mxu0 0.0
      %3482 = vmatprep.subr.mxu0 0.0
      %3483 = vmatpush1.msra.mxu0 0.0
      %3484 = vmatprep.subr.mxu0 0.0
      %3485 = vmatpush1.msra.mxu0 0.0
      %3486 = vmatprep.subr.mxu0 0.0
      %3487 = vmatpush1.msra.mxu0 0.0
      %3488 = vmatprep.subr.mxu0 0.0
      %3489 = vmatpush1.msra.mxu0 0.0
      %3490 = vmatprep.subr.mxu0 0.0
      %3491 = vmatpush1.msra.mxu0 0.0
      %3492 = vmatprep.subr.mxu0 0.0
      %3493 = vmatpush1.msra.mxu0 0.0
      %3494 = vmatprep.subr.mxu0 0.0
      %3495 = vmatpush1.msra.mxu0 0.0
      %3496 = vmatprep.subr.mxu0 0.0
      %3497 = vmatpush1.msra.mxu0 0.0
      %3498 = vmatprep.subr.mxu0 0.0
      %3499 = vmatpush1.msra.mxu0 0.0
      %3500 = vmatprep.subr.mxu0 0.0
      %3501 = vmatpush1.msra.mxu0 0.0
      %3502 = vmatprep.subr.mxu0 0.0
      %3503 = vmatpush1.msra.mxu0 0.0
      %3504 = vmatprep.subr.mxu0 0.0
      %3505 = vmatpush1.msra.mxu0 0.0
      %3506 = vmatprep.subr.mxu0 0.0
      %3507 = vmatpush1.msra.mxu0 0.0
      %3508 = vmatprep.subr.mxu0 0.0
      %3509 = vmatpush1.msra.mxu0 0.0
      %3510 = vmatprep.subr.mxu0 0.0
      %3511 = vmatpush1.msra.mxu0 0.0
      %3512 = vmatprep.subr.mxu0 0.0
      %3513 = vmatpush1.msra.mxu0 0.0
      %3514 = vmatprep.subr.mxu0 0.0
      %3515 = vmatpush1.msra.mxu0 0.0
      %3516 = vmatprep.subr.mxu0 0.0
      %3517 = vmatpush1.msra.mxu0 0.0
      %3518 = vmatprep.subr.mxu0 0.0
      %3519 = vmatpush1.msra.mxu0 0.0
      %3520 = vmatprep.subr.mxu0 0.0
      %3521 = vmatpush1.msra.mxu0 0.0
      %3522 = vmatprep.subr.mxu0 0.0
      %3523 = vmatpush1.msra.mxu0 0.0
      %3524 = vmatprep.mubr.f32.mxu0 0.0
      %v3525 = vand.u32 %v2986, 4294901760
      %v3526 = vsub.f32 %v2986, %v3525
      %v3527 = vand.u32 %v3526, 4294901760
      %v3528 = vsub.f32 %v3526, %v3527
      %v3529 = vand.u32 %v3528, 4294901760
      %3530 = vmatmul.mubr.f32.gmra.mrb[0].mxu0 %v3529
      %v3531 = vpop.f32.mrb[0].mxu0
      %v3532 = vadd.f32 0.0, %v3531
      %v3533 = vpop.f32.mrb[0].mxu0
      %3534 = vdwg.mxu0
      %3535 = vmatprep.subr.mxu0 0.0
      %v3536 = vand.u32 %v2992, 4294901760
      %v3537 = vsub.f32 %v2992, %v3536
      %v3538 = vand.u32 %v3537, 4294901760
      %v3539 = vsub.f32 %v3537, %v3538
      %v3540 = vand.u32 %v3539, 4294901760
      %3541 = vmatpush1.msra.mxu0 %v3540
      %3542 = vmatprep.subr.mxu0 0.0
      %3543 = vmatpush1.msra.mxu0 0.0
      %3544 = vmatprep.subr.mxu0 0.0
      %3545 = vmatpush1.msra.mxu0 0.0
      %3546 = vmatprep.subr.mxu0 0.0
      %3547 = vmatpush1.msra.mxu0 0.0
      %3548 = vmatprep.subr.mxu0 0.0
      %3549 = vmatpush1.msra.mxu0 0.0
      %3550 = vmatprep.subr.mxu0 0.0
      %3551 = vmatpush1.msra.mxu0 0.0
      %3552 = vmatprep.subr.mxu0 0.0
      %3553 = vmatpush1.msra.mxu0 0.0
      %3554 = vmatprep.subr.mxu0 0.0
      %3555 = vmatpush1.msra.mxu0 0.0
      %3556 = vmatprep.subr.mxu0 0.0
      %3557 = vmatpush1.msra.mxu0 0.0
      %3558 = vmatprep.subr.mxu0 0.0
      %3559 = vmatpush1.msra.mxu0 0.0
      %3560 = vmatprep.subr.mxu0 0.0
      %3561 = vmatpush1.msra.mxu0 0.0
      %3562 = vmatprep.subr.mxu0 0.0
      %3563 = vmatpush1.msra.mxu0 0.0
      %3564 = vmatprep.subr.mxu0 0.0
      %3565 = vmatpush1.msra.mxu0 0.0
      %3566 = vmatprep.subr.mxu0 0.0
      %3567 = vmatpush1.msra.mxu0 0.0
      %3568 = vmatprep.subr.mxu0 0.0
      %3569 = vmatpush1.msra.mxu0 0.0
      %3570 = vmatprep.subr.mxu0 0.0
      %3571 = vmatpush1.msra.mxu0 0.0
      %3572 = vmatprep.subr.mxu0 0.0
      %3573 = vmatpush1.msra.mxu0 0.0
      %3574 = vmatprep.subr.mxu0 0.0
      %3575 = vmatpush1.msra.mxu0 0.0
      %3576 = vmatprep.subr.mxu0 0.0
      %3577 = vmatpush1.msra.mxu0 0.0
      %3578 = vmatprep.subr.mxu0 0.0
      %3579 = vmatpush1.msra.mxu0 0.0
      %3580 = vmatprep.subr.mxu0 0.0
      %3581 = vmatpush1.msra.mxu0 0.0
      %3582 = vmatprep.subr.mxu0 0.0
      %3583 = vmatpush1.msra.mxu0 0.0
      %3584 = vmatprep.subr.mxu0 0.0
      %3585 = vmatpush1.msra.mxu0 0.0
      %3586 = vmatprep.subr.mxu0 0.0
      %3587 = vmatpush1.msra.mxu0 0.0
      %3588 = vmatprep.subr.mxu0 0.0
      %3589 = vmatpush1.msra.mxu0 0.0
      %3590 = vmatprep.subr.mxu0 0.0
      %3591 = vmatpush1.msra.mxu0 0.0
      %3592 = vmatprep.subr.mxu0 0.0
      %3593 = vmatpush1.msra.mxu0 0.0
      %3594 = vmatprep.subr.mxu0 0.0
      %3595 = vmatpush1.msra.mxu0 0.0
      %3596 = vmatprep.subr.mxu0 0.0
      %3597 = vmatpush1.msra.mxu0 0.0
      %3598 = vmatprep.subr.mxu0 0.0
      %3599 = vmatpush1.msra.mxu0 0.0
      %3600 = vmatprep.subr.mxu0 0.0
      %3601 = vmatpush1.msra.mxu0 0.0
      %3602 = vmatprep.subr.mxu0 0.0
      %3603 = vmatpush1.msra.mxu0 0.0
      %3604 = vmatprep.mubr.f32.mxu0 0.0
      %v3605 = vand.u32 %v2986, 4294901760
      %3606 = vmatmul.mubr.f32.gmra.mrb[0].mxu0 %v3605
      %v3607 = vpop.f32.mrb[0].mxu0
      %v3608 = vadd.f32 %v3532, %v3607
      %v3609 = vpop.f32.mrb[0].mxu0
      %3610 = vdwg.mxu0
      %3611 = vmatprep.subr.mxu0 0.0
      %v3612 = vand.u32 %v2992, 4294901760
      %v3613 = vsub.f32 %v2992, %v3612
      %3614 = vmatpush1.msra.mxu0 %v3613
      %3615 = vmatprep.subr.mxu0 0.0
      %3616 = vmatpush1.msra.mxu0 0.0
      %3617 = vmatprep.subr.mxu0 0.0
      %3618 = vmatpush1.msra.mxu0 0.0
      %3619 = vmatprep.subr.mxu0 0.0
      %3620 = vmatpush1.msra.mxu0 0.0
      %3621 = vmatprep.subr.mxu0 0.0
      %3622 = vmatpush1.msra.mxu0 0.0
      %3623 = vmatprep.subr.mxu0 0.0
      %3624 = vmatpush1.msra.mxu0 0.0
      %3625 = vmatprep.subr.mxu0 0.0
      %3626 = vmatpush1.msra.mxu0 0.0
      %3627 = vmatprep.subr.mxu0 0.0
      %3628 = vmatpush1.msra.mxu0 0.0
      %3629 = vmatprep.subr.mxu0 0.0
      %3630 = vmatpush1.msra.mxu0 0.0
      %3631 = vmatprep.subr.mxu0 0.0
      %3632 = vmatpush1.msra.mxu0 0.0
      %3633 = vmatprep.subr.mxu0 0.0
      %3634 = vmatpush1.msra.mxu0 0.0
      %3635 = vmatprep.subr.mxu0 0.0
      %3636 = vmatpush1.msra.mxu0 0.0
      %3637 = vmatprep.subr.mxu0 0.0
      %3638 = vmatpush1.msra.mxu0 0.0
      %3639 = vmatprep.subr.mxu0 0.0
      %3640 = vmatpush1.msra.mxu0 0.0
      %3641 = vmatprep.subr.mxu0 0.0
      %3642 = vmatpush1.msra.mxu0 0.0
      %3643 = vmatprep.subr.mxu0 0.0
      %3644 = vmatpush1.msra.mxu0 0.0
      %3645 = vmatprep.subr.mxu0 0.0
      %3646 = vmatpush1.msra.mxu0 0.0
      %3647 = vmatprep.subr.mxu0 0.0
      %3648 = vmatpush1.msra.mxu0 0.0
      %3649 = vmatprep.subr.mxu0 0.0
      %3650 = vmatpush1.msra.mxu0 0.0
      %3651 = vmatprep.subr.mxu0 0.0
      %3652 = vmatpush1.msra.mxu0 0.0
      %3653 = vmatprep.subr.mxu0 0.0
      %3654 = vmatpush1.msra.mxu0 0.0
      %3655 = vmatprep.subr.mxu0 0.0
      %3656 = vmatpush1.msra.mxu0 0.0
      %3657 = vmatprep.subr.mxu0 0.0
      %3658 = vmatpush1.msra.mxu0 0.0
      %3659 = vmatprep.subr.mxu0 0.0
      %3660 = vmatpush1.msra.mxu0 0.0
      %3661 = vmatprep.subr.mxu0 0.0
      %3662 = vmatpush1.msra.mxu0 0.0
      %3663 = vmatprep.subr.mxu0 0.0
      %3664 = vmatpush1.msra.mxu0 0.0
      %3665 = vmatprep.subr.mxu0 0.0
      %3666 = vmatpush1.msra.mxu0 0.0
      %3667 = vmatprep.subr.mxu0 0.0
      %3668 = vmatpush1.msra.mxu0 0.0
      %3669 = vmatprep.subr.mxu0 0.0
      %3670 = vmatpush1.msra.mxu0 0.0
      %3671 = vmatprep.subr.mxu0 0.0
      %3672 = vmatpush1.msra.mxu0 0.0
      %3673 = vmatprep.subr.mxu0 0.0
      %3674 = vmatpush1.msra.mxu0 0.0
      %3675 = vmatprep.subr.mxu0 0.0
      %3676 = vmatpush1.msra.mxu0 0.0
      %3677 = vmatprep.mubr.f32.mxu0 0.0
      %v3678 = vand.u32 %v2986, 4294901760
      %v3679 = vsub.f32 %v2986, %v3678
      %3680 = vmatmul.mubr.f32.gmra.mrb[0].mxu0 %v3679
      %v3681 = vpop.f32.mrb[0].mxu0
      %v3682 = vadd.f32 %v3608, %v3681
      %v3683 = vpop.f32.mrb[0].mxu0
      %3684 = vdwg.mxu0
      %3685 = vmatprep.subr.mxu0 0.0
      %v3686 = vand.u32 %v2992, 4294901760
      %3687 = vmatpush1.msra.mxu0 %v3686
      %3688 = vmatprep.subr.mxu0 0.0
      %3689 = vmatpush1.msra.mxu0 0.0
      %3690 = vmatprep.subr.mxu0 0.0
      %3691 = vmatpush1.msra.mxu0 0.0
      %3692 = vmatprep.subr.mxu0 0.0
      %3693 = vmatpush1.msra.mxu0 0.0
      %3694 = vmatprep.subr.mxu0 0.0
      %3695 = vmatpush1.msra.mxu0 0.0
      %3696 = vmatprep.subr.mxu0 0.0
      %3697 = vmatpush1.msra.mxu0 0.0
      %3698 = vmatprep.subr.mxu0 0.0
      %3699 = vmatpush1.msra.mxu0 0.0
      %3700 = vmatprep.subr.mxu0 0.0
      %3701 = vmatpush1.msra.mxu0 0.0
      %3702 = vmatprep.subr.mxu0 0.0
      %3703 = vmatpush1.msra.mxu0 0.0
      %3704 = vmatprep.subr.mxu0 0.0
      %3705 = vmatpush1.msra.mxu0 0.0
      %3706 = vmatprep.subr.mxu0 0.0
      %3707 = vmatpush1.msra.mxu0 0.0
      %3708 = vmatprep.subr.mxu0 0.0
      %3709 = vmatpush1.msra.mxu0 0.0
      %3710 = vmatprep.subr.mxu0 0.0
      %3711 = vmatpush1.msra.mxu0 0.0
      %3712 = vmatprep.subr.mxu0 0.0
      %3713 = vmatpush1.msra.mxu0 0.0
      %3714 = vmatprep.subr.mxu0 0.0
      %3715 = vmatpush1.msra.mxu0 0.0
      %3716 = vmatprep.subr.mxu0 0.0
      %3717 = vmatpush1.msra.mxu0 0.0
      %3718 = vmatprep.subr.mxu0 0.0
      %3719 = vmatpush1.msra.mxu0 0.0
      %3720 = vmatprep.subr.mxu0 0.0
      %3721 = vmatpush1.msra.mxu0 0.0
      %3722 = vmatprep.subr.mxu0 0.0
      %3723 = vmatpush1.msra.mxu0 0.0
      %3724 = vmatprep.subr.mxu0 0.0
      %3725 = vmatpush1.msra.mxu0 0.0
      %3726 = vmatprep.subr.mxu0 0.0
      %3727 = vmatpush1.msra.mxu0 0.0
      %3728 = vmatprep.subr.mxu0 0.0
      %3729 = vmatpush1.msra.mxu0 0.0
      %3730 = vmatprep.subr.mxu0 0.0
      %3731 = vmatpush1.msra.mxu0 0.0
      %3732 = vmatprep.subr.mxu0 0.0
      %3733 = vmatpush1.msra.mxu0 0.0
      %3734 = vmatprep.subr.mxu0 0.0
      %3735 = vmatpush1.msra.mxu0 0.0
      %3736 = vmatprep.subr.mxu0 0.0
      %3737 = vmatpush1.msra.mxu0 0.0
      %3738 = vmatprep.subr.mxu0 0.0
      %3739 = vmatpush1.msra.mxu0 0.0
      %3740 = vmatprep.subr.mxu0 0.0
      %3741 = vmatpush1.msra.mxu0 0.0
      %3742 = vmatprep.subr.mxu0 0.0
      %3743 = vmatpush1.msra.mxu0 0.0
      %3744 = vmatprep.subr.mxu0 0.0
      %3745 = vmatpush1.msra.mxu0 0.0
      %3746 = vmatprep.subr.mxu0 0.0
      %3747 = vmatpush1.msra.mxu0 0.0
      %3748 = vmatprep.subr.mxu0 0.0
      %3749 = vmatpush1.msra.mxu0 0.0
      %3750 = vmatprep.mubr.f32.mxu0 0.0
      %v3751 = vand.u32 %v2986, 4294901760
      %v3752 = vsub.f32 %v2986, %v3751
      %v3753 = vand.u32 %v3752, 4294901760
      %3754 = vmatmul.mubr.f32.gmra.mrb[0].mxu0 %v3753
      %v3755 = vpop.f32.mrb[0].mxu0
      %v3756 = vadd.f32 %v3682, %v3755
      %v3757 = vpop.f32.mrb[0].mxu0
      %3758 = vdwg.mxu0
      %3759 = vmatprep.subr.mxu0 0.0
      %v3760 = vand.u32 %v2992, 4294901760
      %v3761 = vsub.f32 %v2992, %v3760
      %v3762 = vand.u32 %v3761, 4294901760
      %3763 = vmatpush1.msra.mxu0 %v3762
      %3764 = vmatprep.subr.mxu0 0.0
      %3765 = vmatpush1.msra.mxu0 0.0
      %3766 = vmatprep.subr.mxu0 0.0
      %3767 = vmatpush1.msra.mxu0 0.0
      %3768 = vmatprep.subr.mxu0 0.0
      %3769 = vmatpush1.msra.mxu0 0.0
      %3770 = vmatprep.subr.mxu0 0.0
      %3771 = vmatpush1.msra.mxu0 0.0
      %3772 = vmatprep.subr.mxu0 0.0
      %3773 = vmatpush1.msra.mxu0 0.0
      %3774 = vmatprep.subr.mxu0 0.0
      %3775 = vmatpush1.msra.mxu0 0.0
      %3776 = vmatprep.subr.mxu0 0.0
      %3777 = vmatpush1.msra.mxu0 0.0
      %3778 = vmatprep.subr.mxu0 0.0
      %3779 = vmatpush1.msra.mxu0 0.0
      %3780 = vmatprep.subr.mxu0 0.0
      %3781 = vmatpush1.msra.mxu0 0.0
      %3782 = vmatprep.subr.mxu0 0.0
      %3783 = vmatpush1.msra.mxu0 0.0
      %3784 = vmatprep.subr.mxu0 0.0
      %3785 = vmatpush1.msra.mxu0 0.0
      %3786 = vmatprep.subr.mxu0 0.0
      %3787 = vmatpush1.msra.mxu0 0.0
      %3788 = vmatprep.subr.mxu0 0.0
      %3789 = vmatpush1.msra.mxu0 0.0
      %3790 = vmatprep.subr.mxu0 0.0
      %3791 = vmatpush1.msra.mxu0 0.0
      %3792 = vmatprep.subr.mxu0 0.0
      %3793 = vmatpush1.msra.mxu0 0.0
      %3794 = vmatprep.subr.mxu0 0.0
      %3795 = vmatpush1.msra.mxu0 0.0
      %3796 = vmatprep.subr.mxu0 0.0
      %3797 = vmatpush1.msra.mxu0 0.0
      %3798 = vmatprep.subr.mxu0 0.0
      %3799 = vmatpush1.msra.mxu0 0.0
      %3800 = vmatprep.subr.mxu0 0.0
      %3801 = vmatpush1.msra.mxu0 0.0
      %3802 = vmatprep.subr.mxu0 0.0
      %3803 = vmatpush1.msra.mxu0 0.0
      %3804 = vmatprep.subr.mxu0 0.0
      %3805 = vmatpush1.msra.mxu0 0.0
      %3806 = vmatprep.subr.mxu0 0.0
      %3807 = vmatpush1.msra.mxu0 0.0
      %3808 = vmatprep.subr.mxu0 0.0
      %3809 = vmatpush1.msra.mxu0 0.0
      %3810 = vmatprep.subr.mxu0 0.0
      %3811 = vmatpush1.msra.mxu0 0.0
      %3812 = vmatprep.subr.mxu0 0.0
      %3813 = vmatpush1.msra.mxu0 0.0
      %3814 = vmatprep.subr.mxu0 0.0
      %3815 = vmatpush1.msra.mxu0 0.0
      %3816 = vmatprep.subr.mxu0 0.0
      %3817 = vmatpush1.msra.mxu0 0.0
      %3818 = vmatprep.subr.mxu0 0.0
      %3819 = vmatpush1.msra.mxu0 0.0
      %3820 = vmatprep.subr.mxu0 0.0
      %3821 = vmatpush1.msra.mxu0 0.0
      %3822 = vmatprep.subr.mxu0 0.0
      %3823 = vmatpush1.msra.mxu0 0.0
      %3824 = vmatprep.subr.mxu0 0.0
      %3825 = vmatpush1.msra.mxu0 0.0
      %3826 = vmatprep.mubr.f32.mxu0 0.0
      %v3827 = vand.u32 %v2986, 4294901760
      %3828 = vmatmul.mubr.f32.gmra.mrb[0].mxu0 %v3827
      %v3829 = vpop.f32.mrb[0].mxu0
      %v3830 = vadd.f32 %v3756, %v3829
      %v3831 = vpop.f32.mrb[0].mxu0
      %3832 = vdwg.mxu0
      %3833 = vmatprep.subr.mxu0 0.0
      %v3834 = vand.u32 %v2992, 4294901760
      %3835 = vmatpush1.msra.mxu0 %v3834
      %3836 = vmatprep.subr.mxu0 0.0
      %3837 = vmatpush1.msra.mxu0 0.0
      %3838 = vmatprep.subr.mxu0 0.0
      %3839 = vmatpush1.msra.mxu0 0.0
      %3840 = vmatprep.subr.mxu0 0.0
      %3841 = vmatpush1.msra.mxu0 0.0
      %3842 = vmatprep.subr.mxu0 0.0
      %3843 = vmatpush1.msra.mxu0 0.0
      %3844 = vmatprep.subr.mxu0 0.0
      %3845 = vmatpush1.msra.mxu0 0.0
      %3846 = vmatprep.subr.mxu0 0.0
      %3847 = vmatpush1.msra.mxu0 0.0
      %3848 = vmatprep.subr.mxu0 0.0
      %3849 = vmatpush1.msra.mxu0 0.0
      %3850 = vmatprep.subr.mxu0 0.0
      %3851 = vmatpush1.msra.mxu0 0.0
      %3852 = vmatprep.subr.mxu0 0.0
      %3853 = vmatpush1.msra.mxu0 0.0
      %3854 = vmatprep.subr.mxu0 0.0
      %3855 = vmatpush1.msra.mxu0 0.0
      %3856 = vmatprep.subr.mxu0 0.0
      %3857 = vmatpush1.msra.mxu0 0.0
      %3858 = vmatprep.subr.mxu0 0.0
      %3859 = vmatpush1.msra.mxu0 0.0
      %3860 = vmatprep.subr.mxu0 0.0
      %3861 = vmatpush1.msra.mxu0 0.0
      %3862 = vmatprep.subr.mxu0 0.0
      %3863 = vmatpush1.msra.mxu0 0.0
      %3864 = vmatprep.subr.mxu0 0.0
      %3865 = vmatpush1.msra.mxu0 0.0
      %3866 = vmatprep.subr.mxu0 0.0
      %3867 = vmatpush1.msra.mxu0 0.0
      %3868 = vmatprep.subr.mxu0 0.0
      %3869 = vmatpush1.msra.mxu0 0.0
      %3870 = vmatprep.subr.mxu0 0.0
      %3871 = vmatpush1.msra.mxu0 0.0
      %3872 = vmatprep.subr.mxu0 0.0
      %3873 = vmatpush1.msra.mxu0 0.0
      %3874 = vmatprep.subr.mxu0 0.0
      %3875 = vmatpush1.msra.mxu0 0.0
      %3876 = vmatprep.subr.mxu0 0.0
      %3877 = vmatpush1.msra.mxu0 0.0
      %3878 = vmatprep.subr.mxu0 0.0
      %3879 = vmatpush1.msra.mxu0 0.0
      %3880 = vmatprep.subr.mxu0 0.0
      %3881 = vmatpush1.msra.mxu0 0.0
      %3882 = vmatprep.subr.mxu0 0.0
      %3883 = vmatpush1.msra.mxu0 0.0
      %3884 = vmatprep.subr.mxu0 0.0
      %3885 = vmatpush1.msra.mxu0 0.0
      %3886 = vmatprep.subr.mxu0 0.0
      %3887 = vmatpush1.msra.mxu0 0.0
      %3888 = vmatprep.subr.mxu0 0.0
      %3889 = vmatpush1.msra.mxu0 0.0
      %3890 = vmatprep.subr.mxu0 0.0
      %3891 = vmatpush1.msra.mxu0 0.0
      %3892 = vmatprep.subr.mxu0 0.0
      %3893 = vmatpush1.msra.mxu0 0.0
      %3894 = vmatprep.subr.mxu0 0.0
      %3895 = vmatpush1.msra.mxu0 0.0
      %3896 = vmatprep.subr.mxu0 0.0
      %3897 = vmatpush1.msra.mxu0 0.0
      %3898 = vmatprep.mubr.f32.mxu0 0.0
      %v3899 = vand.u32 %v2986, 4294901760
      %3900 = vmatmul.mubr.f32.gmra.mrb[0].mxu0 %v3899
      %v3901 = vpop.f32.mrb[0].mxu0
      %v3902 = vadd.f32 %v3830, %v3901
      %v3903 = vpop.f32.mrb[0].mxu0
      %3904 = vdwg.mxu0
      %v3905 = vadd.f32 %v2966, %v3455
      %v3906 = vadd.f32 %v2967, %v3457
      %v3907 = vadd.f32 %v2968, %v3902
      %v3908 = vld [vmem:[%s165] sm:$0xff]
      %v3909 = vld [vmem:[%s165 + $0x8] sm:$0xf]
      %s3910 = scalar_lea.vmem %s0, 32
      %v3911 = vld [vmem:[%s3910] sm:$0xff]
      %v3914 = vcombine.high %v3908, %v3908
      %3915 = vrot.lane.b32.xlu0 %v3908, 109
      %v3916 = vpop.permute.xlu0 %3915
      %3917 = vrot.lane.b32.xlu0 %v3914, 109
      %v3918 = vpop.permute.xlu0 %3917
      %3919 = vrot.lane.b32.xlu0 %v3909, 109
      %v3920 = vpop.permute.xlu0 %3919
      %vm3921 = vcmask 891904
      %v3922 = vsel %vm3921, %v3916, %v3918
      %v3923 = vsel %vm3921, %v3918, %v3920
      %v3925 = vsel %vm188, %v3911, 0
      %v3927 = vsel %vm192, %v3922, 0
      %v3929 = vsel %vm192, %v3923, 0
      %v3931 = vsel %vm192, %v3920, 0
      %v3933 = vand.u32 %v3929, 4294901760
      %3934 = vmatprep.subr.mxu0 %v3933
      %v3935 = vand.u32 %v3927, 4294901760
      %3936 = vmatpush1.msra.mxu0 %v3935
      %3937 = vmatprep.subr.mxu0 0.0
      %3938 = vmatpush1.msra.mxu0 0.0
      %3939 = vmatprep.subr.mxu0 0.0
      %3940 = vmatpush1.msra.mxu0 0.0
      %3941 = vmatprep.subr.mxu0 0.0
      %3942 = vmatpush1.msra.mxu0 0.0
      %3943 = vmatprep.subr.mxu0 0.0
      %3944 = vmatpush1.msra.mxu0 0.0
      %3945 = vmatprep.subr.mxu0 0.0
      %3946 = vmatpush1.msra.mxu0 0.0
      %3947 = vmatprep.subr.mxu0 0.0
      %3948 = vmatpush1.msra.mxu0 0.0
      %3949 = vmatprep.subr.mxu0 0.0
      %3950 = vmatpush1.msra.mxu0 0.0
      %3951 = vmatprep.subr.mxu0 0.0
      %3952 = vmatpush1.msra.mxu0 0.0
      %3953 = vmatprep.subr.mxu0 0.0
      %3954 = vmatpush1.msra.mxu0 0.0
      %3955 = vmatprep.subr.mxu0 0.0
      %3956 = vmatpush1.msra.mxu0 0.0
      %3957 = vmatprep.subr.mxu0 0.0
      %3958 = vmatpush1.msra.mxu0 0.0
      %3959 = vmatprep.subr.mxu0 0.0
      %3960 = vmatpush1.msra.mxu0 0.0
      %3961 = vmatprep.subr.mxu0 0.0
      %3962 = vmatpush1.msra.mxu0 0.0
      %3963 = vmatprep.subr.mxu0 0.0
      %3964 = vmatpush1.msra.mxu0 0.0
      %3965 = vmatprep.subr.mxu0 0.0
      %3966 = vmatpush1.msra.mxu0 0.0
      %3967 = vmatprep.subr.mxu0 0.0
      %3968 = vmatpush1.msra.mxu0 0.0
      %3969 = vmatprep.subr.mxu0 0.0
      %3970 = vmatpush1.msra.mxu0 0.0
      %3971 = vmatprep.subr.mxu0 0.0
      %3972 = vmatpush1.msra.mxu0 0.0
      %3973 = vmatprep.subr.mxu0 0.0
      %3974 = vmatpush1.msra.mxu0 0.0
      %3975 = vmatprep.subr.mxu0 0.0
      %3976 = vmatpush1.msra.mxu0 0.0
      %3977 = vmatprep.subr.mxu0 0.0
      %3978 = vmatpush1.msra.mxu0 0.0
      %3979 = vmatprep.subr.mxu0 0.0
      %3980 = vmatpush1.msra.mxu0 0.0
      %3981 = vmatprep.subr.mxu0 0.0
      %3982 = vmatpush1.msra.mxu0 0.0
      %3983 = vmatprep.subr.mxu0 0.0
      %3984 = vmatpush1.msra.mxu0 0.0
      %3985 = vmatprep.subr.mxu0 0.0
      %3986 = vmatpush1.msra.mxu0 0.0
      %3987 = vmatprep.subr.mxu0 0.0
      %3988 = vmatpush1.msra.mxu0 0.0
      %3989 = vmatprep.subr.mxu0 0.0
      %3990 = vmatpush1.msra.mxu0 0.0
      %3991 = vmatprep.subr.mxu0 0.0
      %3992 = vmatpush1.msra.mxu0 0.0
      %3993 = vmatprep.subr.mxu0 0.0
      %3994 = vmatpush1.msra.mxu0 0.0
      %3995 = vmatprep.subr.mxu0 0.0
      %3996 = vmatpush1.msra.mxu0 0.0
      %3997 = vmatprep.subr.mxu0 0.0
      %3998 = vmatpush1.msra.mxu0 0.0
      %3999 = vmatprep.mubr.f32.mxu0 0.0
      %v4000 = vand.u32 %v3925, 4294901760
      %v4001 = vsub.f32 %v3925, %v4000
      %v4002 = vand.u32 %v4001, 4294901760
      %v4003 = vsub.f32 %v4001, %v4002
      %v4004 = vand.u32 %v4003, 4294901760
      %4005 = vmatmul.mubr.f32.gmra.mrb[0].mxu0 %v4004
      %v4006 = vpop.f32.mrb[0].mxu0
      %v4007 = vadd.f32 0.0, %v4006
      %v4008 = vpop.f32.mrb[0].mxu0
      %v4009 = vadd.f32 0.0, %v4008
      %4010 = vdwg.mxu0
      %v4011 = vand.u32 %v3929, 4294901760
      %v4012 = vsub.f32 %v3929, %v4011
      %v4013 = vand.u32 %v4012, 4294901760
      %v4014 = vsub.f32 %v4012, %v4013
      %v4015 = vand.u32 %v4014, 4294901760
      %4016 = vmatprep.subr.mxu0 %v4015
      %v4017 = vand.u32 %v3927, 4294901760
      %v4018 = vsub.f32 %v3927, %v4017
      %v4019 = vand.u32 %v4018, 4294901760
      %v4020 = vsub.f32 %v4018, %v4019
      %v4021 = vand.u32 %v4020, 4294901760
      %4022 = vmatpush1.msra.mxu0 %v4021
      %4023 = vmatprep.subr.mxu0 0.0
      %4024 = vmatpush1.msra.mxu0 0.0
      %4025 = vmatprep.subr.mxu0 0.0
      %4026 = vmatpush1.msra.mxu0 0.0
      %4027 = vmatprep.subr.mxu0 0.0
      %4028 = vmatpush1.msra.mxu0 0.0
      %4029 = vmatprep.subr.mxu0 0.0
      %4030 = vmatpush1.msra.mxu0 0.0
      %4031 = vmatprep.subr.mxu0 0.0
      %4032 = vmatpush1.msra.mxu0 0.0
      %4033 = vmatprep.subr.mxu0 0.0
      %4034 = vmatpush1.msra.mxu0 0.0
      %4035 = vmatprep.subr.mxu0 0.0
      %4036 = vmatpush1.msra.mxu0 0.0
      %4037 = vmatprep.subr.mxu0 0.0
      %4038 = vmatpush1.msra.mxu0 0.0
      %4039 = vmatprep.subr.mxu0 0.0
      %4040 = vmatpush1.msra.mxu0 0.0
      %4041 = vmatprep.subr.mxu0 0.0
      %4042 = vmatpush1.msra.mxu0 0.0
      %4043 = vmatprep.subr.mxu0 0.0
      %4044 = vmatpush1.msra.mxu0 0.0
      %4045 = vmatprep.subr.mxu0 0.0
      %4046 = vmatpush1.msra.mxu0 0.0
      %4047 = vmatprep.subr.mxu0 0.0
      %4048 = vmatpush1.msra.mxu0 0.0
      %4049 = vmatprep.subr.mxu0 0.0
      %4050 = vmatpush1.msra.mxu0 0.0
      %4051 = vmatprep.subr.mxu0 0.0
      %4052 = vmatpush1.msra.mxu0 0.0
      %4053 = vmatprep.subr.mxu0 0.0
      %4054 = vmatpush1.msra.mxu0 0.0
      %4055 = vmatprep.subr.mxu0 0.0
      %4056 = vmatpush1.msra.mxu0 0.0
      %4057 = vmatprep.subr.mxu0 0.0
      %4058 = vmatpush1.msra.mxu0 0.0
      %4059 = vmatprep.subr.mxu0 0.0
      %4060 = vmatpush1.msra.mxu0 0.0
      %4061 = vmatprep.subr.mxu0 0.0
      %4062 = vmatpush1.msra.mxu0 0.0
      %4063 = vmatprep.subr.mxu0 0.0
      %4064 = vmatpush1.msra.mxu0 0.0
      %4065 = vmatprep.subr.mxu0 0.0
      %4066 = vmatpush1.msra.mxu0 0.0
      %4067 = vmatprep.subr.mxu0 0.0
      %4068 = vmatpush1.msra.mxu0 0.0
      %4069 = vmatprep.subr.mxu0 0.0
      %4070 = vmatpush1.msra.mxu0 0.0
      %4071 = vmatprep.subr.mxu0 0.0
      %4072 = vmatpush1.msra.mxu0 0.0
      %4073 = vmatprep.subr.mxu0 0.0
      %4074 = vmatpush1.msra.mxu0 0.0
      %4075 = vmatprep.subr.mxu0 0.0
      %4076 = vmatpush1.msra.mxu0 0.0
      %4077 = vmatprep.subr.mxu0 0.0
      %4078 = vmatpush1.msra.mxu0 0.0
      %4079 = vmatprep.subr.mxu0 0.0
      %4080 = vmatpush1.msra.mxu0 0.0
      %4081 = vmatprep.subr.mxu0 0.0
      %4082 = vmatpush1.msra.mxu0 0.0
      %4083 = vmatprep.subr.mxu0 0.0
      %4084 = vmatpush1.msra.mxu0 0.0
      %4085 = vmatprep.mubr.f32.mxu0 0.0
      %v4086 = vand.u32 %v3925, 4294901760
      %4087 = vmatmul.mubr.f32.gmra.mrb[0].mxu0 %v4086
      %v4088 = vpop.f32.mrb[0].mxu0
      %v4089 = vadd.f32 %v4007, %v4088
      %v4090 = vpop.f32.mrb[0].mxu0
      %v4091 = vadd.f32 %v4009, %v4090
      %4092 = vdwg.mxu0
      %v4093 = vand.u32 %v3929, 4294901760
      %v4094 = vsub.f32 %v3929, %v4093
      %4095 = vmatprep.subr.mxu0 %v4094
      %v4096 = vand.u32 %v3927, 4294901760
      %v4097 = vsub.f32 %v3927, %v4096
      %4098 = vmatpush1.msra.mxu0 %v4097
      %4099 = vmatprep.subr.mxu0 0.0
      %4100 = vmatpush1.msra.mxu0 0.0
      %4101 = vmatprep.subr.mxu0 0.0
      %4102 = vmatpush1.msra.mxu0 0.0
      %4103 = vmatprep.subr.mxu0 0.0
      %4104 = vmatpush1.msra.mxu0 0.0
      %4105 = vmatprep.subr.mxu0 0.0
      %4106 = vmatpush1.msra.mxu0 0.0
      %4107 = vmatprep.subr.mxu0 0.0
      %4108 = vmatpush1.msra.mxu0 0.0
      %4109 = vmatprep.subr.mxu0 0.0
      %4110 = vmatpush1.msra.mxu0 0.0
      %4111 = vmatprep.subr.mxu0 0.0
      %4112 = vmatpush1.msra.mxu0 0.0
      %4113 = vmatprep.subr.mxu0 0.0
      %4114 = vmatpush1.msra.mxu0 0.0
      %4115 = vmatprep.subr.mxu0 0.0
      %4116 = vmatpush1.msra.mxu0 0.0
      %4117 = vmatprep.subr.mxu0 0.0
      %4118 = vmatpush1.msra.mxu0 0.0
      %4119 = vmatprep.subr.mxu0 0.0
      %4120 = vmatpush1.msra.mxu0 0.0
      %4121 = vmatprep.subr.mxu0 0.0
      %4122 = vmatpush1.msra.mxu0 0.0
      %4123 = vmatprep.subr.mxu0 0.0
      %4124 = vmatpush1.msra.mxu0 0.0
      %4125 = vmatprep.subr.mxu0 0.0
      %4126 = vmatpush1.msra.mxu0 0.0
      %4127 = vmatprep.subr.mxu0 0.0
      %4128 = vmatpush1.msra.mxu0 0.0
      %4129 = vmatprep.subr.mxu0 0.0
      %4130 = vmatpush1.msra.mxu0 0.0
      %4131 = vmatprep.subr.mxu0 0.0
      %4132 = vmatpush1.msra.mxu0 0.0
      %4133 = vmatprep.subr.mxu0 0.0
      %4134 = vmatpush1.msra.mxu0 0.0
      %4135 = vmatprep.subr.mxu0 0.0
      %4136 = vmatpush1.msra.mxu0 0.0
      %4137 = vmatprep.subr.mxu0 0.0
      %4138 = vmatpush1.msra.mxu0 0.0
      %4139 = vmatprep.subr.mxu0 0.0
      %4140 = vmatpush1.msra.mxu0 0.0
      %4141 = vmatprep.subr.mxu0 0.0
      %4142 = vmatpush1.msra.mxu0 0.0
      %4143 = vmatprep.subr.mxu0 0.0
      %4144 = vmatpush1.msra.mxu0 0.0
      %4145 = vmatprep.subr.mxu0 0.0
      %4146 = vmatpush1.msra.mxu0 0.0
      %4147 = vmatprep.subr.mxu0 0.0
      %4148 = vmatpush1.msra.mxu0 0.0
      %4149 = vmatprep.subr.mxu0 0.0
      %4150 = vmatpush1.msra.mxu0 0.0
      %4151 = vmatprep.subr.mxu0 0.0
      %4152 = vmatpush1.msra.mxu0 0.0
      %4153 = vmatprep.subr.mxu0 0.0
      %4154 = vmatpush1.msra.mxu0 0.0
      %4155 = vmatprep.subr.mxu0 0.0
      %4156 = vmatpush1.msra.mxu0 0.0
      %4157 = vmatprep.subr.mxu0 0.0
      %4158 = vmatpush1.msra.mxu0 0.0
      %4159 = vmatprep.subr.mxu0 0.0
      %4160 = vmatpush1.msra.mxu0 0.0
      %4161 = vmatprep.mubr.f32.mxu0 0.0
      %v4162 = vand.u32 %v3925, 4294901760
      %v4163 = vsub.f32 %v3925, %v4162
      %4164 = vmatmul.mubr.f32.gmra.mrb[0].mxu0 %v4163
      %v4165 = vpop.f32.mrb[0].mxu0
      %v4166 = vadd.f32 %v4089, %v4165
      %v4167 = vpop.f32.mrb[0].mxu0
      %v4168 = vadd.f32 %v4091, %v4167
      %4169 = vdwg.mxu0
      %v4170 = vand.u32 %v3929, 4294901760
      %4171 = vmatprep.subr.mxu0 %v4170
      %v4172 = vand.u32 %v3927, 4294901760
      %4173 = vmatpush1.msra.mxu0 %v4172
      %4174 = vmatprep.subr.mxu0 0.0
      %4175 = vmatpush1.msra.mxu0 0.0
      %4176 = vmatprep.subr.mxu0 0.0
      %4177 = vmatpush1.msra.mxu0 0.0
      %4178 = vmatprep.subr.mxu0 0.0
      %4179 = vmatpush1.msra.mxu0 0.0
      %4180 = vmatprep.subr.mxu0 0.0
      %4181 = vmatpush1.msra.mxu0 0.0
      %4182 = vmatprep.subr.mxu0 0.0
      %4183 = vmatpush1.msra.mxu0 0.0
      %4184 = vmatprep.subr.mxu0 0.0
      %4185 = vmatpush1.msra.mxu0 0.0
      %4186 = vmatprep.subr.mxu0 0.0
      %4187 = vmatpush1.msra.mxu0 0.0
      %4188 = vmatprep.subr.mxu0 0.0
      %4189 = vmatpush1.msra.mxu0 0.0
      %4190 = vmatprep.subr.mxu0 0.0
      %4191 = vmatpush1.msra.mxu0 0.0
      %4192 = vmatprep.subr.mxu0 0.0
      %4193 = vmatpush1.msra.mxu0 0.0
      %4194 = vmatprep.subr.mxu0 0.0
      %4195 = vmatpush1.msra.mxu0 0.0
      %4196 = vmatprep.subr.mxu0 0.0
      %4197 = vmatpush1.msra.mxu0 0.0
      %4198 = vmatprep.subr.mxu0 0.0
      %4199 = vmatpush1.msra.mxu0 0.0
      %4200 = vmatprep.subr.mxu0 0.0
      %4201 = vmatpush1.msra.mxu0 0.0
      %4202 = vmatprep.subr.mxu0 0.0
      %4203 = vmatpush1.msra.mxu0 0.0
      %4204 = vmatprep.subr.mxu0 0.0
      %4205 = vmatpush1.msra.mxu0 0.0
      %4206 = vmatprep.subr.mxu0 0.0
      %4207 = vmatpush1.msra.mxu0 0.0
      %4208 = vmatprep.subr.mxu0 0.0
      %4209 = vmatpush1.msra.mxu0 0.0
      %4210 = vmatprep.subr.mxu0 0.0
      %4211 = vmatpush1.msra.mxu0 0.0
      %4212 = vmatprep.subr.mxu0 0.0
      %4213 = vmatpush1.msra.mxu0 0.0
      %4214 = vmatprep.subr.mxu0 0.0
      %4215 = vmatpush1.msra.mxu0 0.0
      %4216 = vmatprep.subr.mxu0 0.0
      %4217 = vmatpush1.msra.mxu0 0.0
      %4218 = vmatprep.subr.mxu0 0.0
      %4219 = vmatpush1.msra.mxu0 0.0
      %4220 = vmatprep.subr.mxu0 0.0
      %4221 = vmatpush1.msra.mxu0 0.0
      %4222 = vmatprep.subr.mxu0 0.0
      %4223 = vmatpush1.msra.mxu0 0.0
      %4224 = vmatprep.subr.mxu0 0.0
      %4225 = vmatpush1.msra.mxu0 0.0
      %4226 = vmatprep.subr.mxu0 0.0
      %4227 = vmatpush1.msra.mxu0 0.0
      %4228 = vmatprep.subr.mxu0 0.0
      %4229 = vmatpush1.msra.mxu0 0.0
      %4230 = vmatprep.subr.mxu0 0.0
      %4231 = vmatpush1.msra.mxu0 0.0
      %4232 = vmatprep.subr.mxu0 0.0
      %4233 = vmatpush1.msra.mxu0 0.0
      %4234 = vmatprep.subr.mxu0 0.0
      %4235 = vmatpush1.msra.mxu0 0.0
      %4236 = vmatprep.mubr.f32.mxu0 0.0
      %v4237 = vand.u32 %v3925, 4294901760
      %v4238 = vsub.f32 %v3925, %v4237
      %v4239 = vand.u32 %v4238, 4294901760
      %4240 = vmatmul.mubr.f32.gmra.mrb[0].mxu0 %v4239
      %v4241 = vpop.f32.mrb[0].mxu0
      %v4242 = vadd.f32 %v4166, %v4241
      %v4243 = vpop.f32.mrb[0].mxu0
      %v4244 = vadd.f32 %v4168, %v4243
      %4245 = vdwg.mxu0
      %v4246 = vand.u32 %v3929, 4294901760
      %v4247 = vsub.f32 %v3929, %v4246
      %v4248 = vand.u32 %v4247, 4294901760
      %4249 = vmatprep.subr.mxu0 %v4248
      %v4250 = vand.u32 %v3927, 4294901760
      %v4251 = vsub.f32 %v3927, %v4250
      %v4252 = vand.u32 %v4251, 4294901760
      %4253 = vmatpush1.msra.mxu0 %v4252
      %4254 = vmatprep.subr.mxu0 0.0
      %4255 = vmatpush1.msra.mxu0 0.0
      %4256 = vmatprep.subr.mxu0 0.0
      %4257 = vmatpush1.msra.mxu0 0.0
      %4258 = vmatprep.subr.mxu0 0.0
      %4259 = vmatpush1.msra.mxu0 0.0
      %4260 = vmatprep.subr.mxu0 0.0
      %4261 = vmatpush1.msra.mxu0 0.0
      %4262 = vmatprep.subr.mxu0 0.0
      %4263 = vmatpush1.msra.mxu0 0.0
      %4264 = vmatprep.subr.mxu0 0.0
      %4265 = vmatpush1.msra.mxu0 0.0
      %4266 = vmatprep.subr.mxu0 0.0
      %4267 = vmatpush1.msra.mxu0 0.0
      %4268 = vmatprep.subr.mxu0 0.0
      %4269 = vmatpush1.msra.mxu0 0.0
      %4270 = vmatprep.subr.mxu0 0.0
      %4271 = vmatpush1.msra.mxu0 0.0
      %4272 = vmatprep.subr.mxu0 0.0
      %4273 = vmatpush1.msra.mxu0 0.0
      %4274 = vmatprep.subr.mxu0 0.0
      %4275 = vmatpush1.msra.mxu0 0.0
      %4276 = vmatprep.subr.mxu0 0.0
      %4277 = vmatpush1.msra.mxu0 0.0
      %4278 = vmatprep.subr.mxu0 0.0
      %4279 = vmatpush1.msra.mxu0 0.0
      %4280 = vmatprep.subr.mxu0 0.0
      %4281 = vmatpush1.msra.mxu0 0.0
      %4282 = vmatprep.subr.mxu0 0.0
      %4283 = vmatpush1.msra.mxu0 0.0
      %4284 = vmatprep.subr.mxu0 0.0
      %4285 = vmatpush1.msra.mxu0 0.0
      %4286 = vmatprep.subr.mxu0 0.0
      %4287 = vmatpush1.msra.mxu0 0.0
      %4288 = vmatprep.subr.mxu0 0.0
      %4289 = vmatpush1.msra.mxu0 0.0
      %4290 = vmatprep.subr.mxu0 0.0
      %4291 = vmatpush1.msra.mxu0 0.0
      %4292 = vmatprep.subr.mxu0 0.0
      %4293 = vmatpush1.msra.mxu0 0.0
      %4294 = vmatprep.subr.mxu0 0.0
      %4295 = vmatpush1.msra.mxu0 0.0
      %4296 = vmatprep.subr.mxu0 0.0
      %4297 = vmatpush1.msra.mxu0 0.0
      %4298 = vmatprep.subr.mxu0 0.0
      %4299 = vmatpush1.msra.mxu0 0.0
      %4300 = vmatprep.subr.mxu0 0.0
      %4301 = vmatpush1.msra.mxu0 0.0
      %4302 = vmatprep.subr.mxu0 0.0
      %4303 = vmatpush1.msra.mxu0 0.0
      %4304 = vmatprep.subr.mxu0 0.0
      %4305 = vmatpush1.msra.mxu0 0.0
      %4306 = vmatprep.subr.mxu0 0.0
      %4307 = vmatpush1.msra.mxu0 0.0
      %4308 = vmatprep.subr.mxu0 0.0
      %4309 = vmatpush1.msra.mxu0 0.0
      %4310 = vmatprep.subr.mxu0 0.0
      %4311 = vmatpush1.msra.mxu0 0.0
      %4312 = vmatprep.subr.mxu0 0.0
      %4313 = vmatpush1.msra.mxu0 0.0
      %4314 = vmatprep.subr.mxu0 0.0
      %4315 = vmatpush1.msra.mxu0 0.0
      %4316 = vmatprep.mubr.f32.mxu0 0.0
      %v4317 = vand.u32 %v3925, 4294901760
      %4318 = vmatmul.mubr.f32.gmra.mrb[0].mxu0 %v4317
      %v4319 = vpop.f32.mrb[0].mxu0
      %v4320 = vadd.f32 %v4242, %v4319
      %v4321 = vpop.f32.mrb[0].mxu0
      %v4322 = vadd.f32 %v4244, %v4321
      %4323 = vdwg.mxu0
      %v4324 = vand.u32 %v3929, 4294901760
      %4325 = vmatprep.subr.mxu0 %v4324
      %v4326 = vand.u32 %v3927, 4294901760
      %4327 = vmatpush1.msra.mxu0 %v4326
      %4328 = vmatprep.subr.mxu0 0.0
      %4329 = vmatpush1.msra.mxu0 0.0
      %4330 = vmatprep.subr.mxu0 0.0
      %4331 = vmatpush1.msra.mxu0 0.0
      %4332 = vmatprep.subr.mxu0 0.0
      %4333 = vmatpush1.msra.mxu0 0.0
      %4334 = vmatprep.subr.mxu0 0.0
      %4335 = vmatpush1.msra.mxu0 0.0
      %4336 = vmatprep.subr.mxu0 0.0
      %4337 = vmatpush1.msra.mxu0 0.0
      %4338 = vmatprep.subr.mxu0 0.0
      %4339 = vmatpush1.msra.mxu0 0.0
      %4340 = vmatprep.subr.mxu0 0.0
      %4341 = vmatpush1.msra.mxu0 0.0
      %4342 = vmatprep.subr.mxu0 0.0
      %4343 = vmatpush1.msra.mxu0 0.0
      %4344 = vmatprep.subr.mxu0 0.0
      %4345 = vmatpush1.msra.mxu0 0.0
      %4346 = vmatprep.subr.mxu0 0.0
      %4347 = vmatpush1.msra.mxu0 0.0
      %4348 = vmatprep.subr.mxu0 0.0
      %4349 = vmatpush1.msra.mxu0 0.0
      %4350 = vmatprep.subr.mxu0 0.0
      %4351 = vmatpush1.msra.mxu0 0.0
      %4352 = vmatprep.subr.mxu0 0.0
      %4353 = vmatpush1.msra.mxu0 0.0
      %4354 = vmatprep.subr.mxu0 0.0
      %4355 = vmatpush1.msra.mxu0 0.0
      %4356 = vmatprep.subr.mxu0 0.0
      %4357 = vmatpush1.msra.mxu0 0.0
      %4358 = vmatprep.subr.mxu0 0.0
      %4359 = vmatpush1.msra.mxu0 0.0
      %4360 = vmatprep.subr.mxu0 0.0
      %4361 = vmatpush1.msra.mxu0 0.0
      %4362 = vmatprep.subr.mxu0 0.0
      %4363 = vmatpush1.msra.mxu0 0.0
      %4364 = vmatprep.subr.mxu0 0.0
      %4365 = vmatpush1.msra.mxu0 0.0
      %4366 = vmatprep.subr.mxu0 0.0
      %4367 = vmatpush1.msra.mxu0 0.0
      %4368 = vmatprep.subr.mxu0 0.0
      %4369 = vmatpush1.msra.mxu0 0.0
      %4370 = vmatprep.subr.mxu0 0.0
      %4371 = vmatpush1.msra.mxu0 0.0
      %4372 = vmatprep.subr.mxu0 0.0
      %4373 = vmatpush1.msra.mxu0 0.0
      %4374 = vmatprep.subr.mxu0 0.0
      %4375 = vmatpush1.msra.mxu0 0.0
      %4376 = vmatprep.subr.mxu0 0.0
      %4377 = vmatpush1.msra.mxu0 0.0
      %4378 = vmatprep.subr.mxu0 0.0
      %4379 = vmatpush1.msra.mxu0 0.0
      %4380 = vmatprep.subr.mxu0 0.0
      %4381 = vmatpush1.msra.mxu0 0.0
      %4382 = vmatprep.subr.mxu0 0.0
      %4383 = vmatpush1.msra.mxu0 0.0
      %4384 = vmatprep.subr.mxu0 0.0
      %4385 = vmatpush1.msra.mxu0 0.0
      %4386 = vmatprep.subr.mxu0 0.0
      %4387 = vmatpush1.msra.mxu0 0.0
      %4388 = vmatprep.subr.mxu0 0.0
      %4389 = vmatpush1.msra.mxu0 0.0
      %4390 = vmatprep.mubr.f32.mxu0 0.0
      %v4391 = vand.u32 %v3925, 4294901760
      %4392 = vmatmul.mubr.f32.gmra.mrb[0].mxu0 %v4391
      %v4393 = vpop.f32.mrb[0].mxu0
      %v4394 = vadd.f32 %v4320, %v4393
      %v4395 = vpop.f32.mrb[0].mxu0
      %v4396 = vadd.f32 %v4322, %v4395
      %4397 = vdwg.mxu0
      %4398 = vmatprep.subr.mxu0 0.0
      %v4399 = vand.u32 %v3931, 4294901760
      %4400 = vmatpush1.msra.mxu0 %v4399
      %4401 = vmatprep.subr.mxu0 0.0
      %4402 = vmatpush1.msra.mxu0 0.0
      %4403 = vmatprep.subr.mxu0 0.0
      %4404 = vmatpush1.msra.mxu0 0.0
      %4405 = vmatprep.subr.mxu0 0.0
      %4406 = vmatpush1.msra.mxu0 0.0
      %4407 = vmatprep.subr.mxu0 0.0
      %4408 = vmatpush1.msra.mxu0 0.0
      %4409 = vmatprep.subr.mxu0 0.0
      %4410 = vmatpush1.msra.mxu0 0.0
      %4411 = vmatprep.subr.mxu0 0.0
      %4412 = vmatpush1.msra.mxu0 0.0
      %4413 = vmatprep.subr.mxu0 0.0
      %4414 = vmatpush1.msra.mxu0 0.0
      %4415 = vmatprep.subr.mxu0 0.0
      %4416 = vmatpush1.msra.mxu0 0.0
      %4417 = vmatprep.subr.mxu0 0.0
      %4418 = vmatpush1.msra.mxu0 0.0
      %4419 = vmatprep.subr.mxu0 0.0
      %4420 = vmatpush1.msra.mxu0 0.0
      %4421 = vmatprep.subr.mxu0 0.0
      %4422 = vmatpush1.msra.mxu0 0.0
      %4423 = vmatprep.subr.mxu0 0.0
      %4424 = vmatpush1.msra.mxu0 0.0
      %4425 = vmatprep.subr.mxu0 0.0
      %4426 = vmatpush1.msra.mxu0 0.0
      %4427 = vmatprep.subr.mxu0 0.0
      %4428 = vmatpush1.msra.mxu0 0.0
      %4429 = vmatprep.subr.mxu0 0.0
      %4430 = vmatpush1.msra.mxu0 0.0
      %4431 = vmatprep.subr.mxu0 0.0
      %4432 = vmatpush1.msra.mxu0 0.0
      %4433 = vmatprep.subr.mxu0 0.0
      %4434 = vmatpush1.msra.mxu0 0.0
      %4435 = vmatprep.subr.mxu0 0.0
      %4436 = vmatpush1.msra.mxu0 0.0
      %4437 = vmatprep.subr.mxu0 0.0
      %4438 = vmatpush1.msra.mxu0 0.0
      %4439 = vmatprep.subr.mxu0 0.0
      %4440 = vmatpush1.msra.mxu0 0.0
      %4441 = vmatprep.subr.mxu0 0.0
      %4442 = vmatpush1.msra.mxu0 0.0
      %4443 = vmatprep.subr.mxu0 0.0
      %4444 = vmatpush1.msra.mxu0 0.0
      %4445 = vmatprep.subr.mxu0 0.0
      %4446 = vmatpush1.msra.mxu0 0.0
      %4447 = vmatprep.subr.mxu0 0.0
      %4448 = vmatpush1.msra.mxu0 0.0
      %4449 = vmatprep.subr.mxu0 0.0
      %4450 = vmatpush1.msra.mxu0 0.0
      %4451 = vmatprep.subr.mxu0 0.0
      %4452 = vmatpush1.msra.mxu0 0.0
      %4453 = vmatprep.subr.mxu0 0.0
      %4454 = vmatpush1.msra.mxu0 0.0
      %4455 = vmatprep.subr.mxu0 0.0
      %4456 = vmatpush1.msra.mxu0 0.0
      %4457 = vmatprep.subr.mxu0 0.0
      %4458 = vmatpush1.msra.mxu0 0.0
      %4459 = vmatprep.subr.mxu0 0.0
      %4460 = vmatpush1.msra.mxu0 0.0
      %4461 = vmatprep.subr.mxu0 0.0
      %4462 = vmatpush1.msra.mxu0 0.0
      %4463 = vmatprep.mubr.f32.mxu0 0.0
      %v4464 = vand.u32 %v3925, 4294901760
      %v4465 = vsub.f32 %v3925, %v4464
      %v4466 = vand.u32 %v4465, 4294901760
      %v4467 = vsub.f32 %v4465, %v4466
      %v4468 = vand.u32 %v4467, 4294901760
      %4469 = vmatmul.mubr.f32.gmra.mrb[0].mxu0 %v4468
      %v4470 = vpop.f32.mrb[0].mxu0
      %v4471 = vadd.f32 0.0, %v4470
      %v4472 = vpop.f32.mrb[0].mxu0
      %4473 = vdwg.mxu0
      %4474 = vmatprep.subr.mxu0 0.0
      %v4475 = vand.u32 %v3931, 4294901760
      %v4476 = vsub.f32 %v3931, %v4475
      %v4477 = vand.u32 %v4476, 4294901760
      %v4478 = vsub.f32 %v4476, %v4477
      %v4479 = vand.u32 %v4478, 4294901760
      %4480 = vmatpush1.msra.mxu0 %v4479
      %4481 = vmatprep.subr.mxu0 0.0
      %4482 = vmatpush1.msra.mxu0 0.0
      %4483 = vmatprep.subr.mxu0 0.0
      %4484 = vmatpush1.msra.mxu0 0.0
      %4485 = vmatprep.subr.mxu0 0.0
      %4486 = vmatpush1.msra.mxu0 0.0
      %4487 = vmatprep.subr.mxu0 0.0
      %4488 = vmatpush1.msra.mxu0 0.0
      %4489 = vmatprep.subr.mxu0 0.0
      %4490 = vmatpush1.msra.mxu0 0.0
      %4491 = vmatprep.subr.mxu0 0.0
      %4492 = vmatpush1.msra.mxu0 0.0
      %4493 = vmatprep.subr.mxu0 0.0
      %4494 = vmatpush1.msra.mxu0 0.0
      %4495 = vmatprep.subr.mxu0 0.0
      %4496 = vmatpush1.msra.mxu0 0.0
      %4497 = vmatprep.subr.mxu0 0.0
      %4498 = vmatpush1.msra.mxu0 0.0
      %4499 = vmatprep.subr.mxu0 0.0
      %4500 = vmatpush1.msra.mxu0 0.0
      %4501 = vmatprep.subr.mxu0 0.0
      %4502 = vmatpush1.msra.mxu0 0.0
      %4503 = vmatprep.subr.mxu0 0.0
      %4504 = vmatpush1.msra.mxu0 0.0
      %4505 = vmatprep.subr.mxu0 0.0
      %4506 = vmatpush1.msra.mxu0 0.0
      %4507 = vmatprep.subr.mxu0 0.0
      %4508 = vmatpush1.msra.mxu0 0.0
      %4509 = vmatprep.subr.mxu0 0.0
      %4510 = vmatpush1.msra.mxu0 0.0
      %4511 = vmatprep.subr.mxu0 0.0
      %4512 = vmatpush1.msra.mxu0 0.0
      %4513 = vmatprep.subr.mxu0 0.0
      %4514 = vmatpush1.msra.mxu0 0.0
      %4515 = vmatprep.subr.mxu0 0.0
      %4516 = vmatpush1.msra.mxu0 0.0
      %4517 = vmatprep.subr.mxu0 0.0
      %4518 = vmatpush1.msra.mxu0 0.0
      %4519 = vmatprep.subr.mxu0 0.0
      %4520 = vmatpush1.msra.mxu0 0.0
      %4521 = vmatprep.subr.mxu0 0.0
      %4522 = vmatpush1.msra.mxu0 0.0
      %4523 = vmatprep.subr.mxu0 0.0
      %4524 = vmatpush1.msra.mxu0 0.0
      %4525 = vmatprep.subr.mxu0 0.0
      %4526 = vmatpush1.msra.mxu0 0.0
      %4527 = vmatprep.subr.mxu0 0.0
      %4528 = vmatpush1.msra.mxu0 0.0
      %4529 = vmatprep.subr.mxu0 0.0
      %4530 = vmatpush1.msra.mxu0 0.0
      %4531 = vmatprep.subr.mxu0 0.0
      %4532 = vmatpush1.msra.mxu0 0.0
      %4533 = vmatprep.subr.mxu0 0.0
      %4534 = vmatpush1.msra.mxu0 0.0
      %4535 = vmatprep.subr.mxu0 0.0
      %4536 = vmatpush1.msra.mxu0 0.0
      %4537 = vmatprep.subr.mxu0 0.0
      %4538 = vmatpush1.msra.mxu0 0.0
      %4539 = vmatprep.subr.mxu0 0.0
      %4540 = vmatpush1.msra.mxu0 0.0
      %4541 = vmatprep.subr.mxu0 0.0
      %4542 = vmatpush1.msra.mxu0 0.0
      %4543 = vmatprep.mubr.f32.mxu0 0.0
      %v4544 = vand.u32 %v3925, 4294901760
      %4545 = vmatmul.mubr.f32.gmra.mrb[0].mxu0 %v4544
      %v4546 = vpop.f32.mrb[0].mxu0
      %v4547 = vadd.f32 %v4471, %v4546
      %v4548 = vpop.f32.mrb[0].mxu0
      %4549 = vdwg.mxu0
      %4550 = vmatprep.subr.mxu0 0.0
      %v4551 = vand.u32 %v3931, 4294901760
      %v4552 = vsub.f32 %v3931, %v4551
      %4553 = vmatpush1.msra.mxu0 %v4552
      %4554 = vmatprep.subr.mxu0 0.0
      %4555 = vmatpush1.msra.mxu0 0.0
      %4556 = vmatprep.subr.mxu0 0.0
      %4557 = vmatpush1.msra.mxu0 0.0
      %4558 = vmatprep.subr.mxu0 0.0
      %4559 = vmatpush1.msra.mxu0 0.0
      %4560 = vmatprep.subr.mxu0 0.0
      %4561 = vmatpush1.msra.mxu0 0.0
      %4562 = vmatprep.subr.mxu0 0.0
      %4563 = vmatpush1.msra.mxu0 0.0
      %4564 = vmatprep.subr.mxu0 0.0
      %4565 = vmatpush1.msra.mxu0 0.0
      %4566 = vmatprep.subr.mxu0 0.0
      %4567 = vmatpush1.msra.mxu0 0.0
      %4568 = vmatprep.subr.mxu0 0.0
      %4569 = vmatpush1.msra.mxu0 0.0
      %4570 = vmatprep.subr.mxu0 0.0
      %4571 = vmatpush1.msra.mxu0 0.0
      %4572 = vmatprep.subr.mxu0 0.0
      %4573 = vmatpush1.msra.mxu0 0.0
      %4574 = vmatprep.subr.mxu0 0.0
      %4575 = vmatpush1.msra.mxu0 0.0
      %4576 = vmatprep.subr.mxu0 0.0
      %4577 = vmatpush1.msra.mxu0 0.0
      %4578 = vmatprep.subr.mxu0 0.0
      %4579 = vmatpush1.msra.mxu0 0.0
      %4580 = vmatprep.subr.mxu0 0.0
      %4581 = vmatpush1.msra.mxu0 0.0
      %4582 = vmatprep.subr.mxu0 0.0
      %4583 = vmatpush1.msra.mxu0 0.0
      %4584 = vmatprep.subr.mxu0 0.0
      %4585 = vmatpush1.msra.mxu0 0.0
      %4586 = vmatprep.subr.mxu0 0.0
      %4587 = vmatpush1.msra.mxu0 0.0
      %4588 = vmatprep.subr.mxu0 0.0
      %4589 = vmatpush1.msra.mxu0 0.0
      %4590 = vmatprep.subr.mxu0 0.0
      %4591 = vmatpush1.msra.mxu0 0.0
      %4592 = vmatprep.subr.mxu0 0.0
      %4593 = vmatpush1.msra.mxu0 0.0
      %4594 = vmatprep.subr.mxu0 0.0
      %4595 = vmatpush1.msra.mxu0 0.0
      %4596 = vmatprep.subr.mxu0 0.0
      %4597 = vmatpush1.msra.mxu0 0.0
      %4598 = vmatprep.subr.mxu0 0.0
      %4599 = vmatpush1.msra.mxu0 0.0
      %4600 = vmatprep.subr.mxu0 0.0
      %4601 = vmatpush1.msra.mxu0 0.0
      %4602 = vmatprep.subr.mxu0 0.0
      %4603 = vmatpush1.msra.mxu0 0.0
      %4604 = vmatprep.subr.mxu0 0.0
      %4605 = vmatpush1.msra.mxu0 0.0
      %4606 = vmatprep.subr.mxu0 0.0
      %4607 = vmatpush1.msra.mxu0 0.0
      %4608 = vmatprep.subr.mxu0 0.0
      %4609 = vmatpush1.msra.mxu0 0.0
      %4610 = vmatprep.subr.mxu0 0.0
      %4611 = vmatpush1.msra.mxu0 0.0
      %4612 = vmatprep.subr.mxu0 0.0
      %4613 = vmatpush1.msra.mxu0 0.0
      %4614 = vmatprep.subr.mxu0 0.0
      %4615 = vmatpush1.msra.mxu0 0.0
      %4616 = vmatprep.mubr.f32.mxu0 0.0
      %v4617 = vand.u32 %v3925, 4294901760
      %v4618 = vsub.f32 %v3925, %v4617
      %4619 = vmatmul.mubr.f32.gmra.mrb[0].mxu0 %v4618
      %v4620 = vpop.f32.mrb[0].mxu0
      %v4621 = vadd.f32 %v4547, %v4620
      %v4622 = vpop.f32.mrb[0].mxu0
      %4623 = vdwg.mxu0
      %4624 = vmatprep.subr.mxu0 0.0
      %v4625 = vand.u32 %v3931, 4294901760
      %4626 = vmatpush1.msra.mxu0 %v4625
      %4627 = vmatprep.subr.mxu0 0.0
      %4628 = vmatpush1.msra.mxu0 0.0
      %4629 = vmatprep.subr.mxu0 0.0
      %4630 = vmatpush1.msra.mxu0 0.0
      %4631 = vmatprep.subr.mxu0 0.0
      %4632 = vmatpush1.msra.mxu0 0.0
      %4633 = vmatprep.subr.mxu0 0.0
      %4634 = vmatpush1.msra.mxu0 0.0
      %4635 = vmatprep.subr.mxu0 0.0
      %4636 = vmatpush1.msra.mxu0 0.0
      %4637 = vmatprep.subr.mxu0 0.0
      %4638 = vmatpush1.msra.mxu0 0.0
      %4639 = vmatprep.subr.mxu0 0.0
      %4640 = vmatpush1.msra.mxu0 0.0
      %4641 = vmatprep.subr.mxu0 0.0
      %4642 = vmatpush1.msra.mxu0 0.0
      %4643 = vmatprep.subr.mxu0 0.0
      %4644 = vmatpush1.msra.mxu0 0.0
      %4645 = vmatprep.subr.mxu0 0.0
      %4646 = vmatpush1.msra.mxu0 0.0
      %4647 = vmatprep.subr.mxu0 0.0
      %4648 = vmatpush1.msra.mxu0 0.0
      %4649 = vmatprep.subr.mxu0 0.0
      %4650 = vmatpush1.msra.mxu0 0.0
      %4651 = vmatprep.subr.mxu0 0.0
      %4652 = vmatpush1.msra.mxu0 0.0
      %4653 = vmatprep.subr.mxu0 0.0
      %4654 = vmatpush1.msra.mxu0 0.0
      %4655 = vmatprep.subr.mxu0 0.0
      %4656 = vmatpush1.msra.mxu0 0.0
      %4657 = vmatprep.subr.mxu0 0.0
      %4658 = vmatpush1.msra.mxu0 0.0
      %4659 = vmatprep.subr.mxu0 0.0
      %4660 = vmatpush1.msra.mxu0 0.0
      %4661 = vmatprep.subr.mxu0 0.0
      %4662 = vmatpush1.msra.mxu0 0.0
      %4663 = vmatprep.subr.mxu0 0.0
      %4664 = vmatpush1.msra.mxu0 0.0
      %4665 = vmatprep.subr.mxu0 0.0
      %4666 = vmatpush1.msra.mxu0 0.0
      %4667 = vmatprep.subr.mxu0 0.0
      %4668 = vmatpush1.msra.mxu0 0.0
      %4669 = vmatprep.subr.mxu0 0.0
      %4670 = vmatpush1.msra.mxu0 0.0
      %4671 = vmatprep.subr.mxu0 0.0
      %4672 = vmatpush1.msra.mxu0 0.0
      %4673 = vmatprep.subr.mxu0 0.0
      %4674 = vmatpush1.msra.mxu0 0.0
      %4675 = vmatprep.subr.mxu0 0.0
      %4676 = vmatpush1.msra.mxu0 0.0
      %4677 = vmatprep.subr.mxu0 0.0
      %4678 = vmatpush1.msra.mxu0 0.0
      %4679 = vmatprep.subr.mxu0 0.0
      %4680 = vmatpush1.msra.mxu0 0.0
      %4681 = vmatprep.subr.mxu0 0.0
      %4682 = vmatpush1.msra.mxu0 0.0
      %4683 = vmatprep.subr.mxu0 0.0
      %4684 = vmatpush1.msra.mxu0 0.0
      %4685 = vmatprep.subr.mxu0 0.0
      %4686 = vmatpush1.msra.mxu0 0.0
      %4687 = vmatprep.subr.mxu0 0.0
      %4688 = vmatpush1.msra.mxu0 0.0
      %4689 = vmatprep.mubr.f32.mxu0 0.0
      %v4690 = vand.u32 %v3925, 4294901760
      %v4691 = vsub.f32 %v3925, %v4690
      %v4692 = vand.u32 %v4691, 4294901760
      %4693 = vmatmul.mubr.f32.gmra.mrb[0].mxu0 %v4692
      %v4694 = vpop.f32.mrb[0].mxu0
      %v4695 = vadd.f32 %v4621, %v4694
      %v4696 = vpop.f32.mrb[0].mxu0
      %4697 = vdwg.mxu0
      %4698 = vmatprep.subr.mxu0 0.0
      %v4699 = vand.u32 %v3931, 4294901760
      %v4700 = vsub.f32 %v3931, %v4699
      %v4701 = vand.u32 %v4700, 4294901760
      %4702 = vmatpush1.msra.mxu0 %v4701
      %4703 = vmatprep.subr.mxu0 0.0
      %4704 = vmatpush1.msra.mxu0 0.0
      %4705 = vmatprep.subr.mxu0 0.0
      %4706 = vmatpush1.msra.mxu0 0.0
      %4707 = vmatprep.subr.mxu0 0.0
      %4708 = vmatpush1.msra.mxu0 0.0
      %4709 = vmatprep.subr.mxu0 0.0
      %4710 = vmatpush1.msra.mxu0 0.0
      %4711 = vmatprep.subr.mxu0 0.0
      %4712 = vmatpush1.msra.mxu0 0.0
      %4713 = vmatprep.subr.mxu0 0.0
      %4714 = vmatpush1.msra.mxu0 0.0
      %4715 = vmatprep.subr.mxu0 0.0
      %4716 = vmatpush1.msra.mxu0 0.0
      %4717 = vmatprep.subr.mxu0 0.0
      %4718 = vmatpush1.msra.mxu0 0.0
      %4719 = vmatprep.subr.mxu0 0.0
      %4720 = vmatpush1.msra.mxu0 0.0
      %4721 = vmatprep.subr.mxu0 0.0
      %4722 = vmatpush1.msra.mxu0 0.0
      %4723 = vmatprep.subr.mxu0 0.0
      %4724 = vmatpush1.msra.mxu0 0.0
      %4725 = vmatprep.subr.mxu0 0.0
      %4726 = vmatpush1.msra.mxu0 0.0
      %4727 = vmatprep.subr.mxu0 0.0
      %4728 = vmatpush1.msra.mxu0 0.0
      %4729 = vmatprep.subr.mxu0 0.0
      %4730 = vmatpush1.msra.mxu0 0.0
      %4731 = vmatprep.subr.mxu0 0.0
      %4732 = vmatpush1.msra.mxu0 0.0
      %4733 = vmatprep.subr.mxu0 0.0
      %4734 = vmatpush1.msra.mxu0 0.0
      %4735 = vmatprep.subr.mxu0 0.0
      %4736 = vmatpush1.msra.mxu0 0.0
      %4737 = vmatprep.subr.mxu0 0.0
      %4738 = vmatpush1.msra.mxu0 0.0
      %4739 = vmatprep.subr.mxu0 0.0
      %4740 = vmatpush1.msra.mxu0 0.0
      %4741 = vmatprep.subr.mxu0 0.0
      %4742 = vmatpush1.msra.mxu0 0.0
      %4743 = vmatprep.subr.mxu0 0.0
      %4744 = vmatpush1.msra.mxu0 0.0
      %4745 = vmatprep.subr.mxu0 0.0
      %4746 = vmatpush1.msra.mxu0 0.0
      %4747 = vmatprep.subr.mxu0 0.0
      %4748 = vmatpush1.msra.mxu0 0.0
      %4749 = vmatprep.subr.mxu0 0.0
      %4750 = vmatpush1.msra.mxu0 0.0
      %4751 = vmatprep.subr.mxu0 0.0
      %4752 = vmatpush1.msra.mxu0 0.0
      %4753 = vmatprep.subr.mxu0 0.0
      %4754 = vmatpush1.msra.mxu0 0.0
      %4755 = vmatprep.subr.mxu0 0.0
      %4756 = vmatpush1.msra.mxu0 0.0
      %4757 = vmatprep.subr.mxu0 0.0
      %4758 = vmatpush1.msra.mxu0 0.0
      %4759 = vmatprep.subr.mxu0 0.0
      %4760 = vmatpush1.msra.mxu0 0.0
      %4761 = vmatprep.subr.mxu0 0.0
      %4762 = vmatpush1.msra.mxu0 0.0
      %4763 = vmatprep.subr.mxu0 0.0
      %4764 = vmatpush1.msra.mxu0 0.0
      %4765 = vmatprep.mubr.f32.mxu0 0.0
      %v4766 = vand.u32 %v3925, 4294901760
      %4767 = vmatmul.mubr.f32.gmra.mrb[0].mxu0 %v4766
      %v4768 = vpop.f32.mrb[0].mxu0
      %v4769 = vadd.f32 %v4695, %v4768
      %v4770 = vpop.f32.mrb[0].mxu0
      %4771 = vdwg.mxu0
      %4772 = vmatprep.subr.mxu0 0.0
      %v4773 = vand.u32 %v3931, 4294901760
      %4774 = vmatpush1.msra.mxu0 %v4773
      %4775 = vmatprep.subr.mxu0 0.0
      %4776 = vmatpush1.msra.mxu0 0.0
      %4777 = vmatprep.subr.mxu0 0.0
      %4778 = vmatpush1.msra.mxu0 0.0
      %4779 = vmatprep.subr.mxu0 0.0
      %4780 = vmatpush1.msra.mxu0 0.0
      %4781 = vmatprep.subr.mxu0 0.0
      %4782 = vmatpush1.msra.mxu0 0.0
      %4783 = vmatprep.subr.mxu0 0.0
      %4784 = vmatpush1.msra.mxu0 0.0
      %4785 = vmatprep.subr.mxu0 0.0
      %4786 = vmatpush1.msra.mxu0 0.0
      %4787 = vmatprep.subr.mxu0 0.0
      %4788 = vmatpush1.msra.mxu0 0.0
      %4789 = vmatprep.subr.mxu0 0.0
      %4790 = vmatpush1.msra.mxu0 0.0
      %4791 = vmatprep.subr.mxu0 0.0
      %4792 = vmatpush1.msra.mxu0 0.0
      %4793 = vmatprep.subr.mxu0 0.0
      %4794 = vmatpush1.msra.mxu0 0.0
      %4795 = vmatprep.subr.mxu0 0.0
      %4796 = vmatpush1.msra.mxu0 0.0
      %4797 = vmatprep.subr.mxu0 0.0
      %4798 = vmatpush1.msra.mxu0 0.0
      %4799 = vmatprep.subr.mxu0 0.0
      %4800 = vmatpush1.msra.mxu0 0.0
      %4801 = vmatprep.subr.mxu0 0.0
      %4802 = vmatpush1.msra.mxu0 0.0
      %4803 = vmatprep.subr.mxu0 0.0
      %4804 = vmatpush1.msra.mxu0 0.0
      %4805 = vmatprep.subr.mxu0 0.0
      %4806 = vmatpush1.msra.mxu0 0.0
      %4807 = vmatprep.subr.mxu0 0.0
      %4808 = vmatpush1.msra.mxu0 0.0
      %4809 = vmatprep.subr.mxu0 0.0
      %4810 = vmatpush1.msra.mxu0 0.0
      %4811 = vmatprep.subr.mxu0 0.0
      %4812 = vmatpush1.msra.mxu0 0.0
      %4813 = vmatprep.subr.mxu0 0.0
      %4814 = vmatpush1.msra.mxu0 0.0
      %4815 = vmatprep.subr.mxu0 0.0
      %4816 = vmatpush1.msra.mxu0 0.0
      %4817 = vmatprep.subr.mxu0 0.0
      %4818 = vmatpush1.msra.mxu0 0.0
      %4819 = vmatprep.subr.mxu0 0.0
      %4820 = vmatpush1.msra.mxu0 0.0
      %4821 = vmatprep.subr.mxu0 0.0
      %4822 = vmatpush1.msra.mxu0 0.0
      %4823 = vmatprep.subr.mxu0 0.0
      %4824 = vmatpush1.msra.mxu0 0.0
      %4825 = vmatprep.subr.mxu0 0.0
      %4826 = vmatpush1.msra.mxu0 0.0
      %4827 = vmatprep.subr.mxu0 0.0
      %4828 = vmatpush1.msra.mxu0 0.0
      %4829 = vmatprep.subr.mxu0 0.0
      %4830 = vmatpush1.msra.mxu0 0.0
      %4831 = vmatprep.subr.mxu0 0.0
      %4832 = vmatpush1.msra.mxu0 0.0
      %4833 = vmatprep.subr.mxu0 0.0
      %4834 = vmatpush1.msra.mxu0 0.0
      %4835 = vmatprep.subr.mxu0 0.0
      %4836 = vmatpush1.msra.mxu0 0.0
      %4837 = vmatprep.mubr.f32.mxu0 0.0
      %v4838 = vand.u32 %v3925, 4294901760
      %4839 = vmatmul.mubr.f32.gmra.mrb[0].mxu0 %v4838
      %v4840 = vpop.f32.mrb[0].mxu0
      %v4841 = vadd.f32 %v4769, %v4840
      %v4842 = vpop.f32.mrb[0].mxu0
      %4843 = vdwg.mxu0
      %v4844 = vadd.f32 %v3905, %v4394
      %v4845 = vadd.f32 %v3906, %v4396
      %v4846 = vadd.f32 %v3907, %v4841
      %v4847 = vld [vmem:[%s165] sm:$0xff]
      %v4848 = vld [vmem:[%s165 + $0x8] sm:$0xf]
      %s4849 = scalar_lea.vmem %s0, 40
      %v4850 = vld [vmem:[%s4849] sm:$0xff]
      %v4853 = vcombine.high %v4847, %v4847
      %4854 = vrot.lane.b32.xlu0 %v4847, 108
      %v4855 = vpop.permute.xlu0 %4854
      %4856 = vrot.lane.b32.xlu0 %v4853, 108
      %v4857 = vpop.permute.xlu0 %4856
      %4858 = vrot.lane.b32.xlu0 %v4848, 108
      %v4859 = vpop.permute.xlu0 %4858
      %vm4860 = vcmask 883712
      %v4861 = vsel %vm4860, %v4855, %v4857
      %v4862 = vsel %vm4860, %v4857, %v4859
      %v4864 = vsel %vm188, %v4850, 0
      %v4866 = vsel %vm192, %v4861, 0
      %v4868 = vsel %vm192, %v4862, 0
      %v4870 = vsel %vm192, %v4859, 0
      %v4872 = vand.u32 %v4868, 4294901760
      %4873 = vmatprep.subr.mxu0 %v4872
      %v4874 = vand.u32 %v4866, 4294901760
      %4875 = vmatpush1.msra.mxu0 %v4874
      %4876 = vmatprep.subr.mxu0 0.0
      %4877 = vmatpush1.msra.mxu0 0.0
      %4878 = vmatprep.subr.mxu0 0.0
      %4879 = vmatpush1.msra.mxu0 0.0
      %4880 = vmatprep.subr.mxu0 0.0
      %4881 = vmatpush1.msra.mxu0 0.0
      %4882 = vmatprep.subr.mxu0 0.0
      %4883 = vmatpush1.msra.mxu0 0.0
      %4884 = vmatprep.subr.mxu0 0.0
      %4885 = vmatpush1.msra.mxu0 0.0
      %4886 = vmatprep.subr.mxu0 0.0
      %4887 = vmatpush1.msra.mxu0 0.0
      %4888 = vmatprep.subr.mxu0 0.0
      %4889 = vmatpush1.msra.mxu0 0.0
      %4890 = vmatprep.subr.mxu0 0.0
      %4891 = vmatpush1.msra.mxu0 0.0
      %4892 = vmatprep.subr.mxu0 0.0
      %4893 = vmatpush1.msra.mxu0 0.0
      %4894 = vmatprep.subr.mxu0 0.0
      %4895 = vmatpush1.msra.mxu0 0.0
      %4896 = vmatprep.subr.mxu0 0.0
      %4897 = vmatpush1.msra.mxu0 0.0
      %4898 = vmatprep.subr.mxu0 0.0
      %4899 = vmatpush1.msra.mxu0 0.0
      %4900 = vmatprep.subr.mxu0 0.0
      %4901 = vmatpush1.msra.mxu0 0.0
      %4902 = vmatprep.subr.mxu0 0.0
      %4903 = vmatpush1.msra.mxu0 0.0
      %4904 = vmatprep.subr.mxu0 0.0
      %4905 = vmatpush1.msra.mxu0 0.0
      %4906 = vmatprep.subr.mxu0 0.0
      %4907 = vmatpush1.msra.mxu0 0.0
      %4908 = vmatprep.subr.mxu0 0.0
      %4909 = vmatpush1.msra.mxu0 0.0
      %4910 = vmatprep.subr.mxu0 0.0
      %4911 = vmatpush1.msra.mxu0 0.0
      %4912 = vmatprep.subr.mxu0 0.0
      %4913 = vmatpush1.msra.mxu0 0.0
      %4914 = vmatprep.subr.mxu0 0.0
      %4915 = vmatpush1.msra.mxu0 0.0
      %4916 = vmatprep.subr.mxu0 0.0
      %4917 = vmatpush1.msra.mxu0 0.0
      %4918 = vmatprep.subr.mxu0 0.0
      %4919 = vmatpush1.msra.mxu0 0.0
      %4920 = vmatprep.subr.mxu0 0.0
      %4921 = vmatpush1.msra.mxu0 0.0
      %4922 = vmatprep.subr.mxu0 0.0
      %4923 = vmatpush1.msra.mxu0 0.0
      %4924 = vmatprep.subr.mxu0 0.0
      %4925 = vmatpush1.msra.mxu0 0.0
      %4926 = vmatprep.subr.mxu0 0.0
      %4927 = vmatpush1.msra.mxu0 0.0
      %4928 = vmatprep.subr.mxu0 0.0
      %4929 = vmatpush1.msra.mxu0 0.0
      %4930 = vmatprep.subr.mxu0 0.0
      %4931 = vmatpush1.msra.mxu0 0.0
      %4932 = vmatprep.subr.mxu0 0.0
      %4933 = vmatpush1.msra.mxu0 0.0
      %4934 = vmatprep.subr.mxu0 0.0
      %4935 = vmatpush1.msra.mxu0 0.0
      %4936 = vmatprep.subr.mxu0 0.0
      %4937 = vmatpush1.msra.mxu0 0.0
      %4938 = vmatprep.mubr.f32.mxu0 0.0
      %v4939 = vand.u32 %v4864, 4294901760
      %v4940 = vsub.f32 %v4864, %v4939
      %v4941 = vand.u32 %v4940, 4294901760
      %v4942 = vsub.f32 %v4940, %v4941
      %v4943 = vand.u32 %v4942, 4294901760
      %4944 = vmatmul.mubr.f32.gmra.mrb[0].mxu0 %v4943
      %v4945 = vpop.f32.mrb[0].mxu0
      %v4946 = vadd.f32 0.0, %v4945
      %v4947 = vpop.f32.mrb[0].mxu0
      %v4948 = vadd.f32 0.0, %v4947
      %4949 = vdwg.mxu0
      %v4950 = vand.u32 %v4868, 4294901760
      %v4951 = vsub.f32 %v4868, %v4950
      %v4952 = vand.u32 %v4951, 4294901760
      %v4953 = vsub.f32 %v4951, %v4952
      %v4954 = vand.u32 %v4953, 4294901760
      %4955 = vmatprep.subr.mxu0 %v4954
      %v4956 = vand.u32 %v4866, 4294901760
      %v4957 = vsub.f32 %v4866, %v4956
      %v4958 = vand.u32 %v4957, 4294901760
      %v4959 = vsub.f32 %v4957, %v4958
      %v4960 = vand.u32 %v4959, 4294901760
      %4961 = vmatpush1.msra.mxu0 %v4960
      %4962 = vmatprep.subr.mxu0 0.0
      %4963 = vmatpush1.msra.mxu0 0.0
      %4964 = vmatprep.subr.mxu0 0.0
      %4965 = vmatpush1.msra.mxu0 0.0
      %4966 = vmatprep.subr.mxu0 0.0
      %4967 = vmatpush1.msra.mxu0 0.0
      %4968 = vmatprep.subr.mxu0 0.0
      %4969 = vmatpush1.msra.mxu0 0.0
      %4970 = vmatprep.subr.mxu0 0.0
      %4971 = vmatpush1.msra.mxu0 0.0
      %4972 = vmatprep.subr.mxu0 0.0
      %4973 = vmatpush1.msra.mxu0 0.0
      %4974 = vmatprep.subr.mxu0 0.0
      %4975 = vmatpush1.msra.mxu0 0.0
      %4976 = vmatprep.subr.mxu0 0.0
      %4977 = vmatpush1.msra.mxu0 0.0
      %4978 = vmatprep.subr.mxu0 0.0
      %4979 = vmatpush1.msra.mxu0 0.0
      %4980 = vmatprep.subr.mxu0 0.0
      %4981 = vmatpush1.msra.mxu0 0.0
      %4982 = vmatprep.subr.mxu0 0.0
      %4983 = vmatpush1.msra.mxu0 0.0
      %4984 = vmatprep.subr.mxu0 0.0
      %4985 = vmatpush1.msra.mxu0 0.0
      %4986 = vmatprep.subr.mxu0 0.0
      %4987 = vmatpush1.msra.mxu0 0.0
      %4988 = vmatprep.subr.mxu0 0.0
      %4989 = vmatpush1.msra.mxu0 0.0
      %4990 = vmatprep.subr.mxu0 0.0
      %4991 = vmatpush1.msra.mxu0 0.0
      %4992 = vmatprep.subr.mxu0 0.0
      %4993 = vmatpush1.msra.mxu0 0.0
      %4994 = vmatprep.subr.mxu0 0.0
      %4995 = vmatpush1.msra.mxu0 0.0
      %4996 = vmatprep.subr.mxu0 0.0
      %4997 = vmatpush1.msra.mxu0 0.0
      %4998 = vmatprep.subr.mxu0 0.0
      %4999 = vmatpush1.msra.mxu0 0.0
      %5000 = vmatprep.subr.mxu0 0.0
      %5001 = vmatpush1.msra.mxu0 0.0
      %5002 = vmatprep.subr.mxu0 0.0
      %5003 = vmatpush1.msra.mxu0 0.0
      %5004 = vmatprep.subr.mxu0 0.0
      %5005 = vmatpush1.msra.mxu0 0.0
      %5006 = vmatprep.subr.mxu0 0.0
      %5007 = vmatpush1.msra.mxu0 0.0
      %5008 = vmatprep.subr.mxu0 0.0
      %5009 = vmatpush1.msra.mxu0 0.0
      %5010 = vmatprep.subr.mxu0 0.0
      %5011 = vmatpush1.msra.mxu0 0.0
      %5012 = vmatprep.subr.mxu0 0.0
      %5013 = vmatpush1.msra.mxu0 0.0
      %5014 = vmatprep.subr.mxu0 0.0
      %5015 = vmatpush1.msra.mxu0 0.0
      %5016 = vmatprep.subr.mxu0 0.0
      %5017 = vmatpush1.msra.mxu0 0.0
      %5018 = vmatprep.subr.mxu0 0.0
      %5019 = vmatpush1.msra.mxu0 0.0
      %5020 = vmatprep.subr.mxu0 0.0
      %5021 = vmatpush1.msra.mxu0 0.0
      %5022 = vmatprep.subr.mxu0 0.0
      %5023 = vmatpush1.msra.mxu0 0.0
      %5024 = vmatprep.mubr.f32.mxu0 0.0
      %v5025 = vand.u32 %v4864, 4294901760
      %5026 = vmatmul.mubr.f32.gmra.mrb[0].mxu0 %v5025
      %v5027 = vpop.f32.mrb[0].mxu0
      %v5028 = vadd.f32 %v4946, %v5027
      %v5029 = vpop.f32.mrb[0].mxu0
      %v5030 = vadd.f32 %v4948, %v5029
      %5031 = vdwg.mxu0
      %v5032 = vand.u32 %v4868, 4294901760
      %v5033 = vsub.f32 %v4868, %v5032
      %5034 = vmatprep.subr.mxu0 %v5033
      %v5035 = vand.u32 %v4866, 4294901760
      %v5036 = vsub.f32 %v4866, %v5035
      %5037 = vmatpush1.msra.mxu0 %v5036
      %5038 = vmatprep.subr.mxu0 0.0
      %5039 = vmatpush1.msra.mxu0 0.0
      %5040 = vmatprep.subr.mxu0 0.0
      %5041 = vmatpush1.msra.mxu0 0.0
      %5042 = vmatprep.subr.mxu0 0.0
      %5043 = vmatpush1.msra.mxu0 0.0
      %5044 = vmatprep.subr.mxu0 0.0
      %5045 = vmatpush1.msra.mxu0 0.0
      %5046 = vmatprep.subr.mxu0 0.0
      %5047 = vmatpush1.msra.mxu0 0.0
      %5048 = vmatprep.subr.mxu0 0.0
      %5049 = vmatpush1.msra.mxu0 0.0
      %5050 = vmatprep.subr.mxu0 0.0
      %5051 = vmatpush1.msra.mxu0 0.0
      %5052 = vmatprep.subr.mxu0 0.0
      %5053 = vmatpush1.msra.mxu0 0.0
      %5054 = vmatprep.subr.mxu0 0.0
      %5055 = vmatpush1.msra.mxu0 0.0
      %5056 = vmatprep.subr.mxu0 0.0
      %5057 = vmatpush1.msra.mxu0 0.0
      %5058 = vmatprep.subr.mxu0 0.0
      %5059 = vmatpush1.msra.mxu0 0.0
      %5060 = vmatprep.subr.mxu0 0.0
      %5061 = vmatpush1.msra.mxu0 0.0
      %5062 = vmatprep.subr.mxu0 0.0
      %5063 = vmatpush1.msra.mxu0 0.0
      %5064 = vmatprep.subr.mxu0 0.0
      %5065 = vmatpush1.msra.mxu0 0.0
      %5066 = vmatprep.subr.mxu0 0.0
      %5067 = vmatpush1.msra.mxu0 0.0
      %5068 = vmatprep.subr.mxu0 0.0
      %5069 = vmatpush1.msra.mxu0 0.0
      %5070 = vmatprep.subr.mxu0 0.0
      %5071 = vmatpush1.msra.mxu0 0.0
      %5072 = vmatprep.subr.mxu0 0.0
      %5073 = vmatpush1.msra.mxu0 0.0
      %5074 = vmatprep.subr.mxu0 0.0
      %5075 = vmatpush1.msra.mxu0 0.0
      %5076 = vmatprep.subr.mxu0 0.0
      %5077 = vmatpush1.msra.mxu0 0.0
      %5078 = vmatprep.subr.mxu0 0.0
      %5079 = vmatpush1.msra.mxu0 0.0
      %5080 = vmatprep.subr.mxu0 0.0
      %5081 = vmatpush1.msra.mxu0 0.0
      %5082 = vmatprep.subr.mxu0 0.0
      %5083 = vmatpush1.msra.mxu0 0.0
      %5084 = vmatprep.subr.mxu0 0.0
      %5085 = vmatpush1.msra.mxu0 0.0
      %5086 = vmatprep.subr.mxu0 0.0
      %5087 = vmatpush1.msra.mxu0 0.0
      %5088 = vmatprep.subr.mxu0 0.0
      %5089 = vmatpush1.msra.mxu0 0.0
      %5090 = vmatprep.subr.mxu0 0.0
      %5091 = vmatpush1.msra.mxu0 0.0
      %5092 = vmatprep.subr.mxu0 0.0
      %5093 = vmatpush1.msra.mxu0 0.0
      %5094 = vmatprep.subr.mxu0 0.0
      %5095 = vmatpush1.msra.mxu0 0.0
      %5096 = vmatprep.subr.mxu0 0.0
      %5097 = vmatpush1.msra.mxu0 0.0
      %5098 = vmatprep.subr.mxu0 0.0
      %5099 = vmatpush1.msra.mxu0 0.0
      %5100 = vmatprep.mubr.f32.mxu0 0.0
      %v5101 = vand.u32 %v4864, 4294901760
      %v5102 = vsub.f32 %v4864, %v5101
      %5103 = vmatmul.mubr.f32.gmra.mrb[0].mxu0 %v5102
      %v5104 = vpop.f32.mrb[0].mxu0
      %v5105 = vadd.f32 %v5028, %v5104
      %v5106 = vpop.f32.mrb[0].mxu0
      %v5107 = vadd.f32 %v5030, %v5106
      %5108 = vdwg.mxu0
      %v5109 = vand.u32 %v4868, 4294901760
      %5110 = vmatprep.subr.mxu0 %v5109
      %v5111 = vand.u32 %v4866, 4294901760
      %5112 = vmatpush1.msra.mxu0 %v5111
      %5113 = vmatprep.subr.mxu0 0.0
      %5114 = vmatpush1.msra.mxu0 0.0
      %5115 = vmatprep.subr.mxu0 0.0
      %5116 = vmatpush1.msra.mxu0 0.0
      %5117 = vmatprep.subr.mxu0 0.0
      %5118 = vmatpush1.msra.mxu0 0.0
      %5119 = vmatprep.subr.mxu0 0.0
      %5120 = vmatpush1.msra.mxu0 0.0
      %5121 = vmatprep.subr.mxu0 0.0
      %5122 = vmatpush1.msra.mxu0 0.0
      %5123 = vmatprep.subr.mxu0 0.0
      %5124 = vmatpush1.msra.mxu0 0.0
      %5125 = vmatprep.subr.mxu0 0.0
      %5126 = vmatpush1.msra.mxu0 0.0
      %5127 = vmatprep.subr.mxu0 0.0
      %5128 = vmatpush1.msra.mxu0 0.0
      %5129 = vmatprep.subr.mxu0 0.0
      %5130 = vmatpush1.msra.mxu0 0.0
      %5131 = vmatprep.subr.mxu0 0.0
      %5132 = vmatpush1.msra.mxu0 0.0
      %5133 = vmatprep.subr.mxu0 0.0
      %5134 = vmatpush1.msra.mxu0 0.0
      %5135 = vmatprep.subr.mxu0 0.0
      %5136 = vmatpush1.msra.mxu0 0.0
      %5137 = vmatprep.subr.mxu0 0.0
      %5138 = vmatpush1.msra.mxu0 0.0
      %5139 = vmatprep.subr.mxu0 0.0
      %5140 = vmatpush1.msra.mxu0 0.0
      %5141 = vmatprep.subr.mxu0 0.0
      %5142 = vmatpush1.msra.mxu0 0.0
      %5143 = vmatprep.subr.mxu0 0.0
      %5144 = vmatpush1.msra.mxu0 0.0
      %5145 = vmatprep.subr.mxu0 0.0
      %5146 = vmatpush1.msra.mxu0 0.0
      %5147 = vmatprep.subr.mxu0 0.0
      %5148 = vmatpush1.msra.mxu0 0.0
      %5149 = vmatprep.subr.mxu0 0.0
      %5150 = vmatpush1.msra.mxu0 0.0
      %5151 = vmatprep.subr.mxu0 0.0
      %5152 = vmatpush1.msra.mxu0 0.0
      %5153 = vmatprep.subr.mxu0 0.0
      %5154 = vmatpush1.msra.mxu0 0.0
      %5155 = vmatprep.subr.mxu0 0.0
      %5156 = vmatpush1.msra.mxu0 0.0
      %5157 = vmatprep.subr.mxu0 0.0
      %5158 = vmatpush1.msra.mxu0 0.0
      %5159 = vmatprep.subr.mxu0 0.0
      %5160 = vmatpush1.msra.mxu0 0.0
      %5161 = vmatprep.subr.mxu0 0.0
      %5162 = vmatpush1.msra.mxu0 0.0
      %5163 = vmatprep.subr.mxu0 0.0
      %5164 = vmatpush1.msra.mxu0 0.0
      %5165 = vmatprep.subr.mxu0 0.0
      %5166 = vmatpush1.msra.mxu0 0.0
      %5167 = vmatprep.subr.mxu0 0.0
      %5168 = vmatpush1.msra.mxu0 0.0
      %5169 = vmatprep.subr.mxu0 0.0
      %5170 = vmatpush1.msra.mxu0 0.0
      %5171 = vmatprep.subr.mxu0 0.0
      %5172 = vmatpush1.msra.mxu0 0.0
      %5173 = vmatprep.subr.mxu0 0.0
      %5174 = vmatpush1.msra.mxu0 0.0
      %5175 = vmatprep.mubr.f32.mxu0 0.0
      %v5176 = vand.u32 %v4864, 4294901760
      %v5177 = vsub.f32 %v4864, %v5176
      %v5178 = vand.u32 %v5177, 4294901760
      %5179 = vmatmul.mubr.f32.gmra.mrb[0].mxu0 %v5178
      %v5180 = vpop.f32.mrb[0].mxu0
      %v5181 = vadd.f32 %v5105, %v5180
      %v5182 = vpop.f32.mrb[0].mxu0
      %v5183 = vadd.f32 %v5107, %v5182
      %5184 = vdwg.mxu0
      %v5185 = vand.u32 %v4868, 4294901760
      %v5186 = vsub.f32 %v4868, %v5185
      %v5187 = vand.u32 %v5186, 4294901760
      %5188 = vmatprep.subr.mxu0 %v5187
      %v5189 = vand.u32 %v4866, 4294901760
      %v5190 = vsub.f32 %v4866, %v5189
      %v5191 = vand.u32 %v5190, 4294901760
      %5192 = vmatpush1.msra.mxu0 %v5191
      %5193 = vmatprep.subr.mxu0 0.0
      %5194 = vmatpush1.msra.mxu0 0.0
      %5195 = vmatprep.subr.mxu0 0.0
      %5196 = vmatpush1.msra.mxu0 0.0
      %5197 = vmatprep.subr.mxu0 0.0
      %5198 = vmatpush1.msra.mxu0 0.0
      %5199 = vmatprep.subr.mxu0 0.0
      %5200 = vmatpush1.msra.mxu0 0.0
      %5201 = vmatprep.subr.mxu0 0.0
      %5202 = vmatpush1.msra.mxu0 0.0
      %5203 = vmatprep.subr.mxu0 0.0
      %5204 = vmatpush1.msra.mxu0 0.0
      %5205 = vmatprep.subr.mxu0 0.0
      %5206 = vmatpush1.msra.mxu0 0.0
      %5207 = vmatprep.subr.mxu0 0.0
      %5208 = vmatpush1.msra.mxu0 0.0
      %5209 = vmatprep.subr.mxu0 0.0
      %5210 = vmatpush1.msra.mxu0 0.0
      %5211 = vmatprep.subr.mxu0 0.0
      %5212 = vmatpush1.msra.mxu0 0.0
      %5213 = vmatprep.subr.mxu0 0.0
      %5214 = vmatpush1.msra.mxu0 0.0
      %5215 = vmatprep.subr.mxu0 0.0
      %5216 = vmatpush1.msra.mxu0 0.0
      %5217 = vmatprep.subr.mxu0 0.0
      %5218 = vmatpush1.msra.mxu0 0.0
      %5219 = vmatprep.subr.mxu0 0.0
      %5220 = vmatpush1.msra.mxu0 0.0
      %5221 = vmatprep.subr.mxu0 0.0
      %5222 = vmatpush1.msra.mxu0 0.0
      %5223 = vmatprep.subr.mxu0 0.0
      %5224 = vmatpush1.msra.mxu0 0.0
      %5225 = vmatprep.subr.mxu0 0.0
      %5226 = vmatpush1.msra.mxu0 0.0
      %5227 = vmatprep.subr.mxu0 0.0
      %5228 = vmatpush1.msra.mxu0 0.0
      %5229 = vmatprep.subr.mxu0 0.0
      %5230 = vmatpush1.msra.mxu0 0.0
      %5231 = vmatprep.subr.mxu0 0.0
      %5232 = vmatpush1.msra.mxu0 0.0
      %5233 = vmatprep.subr.mxu0 0.0
      %5234 = vmatpush1.msra.mxu0 0.0
      %5235 = vmatprep.subr.mxu0 0.0
      %5236 = vmatpush1.msra.mxu0 0.0
      %5237 = vmatprep.subr.mxu0 0.0
      %5238 = vmatpush1.msra.mxu0 0.0
      %5239 = vmatprep.subr.mxu0 0.0
      %5240 = vmatpush1.msra.mxu0 0.0
      %5241 = vmatprep.subr.mxu0 0.0
      %5242 = vmatpush1.msra.mxu0 0.0
      %5243 = vmatprep.subr.mxu0 0.0
      %5244 = vmatpush1.msra.mxu0 0.0
      %5245 = vmatprep.subr.mxu0 0.0
      %5246 = vmatpush1.msra.mxu0 0.0
      %5247 = vmatprep.subr.mxu0 0.0
      %5248 = vmatpush1.msra.mxu0 0.0
      %5249 = vmatprep.subr.mxu0 0.0
      %5250 = vmatpush1.msra.mxu0 0.0
      %5251 = vmatprep.subr.mxu0 0.0
      %5252 = vmatpush1.msra.mxu0 0.0
      %5253 = vmatprep.subr.mxu0 0.0
      %5254 = vmatpush1.msra.mxu0 0.0
      %5255 = vmatprep.mubr.f32.mxu0 0.0
      %v5256 = vand.u32 %v4864, 4294901760
      %5257 = vmatmul.mubr.f32.gmra.mrb[0].mxu0 %v5256
      %v5258 = vpop.f32.mrb[0].mxu0
      %v5259 = vadd.f32 %v5181, %v5258
      %v5260 = vpop.f32.mrb[0].mxu0
      %v5261 = vadd.f32 %v5183, %v5260
      %5262 = vdwg.mxu0
      %v5263 = vand.u32 %v4868, 4294901760
      %5264 = vmatprep.subr.mxu0 %v5263
      %v5265 = vand.u32 %v4866, 4294901760
      %5266 = vmatpush1.msra.mxu0 %v5265
      %5267 = vmatprep.subr.mxu0 0.0
      %5268 = vmatpush1.msra.mxu0 0.0
      %5269 = vmatprep.subr.mxu0 0.0
      %5270 = vmatpush1.msra.mxu0 0.0
      %5271 = vmatprep.subr.mxu0 0.0
      %5272 = vmatpush1.msra.mxu0 0.0
      %5273 = vmatprep.subr.mxu0 0.0
      %5274 = vmatpush1.msra.mxu0 0.0
      %5275 = vmatprep.subr.mxu0 0.0
      %5276 = vmatpush1.msra.mxu0 0.0
      %5277 = vmatprep.subr.mxu0 0.0
      %5278 = vmatpush1.msra.mxu0 0.0
      %5279 = vmatprep.subr.mxu0 0.0
      %5280 = vmatpush1.msra.mxu0 0.0
      %5281 = vmatprep.subr.mxu0 0.0
      %5282 = vmatpush1.msra.mxu0 0.0
      %5283 = vmatprep.subr.mxu0 0.0
      %5284 = vmatpush1.msra.mxu0 0.0
      %5285 = vmatprep.subr.mxu0 0.0
      %5286 = vmatpush1.msra.mxu0 0.0
      %5287 = vmatprep.subr.mxu0 0.0
      %5288 = vmatpush1.msra.mxu0 0.0
      %5289 = vmatprep.subr.mxu0 0.0
      %5290 = vmatpush1.msra.mxu0 0.0
      %5291 = vmatprep.subr.mxu0 0.0
      %5292 = vmatpush1.msra.mxu0 0.0
      %5293 = vmatprep.subr.mxu0 0.0
      %5294 = vmatpush1.msra.mxu0 0.0
      %5295 = vmatprep.subr.mxu0 0.0
      %5296 = vmatpush1.msra.mxu0 0.0
      %5297 = vmatprep.subr.mxu0 0.0
      %5298 = vmatpush1.msra.mxu0 0.0
      %5299 = vmatprep.subr.mxu0 0.0
      %5300 = vmatpush1.msra.mxu0 0.0
      %5301 = vmatprep.subr.mxu0 0.0
      %5302 = vmatpush1.msra.mxu0 0.0
      %5303 = vmatprep.subr.mxu0 0.0
      %5304 = vmatpush1.msra.mxu0 0.0
      %5305 = vmatprep.subr.mxu0 0.0
      %5306 = vmatpush1.msra.mxu0 0.0
      %5307 = vmatprep.subr.mxu0 0.0
      %5308 = vmatpush1.msra.mxu0 0.0
      %5309 = vmatprep.subr.mxu0 0.0
      %5310 = vmatpush1.msra.mxu0 0.0
      %5311 = vmatprep.subr.mxu0 0.0
      %5312 = vmatpush1.msra.mxu0 0.0
      %5313 = vmatprep.subr.mxu0 0.0
      %5314 = vmatpush1.msra.mxu0 0.0
      %5315 = vmatprep.subr.mxu0 0.0
      %5316 = vmatpush1.msra.mxu0 0.0
      %5317 = vmatprep.subr.mxu0 0.0
      %5318 = vmatpush1.msra.mxu0 0.0
      %5319 = vmatprep.subr.mxu0 0.0
      %5320 = vmatpush1.msra.mxu0 0.0
      %5321 = vmatprep.subr.mxu0 0.0
      %5322 = vmatpush1.msra.mxu0 0.0
      %5323 = vmatprep.subr.mxu0 0.0
      %5324 = vmatpush1.msra.mxu0 0.0
      %5325 = vmatprep.subr.mxu0 0.0
      %5326 = vmatpush1.msra.mxu0 0.0
      %5327 = vmatprep.subr.mxu0 0.0
      %5328 = vmatpush1.msra.mxu0 0.0
      %5329 = vmatprep.mubr.f32.mxu0 0.0
      %v5330 = vand.u32 %v4864, 4294901760
      %5331 = vmatmul.mubr.f32.gmra.mrb[0].mxu0 %v5330
      %v5332 = vpop.f32.mrb[0].mxu0
      %v5333 = vadd.f32 %v5259, %v5332
      %v5334 = vpop.f32.mrb[0].mxu0
      %v5335 = vadd.f32 %v5261, %v5334
      %5336 = vdwg.mxu0
      %5337 = vmatprep.subr.mxu0 0.0
      %v5338 = vand.u32 %v4870, 4294901760
      %5339 = vmatpush1.msra.mxu0 %v5338
      %5340 = vmatprep.subr.mxu0 0.0
      %5341 = vmatpush1.msra.mxu0 0.0
      %5342 = vmatprep.subr.mxu0 0.0
      %5343 = vmatpush1.msra.mxu0 0.0
      %5344 = vmatprep.subr.mxu0 0.0
      %5345 = vmatpush1.msra.mxu0 0.0
      %5346 = vmatprep.subr.mxu0 0.0
      %5347 = vmatpush1.msra.mxu0 0.0
      %5348 = vmatprep.subr.mxu0 0.0
      %5349 = vmatpush1.msra.mxu0 0.0
      %5350 = vmatprep.subr.mxu0 0.0
      %5351 = vmatpush1.msra.mxu0 0.0
      %5352 = vmatprep.subr.mxu0 0.0
      %5353 = vmatpush1.msra.mxu0 0.0
      %5354 = vmatprep.subr.mxu0 0.0
      %5355 = vmatpush1.msra.mxu0 0.0
      %5356 = vmatprep.subr.mxu0 0.0
      %5357 = vmatpush1.msra.mxu0 0.0
      %5358 = vmatprep.subr.mxu0 0.0
      %5359 = vmatpush1.msra.mxu0 0.0
      %5360 = vmatprep.subr.mxu0 0.0
      %5361 = vmatpush1.msra.mxu0 0.0
      %5362 = vmatprep.subr.mxu0 0.0
      %5363 = vmatpush1.msra.mxu0 0.0
      %5364 = vmatprep.subr.mxu0 0.0
      %5365 = vmatpush1.msra.mxu0 0.0
      %5366 = vmatprep.subr.mxu0 0.0
      %5367 = vmatpush1.msra.mxu0 0.0
      %5368 = vmatprep.subr.mxu0 0.0
      %5369 = vmatpush1.msra.mxu0 0.0
      %5370 = vmatprep.subr.mxu0 0.0
      %5371 = vmatpush1.msra.mxu0 0.0
      %5372 = vmatprep.subr.mxu0 0.0
      %5373 = vmatpush1.msra.mxu0 0.0
      %5374 = vmatprep.subr.mxu0 0.0
      %5375 = vmatpush1.msra.mxu0 0.0
      %5376 = vmatprep.subr.mxu0 0.0
      %5377 = vmatpush1.msra.mxu0 0.0
      %5378 = vmatprep.subr.mxu0 0.0
      %5379 = vmatpush1.msra.mxu0 0.0
      %5380 = vmatprep.subr.mxu0 0.0
      %5381 = vmatpush1.msra.mxu0 0.0
      %5382 = vmatprep.subr.mxu0 0.0
      %5383 = vmatpush1.msra.mxu0 0.0
      %5384 = vmatprep.subr.mxu0 0.0
      %5385 = vmatpush1.msra.mxu0 0.0
      %5386 = vmatprep.subr.mxu0 0.0
      %5387 = vmatpush1.msra.mxu0 0.0
      %5388 = vmatprep.subr.mxu0 0.0
      %5389 = vmatpush1.msra.mxu0 0.0
      %5390 = vmatprep.subr.mxu0 0.0
      %5391 = vmatpush1.msra.mxu0 0.0
      %5392 = vmatprep.subr.mxu0 0.0
      %5393 = vmatpush1.msra.mxu0 0.0
      %5394 = vmatprep.subr.mxu0 0.0
      %5395 = vmatpush1.msra.mxu0 0.0
      %5396 = vmatprep.subr.mxu0 0.0
      %5397 = vmatpush1.msra.mxu0 0.0
      %5398 = vmatprep.subr.mxu0 0.0
      %5399 = vmatpush1.msra.mxu0 0.0
      %5400 = vmatprep.subr.mxu0 0.0
      %5401 = vmatpush1.msra.mxu0 0.0
      %5402 = vmatprep.mubr.f32.mxu0 0.0
      %v5403 = vand.u32 %v4864, 4294901760
      %v5404 = vsub.f32 %v4864, %v5403
      %v5405 = vand.u32 %v5404, 4294901760
      %v5406 = vsub.f32 %v5404, %v5405
      %v5407 = vand.u32 %v5406, 4294901760
      %5408 = vmatmul.mubr.f32.gmra.mrb[0].mxu0 %v5407
      %v5409 = vpop.f32.mrb[0].mxu0
      %v5410 = vadd.f32 0.0, %v5409
      %v5411 = vpop.f32.mrb[0].mxu0
      %5412 = vdwg.mxu0
      %5413 = vmatprep.subr.mxu0 0.0
      %v5414 = vand.u32 %v4870, 4294901760
      %v5415 = vsub.f32 %v4870, %v5414
      %v5416 = vand.u32 %v5415, 4294901760
      %v5417 = vsub.f32 %v5415, %v5416
      %v5418 = vand.u32 %v5417, 4294901760
      %5419 = vmatpush1.msra.mxu0 %v5418
      %5420 = vmatprep.subr.mxu0 0.0
      %5421 = vmatpush1.msra.mxu0 0.0
      %5422 = vmatprep.subr.mxu0 0.0
      %5423 = vmatpush1.msra.mxu0 0.0
      %5424 = vmatprep.subr.mxu0 0.0
      %5425 = vmatpush1.msra.mxu0 0.0
      %5426 = vmatprep.subr.mxu0 0.0
      %5427 = vmatpush1.msra.mxu0 0.0
      %5428 = vmatprep.subr.mxu0 0.0
      %5429 = vmatpush1.msra.mxu0 0.0
      %5430 = vmatprep.subr.mxu0 0.0
      %5431 = vmatpush1.msra.mxu0 0.0
      %5432 = vmatprep.subr.mxu0 0.0
      %5433 = vmatpush1.msra.mxu0 0.0
      %5434 = vmatprep.subr.mxu0 0.0
      %5435 = vmatpush1.msra.mxu0 0.0
      %5436 = vmatprep.subr.mxu0 0.0
      %5437 = vmatpush1.msra.mxu0 0.0
      %5438 = vmatprep.subr.mxu0 0.0
      %5439 = vmatpush1.msra.mxu0 0.0
      %5440 = vmatprep.subr.mxu0 0.0
      %5441 = vmatpush1.msra.mxu0 0.0
      %5442 = vmatprep.subr.mxu0 0.0
      %5443 = vmatpush1.msra.mxu0 0.0
      %5444 = vmatprep.subr.mxu0 0.0
      %5445 = vmatpush1.msra.mxu0 0.0
      %5446 = vmatprep.subr.mxu0 0.0
      %5447 = vmatpush1.msra.mxu0 0.0
      %5448 = vmatprep.subr.mxu0 0.0
      %5449 = vmatpush1.msra.mxu0 0.0
      %5450 = vmatprep.subr.mxu0 0.0
      %5451 = vmatpush1.msra.mxu0 0.0
      %5452 = vmatprep.subr.mxu0 0.0
      %5453 = vmatpush1.msra.mxu0 0.0
      %5454 = vmatprep.subr.mxu0 0.0
      %5455 = vmatpush1.msra.mxu0 0.0
      %5456 = vmatprep.subr.mxu0 0.0
      %5457 = vmatpush1.msra.mxu0 0.0
      %5458 = vmatprep.subr.mxu0 0.0
      %5459 = vmatpush1.msra.mxu0 0.0
      %5460 = vmatprep.subr.mxu0 0.0
      %5461 = vmatpush1.msra.mxu0 0.0
      %5462 = vmatprep.subr.mxu0 0.0
      %5463 = vmatpush1.msra.mxu0 0.0
      %5464 = vmatprep.subr.mxu0 0.0
      %5465 = vmatpush1.msra.mxu0 0.0
      %5466 = vmatprep.subr.mxu0 0.0
      %5467 = vmatpush1.msra.mxu0 0.0
      %5468 = vmatprep.subr.mxu0 0.0
      %5469 = vmatpush1.msra.mxu0 0.0
      %5470 = vmatprep.subr.mxu0 0.0
      %5471 = vmatpush1.msra.mxu0 0.0
      %5472 = vmatprep.subr.mxu0 0.0
      %5473 = vmatpush1.msra.mxu0 0.0
      %5474 = vmatprep.subr.mxu0 0.0
      %5475 = vmatpush1.msra.mxu0 0.0
      %5476 = vmatprep.subr.mxu0 0.0
      %5477 = vmatpush1.msra.mxu0 0.0
      %5478 = vmatprep.subr.mxu0 0.0
      %5479 = vmatpush1.msra.mxu0 0.0
      %5480 = vmatprep.subr.mxu0 0.0
      %5481 = vmatpush1.msra.mxu0 0.0
      %5482 = vmatprep.mubr.f32.mxu0 0.0
      %v5483 = vand.u32 %v4864, 4294901760
      %5484 = vmatmul.mubr.f32.gmra.mrb[0].mxu0 %v5483
      %v5485 = vpop.f32.mrb[0].mxu0
      %v5486 = vadd.f32 %v5410, %v5485
      %v5487 = vpop.f32.mrb[0].mxu0
      %5488 = vdwg.mxu0
      %5489 = vmatprep.subr.mxu0 0.0
      %v5490 = vand.u32 %v4870, 4294901760
      %v5491 = vsub.f32 %v4870, %v5490
      %5492 = vmatpush1.msra.mxu0 %v5491
      %5493 = vmatprep.subr.mxu0 0.0
      %5494 = vmatpush1.msra.mxu0 0.0
      %5495 = vmatprep.subr.mxu0 0.0
      %5496 = vmatpush1.msra.mxu0 0.0
      %5497 = vmatprep.subr.mxu0 0.0
      %5498 = vmatpush1.msra.mxu0 0.0
      %5499 = vmatprep.subr.mxu0 0.0
      %5500 = vmatpush1.msra.mxu0 0.0
      %5501 = vmatprep.subr.mxu0 0.0
      %5502 = vmatpush1.msra.mxu0 0.0
      %5503 = vmatprep.subr.mxu0 0.0
      %5504 = vmatpush1.msra.mxu0 0.0
      %5505 = vmatprep.subr.mxu0 0.0
      %5506 = vmatpush1.msra.mxu0 0.0
      %5507 = vmatprep.subr.mxu0 0.0
      %5508 = vmatpush1.msra.mxu0 0.0
      %5509 = vmatprep.subr.mxu0 0.0
      %5510 = vmatpush1.msra.mxu0 0.0
      %5511 = vmatprep.subr.mxu0 0.0
      %5512 = vmatpush1.msra.mxu0 0.0
      %5513 = vmatprep.subr.mxu0 0.0
      %5514 = vmatpush1.msra.mxu0 0.0
      %5515 = vmatprep.subr.mxu0 0.0
      %5516 = vmatpush1.msra.mxu0 0.0
      %5517 = vmatprep.subr.mxu0 0.0
      %5518 = vmatpush1.msra.mxu0 0.0
      %5519 = vmatprep.subr.mxu0 0.0
      %5520 = vmatpush1.msra.mxu0 0.0
      %5521 = vmatprep.subr.mxu0 0.0
      %5522 = vmatpush1.msra.mxu0 0.0
      %5523 = vmatprep.subr.mxu0 0.0
      %5524 = vmatpush1.msra.mxu0 0.0
      %5525 = vmatprep.subr.mxu0 0.0
      %5526 = vmatpush1.msra.mxu0 0.0
      %5527 = vmatprep.subr.mxu0 0.0
      %5528 = vmatpush1.msra.mxu0 0.0
      %5529 = vmatprep.subr.mxu0 0.0
      %5530 = vmatpush1.msra.mxu0 0.0
      %5531 = vmatprep.subr.mxu0 0.0
      %5532 = vmatpush1.msra.mxu0 0.0
      %5533 = vmatprep.subr.mxu0 0.0
      %5534 = vmatpush1.msra.mxu0 0.0
      %5535 = vmatprep.subr.mxu0 0.0
      %5536 = vmatpush1.msra.mxu0 0.0
      %5537 = vmatprep.subr.mxu0 0.0
      %5538 = vmatpush1.msra.mxu0 0.0
      %5539 = vmatprep.subr.mxu0 0.0
      %5540 = vmatpush1.msra.mxu0 0.0
      %5541 = vmatprep.subr.mxu0 0.0
      %5542 = vmatpush1.msra.mxu0 0.0
      %5543 = vmatprep.subr.mxu0 0.0
      %5544 = vmatpush1.msra.mxu0 0.0
      %5545 = vmatprep.subr.mxu0 0.0
      %5546 = vmatpush1.msra.mxu0 0.0
      %5547 = vmatprep.subr.mxu0 0.0
      %5548 = vmatpush1.msra.mxu0 0.0
      %5549 = vmatprep.subr.mxu0 0.0
      %5550 = vmatpush1.msra.mxu0 0.0
      %5551 = vmatprep.subr.mxu0 0.0
      %5552 = vmatpush1.msra.mxu0 0.0
      %5553 = vmatprep.subr.mxu0 0.0
      %5554 = vmatpush1.msra.mxu0 0.0
      %5555 = vmatprep.mubr.f32.mxu0 0.0
      %v5556 = vand.u32 %v4864, 4294901760
      %v5557 = vsub.f32 %v4864, %v5556
      %5558 = vmatmul.mubr.f32.gmra.mrb[0].mxu0 %v5557
      %v5559 = vpop.f32.mrb[0].mxu0
      %v5560 = vadd.f32 %v5486, %v5559
      %v5561 = vpop.f32.mrb[0].mxu0
      %5562 = vdwg.mxu0
      %5563 = vmatprep.subr.mxu0 0.0
      %v5564 = vand.u32 %v4870, 4294901760
      %5565 = vmatpush1.msra.mxu0 %v5564
      %5566 = vmatprep.subr.mxu0 0.0
      %5567 = vmatpush1.msra.mxu0 0.0
      %5568 = vmatprep.subr.mxu0 0.0
      %5569 = vmatpush1.msra.mxu0 0.0
      %5570 = vmatprep.subr.mxu0 0.0
      %5571 = vmatpush1.msra.mxu0 0.0
      %5572 = vmatprep.subr.mxu0 0.0
      %5573 = vmatpush1.msra.mxu0 0.0
      %5574 = vmatprep.subr.mxu0 0.0
      %5575 = vmatpush1.msra.mxu0 0.0
      %5576 = vmatprep.subr.mxu0 0.0
      %5577 = vmatpush1.msra.mxu0 0.0
      %5578 = vmatprep.subr.mxu0 0.0
      %5579 = vmatpush1.msra.mxu0 0.0
      %5580 = vmatprep.subr.mxu0 0.0
      %5581 = vmatpush1.msra.mxu0 0.0
      %5582 = vmatprep.subr.mxu0 0.0
      %5583 = vmatpush1.msra.mxu0 0.0
      %5584 = vmatprep.subr.mxu0 0.0
      %5585 = vmatpush1.msra.mxu0 0.0
      %5586 = vmatprep.subr.mxu0 0.0
      %5587 = vmatpush1.msra.mxu0 0.0
      %5588 = vmatprep.subr.mxu0 0.0
      %5589 = vmatpush1.msra.mxu0 0.0
      %5590 = vmatprep.subr.mxu0 0.0
      %5591 = vmatpush1.msra.mxu0 0.0
      %5592 = vmatprep.subr.mxu0 0.0
      %5593 = vmatpush1.msra.mxu0 0.0
      %5594 = vmatprep.subr.mxu0 0.0
      %5595 = vmatpush1.msra.mxu0 0.0
      %5596 = vmatprep.subr.mxu0 0.0
      %5597 = vmatpush1.msra.mxu0 0.0
      %5598 = vmatprep.subr.mxu0 0.0
      %5599 = vmatpush1.msra.mxu0 0.0
      %5600 = vmatprep.subr.mxu0 0.0
      %5601 = vmatpush1.msra.mxu0 0.0
      %5602 = vmatprep.subr.mxu0 0.0
      %5603 = vmatpush1.msra.mxu0 0.0
      %5604 = vmatprep.subr.mxu0 0.0
      %5605 = vmatpush1.msra.mxu0 0.0
      %5606 = vmatprep.subr.mxu0 0.0
      %5607 = vmatpush1.msra.mxu0 0.0
      %5608 = vmatprep.subr.mxu0 0.0
      %5609 = vmatpush1.msra.mxu0 0.0
      %5610 = vmatprep.subr.mxu0 0.0
      %5611 = vmatpush1.msra.mxu0 0.0
      %5612 = vmatprep.subr.mxu0 0.0
      %5613 = vmatpush1.msra.mxu0 0.0
      %5614 = vmatprep.subr.mxu0 0.0
      %5615 = vmatpush1.msra.mxu0 0.0
      %5616 = vmatprep.subr.mxu0 0.0
      %5617 = vmatpush1.msra.mxu0 0.0
      %5618 = vmatprep.subr.mxu0 0.0
      %5619 = vmatpush1.msra.mxu0 0.0
      %5620 = vmatprep.subr.mxu0 0.0
      %5621 = vmatpush1.msra.mxu0 0.0
      %5622 = vmatprep.subr.mxu0 0.0
      %5623 = vmatpush1.msra.mxu0 0.0
      %5624 = vmatprep.subr.mxu0 0.0
      %5625 = vmatpush1.msra.mxu0 0.0
      %5626 = vmatprep.subr.mxu0 0.0
      %5627 = vmatpush1.msra.mxu0 0.0
      %5628 = vmatprep.mubr.f32.mxu0 0.0
      %v5629 = vand.u32 %v4864, 4294901760
      %v5630 = vsub.f32 %v4864, %v5629
      %v5631 = vand.u32 %v5630, 4294901760
      %5632 = vmatmul.mubr.f32.gmra.mrb[0].mxu0 %v5631
      %v5633 = vpop.f32.mrb[0].mxu0
      %v5634 = vadd.f32 %v5560, %v5633
      %v5635 = vpop.f32.mrb[0].mxu0
      %5636 = vdwg.mxu0
      %5637 = vmatprep.subr.mxu0 0.0
      %v5638 = vand.u32 %v4870, 4294901760
      %v5639 = vsub.f32 %v4870, %v5638
      %v5640 = vand.u32 %v5639, 4294901760
      %5641 = vmatpush1.msra.mxu0 %v5640
      %5642 = vmatprep.subr.mxu0 0.0
      %5643 = vmatpush1.msra.mxu0 0.0
      %5644 = vmatprep.subr.mxu0 0.0
      %5645 = vmatpush1.msra.mxu0 0.0
      %5646 = vmatprep.subr.mxu0 0.0
      %5647 = vmatpush1.msra.mxu0 0.0
      %5648 = vmatprep.subr.mxu0 0.0
      %5649 = vmatpush1.msra.mxu0 0.0
      %5650 = vmatprep.subr.mxu0 0.0
      %5651 = vmatpush1.msra.mxu0 0.0
      %5652 = vmatprep.subr.mxu0 0.0
      %5653 = vmatpush1.msra.mxu0 0.0
      %5654 = vmatprep.subr.mxu0 0.0
      %5655 = vmatpush1.msra.mxu0 0.0
      %5656 = vmatprep.subr.mxu0 0.0
      %5657 = vmatpush1.msra.mxu0 0.0
      %5658 = vmatprep.subr.mxu0 0.0
      %5659 = vmatpush1.msra.mxu0 0.0
      %5660 = vmatprep.subr.mxu0 0.0
      %5661 = vmatpush1.msra.mxu0 0.0
      %5662 = vmatprep.subr.mxu0 0.0
      %5663 = vmatpush1.msra.mxu0 0.0
      %5664 = vmatprep.subr.mxu0 0.0
      %5665 = vmatpush1.msra.mxu0 0.0
      %5666 = vmatprep.subr.mxu0 0.0
      %5667 = vmatpush1.msra.mxu0 0.0
      %5668 = vmatprep.subr.mxu0 0.0
      %5669 = vmatpush1.msra.mxu0 0.0
      %5670 = vmatprep.subr.mxu0 0.0
      %5671 = vmatpush1.msra.mxu0 0.0
      %5672 = vmatprep.subr.mxu0 0.0
      %5673 = vmatpush1.msra.mxu0 0.0
      %5674 = vmatprep.subr.mxu0 0.0
      %5675 = vmatpush1.msra.mxu0 0.0
      %5676 = vmatprep.subr.mxu0 0.0
      %5677 = vmatpush1.msra.mxu0 0.0
      %5678 = vmatprep.subr.mxu0 0.0
      %5679 = vmatpush1.msra.mxu0 0.0
      %5680 = vmatprep.subr.mxu0 0.0
      %5681 = vmatpush1.msra.mxu0 0.0
      %5682 = vmatprep.subr.mxu0 0.0
      %5683 = vmatpush1.msra.mxu0 0.0
      %5684 = vmatprep.subr.mxu0 0.0
      %5685 = vmatpush1.msra.mxu0 0.0
      %5686 = vmatprep.subr.mxu0 0.0
      %5687 = vmatpush1.msra.mxu0 0.0
      %5688 = vmatprep.subr.mxu0 0.0
      %5689 = vmatpush1.msra.mxu0 0.0
      %5690 = vmatprep.subr.mxu0 0.0
      %5691 = vmatpush1.msra.mxu0 0.0
      %5692 = vmatprep.subr.mxu0 0.0
      %5693 = vmatpush1.msra.mxu0 0.0
      %5694 = vmatprep.subr.mxu0 0.0
      %5695 = vmatpush1.msra.mxu0 0.0
      %5696 = vmatprep.subr.mxu0 0.0
      %5697 = vmatpush1.msra.mxu0 0.0
      %5698 = vmatprep.subr.mxu0 0.0
      %5699 = vmatpush1.msra.mxu0 0.0
      %5700 = vmatprep.subr.mxu0 0.0
      %5701 = vmatpush1.msra.mxu0 0.0
      %5702 = vmatprep.subr.mxu0 0.0
      %5703 = vmatpush1.msra.mxu0 0.0
      %5704 = vmatprep.mubr.f32.mxu0 0.0
      %v5705 = vand.u32 %v4864, 4294901760
      %5706 = vmatmul.mubr.f32.gmra.mrb[0].mxu0 %v5705
      %v5707 = vpop.f32.mrb[0].mxu0
      %v5708 = vadd.f32 %v5634, %v5707
      %v5709 = vpop.f32.mrb[0].mxu0
      %5710 = vdwg.mxu0
      %5711 = vmatprep.subr.mxu0 0.0
      %v5712 = vand.u32 %v4870, 4294901760
      %5713 = vmatpush1.msra.mxu0 %v5712
      %5714 = vmatprep.subr.mxu0 0.0
      %5715 = vmatpush1.msra.mxu0 0.0
      %5716 = vmatprep.subr.mxu0 0.0
      %5717 = vmatpush1.msra.mxu0 0.0
      %5718 = vmatprep.subr.mxu0 0.0
      %5719 = vmatpush1.msra.mxu0 0.0
      %5720 = vmatprep.subr.mxu0 0.0
      %5721 = vmatpush1.msra.mxu0 0.0
      %5722 = vmatprep.subr.mxu0 0.0
      %5723 = vmatpush1.msra.mxu0 0.0
      %5724 = vmatprep.subr.mxu0 0.0
      %5725 = vmatpush1.msra.mxu0 0.0
      %5726 = vmatprep.subr.mxu0 0.0
      %5727 = vmatpush1.msra.mxu0 0.0
      %5728 = vmatprep.subr.mxu0 0.0
      %5729 = vmatpush1.msra.mxu0 0.0
      %5730 = vmatprep.subr.mxu0 0.0
      %5731 = vmatpush1.msra.mxu0 0.0
      %5732 = vmatprep.subr.mxu0 0.0
      %5733 = vmatpush1.msra.mxu0 0.0
      %5734 = vmatprep.subr.mxu0 0.0
      %5735 = vmatpush1.msra.mxu0 0.0
      %5736 = vmatprep.subr.mxu0 0.0
      %5737 = vmatpush1.msra.mxu0 0.0
      %5738 = vmatprep.subr.mxu0 0.0
      %5739 = vmatpush1.msra.mxu0 0.0
      %5740 = vmatprep.subr.mxu0 0.0
      %5741 = vmatpush1.msra.mxu0 0.0
      %5742 = vmatprep.subr.mxu0 0.0
      %5743 = vmatpush1.msra.mxu0 0.0
      %5744 = vmatprep.subr.mxu0 0.0
      %5745 = vmatpush1.msra.mxu0 0.0
      %5746 = vmatprep.subr.mxu0 0.0
      %5747 = vmatpush1.msra.mxu0 0.0
      %5748 = vmatprep.subr.mxu0 0.0
      %5749 = vmatpush1.msra.mxu0 0.0
      %5750 = vmatprep.subr.mxu0 0.0
      %5751 = vmatpush1.msra.mxu0 0.0
      %5752 = vmatprep.subr.mxu0 0.0
      %5753 = vmatpush1.msra.mxu0 0.0
      %5754 = vmatprep.subr.mxu0 0.0
      %5755 = vmatpush1.msra.mxu0 0.0
      %5756 = vmatprep.subr.mxu0 0.0
      %5757 = vmatpush1.msra.mxu0 0.0
      %5758 = vmatprep.subr.mxu0 0.0
      %5759 = vmatpush1.msra.mxu0 0.0
      %5760 = vmatprep.subr.mxu0 0.0
      %5761 = vmatpush1.msra.mxu0 0.0
      %5762 = vmatprep.subr.mxu0 0.0
      %5763 = vmatpush1.msra.mxu0 0.0
      %5764 = vmatprep.subr.mxu0 0.0
      %5765 = vmatpush1.msra.mxu0 0.0
      %5766 = vmatprep.subr.mxu0 0.0
      %5767 = vmatpush1.msra.mxu0 0.0
      %5768 = vmatprep.subr.mxu0 0.0
      %5769 = vmatpush1.msra.mxu0 0.0
      %5770 = vmatprep.subr.mxu0 0.0
      %5771 = vmatpush1.msra.mxu0 0.0
      %5772 = vmatprep.subr.mxu0 0.0
      %5773 = vmatpush1.msra.mxu0 0.0
      %5774 = vmatprep.subr.mxu0 0.0
      %5775 = vmatpush1.msra.mxu0 0.0
      %5776 = vmatprep.mubr.f32.mxu0 0.0
      %v5777 = vand.u32 %v4864, 4294901760
      %5778 = vmatmul.mubr.f32.gmra.mrb[0].mxu0 %v5777
      %v5779 = vpop.f32.mrb[0].mxu0
      %v5780 = vadd.f32 %v5708, %v5779
      %v5781 = vpop.f32.mrb[0].mxu0
      %5782 = vdwg.mxu0
      %v5783 = vadd.f32 %v4844, %v5333
      %v5784 = vadd.f32 %v4845, %v5335
      %v5785 = vadd.f32 %v4846, %v5780
      %v5786 = vld [vmem:[%s165] sm:$0xff]
      %v5787 = vld [vmem:[%s165 + $0x8] sm:$0xf]
      %s5788 = scalar_lea.vmem %s0, 48
      %v5789 = vld [vmem:[%s5788] sm:$0xff]
      %v5792 = vcombine.high %v5786, %v5786
      %5793 = vrot.lane.b32.xlu0 %v5786, 92
      %v5794 = vpop.permute.xlu0 %5793
      %5795 = vrot.lane.b32.xlu0 %v5792, 92
      %v5796 = vpop.permute.xlu0 %5795
      %5797 = vrot.lane.b32.xlu0 %v5787, 92
      %v5798 = vpop.permute.xlu0 %5797
      %vm5799 = vcmask 752640
      %v5800 = vsel %vm5799, %v5794, %v5796
      %v5801 = vsel %vm5799, %v5796, %v5798
      %v5803 = vsel %vm188, %v5789, 0
      %v5805 = vsel %vm192, %v5800, 0
      %v5807 = vsel %vm192, %v5801, 0
      %v5809 = vsel %vm192, %v5798, 0
      %v5811 = vand.u32 %v5807, 4294901760
      %5812 = vmatprep.subr.mxu0 %v5811
      %v5813 = vand.u32 %v5805, 4294901760
      %5814 = vmatpush1.msra.mxu0 %v5813
      %5815 = vmatprep.subr.mxu0 0.0
      %5816 = vmatpush1.msra.mxu0 0.0
      %5817 = vmatprep.subr.mxu0 0.0
      %5818 = vmatpush1.msra.mxu0 0.0
      %5819 = vmatprep.subr.mxu0 0.0
      %5820 = vmatpush1.msra.mxu0 0.0
      %5821 = vmatprep.subr.mxu0 0.0
      %5822 = vmatpush1.msra.mxu0 0.0
      %5823 = vmatprep.subr.mxu0 0.0
      %5824 = vmatpush1.msra.mxu0 0.0
      %5825 = vmatprep.subr.mxu0 0.0
      %5826 = vmatpush1.msra.mxu0 0.0
      %5827 = vmatprep.subr.mxu0 0.0
      %5828 = vmatpush1.msra.mxu0 0.0
      %5829 = vmatprep.subr.mxu0 0.0
      %5830 = vmatpush1.msra.mxu0 0.0
      %5831 = vmatprep.subr.mxu0 0.0
      %5832 = vmatpush1.msra.mxu0 0.0
      %5833 = vmatprep.subr.mxu0 0.0
      %5834 = vmatpush1.msra.mxu0 0.0
      %5835 = vmatprep.subr.mxu0 0.0
      %5836 = vmatpush1.msra.mxu0 0.0
      %5837 = vmatprep.subr.mxu0 0.0
      %5838 = vmatpush1.msra.mxu0 0.0
      %5839 = vmatprep.subr.mxu0 0.0
      %5840 = vmatpush1.msra.mxu0 0.0
      %5841 = vmatprep.subr.mxu0 0.0
      %5842 = vmatpush1.msra.mxu0 0.0
      %5843 = vmatprep.subr.mxu0 0.0
      %5844 = vmatpush1.msra.mxu0 0.0
      %5845 = vmatprep.subr.mxu0 0.0
      %5846 = vmatpush1.msra.mxu0 0.0
      %5847 = vmatprep.subr.mxu0 0.0
      %5848 = vmatpush1.msra.mxu0 0.0
      %5849 = vmatprep.subr.mxu0 0.0
      %5850 = vmatpush1.msra.mxu0 0.0
      %5851 = vmatprep.subr.mxu0 0.0
      %5852 = vmatpush1.msra.mxu0 0.0
      %5853 = vmatprep.subr.mxu0 0.0
      %5854 = vmatpush1.msra.mxu0 0.0
      %5855 = vmatprep.subr.mxu0 0.0
      %5856 = vmatpush1.msra.mxu0 0.0
      %5857 = vmatprep.subr.mxu0 0.0
      %5858 = vmatpush1.msra.mxu0 0.0
      %5859 = vmatprep.subr.mxu0 0.0
      %5860 = vmatpush1.msra.mxu0 0.0
      %5861 = vmatprep.subr.mxu0 0.0
      %5862 = vmatpush1.msra.mxu0 0.0
      %5863 = vmatprep.subr.mxu0 0.0
      %5864 = vmatpush1.msra.mxu0 0.0
      %5865 = vmatprep.subr.mxu0 0.0
      %5866 = vmatpush1.msra.mxu0 0.0
      %5867 = vmatprep.subr.mxu0 0.0
      %5868 = vmatpush1.msra.mxu0 0.0
      %5869 = vmatprep.subr.mxu0 0.0
      %5870 = vmatpush1.msra.mxu0 0.0
      %5871 = vmatprep.subr.mxu0 0.0
      %5872 = vmatpush1.msra.mxu0 0.0
      %5873 = vmatprep.subr.mxu0 0.0
      %5874 = vmatpush1.msra.mxu0 0.0
      %5875 = vmatprep.subr.mxu0 0.0
      %5876 = vmatpush1.msra.mxu0 0.0
      %5877 = vmatprep.mubr.f32.mxu0 0.0
      %v5878 = vand.u32 %v5803, 4294901760
      %v5879 = vsub.f32 %v5803, %v5878
      %v5880 = vand.u32 %v5879, 4294901760
      %v5881 = vsub.f32 %v5879, %v5880
      %v5882 = vand.u32 %v5881, 4294901760
      %5883 = vmatmul.mubr.f32.gmra.mrb[0].mxu0 %v5882
      %v5884 = vpop.f32.mrb[0].mxu0
      %v5885 = vadd.f32 0.0, %v5884
      %v5886 = vpop.f32.mrb[0].mxu0
      %v5887 = vadd.f32 0.0, %v5886
      %5888 = vdwg.mxu0
      %v5889 = vand.u32 %v5807, 4294901760
      %v5890 = vsub.f32 %v5807, %v5889
      %v5891 = vand.u32 %v5890, 4294901760
      %v5892 = vsub.f32 %v5890, %v5891
      %v5893 = vand.u32 %v5892, 4294901760
      %5894 = vmatprep.subr.mxu0 %v5893
      %v5895 = vand.u32 %v5805, 4294901760
      %v5896 = vsub.f32 %v5805, %v5895
      %v5897 = vand.u32 %v5896, 4294901760
      %v5898 = vsub.f32 %v5896, %v5897
      %v5899 = vand.u32 %v5898, 4294901760
      %5900 = vmatpush1.msra.mxu0 %v5899
      %5901 = vmatprep.subr.mxu0 0.0
      %5902 = vmatpush1.msra.mxu0 0.0
      %5903 = vmatprep.subr.mxu0 0.0
      %5904 = vmatpush1.msra.mxu0 0.0
      %5905 = vmatprep.subr.mxu0 0.0
      %5906 = vmatpush1.msra.mxu0 0.0
      %5907 = vmatprep.subr.mxu0 0.0
      %5908 = vmatpush1.msra.mxu0 0.0
      %5909 = vmatprep.subr.mxu0 0.0
      %5910 = vmatpush1.msra.mxu0 0.0
      %5911 = vmatprep.subr.mxu0 0.0
      %5912 = vmatpush1.msra.mxu0 0.0
      %5913 = vmatprep.subr.mxu0 0.0
      %5914 = vmatpush1.msra.mxu0 0.0
      %5915 = vmatprep.subr.mxu0 0.0
      %5916 = vmatpush1.msra.mxu0 0.0
      %5917 = vmatprep.subr.mxu0 0.0
      %5918 = vmatpush1.msra.mxu0 0.0
      %5919 = vmatprep.subr.mxu0 0.0
      %5920 = vmatpush1.msra.mxu0 0.0
      %5921 = vmatprep.subr.mxu0 0.0
      %5922 = vmatpush1.msra.mxu0 0.0
      %5923 = vmatprep.subr.mxu0 0.0
      %5924 = vmatpush1.msra.mxu0 0.0
      %5925 = vmatprep.subr.mxu0 0.0
      %5926 = vmatpush1.msra.mxu0 0.0
      %5927 = vmatprep.subr.mxu0 0.0
      %5928 = vmatpush1.msra.mxu0 0.0
      %5929 = vmatprep.subr.mxu0 0.0
      %5930 = vmatpush1.msra.mxu0 0.0
      %5931 = vmatprep.subr.mxu0 0.0
      %5932 = vmatpush1.msra.mxu0 0.0
      %5933 = vmatprep.subr.mxu0 0.0
      %5934 = vmatpush1.msra.mxu0 0.0
      %5935 = vmatprep.subr.mxu0 0.0
      %5936 = vmatpush1.msra.mxu0 0.0
      %5937 = vmatprep.subr.mxu0 0.0
      %5938 = vmatpush1.msra.mxu0 0.0
      %5939 = vmatprep.subr.mxu0 0.0
      %5940 = vmatpush1.msra.mxu0 0.0
      %5941 = vmatprep.subr.mxu0 0.0
      %5942 = vmatpush1.msra.mxu0 0.0
      %5943 = vmatprep.subr.mxu0 0.0
      %5944 = vmatpush1.msra.mxu0 0.0
      %5945 = vmatprep.subr.mxu0 0.0
      %5946 = vmatpush1.msra.mxu0 0.0
      %5947 = vmatprep.subr.mxu0 0.0
      %5948 = vmatpush1.msra.mxu0 0.0
      %5949 = vmatprep.subr.mxu0 0.0
      %5950 = vmatpush1.msra.mxu0 0.0
      %5951 = vmatprep.subr.mxu0 0.0
      %5952 = vmatpush1.msra.mxu0 0.0
      %5953 = vmatprep.subr.mxu0 0.0
      %5954 = vmatpush1.msra.mxu0 0.0
      %5955 = vmatprep.subr.mxu0 0.0
      %5956 = vmatpush1.msra.mxu0 0.0
      %5957 = vmatprep.subr.mxu0 0.0
      %5958 = vmatpush1.msra.mxu0 0.0
      %5959 = vmatprep.subr.mxu0 0.0
      %5960 = vmatpush1.msra.mxu0 0.0
      %5961 = vmatprep.subr.mxu0 0.0
      %5962 = vmatpush1.msra.mxu0 0.0
      %5963 = vmatprep.mubr.f32.mxu0 0.0
      %v5964 = vand.u32 %v5803, 4294901760
      %5965 = vmatmul.mubr.f32.gmra.mrb[0].mxu0 %v5964
      %v5966 = vpop.f32.mrb[0].mxu0
      %v5967 = vadd.f32 %v5885, %v5966
      %v5968 = vpop.f32.mrb[0].mxu0
      %v5969 = vadd.f32 %v5887, %v5968
      %5970 = vdwg.mxu0
      %v5971 = vand.u32 %v5807, 4294901760
      %v5972 = vsub.f32 %v5807, %v5971
      %5973 = vmatprep.subr.mxu0 %v5972
      %v5974 = vand.u32 %v5805, 4294901760
      %v5975 = vsub.f32 %v5805, %v5974
      %5976 = vmatpush1.msra.mxu0 %v5975
      %5977 = vmatprep.subr.mxu0 0.0
      %5978 = vmatpush1.msra.mxu0 0.0
      %5979 = vmatprep.subr.mxu0 0.0
      %5980 = vmatpush1.msra.mxu0 0.0
      %5981 = vmatprep.subr.mxu0 0.0
      %5982 = vmatpush1.msra.mxu0 0.0
      %5983 = vmatprep.subr.mxu0 0.0
      %5984 = vmatpush1.msra.mxu0 0.0
      %5985 = vmatprep.subr.mxu0 0.0
      %5986 = vmatpush1.msra.mxu0 0.0
      %5987 = vmatprep.subr.mxu0 0.0
      %5988 = vmatpush1.msra.mxu0 0.0
      %5989 = vmatprep.subr.mxu0 0.0
      %5990 = vmatpush1.msra.mxu0 0.0
      %5991 = vmatprep.subr.mxu0 0.0
      %5992 = vmatpush1.msra.mxu0 0.0
      %5993 = vmatprep.subr.mxu0 0.0
      %5994 = vmatpush1.msra.mxu0 0.0
      %5995 = vmatprep.subr.mxu0 0.0
      %5996 = vmatpush1.msra.mxu0 0.0
      %5997 = vmatprep.subr.mxu0 0.0
      %5998 = vmatpush1.msra.mxu0 0.0
      %5999 = vmatprep.subr.mxu0 0.0
      %6000 = vmatpush1.msra.mxu0 0.0
      %6001 = vmatprep.subr.mxu0 0.0
      %6002 = vmatpush1.msra.mxu0 0.0
      %6003 = vmatprep.subr.mxu0 0.0
      %6004 = vmatpush1.msra.mxu0 0.0
      %6005 = vmatprep.subr.mxu0 0.0
      %6006 = vmatpush1.msra.mxu0 0.0
      %6007 = vmatprep.subr.mxu0 0.0
      %6008 = vmatpush1.msra.mxu0 0.0
      %6009 = vmatprep.subr.mxu0 0.0
      %6010 = vmatpush1.msra.mxu0 0.0
      %6011 = vmatprep.subr.mxu0 0.0
      %6012 = vmatpush1.msra.mxu0 0.0
      %6013 = vmatprep.subr.mxu0 0.0
      %6014 = vmatpush1.msra.mxu0 0.0
      %6015 = vmatprep.subr.mxu0 0.0
      %6016 = vmatpush1.msra.mxu0 0.0
      %6017 = vmatprep.subr.mxu0 0.0
      %6018 = vmatpush1.msra.mxu0 0.0
      %6019 = vmatprep.subr.mxu0 0.0
      %6020 = vmatpush1.msra.mxu0 0.0
      %6021 = vmatprep.subr.mxu0 0.0
      %6022 = vmatpush1.msra.mxu0 0.0
      %6023 = vmatprep.subr.mxu0 0.0
      %6024 = vmatpush1.msra.mxu0 0.0
      %6025 = vmatprep.subr.mxu0 0.0
      %6026 = vmatpush1.msra.mxu0 0.0
      %6027 = vmatprep.subr.mxu0 0.0
      %6028 = vmatpush1.msra.mxu0 0.0
      %6029 = vmatprep.subr.mxu0 0.0
      %6030 = vmatpush1.msra.mxu0 0.0
      %6031 = vmatprep.subr.mxu0 0.0
      %6032 = vmatpush1.msra.mxu0 0.0
      %6033 = vmatprep.subr.mxu0 0.0
      %6034 = vmatpush1.msra.mxu0 0.0
      %6035 = vmatprep.subr.mxu0 0.0
      %6036 = vmatpush1.msra.mxu0 0.0
      %6037 = vmatprep.subr.mxu0 0.0
      %6038 = vmatpush1.msra.mxu0 0.0
      %6039 = vmatprep.mubr.f32.mxu0 0.0
      %v6040 = vand.u32 %v5803, 4294901760
      %v6041 = vsub.f32 %v5803, %v6040
      %6042 = vmatmul.mubr.f32.gmra.mrb[0].mxu0 %v6041
      %v6043 = vpop.f32.mrb[0].mxu0
      %v6044 = vadd.f32 %v5967, %v6043
      %v6045 = vpop.f32.mrb[0].mxu0
      %v6046 = vadd.f32 %v5969, %v6045
      %6047 = vdwg.mxu0
      %v6048 = vand.u32 %v5807, 4294901760
      %6049 = vmatprep.subr.mxu0 %v6048
      %v6050 = vand.u32 %v5805, 4294901760
      %6051 = vmatpush1.msra.mxu0 %v6050
      %6052 = vmatprep.subr.mxu0 0.0
      %6053 = vmatpush1.msra.mxu0 0.0
      %6054 = vmatprep.subr.mxu0 0.0
      %6055 = vmatpush1.msra.mxu0 0.0
      %6056 = vmatprep.subr.mxu0 0.0
      %6057 = vmatpush1.msra.mxu0 0.0
      %6058 = vmatprep.subr.mxu0 0.0
      %6059 = vmatpush1.msra.mxu0 0.0
      %6060 = vmatprep.subr.mxu0 0.0
      %6061 = vmatpush1.msra.mxu0 0.0
      %6062 = vmatprep.subr.mxu0 0.0
      %6063 = vmatpush1.msra.mxu0 0.0
      %6064 = vmatprep.subr.mxu0 0.0
      %6065 = vmatpush1.msra.mxu0 0.0
      %6066 = vmatprep.subr.mxu0 0.0
      %6067 = vmatpush1.msra.mxu0 0.0
      %6068 = vmatprep.subr.mxu0 0.0
      %6069 = vmatpush1.msra.mxu0 0.0
      %6070 = vmatprep.subr.mxu0 0.0
      %6071 = vmatpush1.msra.mxu0 0.0
      %6072 = vmatprep.subr.mxu0 0.0
      %6073 = vmatpush1.msra.mxu0 0.0
      %6074 = vmatprep.subr.mxu0 0.0
      %6075 = vmatpush1.msra.mxu0 0.0
      %6076 = vmatprep.subr.mxu0 0.0
      %6077 = vmatpush1.msra.mxu0 0.0
      %6078 = vmatprep.subr.mxu0 0.0
      %6079 = vmatpush1.msra.mxu0 0.0
      %6080 = vmatprep.subr.mxu0 0.0
      %6081 = vmatpush1.msra.mxu0 0.0
      %6082 = vmatprep.subr.mxu0 0.0
      %6083 = vmatpush1.msra.mxu0 0.0
      %6084 = vmatprep.subr.mxu0 0.0
      %6085 = vmatpush1.msra.mxu0 0.0
      %6086 = vmatprep.subr.mxu0 0.0
      %6087 = vmatpush1.msra.mxu0 0.0
      %6088 = vmatprep.subr.mxu0 0.0
      %6089 = vmatpush1.msra.mxu0 0.0
      %6090 = vmatprep.subr.mxu0 0.0
      %6091 = vmatpush1.msra.mxu0 0.0
      %6092 = vmatprep.subr.mxu0 0.0
      %6093 = vmatpush1.msra.mxu0 0.0
      %6094 = vmatprep.subr.mxu0 0.0
      %6095 = vmatpush1.msra.mxu0 0.0
      %6096 = vmatprep.subr.mxu0 0.0
      %6097 = vmatpush1.msra.mxu0 0.0
      %6098 = vmatprep.subr.mxu0 0.0
      %6099 = vmatpush1.msra.mxu0 0.0
      %6100 = vmatprep.subr.mxu0 0.0
      %6101 = vmatpush1.msra.mxu0 0.0
      %6102 = vmatprep.subr.mxu0 0.0
      %6103 = vmatpush1.msra.mxu0 0.0
      %6104 = vmatprep.subr.mxu0 0.0
      %6105 = vmatpush1.msra.mxu0 0.0
      %6106 = vmatprep.subr.mxu0 0.0
      %6107 = vmatpush1.msra.mxu0 0.0
      %6108 = vmatprep.subr.mxu0 0.0
      %6109 = vmatpush1.msra.mxu0 0.0
      %6110 = vmatprep.subr.mxu0 0.0
      %6111 = vmatpush1.msra.mxu0 0.0
      %6112 = vmatprep.subr.mxu0 0.0
      %6113 = vmatpush1.msra.mxu0 0.0
      %6114 = vmatprep.mubr.f32.mxu0 0.0
      %v6115 = vand.u32 %v5803, 4294901760
      %v6116 = vsub.f32 %v5803, %v6115
      %v6117 = vand.u32 %v6116, 4294901760
      %6118 = vmatmul.mubr.f32.gmra.mrb[0].mxu0 %v6117
      %v6119 = vpop.f32.mrb[0].mxu0
      %v6120 = vadd.f32 %v6044, %v6119
      %v6121 = vpop.f32.mrb[0].mxu0
      %v6122 = vadd.f32 %v6046, %v6121
      %6123 = vdwg.mxu0
      %v6124 = vand.u32 %v5807, 4294901760
      %v6125 = vsub.f32 %v5807, %v6124
      %v6126 = vand.u32 %v6125, 4294901760
      %6127 = vmatprep.subr.mxu0 %v6126
      %v6128 = vand.u32 %v5805, 4294901760
      %v6129 = vsub.f32 %v5805, %v6128
      %v6130 = vand.u32 %v6129, 4294901760
      %6131 = vmatpush1.msra.mxu0 %v6130
      %6132 = vmatprep.subr.mxu0 0.0
      %6133 = vmatpush1.msra.mxu0 0.0
      %6134 = vmatprep.subr.mxu0 0.0
      %6135 = vmatpush1.msra.mxu0 0.0
      %6136 = vmatprep.subr.mxu0 0.0
      %6137 = vmatpush1.msra.mxu0 0.0
      %6138 = vmatprep.subr.mxu0 0.0
      %6139 = vmatpush1.msra.mxu0 0.0
      %6140 = vmatprep.subr.mxu0 0.0
      %6141 = vmatpush1.msra.mxu0 0.0
      %6142 = vmatprep.subr.mxu0 0.0
      %6143 = vmatpush1.msra.mxu0 0.0
      %6144 = vmatprep.subr.mxu0 0.0
      %6145 = vmatpush1.msra.mxu0 0.0
      %6146 = vmatprep.subr.mxu0 0.0
      %6147 = vmatpush1.msra.mxu0 0.0
      %6148 = vmatprep.subr.mxu0 0.0
      %6149 = vmatpush1.msra.mxu0 0.0
      %6150 = vmatprep.subr.mxu0 0.0
      %6151 = vmatpush1.msra.mxu0 0.0
      %6152 = vmatprep.subr.mxu0 0.0
      %6153 = vmatpush1.msra.mxu0 0.0
      %6154 = vmatprep.subr.mxu0 0.0
      %6155 = vmatpush1.msra.mxu0 0.0
      %6156 = vmatprep.subr.mxu0 0.0
      %6157 = vmatpush1.msra.mxu0 0.0
      %6158 = vmatprep.subr.mxu0 0.0
      %6159 = vmatpush1.msra.mxu0 0.0
      %6160 = vmatprep.subr.mxu0 0.0
      %6161 = vmatpush1.msra.mxu0 0.0
      %6162 = vmatprep.subr.mxu0 0.0
      %6163 = vmatpush1.msra.mxu0 0.0
      %6164 = vmatprep.subr.mxu0 0.0
      %6165 = vmatpush1.msra.mxu0 0.0
      %6166 = vmatprep.subr.mxu0 0.0
      %6167 = vmatpush1.msra.mxu0 0.0
      %6168 = vmatprep.subr.mxu0 0.0
      %6169 = vmatpush1.msra.mxu0 0.0
      %6170 = vmatprep.subr.mxu0 0.0
      %6171 = vmatpush1.msra.mxu0 0.0
      %6172 = vmatprep.subr.mxu0 0.0
      %6173 = vmatpush1.msra.mxu0 0.0
      %6174 = vmatprep.subr.mxu0 0.0
      %6175 = vmatpush1.msra.mxu0 0.0
      %6176 = vmatprep.subr.mxu0 0.0
      %6177 = vmatpush1.msra.mxu0 0.0
      %6178 = vmatprep.subr.mxu0 0.0
      %6179 = vmatpush1.msra.mxu0 0.0
      %6180 = vmatprep.subr.mxu0 0.0
      %6181 = vmatpush1.msra.mxu0 0.0
      %6182 = vmatprep.subr.mxu0 0.0
      %6183 = vmatpush1.msra.mxu0 0.0
      %6184 = vmatprep.subr.mxu0 0.0
      %6185 = vmatpush1.msra.mxu0 0.0
      %6186 = vmatprep.subr.mxu0 0.0
      %6187 = vmatpush1.msra.mxu0 0.0
      %6188 = vmatprep.subr.mxu0 0.0
      %6189 = vmatpush1.msra.mxu0 0.0
      %6190 = vmatprep.subr.mxu0 0.0
      %6191 = vmatpush1.msra.mxu0 0.0
      %6192 = vmatprep.subr.mxu0 0.0
      %6193 = vmatpush1.msra.mxu0 0.0
      %6194 = vmatprep.mubr.f32.mxu0 0.0
      %v6195 = vand.u32 %v5803, 4294901760
      %6196 = vmatmul.mubr.f32.gmra.mrb[0].mxu0 %v6195
      %v6197 = vpop.f32.mrb[0].mxu0
      %v6198 = vadd.f32 %v6120, %v6197
      %v6199 = vpop.f32.mrb[0].mxu0
      %v6200 = vadd.f32 %v6122, %v6199
      %6201 = vdwg.mxu0
      %v6202 = vand.u32 %v5807, 4294901760
      %6203 = vmatprep.subr.mxu0 %v6202
      %v6204 = vand.u32 %v5805, 4294901760
      %6205 = vmatpush1.msra.mxu0 %v6204
      %6206 = vmatprep.subr.mxu0 0.0
      %6207 = vmatpush1.msra.mxu0 0.0
      %6208 = vmatprep.subr.mxu0 0.0
      %6209 = vmatpush1.msra.mxu0 0.0
      %6210 = vmatprep.subr.mxu0 0.0
      %6211 = vmatpush1.msra.mxu0 0.0
      %6212 = vmatprep.subr.mxu0 0.0
      %6213 = vmatpush1.msra.mxu0 0.0
      %6214 = vmatprep.subr.mxu0 0.0
      %6215 = vmatpush1.msra.mxu0 0.0
      %6216 = vmatprep.subr.mxu0 0.0
      %6217 = vmatpush1.msra.mxu0 0.0
      %6218 = vmatprep.subr.mxu0 0.0
      %6219 = vmatpush1.msra.mxu0 0.0
      %6220 = vmatprep.subr.mxu0 0.0
      %6221 = vmatpush1.msra.mxu0 0.0
      %6222 = vmatprep.subr.mxu0 0.0
      %6223 = vmatpush1.msra.mxu0 0.0
      %6224 = vmatprep.subr.mxu0 0.0
      %6225 = vmatpush1.msra.mxu0 0.0
      %6226 = vmatprep.subr.mxu0 0.0
      %6227 = vmatpush1.msra.mxu0 0.0
      %6228 = vmatprep.subr.mxu0 0.0
      %6229 = vmatpush1.msra.mxu0 0.0
      %6230 = vmatprep.subr.mxu0 0.0
      %6231 = vmatpush1.msra.mxu0 0.0
      %6232 = vmatprep.subr.mxu0 0.0
      %6233 = vmatpush1.msra.mxu0 0.0
      %6234 = vmatprep.subr.mxu0 0.0
      %6235 = vmatpush1.msra.mxu0 0.0
      %6236 = vmatprep.subr.mxu0 0.0
      %6237 = vmatpush1.msra.mxu0 0.0
      %6238 = vmatprep.subr.mxu0 0.0
      %6239 = vmatpush1.msra.mxu0 0.0
      %6240 = vmatprep.subr.mxu0 0.0
      %6241 = vmatpush1.msra.mxu0 0.0
      %6242 = vmatprep.subr.mxu0 0.0
      %6243 = vmatpush1.msra.mxu0 0.0
      %6244 = vmatprep.subr.mxu0 0.0
      %6245 = vmatpush1.msra.mxu0 0.0
      %6246 = vmatprep.subr.mxu0 0.0
      %6247 = vmatpush1.msra.mxu0 0.0
      %6248 = vmatprep.subr.mxu0 0.0
      %6249 = vmatpush1.msra.mxu0 0.0
      %6250 = vmatprep.subr.mxu0 0.0
      %6251 = vmatpush1.msra.mxu0 0.0
      %6252 = vmatprep.subr.mxu0 0.0
      %6253 = vmatpush1.msra.mxu0 0.0
      %6254 = vmatprep.subr.mxu0 0.0
      %6255 = vmatpush1.msra.mxu0 0.0
      %6256 = vmatprep.subr.mxu0 0.0
      %6257 = vmatpush1.msra.mxu0 0.0
      %6258 = vmatprep.subr.mxu0 0.0
      %6259 = vmatpush1.msra.mxu0 0.0
      %6260 = vmatprep.subr.mxu0 0.0
      %6261 = vmatpush1.msra.mxu0 0.0
      %6262 = vmatprep.subr.mxu0 0.0
      %6263 = vmatpush1.msra.mxu0 0.0
      %6264 = vmatprep.subr.mxu0 0.0
      %6265 = vmatpush1.msra.mxu0 0.0
      %6266 = vmatprep.subr.mxu0 0.0
      %6267 = vmatpush1.msra.mxu0 0.0
      %6268 = vmatprep.mubr.f32.mxu0 0.0
      %v6269 = vand.u32 %v5803, 4294901760
      %6270 = vmatmul.mubr.f32.gmra.mrb[0].mxu0 %v6269
      %v6271 = vpop.f32.mrb[0].mxu0
      %v6272 = vadd.f32 %v6198, %v6271
      %v6273 = vpop.f32.mrb[0].mxu0
      %v6274 = vadd.f32 %v6200, %v6273
      %6275 = vdwg.mxu0
      %6276 = vmatprep.subr.mxu0 0.0
      %v6277 = vand.u32 %v5809, 4294901760
      %6278 = vmatpush1.msra.mxu0 %v6277
      %6279 = vmatprep.subr.mxu0 0.0
      %6280 = vmatpush1.msra.mxu0 0.0
      %6281 = vmatprep.subr.mxu0 0.0
      %6282 = vmatpush1.msra.mxu0 0.0
      %6283 = vmatprep.subr.mxu0 0.0
      %6284 = vmatpush1.msra.mxu0 0.0
      %6285 = vmatprep.subr.mxu0 0.0
      %6286 = vmatpush1.msra.mxu0 0.0
      %6287 = vmatprep.subr.mxu0 0.0
      %6288 = vmatpush1.msra.mxu0 0.0
      %6289 = vmatprep.subr.mxu0 0.0
      %6290 = vmatpush1.msra.mxu0 0.0
      %6291 = vmatprep.subr.mxu0 0.0
      %6292 = vmatpush1.msra.mxu0 0.0
      %6293 = vmatprep.subr.mxu0 0.0
      %6294 = vmatpush1.msra.mxu0 0.0
      %6295 = vmatprep.subr.mxu0 0.0
      %6296 = vmatpush1.msra.mxu0 0.0
      %6297 = vmatprep.subr.mxu0 0.0
      %6298 = vmatpush1.msra.mxu0 0.0
      %6299 = vmatprep.subr.mxu0 0.0
      %6300 = vmatpush1.msra.mxu0 0.0
      %6301 = vmatprep.subr.mxu0 0.0
      %6302 = vmatpush1.msra.mxu0 0.0
      %6303 = vmatprep.subr.mxu0 0.0
      %6304 = vmatpush1.msra.mxu0 0.0
      %6305 = vmatprep.subr.mxu0 0.0
      %6306 = vmatpush1.msra.mxu0 0.0
      %6307 = vmatprep.subr.mxu0 0.0
      %6308 = vmatpush1.msra.mxu0 0.0
      %6309 = vmatprep.subr.mxu0 0.0
      %6310 = vmatpush1.msra.mxu0 0.0
      %6311 = vmatprep.subr.mxu0 0.0
      %6312 = vmatpush1.msra.mxu0 0.0
      %6313 = vmatprep.subr.mxu0 0.0
      %6314 = vmatpush1.msra.mxu0 0.0
      %6315 = vmatprep.subr.mxu0 0.0
      %6316 = vmatpush1.msra.mxu0 0.0
      %6317 = vmatprep.subr.mxu0 0.0
      %6318 = vmatpush1.msra.mxu0 0.0
      %6319 = vmatprep.subr.mxu0 0.0
      %6320 = vmatpush1.msra.mxu0 0.0
      %6321 = vmatprep.subr.mxu0 0.0
      %6322 = vmatpush1.msra.mxu0 0.0
      %6323 = vmatprep.subr.mxu0 0.0
      %6324 = vmatpush1.msra.mxu0 0.0
      %6325 = vmatprep.subr.mxu0 0.0
      %6326 = vmatpush1.msra.mxu0 0.0
      %6327 = vmatprep.subr.mxu0 0.0
      %6328 = vmatpush1.msra.mxu0 0.0
      %6329 = vmatprep.subr.mxu0 0.0
      %6330 = vmatpush1.msra.mxu0 0.0
      %6331 = vmatprep.subr.mxu0 0.0
      %6332 = vmatpush1.msra.mxu0 0.0
      %6333 = vmatprep.subr.mxu0 0.0
      %6334 = vmatpush1.msra.mxu0 0.0
      %6335 = vmatprep.subr.mxu0 0.0
      %6336 = vmatpush1.msra.mxu0 0.0
      %6337 = vmatprep.subr.mxu0 0.0
      %6338 = vmatpush1.msra.mxu0 0.0
      %6339 = vmatprep.subr.mxu0 0.0
      %6340 = vmatpush1.msra.mxu0 0.0
      %6341 = vmatprep.mubr.f32.mxu0 0.0
      %v6342 = vand.u32 %v5803, 4294901760
      %v6343 = vsub.f32 %v5803, %v6342
      %v6344 = vand.u32 %v6343, 4294901760
      %v6345 = vsub.f32 %v6343, %v6344
      %v6346 = vand.u32 %v6345, 4294901760
      %6347 = vmatmul.mubr.f32.gmra.mrb[0].mxu0 %v6346
      %v6348 = vpop.f32.mrb[0].mxu0
      %v6349 = vadd.f32 0.0, %v6348
      %v6350 = vpop.f32.mrb[0].mxu0
      %6351 = vdwg.mxu0
      %6352 = vmatprep.subr.mxu0 0.0
      %v6353 = vand.u32 %v5809, 4294901760
      %v6354 = vsub.f32 %v5809, %v6353
      %v6355 = vand.u32 %v6354, 4294901760
      %v6356 = vsub.f32 %v6354, %v6355
      %v6357 = vand.u32 %v6356, 4294901760
      %6358 = vmatpush1.msra.mxu0 %v6357
      %6359 = vmatprep.subr.mxu0 0.0
      %6360 = vmatpush1.msra.mxu0 0.0
      %6361 = vmatprep.subr.mxu0 0.0
      %6362 = vmatpush1.msra.mxu0 0.0
      %6363 = vmatprep.subr.mxu0 0.0
      %6364 = vmatpush1.msra.mxu0 0.0
      %6365 = vmatprep.subr.mxu0 0.0
      %6366 = vmatpush1.msra.mxu0 0.0
      %6367 = vmatprep.subr.mxu0 0.0
      %6368 = vmatpush1.msra.mxu0 0.0
      %6369 = vmatprep.subr.mxu0 0.0
      %6370 = vmatpush1.msra.mxu0 0.0
      %6371 = vmatprep.subr.mxu0 0.0
      %6372 = vmatpush1.msra.mxu0 0.0
      %6373 = vmatprep.subr.mxu0 0.0
      %6374 = vmatpush1.msra.mxu0 0.0
      %6375 = vmatprep.subr.mxu0 0.0
      %6376 = vmatpush1.msra.mxu0 0.0
      %6377 = vmatprep.subr.mxu0 0.0
      %6378 = vmatpush1.msra.mxu0 0.0
      %6379 = vmatprep.subr.mxu0 0.0
      %6380 = vmatpush1.msra.mxu0 0.0
      %6381 = vmatprep.subr.mxu0 0.0
      %6382 = vmatpush1.msra.mxu0 0.0
      %6383 = vmatprep.subr.mxu0 0.0
      %6384 = vmatpush1.msra.mxu0 0.0
      %6385 = vmatprep.subr.mxu0 0.0
      %6386 = vmatpush1.msra.mxu0 0.0
      %6387 = vmatprep.subr.mxu0 0.0
      %6388 = vmatpush1.msra.mxu0 0.0
      %6389 = vmatprep.subr.mxu0 0.0
      %6390 = vmatpush1.msra.mxu0 0.0
      %6391 = vmatprep.subr.mxu0 0.0
      %6392 = vmatpush1.msra.mxu0 0.0
      %6393 = vmatprep.subr.mxu0 0.0
      %6394 = vmatpush1.msra.mxu0 0.0
      %6395 = vmatprep.subr.mxu0 0.0
      %6396 = vmatpush1.msra.mxu0 0.0
      %6397 = vmatprep.subr.mxu0 0.0
      %6398 = vmatpush1.msra.mxu0 0.0
      %6399 = vmatprep.subr.mxu0 0.0
      %6400 = vmatpush1.msra.mxu0 0.0
      %6401 = vmatprep.subr.mxu0 0.0
      %6402 = vmatpush1.msra.mxu0 0.0
      %6403 = vmatprep.subr.mxu0 0.0
      %6404 = vmatpush1.msra.mxu0 0.0
      %6405 = vmatprep.subr.mxu0 0.0
      %6406 = vmatpush1.msra.mxu0 0.0
      %6407 = vmatprep.subr.mxu0 0.0
      %6408 = vmatpush1.msra.mxu0 0.0
      %6409 = vmatprep.subr.mxu0 0.0
      %6410 = vmatpush1.msra.mxu0 0.0
      %6411 = vmatprep.subr.mxu0 0.0
      %6412 = vmatpush1.msra.mxu0 0.0
      %6413 = vmatprep.subr.mxu0 0.0
      %6414 = vmatpush1.msra.mxu0 0.0
      %6415 = vmatprep.subr.mxu0 0.0
      %6416 = vmatpush1.msra.mxu0 0.0
      %6417 = vmatprep.subr.mxu0 0.0
      %6418 = vmatpush1.msra.mxu0 0.0
      %6419 = vmatprep.subr.mxu0 0.0
      %6420 = vmatpush1.msra.mxu0 0.0
      %6421 = vmatprep.mubr.f32.mxu0 0.0
      %v6422 = vand.u32 %v5803, 4294901760
      %6423 = vmatmul.mubr.f32.gmra.mrb[0].mxu0 %v6422
      %v6424 = vpop.f32.mrb[0].mxu0
      %v6425 = vadd.f32 %v6349, %v6424
      %v6426 = vpop.f32.mrb[0].mxu0
      %6427 = vdwg.mxu0
      %6428 = vmatprep.subr.mxu0 0.0
      %v6429 = vand.u32 %v5809, 4294901760
      %v6430 = vsub.f32 %v5809, %v6429
      %6431 = vmatpush1.msra.mxu0 %v6430
      %6432 = vmatprep.subr.mxu0 0.0
      %6433 = vmatpush1.msra.mxu0 0.0
      %6434 = vmatprep.subr.mxu0 0.0
      %6435 = vmatpush1.msra.mxu0 0.0
      %6436 = vmatprep.subr.mxu0 0.0
      %6437 = vmatpush1.msra.mxu0 0.0
      %6438 = vmatprep.subr.mxu0 0.0
      %6439 = vmatpush1.msra.mxu0 0.0
      %6440 = vmatprep.subr.mxu0 0.0
      %6441 = vmatpush1.msra.mxu0 0.0
      %6442 = vmatprep.subr.mxu0 0.0
      %6443 = vmatpush1.msra.mxu0 0.0
      %6444 = vmatprep.subr.mxu0 0.0
      %6445 = vmatpush1.msra.mxu0 0.0
      %6446 = vmatprep.subr.mxu0 0.0
      %6447 = vmatpush1.msra.mxu0 0.0
      %6448 = vmatprep.subr.mxu0 0.0
      %6449 = vmatpush1.msra.mxu0 0.0
      %6450 = vmatprep.subr.mxu0 0.0
      %6451 = vmatpush1.msra.mxu0 0.0
      %6452 = vmatprep.subr.mxu0 0.0
      %6453 = vmatpush1.msra.mxu0 0.0
      %6454 = vmatprep.subr.mxu0 0.0
      %6455 = vmatpush1.msra.mxu0 0.0
      %6456 = vmatprep.subr.mxu0 0.0
      %6457 = vmatpush1.msra.mxu0 0.0
      %6458 = vmatprep.subr.mxu0 0.0
      %6459 = vmatpush1.msra.mxu0 0.0
      %6460 = vmatprep.subr.mxu0 0.0
      %6461 = vmatpush1.msra.mxu0 0.0
      %6462 = vmatprep.subr.mxu0 0.0
      %6463 = vmatpush1.msra.mxu0 0.0
      %6464 = vmatprep.subr.mxu0 0.0
      %6465 = vmatpush1.msra.mxu0 0.0
      %6466 = vmatprep.subr.mxu0 0.0
      %6467 = vmatpush1.msra.mxu0 0.0
      %6468 = vmatprep.subr.mxu0 0.0
      %6469 = vmatpush1.msra.mxu0 0.0
      %6470 = vmatprep.subr.mxu0 0.0
      %6471 = vmatpush1.msra.mxu0 0.0
      %6472 = vmatprep.subr.mxu0 0.0
      %6473 = vmatpush1.msra.mxu0 0.0
      %6474 = vmatprep.subr.mxu0 0.0
      %6475 = vmatpush1.msra.mxu0 0.0
      %6476 = vmatprep.subr.mxu0 0.0
      %6477 = vmatpush1.msra.mxu0 0.0
      %6478 = vmatprep.subr.mxu0 0.0
      %6479 = vmatpush1.msra.mxu0 0.0
      %6480 = vmatprep.subr.mxu0 0.0
      %6481 = vmatpush1.msra.mxu0 0.0
      %6482 = vmatprep.subr.mxu0 0.0
      %6483 = vmatpush1.msra.mxu0 0.0
      %6484 = vmatprep.subr.mxu0 0.0
      %6485 = vmatpush1.msra.mxu0 0.0
      %6486 = vmatprep.subr.mxu0 0.0
      %6487 = vmatpush1.msra.mxu0 0.0
      %6488 = vmatprep.subr.mxu0 0.0
      %6489 = vmatpush1.msra.mxu0 0.0
      %6490 = vmatprep.subr.mxu0 0.0
      %6491 = vmatpush1.msra.mxu0 0.0
      %6492 = vmatprep.subr.mxu0 0.0
      %6493 = vmatpush1.msra.mxu0 0.0
      %6494 = vmatprep.mubr.f32.mxu0 0.0
      %v6495 = vand.u32 %v5803, 4294901760
      %v6496 = vsub.f32 %v5803, %v6495
      %6497 = vmatmul.mubr.f32.gmra.mrb[0].mxu0 %v6496
      %v6498 = vpop.f32.mrb[0].mxu0
      %v6499 = vadd.f32 %v6425, %v6498
      %v6500 = vpop.f32.mrb[0].mxu0
      %6501 = vdwg.mxu0
      %6502 = vmatprep.subr.mxu0 0.0
      %v6503 = vand.u32 %v5809, 4294901760
      %6504 = vmatpush1.msra.mxu0 %v6503
      %6505 = vmatprep.subr.mxu0 0.0
      %6506 = vmatpush1.msra.mxu0 0.0
      %6507 = vmatprep.subr.mxu0 0.0
      %6508 = vmatpush1.msra.mxu0 0.0
      %6509 = vmatprep.subr.mxu0 0.0
      %6510 = vmatpush1.msra.mxu0 0.0
      %6511 = vmatprep.subr.mxu0 0.0
      %6512 = vmatpush1.msra.mxu0 0.0
      %6513 = vmatprep.subr.mxu0 0.0
      %6514 = vmatpush1.msra.mxu0 0.0
      %6515 = vmatprep.subr.mxu0 0.0
      %6516 = vmatpush1.msra.mxu0 0.0
      %6517 = vmatprep.subr.mxu0 0.0
      %6518 = vmatpush1.msra.mxu0 0.0
      %6519 = vmatprep.subr.mxu0 0.0
      %6520 = vmatpush1.msra.mxu0 0.0
      %6521 = vmatprep.subr.mxu0 0.0
      %6522 = vmatpush1.msra.mxu0 0.0
      %6523 = vmatprep.subr.mxu0 0.0
      %6524 = vmatpush1.msra.mxu0 0.0
      %6525 = vmatprep.subr.mxu0 0.0
      %6526 = vmatpush1.msra.mxu0 0.0
      %6527 = vmatprep.subr.mxu0 0.0
      %6528 = vmatpush1.msra.mxu0 0.0
      %6529 = vmatprep.subr.mxu0 0.0
      %6530 = vmatpush1.msra.mxu0 0.0
      %6531 = vmatprep.subr.mxu0 0.0
      %6532 = vmatpush1.msra.mxu0 0.0
      %6533 = vmatprep.subr.mxu0 0.0
      %6534 = vmatpush1.msra.mxu0 0.0
      %6535 = vmatprep.subr.mxu0 0.0
      %6536 = vmatpush1.msra.mxu0 0.0
      %6537 = vmatprep.subr.mxu0 0.0
      %6538 = vmatpush1.msra.mxu0 0.0
      %6539 = vmatprep.subr.mxu0 0.0
      %6540 = vmatpush1.msra.mxu0 0.0
      %6541 = vmatprep.subr.mxu0 0.0
      %6542 = vmatpush1.msra.mxu0 0.0
      %6543 = vmatprep.subr.mxu0 0.0
      %6544 = vmatpush1.msra.mxu0 0.0
      %6545 = vmatprep.subr.mxu0 0.0
      %6546 = vmatpush1.msra.mxu0 0.0
      %6547 = vmatprep.subr.mxu0 0.0
      %6548 = vmatpush1.msra.mxu0 0.0
      %6549 = vmatprep.subr.mxu0 0.0
      %6550 = vmatpush1.msra.mxu0 0.0
      %6551 = vmatprep.subr.mxu0 0.0
      %6552 = vmatpush1.msra.mxu0 0.0
      %6553 = vmatprep.subr.mxu0 0.0
      %6554 = vmatpush1.msra.mxu0 0.0
      %6555 = vmatprep.subr.mxu0 0.0
      %6556 = vmatpush1.msra.mxu0 0.0
      %6557 = vmatprep.subr.mxu0 0.0
      %6558 = vmatpush1.msra.mxu0 0.0
      %6559 = vmatprep.subr.mxu0 0.0
      %6560 = vmatpush1.msra.mxu0 0.0
      %6561 = vmatprep.subr.mxu0 0.0
      %6562 = vmatpush1.msra.mxu0 0.0
      %6563 = vmatprep.subr.mxu0 0.0
      %6564 = vmatpush1.msra.mxu0 0.0
      %6565 = vmatprep.subr.mxu0 0.0
      %6566 = vmatpush1.msra.mxu0 0.0
      %6567 = vmatprep.mubr.f32.mxu0 0.0
      %v6568 = vand.u32 %v5803, 4294901760
      %v6569 = vsub.f32 %v5803, %v6568
      %v6570 = vand.u32 %v6569, 4294901760
      %6571 = vmatmul.mubr.f32.gmra.mrb[0].mxu0 %v6570
      %v6572 = vpop.f32.mrb[0].mxu0
      %v6573 = vadd.f32 %v6499, %v6572
      %v6574 = vpop.f32.mrb[0].mxu0
      %6575 = vdwg.mxu0
      %6576 = vmatprep.subr.mxu0 0.0
      %v6577 = vand.u32 %v5809, 4294901760
      %v6578 = vsub.f32 %v5809, %v6577
      %v6579 = vand.u32 %v6578, 4294901760
      %6580 = vmatpush1.msra.mxu0 %v6579
      %6581 = vmatprep.subr.mxu0 0.0
      %6582 = vmatpush1.msra.mxu0 0.0
      %6583 = vmatprep.subr.mxu0 0.0
      %6584 = vmatpush1.msra.mxu0 0.0
      %6585 = vmatprep.subr.mxu0 0.0
      %6586 = vmatpush1.msra.mxu0 0.0
      %6587 = vmatprep.subr.mxu0 0.0
      %6588 = vmatpush1.msra.mxu0 0.0
      %6589 = vmatprep.subr.mxu0 0.0
      %6590 = vmatpush1.msra.mxu0 0.0
      %6591 = vmatprep.subr.mxu0 0.0
      %6592 = vmatpush1.msra.mxu0 0.0
      %6593 = vmatprep.subr.mxu0 0.0
      %6594 = vmatpush1.msra.mxu0 0.0
      %6595 = vmatprep.subr.mxu0 0.0
      %6596 = vmatpush1.msra.mxu0 0.0
      %6597 = vmatprep.subr.mxu0 0.0
      %6598 = vmatpush1.msra.mxu0 0.0
      %6599 = vmatprep.subr.mxu0 0.0
      %6600 = vmatpush1.msra.mxu0 0.0
      %6601 = vmatprep.subr.mxu0 0.0
      %6602 = vmatpush1.msra.mxu0 0.0
      %6603 = vmatprep.subr.mxu0 0.0
      %6604 = vmatpush1.msra.mxu0 0.0
      %6605 = vmatprep.subr.mxu0 0.0
      %6606 = vmatpush1.msra.mxu0 0.0
      %6607 = vmatprep.subr.mxu0 0.0
      %6608 = vmatpush1.msra.mxu0 0.0
      %6609 = vmatprep.subr.mxu0 0.0
      %6610 = vmatpush1.msra.mxu0 0.0
      %6611 = vmatprep.subr.mxu0 0.0
      %6612 = vmatpush1.msra.mxu0 0.0
      %6613 = vmatprep.subr.mxu0 0.0
      %6614 = vmatpush1.msra.mxu0 0.0
      %6615 = vmatprep.subr.mxu0 0.0
      %6616 = vmatpush1.msra.mxu0 0.0
      %6617 = vmatprep.subr.mxu0 0.0
      %6618 = vmatpush1.msra.mxu0 0.0
      %6619 = vmatprep.subr.mxu0 0.0
      %6620 = vmatpush1.msra.mxu0 0.0
      %6621 = vmatprep.subr.mxu0 0.0
      %6622 = vmatpush1.msra.mxu0 0.0
      %6623 = vmatprep.subr.mxu0 0.0
      %6624 = vmatpush1.msra.mxu0 0.0
      %6625 = vmatprep.subr.mxu0 0.0
      %6626 = vmatpush1.msra.mxu0 0.0
      %6627 = vmatprep.subr.mxu0 0.0
      %6628 = vmatpush1.msra.mxu0 0.0
      %6629 = vmatprep.subr.mxu0 0.0
      %6630 = vmatpush1.msra.mxu0 0.0
      %6631 = vmatprep.subr.mxu0 0.0
      %6632 = vmatpush1.msra.mxu0 0.0
      %6633 = vmatprep.subr.mxu0 0.0
      %6634 = vmatpush1.msra.mxu0 0.0
      %6635 = vmatprep.subr.mxu0 0.0
      %6636 = vmatpush1.msra.mxu0 0.0
      %6637 = vmatprep.subr.mxu0 0.0
      %6638 = vmatpush1.msra.mxu0 0.0
      %6639 = vmatprep.subr.mxu0 0.0
      %6640 = vmatpush1.msra.mxu0 0.0
      %6641 = vmatprep.subr.mxu0 0.0
      %6642 = vmatpush1.msra.mxu0 0.0
      %6643 = vmatprep.mubr.f32.mxu0 0.0
      %v6644 = vand.u32 %v5803, 4294901760
      %6645 = vmatmul.mubr.f32.gmra.mrb[0].mxu0 %v6644
      %v6646 = vpop.f32.mrb[0].mxu0
      %v6647 = vadd.f32 %v6573, %v6646
      %v6648 = vpop.f32.mrb[0].mxu0
      %6649 = vdwg.mxu0
      %6650 = vmatprep.subr.mxu0 0.0
      %v6651 = vand.u32 %v5809, 4294901760
      %6652 = vmatpush1.msra.mxu0 %v6651
      %6653 = vmatprep.subr.mxu0 0.0
      %6654 = vmatpush1.msra.mxu0 0.0
      %6655 = vmatprep.subr.mxu0 0.0
      %6656 = vmatpush1.msra.mxu0 0.0
      %6657 = vmatprep.subr.mxu0 0.0
      %6658 = vmatpush1.msra.mxu0 0.0
      %6659 = vmatprep.subr.mxu0 0.0
      %6660 = vmatpush1.msra.mxu0 0.0
      %6661 = vmatprep.subr.mxu0 0.0
      %6662 = vmatpush1.msra.mxu0 0.0
      %6663 = vmatprep.subr.mxu0 0.0
      %6664 = vmatpush1.msra.mxu0 0.0
      %6665 = vmatprep.subr.mxu0 0.0
      %6666 = vmatpush1.msra.mxu0 0.0
      %6667 = vmatprep.subr.mxu0 0.0
      %6668 = vmatpush1.msra.mxu0 0.0
      %6669 = vmatprep.subr.mxu0 0.0
      %6670 = vmatpush1.msra.mxu0 0.0
      %6671 = vmatprep.subr.mxu0 0.0
      %6672 = vmatpush1.msra.mxu0 0.0
      %6673 = vmatprep.subr.mxu0 0.0
      %6674 = vmatpush1.msra.mxu0 0.0
      %6675 = vmatprep.subr.mxu0 0.0
      %6676 = vmatpush1.msra.mxu0 0.0
      %6677 = vmatprep.subr.mxu0 0.0
      %6678 = vmatpush1.msra.mxu0 0.0
      %6679 = vmatprep.subr.mxu0 0.0
      %6680 = vmatpush1.msra.mxu0 0.0
      %6681 = vmatprep.subr.mxu0 0.0
      %6682 = vmatpush1.msra.mxu0 0.0
      %6683 = vmatprep.subr.mxu0 0.0
      %6684 = vmatpush1.msra.mxu0 0.0
      %6685 = vmatprep.subr.mxu0 0.0
      %6686 = vmatpush1.msra.mxu0 0.0
      %6687 = vmatprep.subr.mxu0 0.0
      %6688 = vmatpush1.msra.mxu0 0.0
      %6689 = vmatprep.subr.mxu0 0.0
      %6690 = vmatpush1.msra.mxu0 0.0
      %6691 = vmatprep.subr.mxu0 0.0
      %6692 = vmatpush1.msra.mxu0 0.0
      %6693 = vmatprep.subr.mxu0 0.0
      %6694 = vmatpush1.msra.mxu0 0.0
      %6695 = vmatprep.subr.mxu0 0.0
      %6696 = vmatpush1.msra.mxu0 0.0
      %6697 = vmatprep.subr.mxu0 0.0
      %6698 = vmatpush1.msra.mxu0 0.0
      %6699 = vmatprep.subr.mxu0 0.0
      %6700 = vmatpush1.msra.mxu0 0.0
      %6701 = vmatprep.subr.mxu0 0.0
      %6702 = vmatpush1.msra.mxu0 0.0
      %6703 = vmatprep.subr.mxu0 0.0
      %6704 = vmatpush1.msra.mxu0 0.0
      %6705 = vmatprep.subr.mxu0 0.0
      %6706 = vmatpush1.msra.mxu0 0.0
      %6707 = vmatprep.subr.mxu0 0.0
      %6708 = vmatpush1.msra.mxu0 0.0
      %6709 = vmatprep.subr.mxu0 0.0
      %6710 = vmatpush1.msra.mxu0 0.0
      %6711 = vmatprep.subr.mxu0 0.0
      %6712 = vmatpush1.msra.mxu0 0.0
      %6713 = vmatprep.subr.mxu0 0.0
      %6714 = vmatpush1.msra.mxu0 0.0
      %6715 = vmatprep.mubr.f32.mxu0 0.0
      %v6716 = vand.u32 %v5803, 4294901760
      %6717 = vmatmul.mubr.f32.gmra.mrb[0].mxu0 %v6716
      %v6718 = vpop.f32.mrb[0].mxu0
      %v6719 = vadd.f32 %v6647, %v6718
      %v6720 = vpop.f32.mrb[0].mxu0
      %6721 = vdwg.mxu0
      %v6722 = vadd.f32 %v5783, %v6272
      %v6723 = vadd.f32 %v5784, %v6274
      %v6724 = vadd.f32 %v5785, %v6719
      %v6725 = vld [vmem:[%s165] sm:$0xff]
      %v6726 = vld [vmem:[%s165 + $0x8] sm:$0xf]
      %s6727 = scalar_lea.vmem %s0, 56
      %v6728 = vld [vmem:[%s6727] sm:$0xff]
      %v6731 = vcombine.high %v6725, %v6725
      %6732 = vrot.lane.b32.xlu0 %v6725, 91
      %v6733 = vpop.permute.xlu0 %6732
      %6734 = vrot.lane.b32.xlu0 %v6731, 91
      %v6735 = vpop.permute.xlu0 %6734
      %6736 = vrot.lane.b32.xlu0 %v6726, 91
      %v6737 = vpop.permute.xlu0 %6736
      %vm6738 = vcmask 744448
      %v6739 = vsel %vm6738, %v6733, %v6735
      %v6740 = vsel %vm6738, %v6735, %v6737
      %v6742 = vsel %vm188, %v6728, 0
      %v6744 = vsel %vm192, %v6739, 0
      %v6746 = vsel %vm192, %v6740, 0
      %v6748 = vsel %vm192, %v6737, 0
      %v6750 = vand.u32 %v6746, 4294901760
      %6751 = vmatprep.subr.mxu0 %v6750
      %v6752 = vand.u32 %v6744, 4294901760
      %6753 = vmatpush1.msra.mxu0 %v6752
      %6754 = vmatprep.subr.mxu0 0.0
      %6755 = vmatpush1.msra.mxu0 0.0
      %6756 = vmatprep.subr.mxu0 0.0
      %6757 = vmatpush1.msra.mxu0 0.0
      %6758 = vmatprep.subr.mxu0 0.0
      %6759 = vmatpush1.msra.mxu0 0.0
      %6760 = vmatprep.subr.mxu0 0.0
      %6761 = vmatpush1.msra.mxu0 0.0
      %6762 = vmatprep.subr.mxu0 0.0
      %6763 = vmatpush1.msra.mxu0 0.0
      %6764 = vmatprep.subr.mxu0 0.0
      %6765 = vmatpush1.msra.mxu0 0.0
      %6766 = vmatprep.subr.mxu0 0.0
      %6767 = vmatpush1.msra.mxu0 0.0
      %6768 = vmatprep.subr.mxu0 0.0
      %6769 = vmatpush1.msra.mxu0 0.0
      %6770 = vmatprep.subr.mxu0 0.0
      %6771 = vmatpush1.msra.mxu0 0.0
      %6772 = vmatprep.subr.mxu0 0.0
      %6773 = vmatpush1.msra.mxu0 0.0
      %6774 = vmatprep.subr.mxu0 0.0
      %6775 = vmatpush1.msra.mxu0 0.0
      %6776 = vmatprep.subr.mxu0 0.0
      %6777 = vmatpush1.msra.mxu0 0.0
      %6778 = vmatprep.subr.mxu0 0.0
      %6779 = vmatpush1.msra.mxu0 0.0
      %6780 = vmatprep.subr.mxu0 0.0
      %6781 = vmatpush1.msra.mxu0 0.0
      %6782 = vmatprep.subr.mxu0 0.0
      %6783 = vmatpush1.msra.mxu0 0.0
      %6784 = vmatprep.subr.mxu0 0.0
      %6785 = vmatpush1.msra.mxu0 0.0
      %6786 = vmatprep.subr.mxu0 0.0
      %6787 = vmatpush1.msra.mxu0 0.0
      %6788 = vmatprep.subr.mxu0 0.0
      %6789 = vmatpush1.msra.mxu0 0.0
      %6790 = vmatprep.subr.mxu0 0.0
      %6791 = vmatpush1.msra.mxu0 0.0
      %6792 = vmatprep.subr.mxu0 0.0
      %6793 = vmatpush1.msra.mxu0 0.0
      %6794 = vmatprep.subr.mxu0 0.0
      %6795 = vmatpush1.msra.mxu0 0.0
      %6796 = vmatprep.subr.mxu0 0.0
      %6797 = vmatpush1.msra.mxu0 0.0
      %6798 = vmatprep.subr.mxu0 0.0
      %6799 = vmatpush1.msra.mxu0 0.0
      %6800 = vmatprep.subr.mxu0 0.0
      %6801 = vmatpush1.msra.mxu0 0.0
      %6802 = vmatprep.subr.mxu0 0.0
      %6803 = vmatpush1.msra.mxu0 0.0
      %6804 = vmatprep.subr.mxu0 0.0
      %6805 = vmatpush1.msra.mxu0 0.0
      %6806 = vmatprep.subr.mxu0 0.0
      %6807 = vmatpush1.msra.mxu0 0.0
      %6808 = vmatprep.subr.mxu0 0.0
      %6809 = vmatpush1.msra.mxu0 0.0
      %6810 = vmatprep.subr.mxu0 0.0
      %6811 = vmatpush1.msra.mxu0 0.0
      %6812 = vmatprep.subr.mxu0 0.0
      %6813 = vmatpush1.msra.mxu0 0.0
      %6814 = vmatprep.subr.mxu0 0.0
      %6815 = vmatpush1.msra.mxu0 0.0
      %6816 = vmatprep.mubr.f32.mxu0 0.0
      %v6817 = vand.u32 %v6742, 4294901760
      %v6818 = vsub.f32 %v6742, %v6817
      %v6819 = vand.u32 %v6818, 4294901760
      %v6820 = vsub.f32 %v6818, %v6819
      %v6821 = vand.u32 %v6820, 4294901760
      %6822 = vmatmul.mubr.f32.gmra.mrb[0].mxu0 %v6821
      %v6823 = vpop.f32.mrb[0].mxu0
      %v6824 = vadd.f32 0.0, %v6823
      %v6825 = vpop.f32.mrb[0].mxu0
      %v6826 = vadd.f32 0.0, %v6825
      %6827 = vdwg.mxu0
      %v6828 = vand.u32 %v6746, 4294901760
      %v6829 = vsub.f32 %v6746, %v6828
      %v6830 = vand.u32 %v6829, 4294901760
      %v6831 = vsub.f32 %v6829, %v6830
      %v6832 = vand.u32 %v6831, 4294901760
      %6833 = vmatprep.subr.mxu0 %v6832
      %v6834 = vand.u32 %v6744, 4294901760
      %v6835 = vsub.f32 %v6744, %v6834
      %v6836 = vand.u32 %v6835, 4294901760
      %v6837 = vsub.f32 %v6835, %v6836
      %v6838 = vand.u32 %v6837, 4294901760
      %6839 = vmatpush1.msra.mxu0 %v6838
      %6840 = vmatprep.subr.mxu0 0.0
      %6841 = vmatpush1.msra.mxu0 0.0
      %6842 = vmatprep.subr.mxu0 0.0
      %6843 = vmatpush1.msra.mxu0 0.0
      %6844 = vmatprep.subr.mxu0 0.0
      %6845 = vmatpush1.msra.mxu0 0.0
      %6846 = vmatprep.subr.mxu0 0.0
      %6847 = vmatpush1.msra.mxu0 0.0
      %6848 = vmatprep.subr.mxu0 0.0
      %6849 = vmatpush1.msra.mxu0 0.0
      %6850 = vmatprep.subr.mxu0 0.0
      %6851 = vmatpush1.msra.mxu0 0.0
      %6852 = vmatprep.subr.mxu0 0.0
      %6853 = vmatpush1.msra.mxu0 0.0
      %6854 = vmatprep.subr.mxu0 0.0
      %6855 = vmatpush1.msra.mxu0 0.0
      %6856 = vmatprep.subr.mxu0 0.0
      %6857 = vmatpush1.msra.mxu0 0.0
      %6858 = vmatprep.subr.mxu0 0.0
      %6859 = vmatpush1.msra.mxu0 0.0
      %6860 = vmatprep.subr.mxu0 0.0
      %6861 = vmatpush1.msra.mxu0 0.0
      %6862 = vmatprep.subr.mxu0 0.0
      %6863 = vmatpush1.msra.mxu0 0.0
      %6864 = vmatprep.subr.mxu0 0.0
      %6865 = vmatpush1.msra.mxu0 0.0
      %6866 = vmatprep.subr.mxu0 0.0
      %6867 = vmatpush1.msra.mxu0 0.0
      %6868 = vmatprep.subr.mxu0 0.0
      %6869 = vmatpush1.msra.mxu0 0.0
      %6870 = vmatprep.subr.mxu0 0.0
      %6871 = vmatpush1.msra.mxu0 0.0
      %6872 = vmatprep.subr.mxu0 0.0
      %6873 = vmatpush1.msra.mxu0 0.0
      %6874 = vmatprep.subr.mxu0 0.0
      %6875 = vmatpush1.msra.mxu0 0.0
      %6876 = vmatprep.subr.mxu0 0.0
      %6877 = vmatpush1.msra.mxu0 0.0
      %6878 = vmatprep.subr.mxu0 0.0
      %6879 = vmatpush1.msra.mxu0 0.0
      %6880 = vmatprep.subr.mxu0 0.0
      %6881 = vmatpush1.msra.mxu0 0.0
      %6882 = vmatprep.subr.mxu0 0.0
      %6883 = vmatpush1.msra.mxu0 0.0
      %6884 = vmatprep.subr.mxu0 0.0
      %6885 = vmatpush1.msra.mxu0 0.0
      %6886 = vmatprep.subr.mxu0 0.0
      %6887 = vmatpush1.msra.mxu0 0.0
      %6888 = vmatprep.subr.mxu0 0.0
      %6889 = vmatpush1.msra.mxu0 0.0
      %6890 = vmatprep.subr.mxu0 0.0
      %6891 = vmatpush1.msra.mxu0 0.0
      %6892 = vmatprep.subr.mxu0 0.0
      %6893 = vmatpush1.msra.mxu0 0.0
      %6894 = vmatprep.subr.mxu0 0.0
      %6895 = vmatpush1.msra.mxu0 0.0
      %6896 = vmatprep.subr.mxu0 0.0
      %6897 = vmatpush1.msra.mxu0 0.0
      %6898 = vmatprep.subr.mxu0 0.0
      %6899 = vmatpush1.msra.mxu0 0.0
      %6900 = vmatprep.subr.mxu0 0.0
      %6901 = vmatpush1.msra.mxu0 0.0
      %6902 = vmatprep.mubr.f32.mxu0 0.0
      %v6903 = vand.u32 %v6742, 4294901760
      %6904 = vmatmul.mubr.f32.gmra.mrb[0].mxu0 %v6903
      %v6905 = vpop.f32.mrb[0].mxu0
      %v6906 = vadd.f32 %v6824, %v6905
      %v6907 = vpop.f32.mrb[0].mxu0
      %v6908 = vadd.f32 %v6826, %v6907
      %6909 = vdwg.mxu0
      %v6910 = vand.u32 %v6746, 4294901760
      %v6911 = vsub.f32 %v6746, %v6910
      %6912 = vmatprep.subr.mxu0 %v6911
      %v6913 = vand.u32 %v6744, 4294901760
      %v6914 = vsub.f32 %v6744, %v6913
      %6915 = vmatpush1.msra.mxu0 %v6914
      %6916 = vmatprep.subr.mxu0 0.0
      %6917 = vmatpush1.msra.mxu0 0.0
      %6918 = vmatprep.subr.mxu0 0.0
      %6919 = vmatpush1.msra.mxu0 0.0
      %6920 = vmatprep.subr.mxu0 0.0
      %6921 = vmatpush1.msra.mxu0 0.0
      %6922 = vmatprep.subr.mxu0 0.0
      %6923 = vmatpush1.msra.mxu0 0.0
      %6924 = vmatprep.subr.mxu0 0.0
      %6925 = vmatpush1.msra.mxu0 0.0
      %6926 = vmatprep.subr.mxu0 0.0
      %6927 = vmatpush1.msra.mxu0 0.0
      %6928 = vmatprep.subr.mxu0 0.0
      %6929 = vmatpush1.msra.mxu0 0.0
      %6930 = vmatprep.subr.mxu0 0.0
      %6931 = vmatpush1.msra.mxu0 0.0
      %6932 = vmatprep.subr.mxu0 0.0
      %6933 = vmatpush1.msra.mxu0 0.0
      %6934 = vmatprep.subr.mxu0 0.0
      %6935 = vmatpush1.msra.mxu0 0.0
      %6936 = vmatprep.subr.mxu0 0.0
      %6937 = vmatpush1.msra.mxu0 0.0
      %6938 = vmatprep.subr.mxu0 0.0
      %6939 = vmatpush1.msra.mxu0 0.0
      %6940 = vmatprep.subr.mxu0 0.0
      %6941 = vmatpush1.msra.mxu0 0.0
      %6942 = vmatprep.subr.mxu0 0.0
      %6943 = vmatpush1.msra.mxu0 0.0
      %6944 = vmatprep.subr.mxu0 0.0
      %6945 = vmatpush1.msra.mxu0 0.0
      %6946 = vmatprep.subr.mxu0 0.0
      %6947 = vmatpush1.msra.mxu0 0.0
      %6948 = vmatprep.subr.mxu0 0.0
      %6949 = vmatpush1.msra.mxu0 0.0
      %6950 = vmatprep.subr.mxu0 0.0
      %6951 = vmatpush1.msra.mxu0 0.0
      %6952 = vmatprep.subr.mxu0 0.0
      %6953 = vmatpush1.msra.mxu0 0.0
      %6954 = vmatprep.subr.mxu0 0.0
      %6955 = vmatpush1.msra.mxu0 0.0
      %6956 = vmatprep.subr.mxu0 0.0
      %6957 = vmatpush1.msra.mxu0 0.0
      %6958 = vmatprep.subr.mxu0 0.0
      %6959 = vmatpush1.msra.mxu0 0.0
      %6960 = vmatprep.subr.mxu0 0.0
      %6961 = vmatpush1.msra.mxu0 0.0
      %6962 = vmatprep.subr.mxu0 0.0
      %6963 = vmatpush1.msra.mxu0 0.0
      %6964 = vmatprep.subr.mxu0 0.0
      %6965 = vmatpush1.msra.mxu0 0.0
      %6966 = vmatprep.subr.mxu0 0.0
      %6967 = vmatpush1.msra.mxu0 0.0
      %6968 = vmatprep.subr.mxu0 0.0
      %6969 = vmatpush1.msra.mxu0 0.0
      %6970 = vmatprep.subr.mxu0 0.0
      %6971 = vmatpush1.msra.mxu0 0.0
      %6972 = vmatprep.subr.mxu0 0.0
      %6973 = vmatpush1.msra.mxu0 0.0
      %6974 = vmatprep.subr.mxu0 0.0
      %6975 = vmatpush1.msra.mxu0 0.0
      %6976 = vmatprep.subr.mxu0 0.0
      %6977 = vmatpush1.msra.mxu0 0.0
      %6978 = vmatprep.mubr.f32.mxu0 0.0
      %v6979 = vand.u32 %v6742, 4294901760
      %v6980 = vsub.f32 %v6742, %v6979
      %6981 = vmatmul.mubr.f32.gmra.mrb[0].mxu0 %v6980
      %v6982 = vpop.f32.mrb[0].mxu0
      %v6983 = vadd.f32 %v6906, %v6982
      %v6984 = vpop.f32.mrb[0].mxu0
      %v6985 = vadd.f32 %v6908, %v6984
      %6986 = vdwg.mxu0
      %v6987 = vand.u32 %v6746, 4294901760
      %6988 = vmatprep.subr.mxu0 %v6987
      %v6989 = vand.u32 %v6744, 4294901760
      %6990 = vmatpush1.msra.mxu0 %v6989
      %6991 = vmatprep.subr.mxu0 0.0
      %6992 = vmatpush1.msra.mxu0 0.0
      %6993 = vmatprep.subr.mxu0 0.0
      %6994 = vmatpush1.msra.mxu0 0.0
      %6995 = vmatprep.subr.mxu0 0.0
      %6996 = vmatpush1.msra.mxu0 0.0
      %6997 = vmatprep.subr.mxu0 0.0
      %6998 = vmatpush1.msra.mxu0 0.0
      %6999 = vmatprep.subr.mxu0 0.0
      %7000 = vmatpush1.msra.mxu0 0.0
      %7001 = vmatprep.subr.mxu0 0.0
      %7002 = vmatpush1.msra.mxu0 0.0
      %7003 = vmatprep.subr.mxu0 0.0
      %7004 = vmatpush1.msra.mxu0 0.0
      %7005 = vmatprep.subr.mxu0 0.0
      %7006 = vmatpush1.msra.mxu0 0.0
      %7007 = vmatprep.subr.mxu0 0.0
      %7008 = vmatpush1.msra.mxu0 0.0
      %7009 = vmatprep.subr.mxu0 0.0
      %7010 = vmatpush1.msra.mxu0 0.0
      %7011 = vmatprep.subr.mxu0 0.0
      %7012 = vmatpush1.msra.mxu0 0.0
      %7013 = vmatprep.subr.mxu0 0.0
      %7014 = vmatpush1.msra.mxu0 0.0
      %7015 = vmatprep.subr.mxu0 0.0
      %7016 = vmatpush1.msra.mxu0 0.0
      %7017 = vmatprep.subr.mxu0 0.0
      %7018 = vmatpush1.msra.mxu0 0.0
      %7019 = vmatprep.subr.mxu0 0.0
      %7020 = vmatpush1.msra.mxu0 0.0
      %7021 = vmatprep.subr.mxu0 0.0
      %7022 = vmatpush1.msra.mxu0 0.0
      %7023 = vmatprep.subr.mxu0 0.0
      %7024 = vmatpush1.msra.mxu0 0.0
      %7025 = vmatprep.subr.mxu0 0.0
      %7026 = vmatpush1.msra.mxu0 0.0
      %7027 = vmatprep.subr.mxu0 0.0
      %7028 = vmatpush1.msra.mxu0 0.0
      %7029 = vmatprep.subr.mxu0 0.0
      %7030 = vmatpush1.msra.mxu0 0.0
      %7031 = vmatprep.subr.mxu0 0.0
      %7032 = vmatpush1.msra.mxu0 0.0
      %7033 = vmatprep.subr.mxu0 0.0
      %7034 = vmatpush1.msra.mxu0 0.0
      %7035 = vmatprep.subr.mxu0 0.0
      %7036 = vmatpush1.msra.mxu0 0.0
      %7037 = vmatprep.subr.mxu0 0.0
      %7038 = vmatpush1.msra.mxu0 0.0
      %7039 = vmatprep.subr.mxu0 0.0
      %7040 = vmatpush1.msra.mxu0 0.0
      %7041 = vmatprep.subr.mxu0 0.0
      %7042 = vmatpush1.msra.mxu0 0.0
      %7043 = vmatprep.subr.mxu0 0.0
      %7044 = vmatpush1.msra.mxu0 0.0
      %7045 = vmatprep.subr.mxu0 0.0
      %7046 = vmatpush1.msra.mxu0 0.0
      %7047 = vmatprep.subr.mxu0 0.0
      %7048 = vmatpush1.msra.mxu0 0.0
      %7049 = vmatprep.subr.mxu0 0.0
      %7050 = vmatpush1.msra.mxu0 0.0
      %7051 = vmatprep.subr.mxu0 0.0
      %7052 = vmatpush1.msra.mxu0 0.0
      %7053 = vmatprep.mubr.f32.mxu0 0.0
      %v7054 = vand.u32 %v6742, 4294901760
      %v7055 = vsub.f32 %v6742, %v7054
      %v7056 = vand.u32 %v7055, 4294901760
      %7057 = vmatmul.mubr.f32.gmra.mrb[0].mxu0 %v7056
      %v7058 = vpop.f32.mrb[0].mxu0
      %v7059 = vadd.f32 %v6983, %v7058
      %v7060 = vpop.f32.mrb[0].mxu0
      %v7061 = vadd.f32 %v6985, %v7060
      %7062 = vdwg.mxu0
      %v7063 = vand.u32 %v6746, 4294901760
      %v7064 = vsub.f32 %v6746, %v7063
      %v7065 = vand.u32 %v7064, 4294901760
      %7066 = vmatprep.subr.mxu0 %v7065
      %v7067 = vand.u32 %v6744, 4294901760
      %v7068 = vsub.f32 %v6744, %v7067
      %v7069 = vand.u32 %v7068, 4294901760
      %7070 = vmatpush1.msra.mxu0 %v7069
      %7071 = vmatprep.subr.mxu0 0.0
      %7072 = vmatpush1.msra.mxu0 0.0
      %7073 = vmatprep.subr.mxu0 0.0
      %7074 = vmatpush1.msra.mxu0 0.0
      %7075 = vmatprep.subr.mxu0 0.0
      %7076 = vmatpush1.msra.mxu0 0.0
      %7077 = vmatprep.subr.mxu0 0.0
      %7078 = vmatpush1.msra.mxu0 0.0
      %7079 = vmatprep.subr.mxu0 0.0
      %7080 = vmatpush1.msra.mxu0 0.0
      %7081 = vmatprep.subr.mxu0 0.0
      %7082 = vmatpush1.msra.mxu0 0.0
      %7083 = vmatprep.subr.mxu0 0.0
      %7084 = vmatpush1.msra.mxu0 0.0
      %7085 = vmatprep.subr.mxu0 0.0
      %7086 = vmatpush1.msra.mxu0 0.0
      %7087 = vmatprep.subr.mxu0 0.0
      %7088 = vmatpush1.msra.mxu0 0.0
      %7089 = vmatprep.subr.mxu0 0.0
      %7090 = vmatpush1.msra.mxu0 0.0
      %7091 = vmatprep.subr.mxu0 0.0
      %7092 = vmatpush1.msra.mxu0 0.0
      %7093 = vmatprep.subr.mxu0 0.0
      %7094 = vmatpush1.msra.mxu0 0.0
      %7095 = vmatprep.subr.mxu0 0.0
      %7096 = vmatpush1.msra.mxu0 0.0
      %7097 = vmatprep.subr.mxu0 0.0
      %7098 = vmatpush1.msra.mxu0 0.0
      %7099 = vmatprep.subr.mxu0 0.0
      %7100 = vmatpush1.msra.mxu0 0.0
      %7101 = vmatprep.subr.mxu0 0.0
      %7102 = vmatpush1.msra.mxu0 0.0
      %7103 = vmatprep.subr.mxu0 0.0
      %7104 = vmatpush1.msra.mxu0 0.0
      %7105 = vmatprep.subr.mxu0 0.0
      %7106 = vmatpush1.msra.mxu0 0.0
      %7107 = vmatprep.subr.mxu0 0.0
      %7108 = vmatpush1.msra.mxu0 0.0
      %7109 = vmatprep.subr.mxu0 0.0
      %7110 = vmatpush1.msra.mxu0 0.0
      %7111 = vmatprep.subr.mxu0 0.0
      %7112 = vmatpush1.msra.mxu0 0.0
      %7113 = vmatprep.subr.mxu0 0.0
      %7114 = vmatpush1.msra.mxu0 0.0
      %7115 = vmatprep.subr.mxu0 0.0
      %7116 = vmatpush1.msra.mxu0 0.0
      %7117 = vmatprep.subr.mxu0 0.0
      %7118 = vmatpush1.msra.mxu0 0.0
      %7119 = vmatprep.subr.mxu0 0.0
      %7120 = vmatpush1.msra.mxu0 0.0
      %7121 = vmatprep.subr.mxu0 0.0
      %7122 = vmatpush1.msra.mxu0 0.0
      %7123 = vmatprep.subr.mxu0 0.0
      %7124 = vmatpush1.msra.mxu0 0.0
      %7125 = vmatprep.subr.mxu0 0.0
      %7126 = vmatpush1.msra.mxu0 0.0
      %7127 = vmatprep.subr.mxu0 0.0
      %7128 = vmatpush1.msra.mxu0 0.0
      %7129 = vmatprep.subr.mxu0 0.0
      %7130 = vmatpush1.msra.mxu0 0.0
      %7131 = vmatprep.subr.mxu0 0.0
      %7132 = vmatpush1.msra.mxu0 0.0
      %7133 = vmatprep.mubr.f32.mxu0 0.0
      %v7134 = vand.u32 %v6742, 4294901760
      %7135 = vmatmul.mubr.f32.gmra.mrb[0].mxu0 %v7134
      %v7136 = vpop.f32.mrb[0].mxu0
      %v7137 = vadd.f32 %v7059, %v7136
      %v7138 = vpop.f32.mrb[0].mxu0
      %v7139 = vadd.f32 %v7061, %v7138
      %7140 = vdwg.mxu0
      %v7141 = vand.u32 %v6746, 4294901760
      %7142 = vmatprep.subr.mxu0 %v7141
      %v7143 = vand.u32 %v6744, 4294901760
      %7144 = vmatpush1.msra.mxu0 %v7143
      %7145 = vmatprep.subr.mxu0 0.0
      %7146 = vmatpush1.msra.mxu0 0.0
      %7147 = vmatprep.subr.mxu0 0.0
      %7148 = vmatpush1.msra.mxu0 0.0
      %7149 = vmatprep.subr.mxu0 0.0
      %7150 = vmatpush1.msra.mxu0 0.0
      %7151 = vmatprep.subr.mxu0 0.0
      %7152 = vmatpush1.msra.mxu0 0.0
      %7153 = vmatprep.subr.mxu0 0.0
      %7154 = vmatpush1.msra.mxu0 0.0
      %7155 = vmatprep.subr.mxu0 0.0
      %7156 = vmatpush1.msra.mxu0 0.0
      %7157 = vmatprep.subr.mxu0 0.0
      %7158 = vmatpush1.msra.mxu0 0.0
      %7159 = vmatprep.subr.mxu0 0.0
      %7160 = vmatpush1.msra.mxu0 0.0
      %7161 = vmatprep.subr.mxu0 0.0
      %7162 = vmatpush1.msra.mxu0 0.0
      %7163 = vmatprep.subr.mxu0 0.0
      %7164 = vmatpush1.msra.mxu0 0.0
      %7165 = vmatprep.subr.mxu0 0.0
      %7166 = vmatpush1.msra.mxu0 0.0
      %7167 = vmatprep.subr.mxu0 0.0
      %7168 = vmatpush1.msra.mxu0 0.0
      %7169 = vmatprep.subr.mxu0 0.0
      %7170 = vmatpush1.msra.mxu0 0.0
      %7171 = vmatprep.subr.mxu0 0.0
      %7172 = vmatpush1.msra.mxu0 0.0
      %7173 = vmatprep.subr.mxu0 0.0
      %7174 = vmatpush1.msra.mxu0 0.0
      %7175 = vmatprep.subr.mxu0 0.0
      %7176 = vmatpush1.msra.mxu0 0.0
      %7177 = vmatprep.subr.mxu0 0.0
      %7178 = vmatpush1.msra.mxu0 0.0
      %7179 = vmatprep.subr.mxu0 0.0
      %7180 = vmatpush1.msra.mxu0 0.0
      %7181 = vmatprep.subr.mxu0 0.0
      %7182 = vmatpush1.msra.mxu0 0.0
      %7183 = vmatprep.subr.mxu0 0.0
      %7184 = vmatpush1.msra.mxu0 0.0
      %7185 = vmatprep.subr.mxu0 0.0
      %7186 = vmatpush1.msra.mxu0 0.0
      %7187 = vmatprep.subr.mxu0 0.0
      %7188 = vmatpush1.msra.mxu0 0.0
      %7189 = vmatprep.subr.mxu0 0.0
      %7190 = vmatpush1.msra.mxu0 0.0
      %7191 = vmatprep.subr.mxu0 0.0
      %7192 = vmatpush1.msra.mxu0 0.0
      %7193 = vmatprep.subr.mxu0 0.0
      %7194 = vmatpush1.msra.mxu0 0.0
      %7195 = vmatprep.subr.mxu0 0.0
      %7196 = vmatpush1.msra.mxu0 0.0
      %7197 = vmatprep.subr.mxu0 0.0
      %7198 = vmatpush1.msra.mxu0 0.0
      %7199 = vmatprep.subr.mxu0 0.0
      %7200 = vmatpush1.msra.mxu0 0.0
      %7201 = vmatprep.subr.mxu0 0.0
      %7202 = vmatpush1.msra.mxu0 0.0
      %7203 = vmatprep.subr.mxu0 0.0
      %7204 = vmatpush1.msra.mxu0 0.0
      %7205 = vmatprep.subr.mxu0 0.0
      %7206 = vmatpush1.msra.mxu0 0.0
      %7207 = vmatprep.mubr.f32.mxu0 0.0
      %v7208 = vand.u32 %v6742, 4294901760
      %7209 = vmatmul.mubr.f32.gmra.mrb[0].mxu0 %v7208
      %v7210 = vpop.f32.mrb[0].mxu0
      %v7211 = vadd.f32 %v7137, %v7210
      %v7212 = vpop.f32.mrb[0].mxu0
      %v7213 = vadd.f32 %v7139, %v7212
      %7214 = vdwg.mxu0
      %7215 = vmatprep.subr.mxu0 0.0
      %v7216 = vand.u32 %v6748, 4294901760
      %7217 = vmatpush1.msra.mxu0 %v7216
      %7218 = vmatprep.subr.mxu0 0.0
      %7219 = vmatpush1.msra.mxu0 0.0
      %7220 = vmatprep.subr.mxu0 0.0
      %7221 = vmatpush1.msra.mxu0 0.0
      %7222 = vmatprep.subr.mxu0 0.0
      %7223 = vmatpush1.msra.mxu0 0.0
      %7224 = vmatprep.subr.mxu0 0.0
      %7225 = vmatpush1.msra.mxu0 0.0
      %7226 = vmatprep.subr.mxu0 0.0
      %7227 = vmatpush1.msra.mxu0 0.0
      %7228 = vmatprep.subr.mxu0 0.0
      %7229 = vmatpush1.msra.mxu0 0.0
      %7230 = vmatprep.subr.mxu0 0.0
      %7231 = vmatpush1.msra.mxu0 0.0
      %7232 = vmatprep.subr.mxu0 0.0
      %7233 = vmatpush1.msra.mxu0 0.0
      %7234 = vmatprep.subr.mxu0 0.0
      %7235 = vmatpush1.msra.mxu0 0.0
      %7236 = vmatprep.subr.mxu0 0.0
      %7237 = vmatpush1.msra.mxu0 0.0
      %7238 = vmatprep.subr.mxu0 0.0
      %7239 = vmatpush1.msra.mxu0 0.0
      %7240 = vmatprep.subr.mxu0 0.0
      %7241 = vmatpush1.msra.mxu0 0.0
      %7242 = vmatprep.subr.mxu0 0.0
      %7243 = vmatpush1.msra.mxu0 0.0
      %7244 = vmatprep.subr.mxu0 0.0
      %7245 = vmatpush1.msra.mxu0 0.0
      %7246 = vmatprep.subr.mxu0 0.0
      %7247 = vmatpush1.msra.mxu0 0.0
      %7248 = vmatprep.subr.mxu0 0.0
      %7249 = vmatpush1.msra.mxu0 0.0
      %7250 = vmatprep.subr.mxu0 0.0
      %7251 = vmatpush1.msra.mxu0 0.0
      %7252 = vmatprep.subr.mxu0 0.0
      %7253 = vmatpush1.msra.mxu0 0.0
      %7254 = vmatprep.subr.mxu0 0.0
      %7255 = vmatpush1.msra.mxu0 0.0
      %7256 = vmatprep.subr.mxu0 0.0
      %7257 = vmatpush1.msra.mxu0 0.0
      %7258 = vmatprep.subr.mxu0 0.0
      %7259 = vmatpush1.msra.mxu0 0.0
      %7260 = vmatprep.subr.mxu0 0.0
      %7261 = vmatpush1.msra.mxu0 0.0
      %7262 = vmatprep.subr.mxu0 0.0
      %7263 = vmatpush1.msra.mxu0 0.0
      %7264 = vmatprep.subr.mxu0 0.0
      %7265 = vmatpush1.msra.mxu0 0.0
      %7266 = vmatprep.subr.mxu0 0.0
      %7267 = vmatpush1.msra.mxu0 0.0
      %7268 = vmatprep.subr.mxu0 0.0
      %7269 = vmatpush1.msra.mxu0 0.0
      %7270 = vmatprep.subr.mxu0 0.0
      %7271 = vmatpush1.msra.mxu0 0.0
      %7272 = vmatprep.subr.mxu0 0.0
      %7273 = vmatpush1.msra.mxu0 0.0
      %7274 = vmatprep.subr.mxu0 0.0
      %7275 = vmatpush1.msra.mxu0 0.0
      %7276 = vmatprep.subr.mxu0 0.0
      %7277 = vmatpush1.msra.mxu0 0.0
      %7278 = vmatprep.subr.mxu0 0.0
      %7279 = vmatpush1.msra.mxu0 0.0
      %7280 = vmatprep.mubr.f32.mxu0 0.0
      %v7281 = vand.u32 %v6742, 4294901760
      %v7282 = vsub.f32 %v6742, %v7281
      %v7283 = vand.u32 %v7282, 4294901760
      %v7284 = vsub.f32 %v7282, %v7283
      %v7285 = vand.u32 %v7284, 4294901760
      %7286 = vmatmul.mubr.f32.gmra.mrb[0].mxu0 %v7285
      %v7287 = vpop.f32.mrb[0].mxu0
      %v7288 = vadd.f32 0.0, %v7287
      %v7289 = vpop.f32.mrb[0].mxu0
      %7290 = vdwg.mxu0
      %7291 = vmatprep.subr.mxu0 0.0
      %v7292 = vand.u32 %v6748, 4294901760
      %v7293 = vsub.f32 %v6748, %v7292
      %v7294 = vand.u32 %v7293, 4294901760
      %v7295 = vsub.f32 %v7293, %v7294
      %v7296 = vand.u32 %v7295, 4294901760
      %7297 = vmatpush1.msra.mxu0 %v7296
      %7298 = vmatprep.subr.mxu0 0.0
      %7299 = vmatpush1.msra.mxu0 0.0
      %7300 = vmatprep.subr.mxu0 0.0
      %7301 = vmatpush1.msra.mxu0 0.0
      %7302 = vmatprep.subr.mxu0 0.0
      %7303 = vmatpush1.msra.mxu0 0.0
      %7304 = vmatprep.subr.mxu0 0.0
      %7305 = vmatpush1.msra.mxu0 0.0
      %7306 = vmatprep.subr.mxu0 0.0
      %7307 = vmatpush1.msra.mxu0 0.0
      %7308 = vmatprep.subr.mxu0 0.0
      %7309 = vmatpush1.msra.mxu0 0.0
      %7310 = vmatprep.subr.mxu0 0.0
      %7311 = vmatpush1.msra.mxu0 0.0
      %7312 = vmatprep.subr.mxu0 0.0
      %7313 = vmatpush1.msra.mxu0 0.0
      %7314 = vmatprep.subr.mxu0 0.0
      %7315 = vmatpush1.msra.mxu0 0.0
      %7316 = vmatprep.subr.mxu0 0.0
      %7317 = vmatpush1.msra.mxu0 0.0
      %7318 = vmatprep.subr.mxu0 0.0
      %7319 = vmatpush1.msra.mxu0 0.0
      %7320 = vmatprep.subr.mxu0 0.0
      %7321 = vmatpush1.msra.mxu0 0.0
      %7322 = vmatprep.subr.mxu0 0.0
      %7323 = vmatpush1.msra.mxu0 0.0
      %7324 = vmatprep.subr.mxu0 0.0
      %7325 = vmatpush1.msra.mxu0 0.0
      %7326 = vmatprep.subr.mxu0 0.0
      %7327 = vmatpush1.msra.mxu0 0.0
      %7328 = vmatprep.subr.mxu0 0.0
      %7329 = vmatpush1.msra.mxu0 0.0
      %7330 = vmatprep.subr.mxu0 0.0
      %7331 = vmatpush1.msra.mxu0 0.0
      %7332 = vmatprep.subr.mxu0 0.0
      %7333 = vmatpush1.msra.mxu0 0.0
      %7334 = vmatprep.subr.mxu0 0.0
      %7335 = vmatpush1.msra.mxu0 0.0
      %7336 = vmatprep.subr.mxu0 0.0
      %7337 = vmatpush1.msra.mxu0 0.0
      %7338 = vmatprep.subr.mxu0 0.0
      %7339 = vmatpush1.msra.mxu0 0.0
      %7340 = vmatprep.subr.mxu0 0.0
      %7341 = vmatpush1.msra.mxu0 0.0
      %7342 = vmatprep.subr.mxu0 0.0
      %7343 = vmatpush1.msra.mxu0 0.0
      %7344 = vmatprep.subr.mxu0 0.0
      %7345 = vmatpush1.msra.mxu0 0.0
      %7346 = vmatprep.subr.mxu0 0.0
      %7347 = vmatpush1.msra.mxu0 0.0
      %7348 = vmatprep.subr.mxu0 0.0
      %7349 = vmatpush1.msra.mxu0 0.0
      %7350 = vmatprep.subr.mxu0 0.0
      %7351 = vmatpush1.msra.mxu0 0.0
      %7352 = vmatprep.subr.mxu0 0.0
      %7353 = vmatpush1.msra.mxu0 0.0
      %7354 = vmatprep.subr.mxu0 0.0
      %7355 = vmatpush1.msra.mxu0 0.0
      %7356 = vmatprep.subr.mxu0 0.0
      %7357 = vmatpush1.msra.mxu0 0.0
      %7358 = vmatprep.subr.mxu0 0.0
      %7359 = vmatpush1.msra.mxu0 0.0
      %7360 = vmatprep.mubr.f32.mxu0 0.0
      %v7361 = vand.u32 %v6742, 4294901760
      %7362 = vmatmul.mubr.f32.gmra.mrb[0].mxu0 %v7361
      %v7363 = vpop.f32.mrb[0].mxu0
      %v7364 = vadd.f32 %v7288, %v7363
      %v7365 = vpop.f32.mrb[0].mxu0
      %7366 = vdwg.mxu0
      %7367 = vmatprep.subr.mxu0 0.0
      %v7368 = vand.u32 %v6748, 4294901760
      %v7369 = vsub.f32 %v6748, %v7368
      %7370 = vmatpush1.msra.mxu0 %v7369
      %7371 = vmatprep.subr.mxu0 0.0
      %7372 = vmatpush1.msra.mxu0 0.0
      %7373 = vmatprep.subr.mxu0 0.0
      %7374 = vmatpush1.msra.mxu0 0.0
      %7375 = vmatprep.subr.mxu0 0.0
      %7376 = vmatpush1.msra.mxu0 0.0
      %7377 = vmatprep.subr.mxu0 0.0
      %7378 = vmatpush1.msra.mxu0 0.0
      %7379 = vmatprep.subr.mxu0 0.0
      %7380 = vmatpush1.msra.mxu0 0.0
      %7381 = vmatprep.subr.mxu0 0.0
      %7382 = vmatpush1.msra.mxu0 0.0
      %7383 = vmatprep.subr.mxu0 0.0
      %7384 = vmatpush1.msra.mxu0 0.0
      %7385 = vmatprep.subr.mxu0 0.0
      %7386 = vmatpush1.msra.mxu0 0.0
      %7387 = vmatprep.subr.mxu0 0.0
      %7388 = vmatpush1.msra.mxu0 0.0
      %7389 = vmatprep.subr.mxu0 0.0
      %7390 = vmatpush1.msra.mxu0 0.0
      %7391 = vmatprep.subr.mxu0 0.0
      %7392 = vmatpush1.msra.mxu0 0.0
      %7393 = vmatprep.subr.mxu0 0.0
      %7394 = vmatpush1.msra.mxu0 0.0
      %7395 = vmatprep.subr.mxu0 0.0
      %7396 = vmatpush1.msra.mxu0 0.0
      %7397 = vmatprep.subr.mxu0 0.0
      %7398 = vmatpush1.msra.mxu0 0.0
      %7399 = vmatprep.subr.mxu0 0.0
      %7400 = vmatpush1.msra.mxu0 0.0
      %7401 = vmatprep.subr.mxu0 0.0
      %7402 = vmatpush1.msra.mxu0 0.0
      %7403 = vmatprep.subr.mxu0 0.0
      %7404 = vmatpush1.msra.mxu0 0.0
      %7405 = vmatprep.subr.mxu0 0.0
      %7406 = vmatpush1.msra.mxu0 0.0
      %7407 = vmatprep.subr.mxu0 0.0
      %7408 = vmatpush1.msra.mxu0 0.0
      %7409 = vmatprep.subr.mxu0 0.0
      %7410 = vmatpush1.msra.mxu0 0.0
      %7411 = vmatprep.subr.mxu0 0.0
      %7412 = vmatpush1.msra.mxu0 0.0
      %7413 = vmatprep.subr.mxu0 0.0
      %7414 = vmatpush1.msra.mxu0 0.0
      %7415 = vmatprep.subr.mxu0 0.0
      %7416 = vmatpush1.msra.mxu0 0.0
      %7417 = vmatprep.subr.mxu0 0.0
      %7418 = vmatpush1.msra.mxu0 0.0
      %7419 = vmatprep.subr.mxu0 0.0
      %7420 = vmatpush1.msra.mxu0 0.0
      %7421 = vmatprep.subr.mxu0 0.0
      %7422 = vmatpush1.msra.mxu0 0.0
      %7423 = vmatprep.subr.mxu0 0.0
      %7424 = vmatpush1.msra.mxu0 0.0
      %7425 = vmatprep.subr.mxu0 0.0
      %7426 = vmatpush1.msra.mxu0 0.0
      %7427 = vmatprep.subr.mxu0 0.0
      %7428 = vmatpush1.msra.mxu0 0.0
      %7429 = vmatprep.subr.mxu0 0.0
      %7430 = vmatpush1.msra.mxu0 0.0
      %7431 = vmatprep.subr.mxu0 0.0
      %7432 = vmatpush1.msra.mxu0 0.0
      %7433 = vmatprep.mubr.f32.mxu0 0.0
      %v7434 = vand.u32 %v6742, 4294901760
      %v7435 = vsub.f32 %v6742, %v7434
      %7436 = vmatmul.mubr.f32.gmra.mrb[0].mxu0 %v7435
      %v7437 = vpop.f32.mrb[0].mxu0
      %v7438 = vadd.f32 %v7364, %v7437
      %v7439 = vpop.f32.mrb[0].mxu0
      %7440 = vdwg.mxu0
      %7441 = vmatprep.subr.mxu0 0.0
      %v7442 = vand.u32 %v6748, 4294901760
      %7443 = vmatpush1.msra.mxu0 %v7442
      %7444 = vmatprep.subr.mxu0 0.0
      %7445 = vmatpush1.msra.mxu0 0.0
      %7446 = vmatprep.subr.mxu0 0.0
      %7447 = vmatpush1.msra.mxu0 0.0
      %7448 = vmatprep.subr.mxu0 0.0
      %7449 = vmatpush1.msra.mxu0 0.0
      %7450 = vmatprep.subr.mxu0 0.0
      %7451 = vmatpush1.msra.mxu0 0.0
      %7452 = vmatprep.subr.mxu0 0.0
      %7453 = vmatpush1.msra.mxu0 0.0
      %7454 = vmatprep.subr.mxu0 0.0
      %7455 = vmatpush1.msra.mxu0 0.0
      %7456 = vmatprep.subr.mxu0 0.0
      %7457 = vmatpush1.msra.mxu0 0.0
      %7458 = vmatprep.subr.mxu0 0.0
      %7459 = vmatpush1.msra.mxu0 0.0
      %7460 = vmatprep.subr.mxu0 0.0
      %7461 = vmatpush1.msra.mxu0 0.0
      %7462 = vmatprep.subr.mxu0 0.0
      %7463 = vmatpush1.msra.mxu0 0.0
      %7464 = vmatprep.subr.mxu0 0.0
      %7465 = vmatpush1.msra.mxu0 0.0
      %7466 = vmatprep.subr.mxu0 0.0
      %7467 = vmatpush1.msra.mxu0 0.0
      %7468 = vmatprep.subr.mxu0 0.0
      %7469 = vmatpush1.msra.mxu0 0.0
      %7470 = vmatprep.subr.mxu0 0.0
      %7471 = vmatpush1.msra.mxu0 0.0
      %7472 = vmatprep.subr.mxu0 0.0
      %7473 = vmatpush1.msra.mxu0 0.0
      %7474 = vmatprep.subr.mxu0 0.0
      %7475 = vmatpush1.msra.mxu0 0.0
      %7476 = vmatprep.subr.mxu0 0.0
      %7477 = vmatpush1.msra.mxu0 0.0
      %7478 = vmatprep.subr.mxu0 0.0
      %7479 = vmatpush1.msra.mxu0 0.0
      %7480 = vmatprep.subr.mxu0 0.0
      %7481 = vmatpush1.msra.mxu0 0.0
      %7482 = vmatprep.subr.mxu0 0.0
      %7483 = vmatpush1.msra.mxu0 0.0
      %7484 = vmatprep.subr.mxu0 0.0
      %7485 = vmatpush1.msra.mxu0 0.0
      %7486 = vmatprep.subr.mxu0 0.0
      %7487 = vmatpush1.msra.mxu0 0.0
      %7488 = vmatprep.subr.mxu0 0.0
      %7489 = vmatpush1.msra.mxu0 0.0
      %7490 = vmatprep.subr.mxu0 0.0
      %7491 = vmatpush1.msra.mxu0 0.0
      %7492 = vmatprep.subr.mxu0 0.0
      %7493 = vmatpush1.msra.mxu0 0.0
      %7494 = vmatprep.subr.mxu0 0.0
      %7495 = vmatpush1.msra.mxu0 0.0
      %7496 = vmatprep.subr.mxu0 0.0
      %7497 = vmatpush1.msra.mxu0 0.0
      %7498 = vmatprep.subr.mxu0 0.0
      %7499 = vmatpush1.msra.mxu0 0.0
      %7500 = vmatprep.subr.mxu0 0.0
      %7501 = vmatpush1.msra.mxu0 0.0
      %7502 = vmatprep.subr.mxu0 0.0
      %7503 = vmatpush1.msra.mxu0 0.0
      %7504 = vmatprep.subr.mxu0 0.0
      %7505 = vmatpush1.msra.mxu0 0.0
      %7506 = vmatprep.mubr.f32.mxu0 0.0
      %v7507 = vand.u32 %v6742, 4294901760
      %v7508 = vsub.f32 %v6742, %v7507
      %v7509 = vand.u32 %v7508, 4294901760
      %7510 = vmatmul.mubr.f32.gmra.mrb[0].mxu0 %v7509
      %v7511 = vpop.f32.mrb[0].mxu0
      %v7512 = vadd.f32 %v7438, %v7511
      %v7513 = vpop.f32.mrb[0].mxu0
      %7514 = vdwg.mxu0
      %7515 = vmatprep.subr.mxu0 0.0
      %v7516 = vand.u32 %v6748, 4294901760
      %v7517 = vsub.f32 %v6748, %v7516
      %v7518 = vand.u32 %v7517, 4294901760
      %7519 = vmatpush1.msra.mxu0 %v7518
      %7520 = vmatprep.subr.mxu0 0.0
      %7521 = vmatpush1.msra.mxu0 0.0
      %7522 = vmatprep.subr.mxu0 0.0
      %7523 = vmatpush1.msra.mxu0 0.0
      %7524 = vmatprep.subr.mxu0 0.0
      %7525 = vmatpush1.msra.mxu0 0.0
      %7526 = vmatprep.subr.mxu0 0.0
      %7527 = vmatpush1.msra.mxu0 0.0
      %7528 = vmatprep.subr.mxu0 0.0
      %7529 = vmatpush1.msra.mxu0 0.0
      %7530 = vmatprep.subr.mxu0 0.0
      %7531 = vmatpush1.msra.mxu0 0.0
      %7532 = vmatprep.subr.mxu0 0.0
      %7533 = vmatpush1.msra.mxu0 0.0
      %7534 = vmatprep.subr.mxu0 0.0
      %7535 = vmatpush1.msra.mxu0 0.0
      %7536 = vmatprep.subr.mxu0 0.0
      %7537 = vmatpush1.msra.mxu0 0.0
      %7538 = vmatprep.subr.mxu0 0.0
      %7539 = vmatpush1.msra.mxu0 0.0
      %7540 = vmatprep.subr.mxu0 0.0
      %7541 = vmatpush1.msra.mxu0 0.0
      %7542 = vmatprep.subr.mxu0 0.0
      %7543 = vmatpush1.msra.mxu0 0.0
      %7544 = vmatprep.subr.mxu0 0.0
      %7545 = vmatpush1.msra.mxu0 0.0
      %7546 = vmatprep.subr.mxu0 0.0
      %7547 = vmatpush1.msra.mxu0 0.0
      %7548 = vmatprep.subr.mxu0 0.0
      %7549 = vmatpush1.msra.mxu0 0.0
      %7550 = vmatprep.subr.mxu0 0.0
      %7551 = vmatpush1.msra.mxu0 0.0
      %7552 = vmatprep.subr.mxu0 0.0
      %7553 = vmatpush1.msra.mxu0 0.0
      %7554 = vmatprep.subr.mxu0 0.0
      %7555 = vmatpush1.msra.mxu0 0.0
      %7556 = vmatprep.subr.mxu0 0.0
      %7557 = vmatpush1.msra.mxu0 0.0
      %7558 = vmatprep.subr.mxu0 0.0
      %7559 = vmatpush1.msra.mxu0 0.0
      %7560 = vmatprep.subr.mxu0 0.0
      %7561 = vmatpush1.msra.mxu0 0.0
      %7562 = vmatprep.subr.mxu0 0.0
      %7563 = vmatpush1.msra.mxu0 0.0
      %7564 = vmatprep.subr.mxu0 0.0
      %7565 = vmatpush1.msra.mxu0 0.0
      %7566 = vmatprep.subr.mxu0 0.0
      %7567 = vmatpush1.msra.mxu0 0.0
      %7568 = vmatprep.subr.mxu0 0.0
      %7569 = vmatpush1.msra.mxu0 0.0
      %7570 = vmatprep.subr.mxu0 0.0
      %7571 = vmatpush1.msra.mxu0 0.0
      %7572 = vmatprep.subr.mxu0 0.0
      %7573 = vmatpush1.msra.mxu0 0.0
      %7574 = vmatprep.subr.mxu0 0.0
      %7575 = vmatpush1.msra.mxu0 0.0
      %7576 = vmatprep.subr.mxu0 0.0
      %7577 = vmatpush1.msra.mxu0 0.0
      %7578 = vmatprep.subr.mxu0 0.0
      %7579 = vmatpush1.msra.mxu0 0.0
      %7580 = vmatprep.subr.mxu0 0.0
      %7581 = vmatpush1.msra.mxu0 0.0
      %7582 = vmatprep.mubr.f32.mxu0 0.0
      %v7583 = vand.u32 %v6742, 4294901760
      %7584 = vmatmul.mubr.f32.gmra.mrb[0].mxu0 %v7583
      %v7585 = vpop.f32.mrb[0].mxu0
      %v7586 = vadd.f32 %v7512, %v7585
      %v7587 = vpop.f32.mrb[0].mxu0
      %7588 = vdwg.mxu0
      %7589 = vmatprep.subr.mxu0 0.0
      %v7590 = vand.u32 %v6748, 4294901760
      %7591 = vmatpush1.msra.mxu0 %v7590
      %7592 = vmatprep.subr.mxu0 0.0
      %7593 = vmatpush1.msra.mxu0 0.0
      %7594 = vmatprep.subr.mxu0 0.0
      %7595 = vmatpush1.msra.mxu0 0.0
      %7596 = vmatprep.subr.mxu0 0.0
      %7597 = vmatpush1.msra.mxu0 0.0
      %7598 = vmatprep.subr.mxu0 0.0
      %7599 = vmatpush1.msra.mxu0 0.0
      %7600 = vmatprep.subr.mxu0 0.0
      %7601 = vmatpush1.msra.mxu0 0.0
      %7602 = vmatprep.subr.mxu0 0.0
      %7603 = vmatpush1.msra.mxu0 0.0
      %7604 = vmatprep.subr.mxu0 0.0
      %7605 = vmatpush1.msra.mxu0 0.0
      %7606 = vmatprep.subr.mxu0 0.0
      %7607 = vmatpush1.msra.mxu0 0.0
      %7608 = vmatprep.subr.mxu0 0.0
      %7609 = vmatpush1.msra.mxu0 0.0
      %7610 = vmatprep.subr.mxu0 0.0
      %7611 = vmatpush1.msra.mxu0 0.0
      %7612 = vmatprep.subr.mxu0 0.0
      %7613 = vmatpush1.msra.mxu0 0.0
      %7614 = vmatprep.subr.mxu0 0.0
      %7615 = vmatpush1.msra.mxu0 0.0
      %7616 = vmatprep.subr.mxu0 0.0
      %7617 = vmatpush1.msra.mxu0 0.0
      %7618 = vmatprep.subr.mxu0 0.0
      %7619 = vmatpush1.msra.mxu0 0.0
      %7620 = vmatprep.subr.mxu0 0.0
      %7621 = vmatpush1.msra.mxu0 0.0
      %7622 = vmatprep.subr.mxu0 0.0
      %7623 = vmatpush1.msra.mxu0 0.0
      %7624 = vmatprep.subr.mxu0 0.0
      %7625 = vmatpush1.msra.mxu0 0.0
      %7626 = vmatprep.subr.mxu0 0.0
      %7627 = vmatpush1.msra.mxu0 0.0
      %7628 = vmatprep.subr.mxu0 0.0
      %7629 = vmatpush1.msra.mxu0 0.0
      %7630 = vmatprep.subr.mxu0 0.0
      %7631 = vmatpush1.msra.mxu0 0.0
      %7632 = vmatprep.subr.mxu0 0.0
      %7633 = vmatpush1.msra.mxu0 0.0
      %7634 = vmatprep.subr.mxu0 0.0
      %7635 = vmatpush1.msra.mxu0 0.0
      %7636 = vmatprep.subr.mxu0 0.0
      %7637 = vmatpush1.msra.mxu0 0.0
      %7638 = vmatprep.subr.mxu0 0.0
      %7639 = vmatpush1.msra.mxu0 0.0
      %7640 = vmatprep.subr.mxu0 0.0
      %7641 = vmatpush1.msra.mxu0 0.0
      %7642 = vmatprep.subr.mxu0 0.0
      %7643 = vmatpush1.msra.mxu0 0.0
      %7644 = vmatprep.subr.mxu0 0.0
      %7645 = vmatpush1.msra.mxu0 0.0
      %7646 = vmatprep.subr.mxu0 0.0
      %7647 = vmatpush1.msra.mxu0 0.0
      %7648 = vmatprep.subr.mxu0 0.0
      %7649 = vmatpush1.msra.mxu0 0.0
      %7650 = vmatprep.subr.mxu0 0.0
      %7651 = vmatpush1.msra.mxu0 0.0
      %7652 = vmatprep.subr.mxu0 0.0
      %7653 = vmatpush1.msra.mxu0 0.0
      %7654 = vmatprep.mubr.f32.mxu0 0.0
      %v7655 = vand.u32 %v6742, 4294901760
      %7656 = vmatmul.mubr.f32.gmra.mrb[0].mxu0 %v7655
      %v7657 = vpop.f32.mrb[0].mxu0
      %v7658 = vadd.f32 %v7586, %v7657
      %v7659 = vpop.f32.mrb[0].mxu0
      %7660 = vdwg.mxu0
      %v7661 = vadd.f32 %v6722, %v7211
      %v7662 = vadd.f32 %v6723, %v7213
      %v7663 = vadd.f32 %v6724, %v7658
      %v7664 = vld [vmem:[%s165] sm:$0xff]
      %v7665 = vld [vmem:[%s165 + $0x8] sm:$0xf]
      %s7666 = scalar_lea.vmem %s0, 64
      %v7667 = vld [vmem:[%s7666] sm:$0xff]
      %v7670 = vcombine.high %v7664, %v7664
      %7671 = vrot.lane.b32.xlu0 %v7664, 90
      %v7672 = vpop.permute.xlu0 %7671
      %7673 = vrot.lane.b32.xlu0 %v7670, 90
      %v7674 = vpop.permute.xlu0 %7673
      %7675 = vrot.lane.b32.xlu0 %v7665, 90
      %v7676 = vpop.permute.xlu0 %7675
      %vm7677 = vcmask 736256
      %v7678 = vsel %vm7677, %v7672, %v7674
      %v7679 = vsel %vm7677, %v7674, %v7676
      %v7681 = vsel %vm188, %v7667, 0
      %v7683 = vsel %vm192, %v7678, 0
      %v7685 = vsel %vm192, %v7679, 0
      %v7687 = vsel %vm192, %v7676, 0
      %v7689 = vand.u32 %v7685, 4294901760
      %7690 = vmatprep.subr.mxu0 %v7689
      %v7691 = vand.u32 %v7683, 4294901760
      %7692 = vmatpush1.msra.mxu0 %v7691
      %7693 = vmatprep.subr.mxu0 0.0
      %7694 = vmatpush1.msra.mxu0 0.0
      %7695 = vmatprep.subr.mxu0 0.0
      %7696 = vmatpush1.msra.mxu0 0.0
      %7697 = vmatprep.subr.mxu0 0.0
      %7698 = vmatpush1.msra.mxu0 0.0
      %7699 = vmatprep.subr.mxu0 0.0
      %7700 = vmatpush1.msra.mxu0 0.0
      %7701 = vmatprep.subr.mxu0 0.0
      %7702 = vmatpush1.msra.mxu0 0.0
      %7703 = vmatprep.subr.mxu0 0.0
      %7704 = vmatpush1.msra.mxu0 0.0
      %7705 = vmatprep.subr.mxu0 0.0
      %7706 = vmatpush1.msra.mxu0 0.0
      %7707 = vmatprep.subr.mxu0 0.0
      %7708 = vmatpush1.msra.mxu0 0.0
      %7709 = vmatprep.subr.mxu0 0.0
      %7710 = vmatpush1.msra.mxu0 0.0
      %7711 = vmatprep.subr.mxu0 0.0
      %7712 = vmatpush1.msra.mxu0 0.0
      %7713 = vmatprep.subr.mxu0 0.0
      %7714 = vmatpush1.msra.mxu0 0.0
      %7715 = vmatprep.subr.mxu0 0.0
      %7716 = vmatpush1.msra.mxu0 0.0
      %7717 = vmatprep.subr.mxu0 0.0
      %7718 = vmatpush1.msra.mxu0 0.0
      %7719 = vmatprep.subr.mxu0 0.0
      %7720 = vmatpush1.msra.mxu0 0.0
      %7721 = vmatprep.subr.mxu0 0.0
      %7722 = vmatpush1.msra.mxu0 0.0
      %7723 = vmatprep.subr.mxu0 0.0
      %7724 = vmatpush1.msra.mxu0 0.0
      %7725 = vmatprep.subr.mxu0 0.0
      %7726 = vmatpush1.msra.mxu0 0.0
      %7727 = vmatprep.subr.mxu0 0.0
      %7728 = vmatpush1.msra.mxu0 0.0
      %7729 = vmatprep.subr.mxu0 0.0
      %7730 = vmatpush1.msra.mxu0 0.0
      %7731 = vmatprep.subr.mxu0 0.0
      %7732 = vmatpush1.msra.mxu0 0.0
      %7733 = vmatprep.subr.mxu0 0.0
      %7734 = vmatpush1.msra.mxu0 0.0
      %7735 = vmatprep.subr.mxu0 0.0
      %7736 = vmatpush1.msra.mxu0 0.0
      %7737 = vmatprep.subr.mxu0 0.0
      %7738 = vmatpush1.msra.mxu0 0.0
      %7739 = vmatprep.subr.mxu0 0.0
      %7740 = vmatpush1.msra.mxu0 0.0
      %7741 = vmatprep.subr.mxu0 0.0
      %7742 = vmatpush1.msra.mxu0 0.0
      %7743 = vmatprep.subr.mxu0 0.0
      %7744 = vmatpush1.msra.mxu0 0.0
      %7745 = vmatprep.subr.mxu0 0.0
      %7746 = vmatpush1.msra.mxu0 0.0
      %7747 = vmatprep.subr.mxu0 0.0
      %7748 = vmatpush1.msra.mxu0 0.0
      %7749 = vmatprep.subr.mxu0 0.0
      %7750 = vmatpush1.msra.mxu0 0.0
      %7751 = vmatprep.subr.mxu0 0.0
      %7752 = vmatpush1.msra.mxu0 0.0
      %7753 = vmatprep.subr.mxu0 0.0
      %7754 = vmatpush1.msra.mxu0 0.0
      %7755 = vmatprep.mubr.f32.mxu0 0.0
      %v7756 = vand.u32 %v7681, 4294901760
      %v7757 = vsub.f32 %v7681, %v7756
      %v7758 = vand.u32 %v7757, 4294901760
      %v7759 = vsub.f32 %v7757, %v7758
      %v7760 = vand.u32 %v7759, 4294901760
      %7761 = vmatmul.mubr.f32.gmra.mrb[0].mxu0 %v7760
      %v7762 = vpop.f32.mrb[0].mxu0
      %v7763 = vadd.f32 0.0, %v7762
      %v7764 = vpop.f32.mrb[0].mxu0
      %v7765 = vadd.f32 0.0, %v7764
      %7766 = vdwg.mxu0
      %v7767 = vand.u32 %v7685, 4294901760
      %v7768 = vsub.f32 %v7685, %v7767
      %v7769 = vand.u32 %v7768, 4294901760
      %v7770 = vsub.f32 %v7768, %v7769
      %v7771 = vand.u32 %v7770, 4294901760
      %7772 = vmatprep.subr.mxu0 %v7771
      %v7773 = vand.u32 %v7683, 4294901760
      %v7774 = vsub.f32 %v7683, %v7773
      %v7775 = vand.u32 %v7774, 4294901760
      %v7776 = vsub.f32 %v7774, %v7775
      %v7777 = vand.u32 %v7776, 4294901760
      %7778 = vmatpush1.msra.mxu0 %v7777
      %7779 = vmatprep.subr.mxu0 0.0
      %7780 = vmatpush1.msra.mxu0 0.0
      %7781 = vmatprep.subr.mxu0 0.0
      %7782 = vmatpush1.msra.mxu0 0.0
      %7783 = vmatprep.subr.mxu0 0.0
      %7784 = vmatpush1.msra.mxu0 0.0
      %7785 = vmatprep.subr.mxu0 0.0
      %7786 = vmatpush1.msra.mxu0 0.0
      %7787 = vmatprep.subr.mxu0 0.0
      %7788 = vmatpush1.msra.mxu0 0.0
      %7789 = vmatprep.subr.mxu0 0.0
      %7790 = vmatpush1.msra.mxu0 0.0
      %7791 = vmatprep.subr.mxu0 0.0
      %7792 = vmatpush1.msra.mxu0 0.0
      %7793 = vmatprep.subr.mxu0 0.0
      %7794 = vmatpush1.msra.mxu0 0.0
      %7795 = vmatprep.subr.mxu0 0.0
      %7796 = vmatpush1.msra.mxu0 0.0
      %7797 = vmatprep.subr.mxu0 0.0
      %7798 = vmatpush1.msra.mxu0 0.0
      %7799 = vmatprep.subr.mxu0 0.0
      %7800 = vmatpush1.msra.mxu0 0.0
      %7801 = vmatprep.subr.mxu0 0.0
      %7802 = vmatpush1.msra.mxu0 0.0
      %7803 = vmatprep.subr.mxu0 0.0
      %7804 = vmatpush1.msra.mxu0 0.0
      %7805 = vmatprep.subr.mxu0 0.0
      %7806 = vmatpush1.msra.mxu0 0.0
      %7807 = vmatprep.subr.mxu0 0.0
      %7808 = vmatpush1.msra.mxu0 0.0
      %7809 = vmatprep.subr.mxu0 0.0
      %7810 = vmatpush1.msra.mxu0 0.0
      %7811 = vmatprep.subr.mxu0 0.0
      %7812 = vmatpush1.msra.mxu0 0.0
      %7813 = vmatprep.subr.mxu0 0.0
      %7814 = vmatpush1.msra.mxu0 0.0
      %7815 = vmatprep.subr.mxu0 0.0
      %7816 = vmatpush1.msra.mxu0 0.0
      %7817 = vmatprep.subr.mxu0 0.0
      %7818 = vmatpush1.msra.mxu0 0.0
      %7819 = vmatprep.subr.mxu0 0.0
      %7820 = vmatpush1.msra.mxu0 0.0
      %7821 = vmatprep.subr.mxu0 0.0
      %7822 = vmatpush1.msra.mxu0 0.0
      %7823 = vmatprep.subr.mxu0 0.0
      %7824 = vmatpush1.msra.mxu0 0.0
      %7825 = vmatprep.subr.mxu0 0.0
      %7826 = vmatpush1.msra.mxu0 0.0
      %7827 = vmatprep.subr.mxu0 0.0
      %7828 = vmatpush1.msra.mxu0 0.0
      %7829 = vmatprep.subr.mxu0 0.0
      %7830 = vmatpush1.msra.mxu0 0.0
      %7831 = vmatprep.subr.mxu0 0.0
      %7832 = vmatpush1.msra.mxu0 0.0
      %7833 = vmatprep.subr.mxu0 0.0
      %7834 = vmatpush1.msra.mxu0 0.0
      %7835 = vmatprep.subr.mxu0 0.0
      %7836 = vmatpush1.msra.mxu0 0.0
      %7837 = vmatprep.subr.mxu0 0.0
      %7838 = vmatpush1.msra.mxu0 0.0
      %7839 = vmatprep.subr.mxu0 0.0
      %7840 = vmatpush1.msra.mxu0 0.0
      %7841 = vmatprep.mubr.f32.mxu0 0.0
      %v7842 = vand.u32 %v7681, 4294901760
      %7843 = vmatmul.mubr.f32.gmra.mrb[0].mxu0 %v7842
      %v7844 = vpop.f32.mrb[0].mxu0
      %v7845 = vadd.f32 %v7763, %v7844
      %v7846 = vpop.f32.mrb[0].mxu0
      %v7847 = vadd.f32 %v7765, %v7846
      %7848 = vdwg.mxu0
      %v7849 = vand.u32 %v7685, 4294901760
      %v7850 = vsub.f32 %v7685, %v7849
      %7851 = vmatprep.subr.mxu0 %v7850
      %v7852 = vand.u32 %v7683, 4294901760
      %v7853 = vsub.f32 %v7683, %v7852
      %7854 = vmatpush1.msra.mxu0 %v7853
      %7855 = vmatprep.subr.mxu0 0.0
      %7856 = vmatpush1.msra.mxu0 0.0
      %7857 = vmatprep.subr.mxu0 0.0
      %7858 = vmatpush1.msra.mxu0 0.0
      %7859 = vmatprep.subr.mxu0 0.0
      %7860 = vmatpush1.msra.mxu0 0.0
      %7861 = vmatprep.subr.mxu0 0.0
      %7862 = vmatpush1.msra.mxu0 0.0
      %7863 = vmatprep.subr.mxu0 0.0
      %7864 = vmatpush1.msra.mxu0 0.0
      %7865 = vmatprep.subr.mxu0 0.0
      %7866 = vmatpush1.msra.mxu0 0.0
      %7867 = vmatprep.subr.mxu0 0.0
      %7868 = vmatpush1.msra.mxu0 0.0
      %7869 = vmatprep.subr.mxu0 0.0
      %7870 = vmatpush1.msra.mxu0 0.0
      %7871 = vmatprep.subr.mxu0 0.0
      %7872 = vmatpush1.msra.mxu0 0.0
      %7873 = vmatprep.subr.mxu0 0.0
      %7874 = vmatpush1.msra.mxu0 0.0
      %7875 = vmatprep.subr.mxu0 0.0
      %7876 = vmatpush1.msra.mxu0 0.0
      %7877 = vmatprep.subr.mxu0 0.0
      %7878 = vmatpush1.msra.mxu0 0.0
      %7879 = vmatprep.subr.mxu0 0.0
      %7880 = vmatpush1.msra.mxu0 0.0
      %7881 = vmatprep.subr.mxu0 0.0
      %7882 = vmatpush1.msra.mxu0 0.0
      %7883 = vmatprep.subr.mxu0 0.0
      %7884 = vmatpush1.msra.mxu0 0.0
      %7885 = vmatprep.subr.mxu0 0.0
      %7886 = vmatpush1.msra.mxu0 0.0
      %7887 = vmatprep.subr.mxu0 0.0
      %7888 = vmatpush1.msra.mxu0 0.0
      %7889 = vmatprep.subr.mxu0 0.0
      %7890 = vmatpush1.msra.mxu0 0.0
      %7891 = vmatprep.subr.mxu0 0.0
      %7892 = vmatpush1.msra.mxu0 0.0
      %7893 = vmatprep.subr.mxu0 0.0
      %7894 = vmatpush1.msra.mxu0 0.0
      %7895 = vmatprep.subr.mxu0 0.0
      %7896 = vmatpush1.msra.mxu0 0.0
      %7897 = vmatprep.subr.mxu0 0.0
      %7898 = vmatpush1.msra.mxu0 0.0
      %7899 = vmatprep.subr.mxu0 0.0
      %7900 = vmatpush1.msra.mxu0 0.0
      %7901 = vmatprep.subr.mxu0 0.0
      %7902 = vmatpush1.msra.mxu0 0.0
      %7903 = vmatprep.subr.mxu0 0.0
      %7904 = vmatpush1.msra.mxu0 0.0
      %7905 = vmatprep.subr.mxu0 0.0
      %7906 = vmatpush1.msra.mxu0 0.0
      %7907 = vmatprep.subr.mxu0 0.0
      %7908 = vmatpush1.msra.mxu0 0.0
      %7909 = vmatprep.subr.mxu0 0.0
      %7910 = vmatpush1.msra.mxu0 0.0
      %7911 = vmatprep.subr.mxu0 0.0
      %7912 = vmatpush1.msra.mxu0 0.0
      %7913 = vmatprep.subr.mxu0 0.0
      %7914 = vmatpush1.msra.mxu0 0.0
      %7915 = vmatprep.subr.mxu0 0.0
      %7916 = vmatpush1.msra.mxu0 0.0
      %7917 = vmatprep.mubr.f32.mxu0 0.0
      %v7918 = vand.u32 %v7681, 4294901760
      %v7919 = vsub.f32 %v7681, %v7918
      %7920 = vmatmul.mubr.f32.gmra.mrb[0].mxu0 %v7919
      %v7921 = vpop.f32.mrb[0].mxu0
      %v7922 = vadd.f32 %v7845, %v7921
      %v7923 = vpop.f32.mrb[0].mxu0
      %v7924 = vadd.f32 %v7847, %v7923
      %7925 = vdwg.mxu0
      %v7926 = vand.u32 %v7685, 4294901760
      %7927 = vmatprep.subr.mxu0 %v7926
      %v7928 = vand.u32 %v7683, 4294901760
      %7929 = vmatpush1.msra.mxu0 %v7928
      %7930 = vmatprep.subr.mxu0 0.0
      %7931 = vmatpush1.msra.mxu0 0.0
      %7932 = vmatprep.subr.mxu0 0.0
      %7933 = vmatpush1.msra.mxu0 0.0
      %7934 = vmatprep.subr.mxu0 0.0
      %7935 = vmatpush1.msra.mxu0 0.0
      %7936 = vmatprep.subr.mxu0 0.0
      %7937 = vmatpush1.msra.mxu0 0.0
      %7938 = vmatprep.subr.mxu0 0.0
      %7939 = vmatpush1.msra.mxu0 0.0
      %7940 = vmatprep.subr.mxu0 0.0
      %7941 = vmatpush1.msra.mxu0 0.0
      %7942 = vmatprep.subr.mxu0 0.0
      %7943 = vmatpush1.msra.mxu0 0.0
      %7944 = vmatprep.subr.mxu0 0.0
      %7945 = vmatpush1.msra.mxu0 0.0
      %7946 = vmatprep.subr.mxu0 0.0
      %7947 = vmatpush1.msra.mxu0 0.0
      %7948 = vmatprep.subr.mxu0 0.0
      %7949 = vmatpush1.msra.mxu0 0.0
      %7950 = vmatprep.subr.mxu0 0.0
      %7951 = vmatpush1.msra.mxu0 0.0
      %7952 = vmatprep.subr.mxu0 0.0
      %7953 = vmatpush1.msra.mxu0 0.0
      %7954 = vmatprep.subr.mxu0 0.0
      %7955 = vmatpush1.msra.mxu0 0.0
      %7956 = vmatprep.subr.mxu0 0.0
      %7957 = vmatpush1.msra.mxu0 0.0
      %7958 = vmatprep.subr.mxu0 0.0
      %7959 = vmatpush1.msra.mxu0 0.0
      %7960 = vmatprep.subr.mxu0 0.0
      %7961 = vmatpush1.msra.mxu0 0.0
      %7962 = vmatprep.subr.mxu0 0.0
      %7963 = vmatpush1.msra.mxu0 0.0
      %7964 = vmatprep.subr.mxu0 0.0
      %7965 = vmatpush1.msra.mxu0 0.0
      %7966 = vmatprep.subr.mxu0 0.0
      %7967 = vmatpush1.msra.mxu0 0.0
      %7968 = vmatprep.subr.mxu0 0.0
      %7969 = vmatpush1.msra.mxu0 0.0
      %7970 = vmatprep.subr.mxu0 0.0
      %7971 = vmatpush1.msra.mxu0 0.0
      %7972 = vmatprep.subr.mxu0 0.0
      %7973 = vmatpush1.msra.mxu0 0.0
      %7974 = vmatprep.subr.mxu0 0.0
      %7975 = vmatpush1.msra.mxu0 0.0
      %7976 = vmatprep.subr.mxu0 0.0
      %7977 = vmatpush1.msra.mxu0 0.0
      %7978 = vmatprep.subr.mxu0 0.0
      %7979 = vmatpush1.msra.mxu0 0.0
      %7980 = vmatprep.subr.mxu0 0.0
      %7981 = vmatpush1.msra.mxu0 0.0
      %7982 = vmatprep.subr.mxu0 0.0
      %7983 = vmatpush1.msra.mxu0 0.0
      %7984 = vmatprep.subr.mxu0 0.0
      %7985 = vmatpush1.msra.mxu0 0.0
      %7986 = vmatprep.subr.mxu0 0.0
      %7987 = vmatpush1.msra.mxu0 0.0
      %7988 = vmatprep.subr.mxu0 0.0
      %7989 = vmatpush1.msra.mxu0 0.0
      %7990 = vmatprep.subr.mxu0 0.0
      %7991 = vmatpush1.msra.mxu0 0.0
      %7992 = vmatprep.mubr.f32.mxu0 0.0
      %v7993 = vand.u32 %v7681, 4294901760
      %v7994 = vsub.f32 %v7681, %v7993
      %v7995 = vand.u32 %v7994, 4294901760
      %7996 = vmatmul.mubr.f32.gmra.mrb[0].mxu0 %v7995
      %v7997 = vpop.f32.mrb[0].mxu0
      %v7998 = vadd.f32 %v7922, %v7997
      %v7999 = vpop.f32.mrb[0].mxu0
      %v8000 = vadd.f32 %v7924, %v7999
      %8001 = vdwg.mxu0
      %v8002 = vand.u32 %v7685, 4294901760
      %v8003 = vsub.f32 %v7685, %v8002
      %v8004 = vand.u32 %v8003, 4294901760
      %8005 = vmatprep.subr.mxu0 %v8004
      %v8006 = vand.u32 %v7683, 4294901760
      %v8007 = vsub.f32 %v7683, %v8006
      %v8008 = vand.u32 %v8007, 4294901760
      %8009 = vmatpush1.msra.mxu0 %v8008
      %8010 = vmatprep.subr.mxu0 0.0
      %8011 = vmatpush1.msra.mxu0 0.0
      %8012 = vmatprep.subr.mxu0 0.0
      %8013 = vmatpush1.msra.mxu0 0.0
      %8014 = vmatprep.subr.mxu0 0.0
      %8015 = vmatpush1.msra.mxu0 0.0
      %8016 = vmatprep.subr.mxu0 0.0
      %8017 = vmatpush1.msra.mxu0 0.0
      %8018 = vmatprep.subr.mxu0 0.0
      %8019 = vmatpush1.msra.mxu0 0.0
      %8020 = vmatprep.subr.mxu0 0.0
      %8021 = vmatpush1.msra.mxu0 0.0
      %8022 = vmatprep.subr.mxu0 0.0
      %8023 = vmatpush1.msra.mxu0 0.0
      %8024 = vmatprep.subr.mxu0 0.0
      %8025 = vmatpush1.msra.mxu0 0.0
      %8026 = vmatprep.subr.mxu0 0.0
      %8027 = vmatpush1.msra.mxu0 0.0
      %8028 = vmatprep.subr.mxu0 0.0
      %8029 = vmatpush1.msra.mxu0 0.0
      %8030 = vmatprep.subr.mxu0 0.0
      %8031 = vmatpush1.msra.mxu0 0.0
      %8032 = vmatprep.subr.mxu0 0.0
      %8033 = vmatpush1.msra.mxu0 0.0
      %8034 = vmatprep.subr.mxu0 0.0
      %8035 = vmatpush1.msra.mxu0 0.0
      %8036 = vmatprep.subr.mxu0 0.0
      %8037 = vmatpush1.msra.mxu0 0.0
      %8038 = vmatprep.subr.mxu0 0.0
      %8039 = vmatpush1.msra.mxu0 0.0
      %8040 = vmatprep.subr.mxu0 0.0
      %8041 = vmatpush1.msra.mxu0 0.0
      %8042 = vmatprep.subr.mxu0 0.0
      %8043 = vmatpush1.msra.mxu0 0.0
      %8044 = vmatprep.subr.mxu0 0.0
      %8045 = vmatpush1.msra.mxu0 0.0
      %8046 = vmatprep.subr.mxu0 0.0
      %8047 = vmatpush1.msra.mxu0 0.0
      %8048 = vmatprep.subr.mxu0 0.0
      %8049 = vmatpush1.msra.mxu0 0.0
      %8050 = vmatprep.subr.mxu0 0.0
      %8051 = vmatpush1.msra.mxu0 0.0
      %8052 = vmatprep.subr.mxu0 0.0
      %8053 = vmatpush1.msra.mxu0 0.0
      %8054 = vmatprep.subr.mxu0 0.0
      %8055 = vmatpush1.msra.mxu0 0.0
      %8056 = vmatprep.subr.mxu0 0.0
      %8057 = vmatpush1.msra.mxu0 0.0
      %8058 = vmatprep.subr.mxu0 0.0
      %8059 = vmatpush1.msra.mxu0 0.0
      %8060 = vmatprep.subr.mxu0 0.0
      %8061 = vmatpush1.msra.mxu0 0.0
      %8062 = vmatprep.subr.mxu0 0.0
      %8063 = vmatpush1.msra.mxu0 0.0
      %8064 = vmatprep.subr.mxu0 0.0
      %8065 = vmatpush1.msra.mxu0 0.0
      %8066 = vmatprep.subr.mxu0 0.0
      %8067 = vmatpush1.msra.mxu0 0.0
      %8068 = vmatprep.subr.mxu0 0.0
      %8069 = vmatpush1.msra.mxu0 0.0
      %8070 = vmatprep.subr.mxu0 0.0
      %8071 = vmatpush1.msra.mxu0 0.0
      %8072 = vmatprep.mubr.f32.mxu0 0.0
      %v8073 = vand.u32 %v7681, 4294901760
      %8074 = vmatmul.mubr.f32.gmra.mrb[0].mxu0 %v8073
      %v8075 = vpop.f32.mrb[0].mxu0
      %v8076 = vadd.f32 %v7998, %v8075
      %v8077 = vpop.f32.mrb[0].mxu0
      %v8078 = vadd.f32 %v8000, %v8077
      %8079 = vdwg.mxu0
      %v8080 = vand.u32 %v7685, 4294901760
      %8081 = vmatprep.subr.mxu0 %v8080
      %v8082 = vand.u32 %v7683, 4294901760
      %8083 = vmatpush1.msra.mxu0 %v8082
      %8084 = vmatprep.subr.mxu0 0.0
      %8085 = vmatpush1.msra.mxu0 0.0
      %8086 = vmatprep.subr.mxu0 0.0
      %8087 = vmatpush1.msra.mxu0 0.0
      %8088 = vmatprep.subr.mxu0 0.0
      %8089 = vmatpush1.msra.mxu0 0.0
      %8090 = vmatprep.subr.mxu0 0.0
      %8091 = vmatpush1.msra.mxu0 0.0
      %8092 = vmatprep.subr.mxu0 0.0
      %8093 = vmatpush1.msra.mxu0 0.0
      %8094 = vmatprep.subr.mxu0 0.0
      %8095 = vmatpush1.msra.mxu0 0.0
      %8096 = vmatprep.subr.mxu0 0.0
      %8097 = vmatpush1.msra.mxu0 0.0
      %8098 = vmatprep.subr.mxu0 0.0
      %8099 = vmatpush1.msra.mxu0 0.0
      %8100 = vmatprep.subr.mxu0 0.0
      %8101 = vmatpush1.msra.mxu0 0.0
      %8102 = vmatprep.subr.mxu0 0.0
      %8103 = vmatpush1.msra.mxu0 0.0
      %8104 = vmatprep.subr.mxu0 0.0
      %8105 = vmatpush1.msra.mxu0 0.0
      %8106 = vmatprep.subr.mxu0 0.0
      %8107 = vmatpush1.msra.mxu0 0.0
      %8108 = vmatprep.subr.mxu0 0.0
      %8109 = vmatpush1.msra.mxu0 0.0
      %8110 = vmatprep.subr.mxu0 0.0
      %8111 = vmatpush1.msra.mxu0 0.0
      %8112 = vmatprep.subr.mxu0 0.0
      %8113 = vmatpush1.msra.mxu0 0.0
      %8114 = vmatprep.subr.mxu0 0.0
      %8115 = vmatpush1.msra.mxu0 0.0
      %8116 = vmatprep.subr.mxu0 0.0
      %8117 = vmatpush1.msra.mxu0 0.0
      %8118 = vmatprep.subr.mxu0 0.0
      %8119 = vmatpush1.msra.mxu0 0.0
      %8120 = vmatprep.subr.mxu0 0.0
      %8121 = vmatpush1.msra.mxu0 0.0
      %8122 = vmatprep.subr.mxu0 0.0
      %8123 = vmatpush1.msra.mxu0 0.0
      %8124 = vmatprep.subr.mxu0 0.0
      %8125 = vmatpush1.msra.mxu0 0.0
      %8126 = vmatprep.subr.mxu0 0.0
      %8127 = vmatpush1.msra.mxu0 0.0
      %8128 = vmatprep.subr.mxu0 0.0
      %8129 = vmatpush1.msra.mxu0 0.0
      %8130 = vmatprep.subr.mxu0 0.0
      %8131 = vmatpush1.msra.mxu0 0.0
      %8132 = vmatprep.subr.mxu0 0.0
      %8133 = vmatpush1.msra.mxu0 0.0
      %8134 = vmatprep.subr.mxu0 0.0
      %8135 = vmatpush1.msra.mxu0 0.0
      %8136 = vmatprep.subr.mxu0 0.0
      %8137 = vmatpush1.msra.mxu0 0.0
      %8138 = vmatprep.subr.mxu0 0.0
      %8139 = vmatpush1.msra.mxu0 0.0
      %8140 = vmatprep.subr.mxu0 0.0
      %8141 = vmatpush1.msra.mxu0 0.0
      %8142 = vmatprep.subr.mxu0 0.0
      %8143 = vmatpush1.msra.mxu0 0.0
      %8144 = vmatprep.subr.mxu0 0.0
      %8145 = vmatpush1.msra.mxu0 0.0
      %8146 = vmatprep.mubr.f32.mxu0 0.0
      %v8147 = vand.u32 %v7681, 4294901760
      %8148 = vmatmul.mubr.f32.gmra.mrb[0].mxu0 %v8147
      %v8149 = vpop.f32.mrb[0].mxu0
      %v8150 = vadd.f32 %v8076, %v8149
      %v8151 = vpop.f32.mrb[0].mxu0
      %v8152 = vadd.f32 %v8078, %v8151
      %8153 = vdwg.mxu0
      %8154 = vmatprep.subr.mxu0 0.0
      %v8155 = vand.u32 %v7687, 4294901760
      %8156 = vmatpush1.msra.mxu0 %v8155
      %8157 = vmatprep.subr.mxu0 0.0
      %8158 = vmatpush1.msra.mxu0 0.0
      %8159 = vmatprep.subr.mxu0 0.0
      %8160 = vmatpush1.msra.mxu0 0.0
      %8161 = vmatprep.subr.mxu0 0.0
      %8162 = vmatpush1.msra.mxu0 0.0
      %8163 = vmatprep.subr.mxu0 0.0
      %8164 = vmatpush1.msra.mxu0 0.0
      %8165 = vmatprep.subr.mxu0 0.0
      %8166 = vmatpush1.msra.mxu0 0.0
      %8167 = vmatprep.subr.mxu0 0.0
      %8168 = vmatpush1.msra.mxu0 0.0
      %8169 = vmatprep.subr.mxu0 0.0
      %8170 = vmatpush1.msra.mxu0 0.0
      %8171 = vmatprep.subr.mxu0 0.0
      %8172 = vmatpush1.msra.mxu0 0.0
      %8173 = vmatprep.subr.mxu0 0.0
      %8174 = vmatpush1.msra.mxu0 0.0
      %8175 = vmatprep.subr.mxu0 0.0
      %8176 = vmatpush1.msra.mxu0 0.0
      %8177 = vmatprep.subr.mxu0 0.0
      %8178 = vmatpush1.msra.mxu0 0.0
      %8179 = vmatprep.subr.mxu0 0.0
      %8180 = vmatpush1.msra.mxu0 0.0
      %8181 = vmatprep.subr.mxu0 0.0
      %8182 = vmatpush1.msra.mxu0 0.0
      %8183 = vmatprep.subr.mxu0 0.0
      %8184 = vmatpush1.msra.mxu0 0.0
      %8185 = vmatprep.subr.mxu0 0.0
      %8186 = vmatpush1.msra.mxu0 0.0
      %8187 = vmatprep.subr.mxu0 0.0
      %8188 = vmatpush1.msra.mxu0 0.0
      %8189 = vmatprep.subr.mxu0 0.0
      %8190 = vmatpush1.msra.mxu0 0.0
      %8191 = vmatprep.subr.mxu0 0.0
      %8192 = vmatpush1.msra.mxu0 0.0
      %8193 = vmatprep.subr.mxu0 0.0
      %8194 = vmatpush1.msra.mxu0 0.0
      %8195 = vmatprep.subr.mxu0 0.0
      %8196 = vmatpush1.msra.mxu0 0.0
      %8197 = vmatprep.subr.mxu0 0.0
      %8198 = vmatpush1.msra.mxu0 0.0
      %8199 = vmatprep.subr.mxu0 0.0
      %8200 = vmatpush1.msra.mxu0 0.0
      %8201 = vmatprep.subr.mxu0 0.0
      %8202 = vmatpush1.msra.mxu0 0.0
      %8203 = vmatprep.subr.mxu0 0.0
      %8204 = vmatpush1.msra.mxu0 0.0
      %8205 = vmatprep.subr.mxu0 0.0
      %8206 = vmatpush1.msra.mxu0 0.0
      %8207 = vmatprep.subr.mxu0 0.0
      %8208 = vmatpush1.msra.mxu0 0.0
      %8209 = vmatprep.subr.mxu0 0.0
      %8210 = vmatpush1.msra.mxu0 0.0
      %8211 = vmatprep.subr.mxu0 0.0
      %8212 = vmatpush1.msra.mxu0 0.0
      %8213 = vmatprep.subr.mxu0 0.0
      %8214 = vmatpush1.msra.mxu0 0.0
      %8215 = vmatprep.subr.mxu0 0.0
      %8216 = vmatpush1.msra.mxu0 0.0
      %8217 = vmatprep.subr.mxu0 0.0
      %8218 = vmatpush1.msra.mxu0 0.0
      %8219 = vmatprep.mubr.f32.mxu0 0.0
      %v8220 = vand.u32 %v7681, 4294901760
      %v8221 = vsub.f32 %v7681, %v8220
      %v8222 = vand.u32 %v8221, 4294901760
      %v8223 = vsub.f32 %v8221, %v8222
      %v8224 = vand.u32 %v8223, 4294901760
      %8225 = vmatmul.mubr.f32.gmra.mrb[0].mxu0 %v8224
      %v8226 = vpop.f32.mrb[0].mxu0
      %v8227 = vadd.f32 0.0, %v8226
      %v8228 = vpop.f32.mrb[0].mxu0
      %8229 = vdwg.mxu0
      %8230 = vmatprep.subr.mxu0 0.0
      %v8231 = vand.u32 %v7687, 4294901760
      %v8232 = vsub.f32 %v7687, %v8231
      %v8233 = vand.u32 %v8232, 4294901760
      %v8234 = vsub.f32 %v8232, %v8233
      %v8235 = vand.u32 %v8234, 4294901760
      %8236 = vmatpush1.msra.mxu0 %v8235
      %8237 = vmatprep.subr.mxu0 0.0
      %8238 = vmatpush1.msra.mxu0 0.0
      %8239 = vmatprep.subr.mxu0 0.0
      %8240 = vmatpush1.msra.mxu0 0.0
      %8241 = vmatprep.subr.mxu0 0.0
      %8242 = vmatpush1.msra.mxu0 0.0
      %8243 = vmatprep.subr.mxu0 0.0
      %8244 = vmatpush1.msra.mxu0 0.0
      %8245 = vmatprep.subr.mxu0 0.0
      %8246 = vmatpush1.msra.mxu0 0.0
      %8247 = vmatprep.subr.mxu0 0.0
      %8248 = vmatpush1.msra.mxu0 0.0
      %8249 = vmatprep.subr.mxu0 0.0
      %8250 = vmatpush1.msra.mxu0 0.0
      %8251 = vmatprep.subr.mxu0 0.0
      %8252 = vmatpush1.msra.mxu0 0.0
      %8253 = vmatprep.subr.mxu0 0.0
      %8254 = vmatpush1.msra.mxu0 0.0
      %8255 = vmatprep.subr.mxu0 0.0
      %8256 = vmatpush1.msra.mxu0 0.0
      %8257 = vmatprep.subr.mxu0 0.0
      %8258 = vmatpush1.msra.mxu0 0.0
      %8259 = vmatprep.subr.mxu0 0.0
      %8260 = vmatpush1.msra.mxu0 0.0
      %8261 = vmatprep.subr.mxu0 0.0
      %8262 = vmatpush1.msra.mxu0 0.0
      %8263 = vmatprep.subr.mxu0 0.0
      %8264 = vmatpush1.msra.mxu0 0.0
      %8265 = vmatprep.subr.mxu0 0.0
      %8266 = vmatpush1.msra.mxu0 0.0
      %8267 = vmatprep.subr.mxu0 0.0
      %8268 = vmatpush1.msra.mxu0 0.0
      %8269 = vmatprep.subr.mxu0 0.0
      %8270 = vmatpush1.msra.mxu0 0.0
      %8271 = vmatprep.subr.mxu0 0.0
      %8272 = vmatpush1.msra.mxu0 0.0
      %8273 = vmatprep.subr.mxu0 0.0
      %8274 = vmatpush1.msra.mxu0 0.0
      %8275 = vmatprep.subr.mxu0 0.0
      %8276 = vmatpush1.msra.mxu0 0.0
      %8277 = vmatprep.subr.mxu0 0.0
      %8278 = vmatpush1.msra.mxu0 0.0
      %8279 = vmatprep.subr.mxu0 0.0
      %8280 = vmatpush1.msra.mxu0 0.0
      %8281 = vmatprep.subr.mxu0 0.0
      %8282 = vmatpush1.msra.mxu0 0.0
      %8283 = vmatprep.subr.mxu0 0.0
      %8284 = vmatpush1.msra.mxu0 0.0
      %8285 = vmatprep.subr.mxu0 0.0
      %8286 = vmatpush1.msra.mxu0 0.0
      %8287 = vmatprep.subr.mxu0 0.0
      %8288 = vmatpush1.msra.mxu0 0.0
      %8289 = vmatprep.subr.mxu0 0.0
      %8290 = vmatpush1.msra.mxu0 0.0
      %8291 = vmatprep.subr.mxu0 0.0
      %8292 = vmatpush1.msra.mxu0 0.0
      %8293 = vmatprep.subr.mxu0 0.0
      %8294 = vmatpush1.msra.mxu0 0.0
      %8295 = vmatprep.subr.mxu0 0.0
      %8296 = vmatpush1.msra.mxu0 0.0
      %8297 = vmatprep.subr.mxu0 0.0
      %8298 = vmatpush1.msra.mxu0 0.0
      %8299 = vmatprep.mubr.f32.mxu0 0.0
      %v8300 = vand.u32 %v7681, 4294901760
      %8301 = vmatmul.mubr.f32.gmra.mrb[0].mxu0 %v8300
      %v8302 = vpop.f32.mrb[0].mxu0
      %v8303 = vadd.f32 %v8227, %v8302
      %v8304 = vpop.f32.mrb[0].mxu0
      %8305 = vdwg.mxu0
      %8306 = vmatprep.subr.mxu0 0.0
      %v8307 = vand.u32 %v7687, 4294901760
      %v8308 = vsub.f32 %v7687, %v8307
      %8309 = vmatpush1.msra.mxu0 %v8308
      %8310 = vmatprep.subr.mxu0 0.0
      %8311 = vmatpush1.msra.mxu0 0.0
      %8312 = vmatprep.subr.mxu0 0.0
      %8313 = vmatpush1.msra.mxu0 0.0
      %8314 = vmatprep.subr.mxu0 0.0
      %8315 = vmatpush1.msra.mxu0 0.0
      %8316 = vmatprep.subr.mxu0 0.0
      %8317 = vmatpush1.msra.mxu0 0.0
      %8318 = vmatprep.subr.mxu0 0.0
      %8319 = vmatpush1.msra.mxu0 0.0
      %8320 = vmatprep.subr.mxu0 0.0
      %8321 = vmatpush1.msra.mxu0 0.0
      %8322 = vmatprep.subr.mxu0 0.0
      %8323 = vmatpush1.msra.mxu0 0.0
      %8324 = vmatprep.subr.mxu0 0.0
      %8325 = vmatpush1.msra.mxu0 0.0
      %8326 = vmatprep.subr.mxu0 0.0
      %8327 = vmatpush1.msra.mxu0 0.0
      %8328 = vmatprep.subr.mxu0 0.0
      %8329 = vmatpush1.msra.mxu0 0.0
      %8330 = vmatprep.subr.mxu0 0.0
      %8331 = vmatpush1.msra.mxu0 0.0
      %8332 = vmatprep.subr.mxu0 0.0
      %8333 = vmatpush1.msra.mxu0 0.0
      %8334 = vmatprep.subr.mxu0 0.0
      %8335 = vmatpush1.msra.mxu0 0.0
      %8336 = vmatprep.subr.mxu0 0.0
      %8337 = vmatpush1.msra.mxu0 0.0
      %8338 = vmatprep.subr.mxu0 0.0
      %8339 = vmatpush1.msra.mxu0 0.0
      %8340 = vmatprep.subr.mxu0 0.0
      %8341 = vmatpush1.msra.mxu0 0.0
      %8342 = vmatprep.subr.mxu0 0.0
      %8343 = vmatpush1.msra.mxu0 0.0
      %8344 = vmatprep.subr.mxu0 0.0
      %8345 = vmatpush1.msra.mxu0 0.0
      %8346 = vmatprep.subr.mxu0 0.0
      %8347 = vmatpush1.msra.mxu0 0.0
      %8348 = vmatprep.subr.mxu0 0.0
      %8349 = vmatpush1.msra.mxu0 0.0
      %8350 = vmatprep.subr.mxu0 0.0
      %8351 = vmatpush1.msra.mxu0 0.0
      %8352 = vmatprep.subr.mxu0 0.0
      %8353 = vmatpush1.msra.mxu0 0.0
      %8354 = vmatprep.subr.mxu0 0.0
      %8355 = vmatpush1.msra.mxu0 0.0
      %8356 = vmatprep.subr.mxu0 0.0
      %8357 = vmatpush1.msra.mxu0 0.0
      %8358 = vmatprep.subr.mxu0 0.0
      %8359 = vmatpush1.msra.mxu0 0.0
      %8360 = vmatprep.subr.mxu0 0.0
      %8361 = vmatpush1.msra.mxu0 0.0
      %8362 = vmatprep.subr.mxu0 0.0
      %8363 = vmatpush1.msra.mxu0 0.0
      %8364 = vmatprep.subr.mxu0 0.0
      %8365 = vmatpush1.msra.mxu0 0.0
      %8366 = vmatprep.subr.mxu0 0.0
      %8367 = vmatpush1.msra.mxu0 0.0
      %8368 = vmatprep.subr.mxu0 0.0
      %8369 = vmatpush1.msra.mxu0 0.0
      %8370 = vmatprep.subr.mxu0 0.0
      %8371 = vmatpush1.msra.mxu0 0.0
      %8372 = vmatprep.mubr.f32.mxu0 0.0
      %v8373 = vand.u32 %v7681, 4294901760
      %v8374 = vsub.f32 %v7681, %v8373
      %8375 = vmatmul.mubr.f32.gmra.mrb[0].mxu0 %v8374
      %v8376 = vpop.f32.mrb[0].mxu0
      %v8377 = vadd.f32 %v8303, %v8376
      %v8378 = vpop.f32.mrb[0].mxu0
      %8379 = vdwg.mxu0
      %8380 = vmatprep.subr.mxu0 0.0
      %v8381 = vand.u32 %v7687, 4294901760
      %8382 = vmatpush1.msra.mxu0 %v8381
      %8383 = vmatprep.subr.mxu0 0.0
      %8384 = vmatpush1.msra.mxu0 0.0
      %8385 = vmatprep.subr.mxu0 0.0
      %8386 = vmatpush1.msra.mxu0 0.0
      %8387 = vmatprep.subr.mxu0 0.0
      %8388 = vmatpush1.msra.mxu0 0.0
      %8389 = vmatprep.subr.mxu0 0.0
      %8390 = vmatpush1.msra.mxu0 0.0
      %8391 = vmatprep.subr.mxu0 0.0
      %8392 = vmatpush1.msra.mxu0 0.0
      %8393 = vmatprep.subr.mxu0 0.0
      %8394 = vmatpush1.msra.mxu0 0.0
      %8395 = vmatprep.subr.mxu0 0.0
      %8396 = vmatpush1.msra.mxu0 0.0
      %8397 = vmatprep.subr.mxu0 0.0
      %8398 = vmatpush1.msra.mxu0 0.0
      %8399 = vmatprep.subr.mxu0 0.0
      %8400 = vmatpush1.msra.mxu0 0.0
      %8401 = vmatprep.subr.mxu0 0.0
      %8402 = vmatpush1.msra.mxu0 0.0
      %8403 = vmatprep.subr.mxu0 0.0
      %8404 = vmatpush1.msra.mxu0 0.0
      %8405 = vmatprep.subr.mxu0 0.0
      %8406 = vmatpush1.msra.mxu0 0.0
      %8407 = vmatprep.subr.mxu0 0.0
      %8408 = vmatpush1.msra.mxu0 0.0
      %8409 = vmatprep.subr.mxu0 0.0
      %8410 = vmatpush1.msra.mxu0 0.0
      %8411 = vmatprep.subr.mxu0 0.0
      %8412 = vmatpush1.msra.mxu0 0.0
      %8413 = vmatprep.subr.mxu0 0.0
      %8414 = vmatpush1.msra.mxu0 0.0
      %8415 = vmatprep.subr.mxu0 0.0
      %8416 = vmatpush1.msra.mxu0 0.0
      %8417 = vmatprep.subr.mxu0 0.0
      %8418 = vmatpush1.msra.mxu0 0.0
      %8419 = vmatprep.subr.mxu0 0.0
      %8420 = vmatpush1.msra.mxu0 0.0
      %8421 = vmatprep.subr.mxu0 0.0
      %8422 = vmatpush1.msra.mxu0 0.0
      %8423 = vmatprep.subr.mxu0 0.0
      %8424 = vmatpush1.msra.mxu0 0.0
      %8425 = vmatprep.subr.mxu0 0.0
      %8426 = vmatpush1.msra.mxu0 0.0
      %8427 = vmatprep.subr.mxu0 0.0
      %8428 = vmatpush1.msra.mxu0 0.0
      %8429 = vmatprep.subr.mxu0 0.0
      %8430 = vmatpush1.msra.mxu0 0.0
      %8431 = vmatprep.subr.mxu0 0.0
      %8432 = vmatpush1.msra.mxu0 0.0
      %8433 = vmatprep.subr.mxu0 0.0
      %8434 = vmatpush1.msra.mxu0 0.0
      %8435 = vmatprep.subr.mxu0 0.0
      %8436 = vmatpush1.msra.mxu0 0.0
      %8437 = vmatprep.subr.mxu0 0.0
      %8438 = vmatpush1.msra.mxu0 0.0
      %8439 = vmatprep.subr.mxu0 0.0
      %8440 = vmatpush1.msra.mxu0 0.0
      %8441 = vmatprep.subr.mxu0 0.0
      %8442 = vmatpush1.msra.mxu0 0.0
      %8443 = vmatprep.subr.mxu0 0.0
      %8444 = vmatpush1.msra.mxu0 0.0
      %8445 = vmatprep.mubr.f32.mxu0 0.0
      %v8446 = vand.u32 %v7681, 4294901760
      %v8447 = vsub.f32 %v7681, %v8446
      %v8448 = vand.u32 %v8447, 4294901760
      %8449 = vmatmul.mubr.f32.gmra.mrb[0].mxu0 %v8448
      %v8450 = vpop.f32.mrb[0].mxu0
      %v8451 = vadd.f32 %v8377, %v8450
      %v8452 = vpop.f32.mrb[0].mxu0
      %8453 = vdwg.mxu0
      %8454 = vmatprep.subr.mxu0 0.0
      %v8455 = vand.u32 %v7687, 4294901760
      %v8456 = vsub.f32 %v7687, %v8455
      %v8457 = vand.u32 %v8456, 4294901760
      %8458 = vmatpush1.msra.mxu0 %v8457
      %8459 = vmatprep.subr.mxu0 0.0
      %8460 = vmatpush1.msra.mxu0 0.0
      %8461 = vmatprep.subr.mxu0 0.0
      %8462 = vmatpush1.msra.mxu0 0.0
      %8463 = vmatprep.subr.mxu0 0.0
      %8464 = vmatpush1.msra.mxu0 0.0
      %8465 = vmatprep.subr.mxu0 0.0
      %8466 = vmatpush1.msra.mxu0 0.0
      %8467 = vmatprep.subr.mxu0 0.0
      %8468 = vmatpush1.msra.mxu0 0.0
      %8469 = vmatprep.subr.mxu0 0.0
      %8470 = vmatpush1.msra.mxu0 0.0
      %8471 = vmatprep.subr.mxu0 0.0
      %8472 = vmatpush1.msra.mxu0 0.0
      %8473 = vmatprep.subr.mxu0 0.0
      %8474 = vmatpush1.msra.mxu0 0.0
      %8475 = vmatprep.subr.mxu0 0.0
      %8476 = vmatpush1.msra.mxu0 0.0
      %8477 = vmatprep.subr.mxu0 0.0
      %8478 = vmatpush1.msra.mxu0 0.0
      %8479 = vmatprep.subr.mxu0 0.0
      %8480 = vmatpush1.msra.mxu0 0.0
      %8481 = vmatprep.subr.mxu0 0.0
      %8482 = vmatpush1.msra.mxu0 0.0
      %8483 = vmatprep.subr.mxu0 0.0
      %8484 = vmatpush1.msra.mxu0 0.0
      %8485 = vmatprep.subr.mxu0 0.0
      %8486 = vmatpush1.msra.mxu0 0.0
      %8487 = vmatprep.subr.mxu0 0.0
      %8488 = vmatpush1.msra.mxu0 0.0
      %8489 = vmatprep.subr.mxu0 0.0
      %8490 = vmatpush1.msra.mxu0 0.0
      %8491 = vmatprep.subr.mxu0 0.0
      %8492 = vmatpush1.msra.mxu0 0.0
      %8493 = vmatprep.subr.mxu0 0.0
      %8494 = vmatpush1.msra.mxu0 0.0
      %8495 = vmatprep.subr.mxu0 0.0
      %8496 = vmatpush1.msra.mxu0 0.0
      %8497 = vmatprep.subr.mxu0 0.0
      %8498 = vmatpush1.msra.mxu0 0.0
      %8499 = vmatprep.subr.mxu0 0.0
      %8500 = vmatpush1.msra.mxu0 0.0
      %8501 = vmatprep.subr.mxu0 0.0
      %8502 = vmatpush1.msra.mxu0 0.0
      %8503 = vmatprep.subr.mxu0 0.0
      %8504 = vmatpush1.msra.mxu0 0.0
      %8505 = vmatprep.subr.mxu0 0.0
      %8506 = vmatpush1.msra.mxu0 0.0
      %8507 = vmatprep.subr.mxu0 0.0
      %8508 = vmatpush1.msra.mxu0 0.0
      %8509 = vmatprep.subr.mxu0 0.0
      %8510 = vmatpush1.msra.mxu0 0.0
      %8511 = vmatprep.subr.mxu0 0.0
      %8512 = vmatpush1.msra.mxu0 0.0
      %8513 = vmatprep.subr.mxu0 0.0
      %8514 = vmatpush1.msra.mxu0 0.0
      %8515 = vmatprep.subr.mxu0 0.0
      %8516 = vmatpush1.msra.mxu0 0.0
      %8517 = vmatprep.subr.mxu0 0.0
      %8518 = vmatpush1.msra.mxu0 0.0
      %8519 = vmatprep.subr.mxu0 0.0
      %8520 = vmatpush1.msra.mxu0 0.0
      %8521 = vmatprep.mubr.f32.mxu0 0.0
      %v8522 = vand.u32 %v7681, 4294901760
      %8523 = vmatmul.mubr.f32.gmra.mrb[0].mxu0 %v8522
      %v8524 = vpop.f32.mrb[0].mxu0
      %v8525 = vadd.f32 %v8451, %v8524
      %v8526 = vpop.f32.mrb[0].mxu0
      %8527 = vdwg.mxu0
      %8528 = vmatprep.subr.mxu0 0.0
      %v8529 = vand.u32 %v7687, 4294901760
      %8530 = vmatpush1.msra.mxu0 %v8529
      %8531 = vmatprep.subr.mxu0 0.0
      %8532 = vmatpush1.msra.mxu0 0.0
      %8533 = vmatprep.subr.mxu0 0.0
      %8534 = vmatpush1.msra.mxu0 0.0
      %8535 = vmatprep.subr.mxu0 0.0
      %8536 = vmatpush1.msra.mxu0 0.0
      %8537 = vmatprep.subr.mxu0 0.0
      %8538 = vmatpush1.msra.mxu0 0.0
      %8539 = vmatprep.subr.mxu0 0.0
      %8540 = vmatpush1.msra.mxu0 0.0
      %8541 = vmatprep.subr.mxu0 0.0
      %8542 = vmatpush1.msra.mxu0 0.0
      %8543 = vmatprep.subr.mxu0 0.0
      %8544 = vmatpush1.msra.mxu0 0.0
      %8545 = vmatprep.subr.mxu0 0.0
      %8546 = vmatpush1.msra.mxu0 0.0
      %8547 = vmatprep.subr.mxu0 0.0
      %8548 = vmatpush1.msra.mxu0 0.0
      %8549 = vmatprep.subr.mxu0 0.0
      %8550 = vmatpush1.msra.mxu0 0.0
      %8551 = vmatprep.subr.mxu0 0.0
      %8552 = vmatpush1.msra.mxu0 0.0
      %8553 = vmatprep.subr.mxu0 0.0
      %8554 = vmatpush1.msra.mxu0 0.0
      %8555 = vmatprep.subr.mxu0 0.0
      %8556 = vmatpush1.msra.mxu0 0.0
      %8557 = vmatprep.subr.mxu0 0.0
      %8558 = vmatpush1.msra.mxu0 0.0
      %8559 = vmatprep.subr.mxu0 0.0
      %8560 = vmatpush1.msra.mxu0 0.0
      %8561 = vmatprep.subr.mxu0 0.0
      %8562 = vmatpush1.msra.mxu0 0.0
      %8563 = vmatprep.subr.mxu0 0.0
      %8564 = vmatpush1.msra.mxu0 0.0
      %8565 = vmatprep.subr.mxu0 0.0
      %8566 = vmatpush1.msra.mxu0 0.0
      %8567 = vmatprep.subr.mxu0 0.0
      %8568 = vmatpush1.msra.mxu0 0.0
      %8569 = vmatprep.subr.mxu0 0.0
      %8570 = vmatpush1.msra.mxu0 0.0
      %8571 = vmatprep.subr.mxu0 0.0
      %8572 = vmatpush1.msra.mxu0 0.0
      %8573 = vmatprep.subr.mxu0 0.0
      %8574 = vmatpush1.msra.mxu0 0.0
      %8575 = vmatprep.subr.mxu0 0.0
      %8576 = vmatpush1.msra.mxu0 0.0
      %8577 = vmatprep.subr.mxu0 0.0
      %8578 = vmatpush1.msra.mxu0 0.0
      %8579 = vmatprep.subr.mxu0 0.0
      %8580 = vmatpush1.msra.mxu0 0.0
      %8581 = vmatprep.subr.mxu0 0.0
      %8582 = vmatpush1.msra.mxu0 0.0
      %8583 = vmatprep.subr.mxu0 0.0
      %8584 = vmatpush1.msra.mxu0 0.0
      %8585 = vmatprep.subr.mxu0 0.0
      %8586 = vmatpush1.msra.mxu0 0.0
      %8587 = vmatprep.subr.mxu0 0.0
      %8588 = vmatpush1.msra.mxu0 0.0
      %8589 = vmatprep.subr.mxu0 0.0
      %8590 = vmatpush1.msra.mxu0 0.0
      %8591 = vmatprep.subr.mxu0 0.0
      %8592 = vmatpush1.msra.mxu0 0.0
      %8593 = vmatprep.mubr.f32.mxu0 0.0
      %v8594 = vand.u32 %v7681, 4294901760
      %8595 = vmatmul.mubr.f32.gmra.mrb[0].mxu0 %v8594
      %v8596 = vpop.f32.mrb[0].mxu0
      %v8597 = vadd.f32 %v8525, %v8596
      %v8598 = vpop.f32.mrb[0].mxu0
      %8599 = vdwg.mxu0
      %v8600 = vadd.f32 %v7661, %v8150
      %v8601 = vadd.f32 %v7662, %v8152
      %v8602 = vadd.f32 %v7663, %v8597
      %v8603 = vld [vmem:[%s1] sm:$0xff]
      %8605 = vset.pattern.permute.xlu0 0
      %8606 = vperm.xlu0 %8605, %v8603
      %v8607 = vpop.permute.xlu0 %8606
      %v8609 = vadd.f32 %v8600, %v8607
      %v8610 = vadd.f32 %v8601, %v8607
      %v8611 = vadd.f32 %v8602, %v8607
      %v8612 = vmul.f32 %v8609, 0.01
      %v8613 = vmul.f32 %v8610, 0.01
      %v8614 = vmul.f32 %v8611, 0.01
      %v8615 = vmax.f32 %v8609, %v8612
      %v8616 = vmax.f32 %v8610, %v8613
      %v8617 = vmax.f32 %v8611, %v8614
      %8618 = vst [vmem:[%s170] sm:$0xff] %v8615
      %8619 = vst [vmem:[%s170 + $0x8] sm:$0xff] %v8616
      %vm8620 = vcmask 261120
      %8621 = vst.msk [vmem:[%s170 + $0x10] sm:$0xff] %vm8620, %v8617
      %p8622 = scmp.lt.s32.totalorder %s14, 1
      %s8623 = scalar_select %p8622, %s14, 1
      %s8624 = smul.addr %s8623, 3
      %s8625 = smul.addr %s8624, 8
      %s8626 = scalar_lea.vmem %s3, %s8625
      // Predicated region
      $region33: #{conv_layer_2d.1} parent=31 // pred_check
        %p8627 = pneg %p100
      $region34: #{conv_layer_2d.1} parent=31 // pred_check_branch
        %8629 = sbr.rel (%p8627) target = $region36
      $region35: #{conv_layer_2d.1} parent=31 // pred_region
        _
      $region36: #{conv_layer_2d.1} parent=31 // pred_fallthru
        _
    $region32: #{conv_layer_2d.1} parent=5 // pred_fallthru
      _
    %p8630 = scmp.le.s32.totalorder 2, %s9
    // Predicated region
    $region37: #{conv_layer_2d.1} parent=5 // pred_check
      %p8631 = pneg %p8630
    $region38: #{conv_layer_2d.1} parent=5 // pred_check_branch
      %8633 = sbr.rel (%p8631) target = $region40
    $region39: #{conv_layer_2d.1} parent=5 // pred_region
      %s8634 = ssub.s32 %s9, 2
      // Predicated region
      $region41: #{conv_layer_2d.1} parent=39 // pred_check
        %p8635 = pneg %p106
      $region42: #{conv_layer_2d.1} parent=39 // pred_check_branch
        %8637 = sbr.rel (%p8635) target = $region44
      $region43: #{conv_layer_2d.1} parent=39 // pred_region
        %p8638 = scmp.lt.s32.totalorder %s15, 1
        %s8639 = scalar_select %p8638, %s15, 1
        %s8640 = smul.addr %s8639, 3
        %s8641 = smul.addr %s8640, 8
        %s8642 = scalar_lea.vmem %s3, %s8641
      $region44: #{conv_layer_2d.1} parent=39 // pred_fallthru
        _
    $region40: #{conv_layer_2d.1} parent=5 // pred_fallthru
      _
  $region6: #{conv_layer_2d.1} parent=0 // loop_footer
    %s13 = sadd.s32 1, %s9
  $region7: #{conv_layer_2d.1} parent=0 // loop_footer_branch
    %8 = sbr.rel target = $region3
  $region8: #{conv_layer_2d.1} parent=0 // loop_exit
    _

</llo_original>
